<compile_context>
chip_gen: v6e
topology: v6e:2x2x1
jax: 0.10.0
libtpu: 0.0.40
codegen_flags: <defaults>
</compile_context>

<pallas_src>
import functools

import jax
import jax.numpy as jnp
from jax import lax
from jax.experimental import pallas as pl
from jax.experimental.pallas import tpu as pltpu

VMEM = pl.BlockSpec(memory_space=pltpu.MemorySpace.VMEM)
SMEM = pl.BlockSpec(memory_space=pltpu.MemorySpace.SMEM)


# --------------------------------------------------------------------------
# Parameter-side helpers (plain-JAX glue in the wrapper).
# --------------------------------------------------------------------------
def _conv_band_matrix_t(w3, T, d):
    """(T,T) matrix Kt s.t. (Kt @ xT)[t] = w0*x[t-d] + w1*x[t] + w2*x[t+d] (zero pad)."""
    t = jnp.arange(T)[:, None]
    s = jnp.arange(T)[None, :]
    kt = (w3[0] * (s == t - d) + w3[1] * (s == t) + w3[2] * (s == t + d))
    return kt.astype(jnp.float32)


def gcn_norm_matrix(adj):
    """Normalized propagation matrix matching GCNConv on duplicated adj.nonzero() edges.

    Each edge appears twice -> off-diagonal weight 2; add_remaining_self_loops adds a
    weight-1 self loop only where the diagonal of adj is zero.
    """
    self_loop = jnp.where(jnp.diag(adj) > 0, 0.0, 1.0)
    ahat = 2.0 * adj + jnp.diag(self_loop)          # ahat[r, c]: weight of edge r -> c
    deg = jnp.sum(ahat, axis=0)                     # in-degree at the target node
    dinv = lax.rsqrt(deg)
    return dinv[:, None] * ahat.T * dinv[None, :]   # M[i, j] = d_i^-.5 ahat[j, i] d_j^-.5


# --------------------------------------------------------------------------
# The single fused kernel.
# --------------------------------------------------------------------------
def _we_stgcn_kernel(tcb_ref,                       # SMEM (3,)  temporal conv biases
                     h0_ref,                        # (T, N)    time-major TCN input
                     k_ref,                         # (3, T, T) banded conv matrices (transposed)
                     mt_ref,                        # (N, N)    M^T (GCN normalization)
                     gcwt_ref,                      # (T, T)    GCN weight, transposed
                     gcb_ref,                       # (T, 1)    GCN bias (column)
                     emb_ref,                       # (T, 2T)   gathered weather|week embeddings
                     fw_ref,                        # (2T, N)   feature Linear weight^T
                     fb_ref,                        # (1, N)
                     wi0_ref,                       # (2N, 3H)  GRU layer-0 input weights (r|z|n)
                     wi12_ref,                      # (2, H, 3H) GRU layers 1,2 input weights
                     wh_ref,                        # (3, H, 3H) GRU hidden weights
                     bx_ref,                        # (3, 1, 3H) combined input-side biases
                     bhn_ref,                       # (3, 1, H)  hidden bias of the n-gate
                     gfw_ref,                       # (H, T)    GRU fc weight^T
                     gfb_ref,                       # (1, T)
                     hw1_ref,                       # (T, 128)  head fc1 weight^T
                     hb1_ref,                       # (1, 128)
                     hg_ref,                        # (1, 128)  BN gamma
                     hbeta_ref,                     # (1, 128)  BN beta
                     hw2_ref,                       # (128, NP) head fc2 weight^T (lane padded)
                     hb2_ref,                       # (1, NP)   head fc2 bias   (-1e30 padding)
                     out_ref,                       # (T, NP)   output
                     seq_ref,                       # (T, H)    VMEM scratch: GRU layer output
                     *, T, N, H, eps):
    f32 = jnp.float32

    # ---- TemporalConvLayer x3: out = tanh(dilated conv1d(x)) + x (dropout == identity)
    # TODO(synk): nn.Dropout(0.2) is stochastic in training mode; treated as identity here.
    h = h0_ref[...]                                                     # (T, N)
    for li in range(3):
        conv = jnp.dot(k_ref[li], h, preferred_element_type=f32) + tcb_ref[li]
        h = jnp.tanh(conv) + h

    # ---- GCNLayer (already transposed, as GCNLayer returns h.T):
    #      xg = tanh( W^T @ h^T @ M^T + b )  -> (T, N), only standard matmuls.
    hw_t = jnp.dot(gcwt_ref[...], h, preferred_element_type=f32)        # (T, N) == (h W)^T
    xg = jnp.tanh(jnp.dot(hw_t, mt_ref[...], preferred_element_type=f32)
                  + gcb_ref[...])                                       # (T, N)

    # ---- FeatureComponent: Linear(concat(weather_emb, week_emb))
    bfeat = jnp.dot(emb_ref[...], fw_ref[...], preferred_element_type=f32) + fb_ref[...]

    # ---- ThreeLayerGRU (PyTorch gate order r, z, n).  The concat of
    #      combined = [xg | bfeat] is folded into two matmuls against the split
    #      halves of the stacked layer-0 input weights (same reduction, no lane concat).
    wi0 = wi0_ref[...]
    gx = (jnp.dot(xg, wi0[0:N, :], preferred_element_type=f32)
          + jnp.dot(bfeat, wi0[N:2 * N, :], preferred_element_type=f32)
          + bx_ref[0])                                                  # (T, 3H)

    for layer in range(3):
        if layer > 0:
            # previous layer's full output sequence is resident in seq_ref
            gx = (jnp.dot(seq_ref[...], wi12_ref[layer - 1], preferred_element_type=f32)
                  + bx_ref[layer])                                      # (T, 3H)
        wh = wh_ref[layer]                    # (H, 3H)  hoisted out of the recurrence
        bhn = bhn_ref[layer]                  # (1, H)
        gxr, gxz, gxn = gx[:, 0:H], gx[:, H:2 * H], gx[:, 2 * H:]       # split once

        hstate = jnp.zeros((1, H), f32)
        for t in range(T):                    # fully unrolled recurrence (T static, small)
            gh = jnp.dot(hstate, wh, preferred_element_type=f32)        # (1, 3H)
            r = jax.nn.sigmoid(gxr[t:t + 1, :] + gh[:, 0:H])
            z = jax.nn.sigmoid(gxz[t:t + 1, :] + gh[:, H:2 * H])
            n = jnp.tanh(gxn[t:t + 1, :] + r * (gh[:, 2 * H:] + bhn))
            hstate = (1.0 - z) * n + z * hstate
            # one static-index row store per step (cheap), instead of carrying a
            # (T,H) vreg value through the whole unrolled loop.
            seq_ref[pl.ds(t, 1), :] = hstate

    gru_out = (jnp.dot(seq_ref[...], gfw_ref[...], preferred_element_type=f32)
               + gfb_ref[...])                                          # (T, T)

    # ---- AttentionalPoolingMechanism: R is (T,1,1), so exp(-R)/sum over the size-1
    #      axis is identically 1 and Con == GRUoutput exactly -> mathematical no-op.
    pooled = gru_out

    # ---- CustomModel head: fc1 -> relu -> BatchNorm (training batch stats) -> fc2 -> softmax(dim=1)
    h1 = jnp.dot(pooled, hw1_ref[...], preferred_element_type=f32) + hb1_ref[...]
    h1 = jnp.maximum(h1, 0.0)
    mean = jnp.mean(h1, axis=0, keepdims=True)
    cent = h1 - mean
    var = jnp.mean(cent * cent, axis=0, keepdims=True)                  # biased var (training BN)
    hbn = cent * lax.rsqrt(var + eps) * hg_ref[...] + hbeta_ref[...]
    logits = jnp.dot(hbn, hw2_ref[...], preferred_element_type=f32) + hb2_ref[...]   # (T, NP)
    m = jnp.max(logits, axis=1, keepdims=True)
    e = jnp.exp(logits - m)                   # padded classes: exp(-1e30 - m) == 0 exactly
    out_ref[...] = e * pl.reciprocal(jnp.sum(e, axis=1, keepdims=True), approx=True)


# --------------------------------------------------------------------------
# Full forward (mirrors WE_STGCN.forward, including the raw `reshape`s).
# --------------------------------------------------------------------------
def we_stgcn_forward(p, x, adj, weather, week):
    T, N = x.shape
    H = T
    NP = -(-N // 128) * 128                    # lane-dense padded class dim

    # x.squeeze(0) is a no-op; x.reshape(N, 1, T) is the raw row-major reshape of the
    # PyTorch code (mixes time/node indices); C == 1 is squeezed.  The kernel runs the
    # temporal stage time-major, so transpose once here (cheap XLA glue, outside kernel).
    h0_t = jnp.reshape(x, (N, T)).T.astype(jnp.float32)                 # (T, N)

    # Dilated k=3 Conv1d as banded (T,T) matrices applied on the left (parameter-derived).
    kmats_t = jnp.stack([_conv_band_matrix_t(p["tcn1_w"], T, 1),
                         _conv_band_matrix_t(p["tcn2_w"], T, 2),
                         _conv_band_matrix_t(p["tcn3_w"], T, 4)])
    tc_bias = jnp.concatenate([p["tcn1_b"], p["tcn2_b"], p["tcn3_b"]]).astype(jnp.float32)

    m_t = gcn_norm_matrix(adj).T                                        # (N, N)
    gcn_wt = p["gcn_w"].T                                               # (T, T)

    emb_cat = jnp.concatenate([jnp.take(p["emb_weather"], weather, axis=0),
                               jnp.take(p["emb_week"], week, axis=0)], axis=-1)  # (T, 2T)

    # Pad fc2 so the kernel's single HBM store is a full 128-lane unmasked store;
    # -1e30 bias on padded classes keeps the softmax over the real N classes exact.
    w2p = jnp.zeros((128, NP), jnp.float32).at[:, :N].set(p["head_w2T"])
    b2p = jnp.full((1, NP), -1e30, jnp.float32).at[:, :N].set(p["head_b2"])

    fused = pl.pallas_call(
        functools.partial(_we_stgcn_kernel, T=T, N=N, H=H, eps=1e-5),
        out_shape=jax.ShapeDtypeStruct((T, NP), jnp.float32),
        in_specs=[SMEM] + [VMEM] * 21,
        out_specs=VMEM,
        scratch_shapes=[pltpu.VMEM((T, H), jnp.float32)],
        compiler_params=pltpu.CompilerParams(vmem_limit_bytes=32 * 1024 * 1024),
    )
    out = fused(tc_bias, h0_t, kmats_t, m_t, gcn_wt, p["gcn_b"], emb_cat,
                p["feat_wT"], p["feat_b"],
                p["gru_wi0"], p["gru_wi12"], p["gru_wh"], p["gru_bx"], p["gru_bhn"],
                p["gru_fc_wT"], p["gru_fc_b"],
                p["head_w1T"], p["head_b1"], p["head_gamma"], p["head_beta"],
                w2p, b2p)
    return out[:, :N][None, :, :]                                        # (1, T, N)


# --------------------------------------------------------------------------
# Deterministic parameter initialization (shapes follow the module __init__).
# --------------------------------------------------------------------------
def init_params(key, T, N):
    H = T
    keys = iter(jax.random.split(key, 64))

    def nrm(shape, scale=0.1):
        return scale * jax.random.normal(next(keys), shape, dtype=jnp.float32)

    p = {}
    for name in ("tcn1", "tcn2", "tcn3"):
        p[f"{name}_w"] = nrm((3,), 0.5)              # Conv1d(1,1,3) weight
        p[f"{name}_b"] = nrm((1,), 0.1)              # Conv1d bias
    p["gcn_w"] = nrm((T, T))                         # GCNConv lin.weight^T (right-multiply form)
    p["gcn_b"] = nrm((T, 1))                         # GCNConv bias (stored as a column)
    p["emb_weather"] = nrm((T, T), 0.5)              # Embedding(T, T)
    p["emb_week"] = nrm((T, T), 0.5)
    p["feat_wT"] = nrm((2 * T, N))                   # Linear(2T, N)^T
    p["feat_b"] = nrm((1, N))

    dims = [2 * N, H, H]
    wi_list, wh_list, bx_list, bhn_list = [], [], [], []
    for layer in range(3):
        D = dims[layer]
        w_ih, w_hh = nrm((3 * H, D)), nrm((3 * H, H))
        b_ih, b_hh = nrm((3 * H,)), nrm((3 * H,))
        wi_list.append(w_ih.T)                                   # (D, 3H), gates r|z|n
        wh_list.append(w_hh.T)                                   # (H, 3H)
        bx_list.append(jnp.concatenate([b_ih[:2 * H] + b_hh[:2 * H],
                                        b_ih[2 * H:]]).reshape(1, 3 * H))
        bhn_list.append(b_hh[2 * H:].reshape(1, H))
    p["gru_wi0"] = wi_list[0]                        # (2N, 3H)
    p["gru_wi12"] = jnp.stack(wi_list[1:])           # (2, H, 3H)
    p["gru_wh"] = jnp.stack(wh_list)                 # (3, H, 3H)
    p["gru_bx"] = jnp.stack(bx_list)                 # (3, 1, 3H)
    p["gru_bhn"] = jnp.stack(bhn_list)               # (3, 1, H)

    p["gru_fc_wT"] = nrm((H, T))                     # Linear(H, T)^T
    p["gru_fc_b"] = nrm((1, T))
    # AttentionalPoolingMechanism params exist in the module but are mathematically
    # dead (softmax over a singleton axis); kept only for parameter parity, unused.
    p["ap_wT"] = nrm((2 * N, T))
    p["ap_b"] = nrm((1, T))
    p["head_w1T"] = nrm((T, 128))                    # fc1
    p["head_b1"] = nrm((1, 128))
    p["head_gamma"] = jnp.ones((1, 128), jnp.float32)   # BatchNorm2d affine
    p["head_beta"] = jnp.zeros((1, 128), jnp.float32)
    p["head_w2T"] = nrm((128, N))                    # fc2
    p["head_b2"] = nrm((1, N))
    return p


if __name__ == "__main__":
    # Small shapes consistent with the module: num_timesteps_input == num_timesteps_output == T
    T, N = 16, 8
    key = jax.random.PRNGKey(0)
    kx, kadj, kwe, kwk, kp = jax.random.split(key, 5)
    x = jax.random.uniform(kx, (T, N), dtype=jnp.float32)               # torch.rand(T, N)
    adj = jax.random.randint(kadj, (N, N), 0, 2).astype(jnp.float32)    # 0/1 adjacency
    weather = jax.random.randint(kwe, (T,), 1, 4, dtype=jnp.int32)      # ints in [1, 4)
    week = jax.random.randint(kwk, (T,), 1, 8, dtype=jnp.int32)         # ints in [1, 8)

    params = init_params(kp, T, N)
    out = jax.jit(we_stgcn_forward)(params, x, adj, weather, week)
    out = jax.block_until_ready(out)
    assert out.shape == (1, T, N), out.shape
    assert bool(jnp.all(jnp.isfinite(out)))
    print("KERNEL_OK")
</pallas_src>

<mosaic_0001>
module attributes {stable_mosaic.version = 11 : i64} {
  func.func @_we_stgcn_kernel(%arg0: memref<3xf32, #tpu.memory_space<smem>>, %arg1: memref<16x8xf32, #tpu.memory_space<vmem>>, %arg2: memref<3x16x16xf32, #tpu.memory_space<vmem>>, %arg3: memref<8x8xf32, #tpu.memory_space<vmem>>, %arg4: memref<16x16xf32, #tpu.memory_space<vmem>>, %arg5: memref<16x1xf32, #tpu.memory_space<vmem>>, %arg6: memref<16x32xf32, #tpu.memory_space<vmem>>, %arg7: memref<32x8xf32, #tpu.memory_space<vmem>>, %arg8: memref<1x8xf32, #tpu.memory_space<vmem>>, %arg9: memref<16x48xf32, #tpu.memory_space<vmem>>, %arg10: memref<2x16x48xf32, #tpu.memory_space<vmem>>, %arg11: memref<3x16x48xf32, #tpu.memory_space<vmem>>, %arg12: memref<3x1x48xf32, #tpu.memory_space<vmem>>, %arg13: memref<3x1x16xf32, #tpu.memory_space<vmem>>, %arg14: memref<16x16xf32, #tpu.memory_space<vmem>>, %arg15: memref<1x16xf32, #tpu.memory_space<vmem>>, %arg16: memref<16x128xf32, #tpu.memory_space<vmem>>, %arg17: memref<1x128xf32, #tpu.memory_space<vmem>>, %arg18: memref<1x128xf32, #tpu.memory_space<vmem>>, %arg19: memref<1x128xf32, #tpu.memory_space<vmem>>, %arg20: memref<128x128xf32, #tpu.memory_space<vmem>>, %arg21: memref<1x128xf32, #tpu.memory_space<vmem>>, %arg22: memref<16x128xf32, #tpu.memory_space<vmem>>, %arg23: memref<16x16xf32, #tpu.memory_space<vmem>>) attributes {dimension_semantics = [], scalar_prefetch = 0 : i64, scratch_operands = 1 : i64, tpu.core_type = #tpu.core_type<tc>} {
    %c0 = arith.constant 0 : index
    %c0_0 = arith.constant 0 : index
    %0 = vector.load %arg1[%c0, %c0_0] : memref<16x8xf32, #tpu.memory_space<vmem>>, vector<16x8xf32>
    %c0_1 = arith.constant 0 : index
    %c0_2 = arith.constant 0 : index
    %c0_3 = arith.constant 0 : index
    %1 = vector.load %arg2[%c0_1, %c0_2, %c0_3] : memref<3x16x16xf32, #tpu.memory_space<vmem>>, vector<1x16x16xf32>
    %2 = vector.shape_cast %1 : vector<1x16x16xf32> to vector<16x16xf32>
    %cst = arith.constant dense<0.000000e+00> : vector<16x8xf32>
    %3 = tpu.matmul %2, %0, %cst {dimension_numbers = #tpu.dot_dimension_numbers<[1], [0], [0], [1], [0, 0, 1, 1], [], []>} : vector<16x16xf32>, vector<16x8xf32>, vector<16x8xf32> -> vector<16x8xf32>
    %c0_4 = arith.constant 0 : index
    %4 = memref.load %arg0[%c0_4] : memref<3xf32, #tpu.memory_space<smem>>
    %5 = vector.broadcast %4 : f32 to vector<16x8xf32>
    %6 = arith.addf %3, %5 : vector<16x8xf32>
    %7 = math.tanh %6 : vector<16x8xf32>
    %8 = arith.addf %7, %0 : vector<16x8xf32>
    %c1 = arith.constant 1 : index
    %c0_5 = arith.constant 0 : index
    %c0_6 = arith.constant 0 : index
    %9 = vector.load %arg2[%c1, %c0_5, %c0_6] : memref<3x16x16xf32, #tpu.memory_space<vmem>>, vector<1x16x16xf32>
    %10 = vector.shape_cast %9 : vector<1x16x16xf32> to vector<16x16xf32>
    %cst_7 = arith.constant dense<0.000000e+00> : vector<16x8xf32>
    %11 = tpu.matmul %10, %8, %cst_7 {dimension_numbers = #tpu.dot_dimension_numbers<[1], [0], [0], [1], [0, 0, 1, 1], [], []>} : vector<16x16xf32>, vector<16x8xf32>, vector<16x8xf32> -> vector<16x8xf32>
    %c1_8 = arith.constant 1 : index
    %12 = memref.load %arg0[%c1_8] : memref<3xf32, #tpu.memory_space<smem>>
    %13 = vector.broadcast %12 : f32 to vector<16x8xf32>
    %14 = arith.addf %11, %13 : vector<16x8xf32>
    %15 = math.tanh %14 : vector<16x8xf32>
    %16 = arith.addf %15, %8 : vector<16x8xf32>
    %c2 = arith.constant 2 : index
    %c0_9 = arith.constant 0 : index
    %c0_10 = arith.constant 0 : index
    %17 = vector.load %arg2[%c2, %c0_9, %c0_10] : memref<3x16x16xf32, #tpu.memory_space<vmem>>, vector<1x16x16xf32>
    %18 = vector.shape_cast %17 : vector<1x16x16xf32> to vector<16x16xf32>
    %cst_11 = arith.constant dense<0.000000e+00> : vector<16x8xf32>
    %19 = tpu.matmul %18, %16, %cst_11 {dimension_numbers = #tpu.dot_dimension_numbers<[1], [0], [0], [1], [0, 0, 1, 1], [], []>} : vector<16x16xf32>, vector<16x8xf32>, vector<16x8xf32> -> vector<16x8xf32>
    %c2_12 = arith.constant 2 : index
    %20 = memref.load %arg0[%c2_12] : memref<3xf32, #tpu.memory_space<smem>>
    %21 = vector.broadcast %20 : f32 to vector<16x8xf32>
    %22 = arith.addf %19, %21 : vector<16x8xf32>
    %23 = math.tanh %22 : vector<16x8xf32>
    %24 = arith.addf %23, %16 : vector<16x8xf32>
    %c0_13 = arith.constant 0 : index
    %c0_14 = arith.constant 0 : index
    %25 = vector.load %arg4[%c0_13, %c0_14] : memref<16x16xf32, #tpu.memory_space<vmem>>, vector<16x16xf32>
    %cst_15 = arith.constant dense<0.000000e+00> : vector<16x8xf32>
    %26 = tpu.matmul %25, %24, %cst_15 {dimension_numbers = #tpu.dot_dimension_numbers<[1], [0], [0], [1], [0, 0, 1, 1], [], []>} : vector<16x16xf32>, vector<16x8xf32>, vector<16x8xf32> -> vector<16x8xf32>
    %c0_16 = arith.constant 0 : index
    %c0_17 = arith.constant 0 : index
    %27 = vector.load %arg3[%c0_16, %c0_17] : memref<8x8xf32, #tpu.memory_space<vmem>>, vector<8x8xf32>
    %cst_18 = arith.constant dense<0.000000e+00> : vector<16x8xf32>
    %28 = tpu.matmul %26, %27, %cst_18 {dimension_numbers = #tpu.dot_dimension_numbers<[1], [0], [0], [1], [0, 0, 1, 1], [], []>} : vector<16x8xf32>, vector<8x8xf32>, vector<16x8xf32> -> vector<16x8xf32>
    %c0_19 = arith.constant 0 : index
    %c0_20 = arith.constant 0 : index
    %29 = vector.load %arg5[%c0_19, %c0_20] : memref<16x1xf32, #tpu.memory_space<vmem>>, vector<16x1xf32>
    %30 = vector.broadcast %29 : vector<16x1xf32> to vector<16x8xf32>
    %31 = arith.addf %28, %30 : vector<16x8xf32>
    %32 = math.tanh %31 : vector<16x8xf32>
    %c0_21 = arith.constant 0 : index
    %c0_22 = arith.constant 0 : index
    %33 = vector.load %arg6[%c0_21, %c0_22] : memref<16x32xf32, #tpu.memory_space<vmem>>, vector<16x32xf32>
    %c0_23 = arith.constant 0 : index
    %c0_24 = arith.constant 0 : index
    %34 = vector.load %arg7[%c0_23, %c0_24] : memref<32x8xf32, #tpu.memory_space<vmem>>, vector<32x8xf32>
    %cst_25 = arith.constant dense<0.000000e+00> : vector<16x8xf32>
    %35 = tpu.matmul %33, %34, %cst_25 {dimension_numbers = #tpu.dot_dimension_numbers<[1], [0], [0], [1], [0, 0, 1, 1], [], []>} : vector<16x32xf32>, vector<32x8xf32>, vector<16x8xf32> -> vector<16x8xf32>
    %c0_26 = arith.constant 0 : index
    %c0_27 = arith.constant 0 : index
    %36 = vector.load %arg8[%c0_26, %c0_27] : memref<1x8xf32, #tpu.memory_space<vmem>>, vector<1x8xf32>
    %37 = vector.broadcast %36 : vector<1x8xf32> to vector<16x8xf32>
    %38 = arith.addf %35, %37 : vector<16x8xf32>
    %c0_28 = arith.constant 0 : index
    %c0_29 = arith.constant 0 : index
    %39 = vector.load %arg9[%c0_28, %c0_29] : memref<16x48xf32, #tpu.memory_space<vmem>>, vector<16x48xf32>
    %40 = vector.extract_strided_slice %39 {offsets = [0, 0], sizes = [8, 48], strides = [1, 1]} : vector<16x48xf32> to vector<8x48xf32>
    %cst_30 = arith.constant dense<0.000000e+00> : vector<16x48xf32>
    %41 = tpu.matmul %32, %40, %cst_30 {dimension_numbers = #tpu.dot_dimension_numbers<[1], [0], [0], [1], [0, 0, 1, 1], [], []>} : vector<16x8xf32>, vector<8x48xf32>, vector<16x48xf32> -> vector<16x48xf32>
    %42 = vector.extract_strided_slice %39 {offsets = [8, 0], sizes = [8, 48], strides = [1, 1]} : vector<16x48xf32> to vector<8x48xf32>
    %cst_31 = arith.constant dense<0.000000e+00> : vector<16x48xf32>
    %43 = tpu.matmul %38, %42, %cst_31 {dimension_numbers = #tpu.dot_dimension_numbers<[1], [0], [0], [1], [0, 0, 1, 1], [], []>} : vector<16x8xf32>, vector<8x48xf32>, vector<16x48xf32> -> vector<16x48xf32>
    %44 = arith.addf %41, %43 : vector<16x48xf32>
    %c0_32 = arith.constant 0 : index
    %c0_33 = arith.constant 0 : index
    %c0_34 = arith.constant 0 : index
    %45 = vector.load %arg12[%c0_32, %c0_33, %c0_34] : memref<3x1x48xf32, #tpu.memory_space<vmem>>, vector<1x1x48xf32>
    %46 = vector.shape_cast %45 : vector<1x1x48xf32> to vector<1x48xf32>
    %47 = vector.broadcast %46 : vector<1x48xf32> to vector<16x48xf32>
    %48 = arith.addf %44, %47 : vector<16x48xf32>
    %c0_35 = arith.constant 0 : index
    %c0_36 = arith.constant 0 : index
    %c0_37 = arith.constant 0 : index
    %49 = vector.load %arg11[%c0_35, %c0_36, %c0_37] : memref<3x16x48xf32, #tpu.memory_space<vmem>>, vector<1x16x48xf32>
    %50 = vector.shape_cast %49 : vector<1x16x48xf32> to vector<16x48xf32>
    %c0_38 = arith.constant 0 : index
    %c0_39 = arith.constant 0 : index
    %c0_40 = arith.constant 0 : index
    %51 = vector.load %arg13[%c0_38, %c0_39, %c0_40] : memref<3x1x16xf32, #tpu.memory_space<vmem>>, vector<1x1x16xf32>
    %52 = vector.shape_cast %51 : vector<1x1x16xf32> to vector<1x16xf32>
    %53 = vector.extract_strided_slice %48 {offsets = [0, 0], sizes = [16, 16], strides = [1, 1]} : vector<16x48xf32> to vector<16x16xf32>
    %54 = vector.extract_strided_slice %48 {offsets = [0, 16], sizes = [16, 16], strides = [1, 1]} : vector<16x48xf32> to vector<16x16xf32>
    %55 = vector.extract_strided_slice %48 {offsets = [0, 32], sizes = [16, 16], strides = [1, 1]} : vector<16x48xf32> to vector<16x16xf32>
    %cst_41 = arith.constant 0.000000e+00 : f32
    %56 = vector.broadcast %cst_41 : f32 to vector<1x16xf32>
    %cst_42 = arith.constant dense<0.000000e+00> : vector<1x48xf32>
    %57 = tpu.matmul %56, %50, %cst_42 {dimension_numbers = #tpu.dot_dimension_numbers<[1], [0], [0], [1], [0, 0, 1, 1], [], []>} : vector<1x16xf32>, vector<16x48xf32>, vector<1x48xf32> -> vector<1x48xf32>
    %58 = vector.extract_strided_slice %53 {offsets = [0, 0], sizes = [1, 16], strides = [1, 1]} : vector<16x16xf32> to vector<1x16xf32>
    %59 = vector.extract_strided_slice %57 {offsets = [0, 0], sizes = [1, 16], strides = [1, 1]} : vector<1x48xf32> to vector<1x16xf32>
    %60 = arith.addf %58, %59 : vector<1x16xf32>
    %61 = arith.negf %60 : vector<1x16xf32>
    %62 = math.exp %61 : vector<1x16xf32>
    %cst_43 = arith.constant 1.000000e+00 : f32
    %63 = vector.broadcast %cst_43 : f32 to vector<1x16xf32>
    %64 = arith.addf %63, %62 : vector<1x16xf32>
    %65 = arith.divf %63, %64 : vector<1x16xf32>
    %66 = vector.extract_strided_slice %54 {offsets = [0, 0], sizes = [1, 16], strides = [1, 1]} : vector<16x16xf32> to vector<1x16xf32>
    %67 = vector.extract_strided_slice %57 {offsets = [0, 16], sizes = [1, 16], strides = [1, 1]} : vector<1x48xf32> to vector<1x16xf32>
    %68 = arith.addf %66, %67 : vector<1x16xf32>
    %69 = arith.negf %68 : vector<1x16xf32>
    %70 = math.exp %69 : vector<1x16xf32>
    %cst_44 = arith.constant 1.000000e+00 : f32
    %71 = vector.broadcast %cst_44 : f32 to vector<1x16xf32>
    %72 = arith.addf %71, %70 : vector<1x16xf32>
    %73 = arith.divf %71, %72 : vector<1x16xf32>
    %74 = vector.extract_strided_slice %55 {offsets = [0, 0], sizes = [1, 16], strides = [1, 1]} : vector<16x16xf32> to vector<1x16xf32>
    %75 = vector.extract_strided_slice %57 {offsets = [0, 32], sizes = [1, 16], strides = [1, 1]} : vector<1x48xf32> to vector<1x16xf32>
    %76 = arith.addf %75, %52 : vector<1x16xf32>
    %77 = arith.mulf %65, %76 : vector<1x16xf32>
    %78 = arith.addf %74, %77 : vector<1x16xf32>
    %79 = math.tanh %78 : vector<1x16xf32>
    %cst_45 = arith.constant 1.000000e+00 : f32
    %80 = vector.broadcast %cst_45 : f32 to vector<1x16xf32>
    %81 = arith.subf %80, %73 : vector<1x16xf32>
    %82 = arith.mulf %81, %79 : vector<1x16xf32>
    %83 = arith.mulf %73, %56 : vector<1x16xf32>
    %84 = arith.addf %82, %83 : vector<1x16xf32>
    %c0_46 = arith.constant 0 : index
    %c0_47 = arith.constant 0 : index
    %85 = vector.load %arg23[%c0_46, %c0_47] : memref<16x16xf32, #tpu.memory_space<vmem>>, vector<1x16xf32>
    tpu.vector_store %arg23[%c0_46, %c0_47], %84 {strides = array<i32>} : memref<16x16xf32, #tpu.memory_space<vmem>>, vector<1x16xf32>,
    %cst_48 = arith.constant dense<0.000000e+00> : vector<1x48xf32>
    %86 = tpu.matmul %84, %50, %cst_48 {dimension_numbers = #tpu.dot_dimension_numbers<[1], [0], [0], [1], [0, 0, 1, 1], [], []>} : vector<1x16xf32>, vector<16x48xf32>, vector<1x48xf32> -> vector<1x48xf32>
    %87 = vector.extract_strided_slice %53 {offsets = [1, 0], sizes = [1, 16], strides = [1, 1]} : vector<16x16xf32> to vector<1x16xf32>
    %88 = vector.extract_strided_slice %86 {offsets = [0, 0], sizes = [1, 16], strides = [1, 1]} : vector<1x48xf32> to vector<1x16xf32>
    %89 = arith.addf %87, %88 : vector<1x16xf32>
    %90 = arith.negf %89 : vector<1x16xf32>
    %91 = math.exp %90 : vector<1x16xf32>
    %cst_49 = arith.constant 1.000000e+00 : f32
    %92 = vector.broadcast %cst_49 : f32 to vector<1x16xf32>
    %93 = arith.addf %92, %91 : vector<1x16xf32>
    %94 = arith.divf %92, %93 : vector<1x16xf32>
    %95 = vector.extract_strided_slice %54 {offsets = [1, 0], sizes = [1, 16], strides = [1, 1]} : vector<16x16xf32> to vector<1x16xf32>
    %96 = vector.extract_strided_slice %86 {offsets = [0, 16], sizes = [1, 16], strides = [1, 1]} : vector<1x48xf32> to vector<1x16xf32>
    %97 = arith.addf %95, %96 : vector<1x16xf32>
    %98 = arith.negf %97 : vector<1x16xf32>
    %99 = math.exp %98 : vector<1x16xf32>
    %cst_50 = arith.constant 1.000000e+00 : f32
    %100 = vector.broadcast %cst_50 : f32 to vector<1x16xf32>
    %101 = arith.addf %100, %99 : vector<1x16xf32>
    %102 = arith.divf %100, %101 : vector<1x16xf32>
    %103 = vector.extract_strided_slice %55 {offsets = [1, 0], sizes = [1, 16], strides = [1, 1]} : vector<16x16xf32> to vector<1x16xf32>
    %104 = vector.extract_strided_slice %86 {offsets = [0, 32], sizes = [1, 16], strides = [1, 1]} : vector<1x48xf32> to vector<1x16xf32>
    %105 = arith.addf %104, %52 : vector<1x16xf32>
    %106 = arith.mulf %94, %105 : vector<1x16xf32>
    %107 = arith.addf %103, %106 : vector<1x16xf32>
    %108 = math.tanh %107 : vector<1x16xf32>
    %cst_51 = arith.constant 1.000000e+00 : f32
    %109 = vector.broadcast %cst_51 : f32 to vector<1x16xf32>
    %110 = arith.subf %109, %102 : vector<1x16xf32>
    %111 = arith.mulf %110, %108 : vector<1x16xf32>
    %112 = arith.mulf %102, %84 : vector<1x16xf32>
    %113 = arith.addf %111, %112 : vector<1x16xf32>
    %c1_52 = arith.constant 1 : index
    %c0_53 = arith.constant 0 : index
    %114 = vector.load %arg23[%c1_52, %c0_53] : memref<16x16xf32, #tpu.memory_space<vmem>>, vector<1x16xf32>
    tpu.vector_store %arg23[%c1_52, %c0_53], %113 {strides = array<i32>} : memref<16x16xf32, #tpu.memory_space<vmem>>, vector<1x16xf32>,
    %cst_54 = arith.constant dense<0.000000e+00> : vector<1x48xf32>
    %115 = tpu.matmul %113, %50, %cst_54 {dimension_numbers = #tpu.dot_dimension_numbers<[1], [0], [0], [1], [0, 0, 1, 1], [], []>} : vector<1x16xf32>, vector<16x48xf32>, vector<1x48xf32> -> vector<1x48xf32>
    %116 = vector.extract_strided_slice %53 {offsets = [2, 0], sizes = [1, 16], strides = [1, 1]} : vector<16x16xf32> to vector<1x16xf32>
    %117 = vector.extract_strided_slice %115 {offsets = [0, 0], sizes = [1, 16], strides = [1, 1]} : vector<1x48xf32> to vector<1x16xf32>
    %118 = arith.addf %116, %117 : vector<1x16xf32>
    %119 = arith.negf %118 : vector<1x16xf32>
    %120 = math.exp %119 : vector<1x16xf32>
    %cst_55 = arith.constant 1.000000e+00 : f32
    %121 = vector.broadcast %cst_55 : f32 to vector<1x16xf32>
    %122 = arith.addf %121, %120 : vector<1x16xf32>
    %123 = arith.divf %121, %122 : vector<1x16xf32>
    %124 = vector.extract_strided_slice %54 {offsets = [2, 0], sizes = [1, 16], strides = [1, 1]} : vector<16x16xf32> to vector<1x16xf32>
    %125 = vector.extract_strided_slice %115 {offsets = [0, 16], sizes = [1, 16], strides = [1, 1]} : vector<1x48xf32> to vector<1x16xf32>
    %126 = arith.addf %124, %125 : vector<1x16xf32>
    %127 = arith.negf %126 : vector<1x16xf32>
    %128 = math.exp %127 : vector<1x16xf32>
    %cst_56 = arith.constant 1.000000e+00 : f32
    %129 = vector.broadcast %cst_56 : f32 to vector<1x16xf32>
    %130 = arith.addf %129, %128 : vector<1x16xf32>
    %131 = arith.divf %129, %130 : vector<1x16xf32>
    %132 = vector.extract_strided_slice %55 {offsets = [2, 0], sizes = [1, 16], strides = [1, 1]} : vector<16x16xf32> to vector<1x16xf32>
    %133 = vector.extract_strided_slice %115 {offsets = [0, 32], sizes = [1, 16], strides = [1, 1]} : vector<1x48xf32> to vector<1x16xf32>
    %134 = arith.addf %133, %52 : vector<1x16xf32>
    %135 = arith.mulf %123, %134 : vector<1x16xf32>
    %136 = arith.addf %132, %135 : vector<1x16xf32>
    %137 = math.tanh %136 : vector<1x16xf32>
    %cst_57 = arith.constant 1.000000e+00 : f32
    %138 = vector.broadcast %cst_57 : f32 to vector<1x16xf32>
    %139 = arith.subf %138, %131 : vector<1x16xf32>
    %140 = arith.mulf %139, %137 : vector<1x16xf32>
    %141 = arith.mulf %131, %113 : vector<1x16xf32>
    %142 = arith.addf %140, %141 : vector<1x16xf32>
    %c2_58 = arith.constant 2 : index
    %c0_59 = arith.constant 0 : index
    %143 = vector.load %arg23[%c2_58, %c0_59] : memref<16x16xf32, #tpu.memory_space<vmem>>, vector<1x16xf32>
    tpu.vector_store %arg23[%c2_58, %c0_59], %142 {strides = array<i32>} : memref<16x16xf32, #tpu.memory_space<vmem>>, vector<1x16xf32>,
    %cst_60 = arith.constant dense<0.000000e+00> : vector<1x48xf32>
    %144 = tpu.matmul %142, %50, %cst_60 {dimension_numbers = #tpu.dot_dimension_numbers<[1], [0], [0], [1], [0, 0, 1, 1], [], []>} : vector<1x16xf32>, vector<16x48xf32>, vector<1x48xf32> -> vector<1x48xf32>
    %145 = vector.extract_strided_slice %53 {offsets = [3, 0], sizes = [1, 16], strides = [1, 1]} : vector<16x16xf32> to vector<1x16xf32>
    %146 = vector.extract_strided_slice %144 {offsets = [0, 0], sizes = [1, 16], strides = [1, 1]} : vector<1x48xf32> to vector<1x16xf32>
    %147 = arith.addf %145, %146 : vector<1x16xf32>
    %148 = arith.negf %147 : vector<1x16xf32>
    %149 = math.exp %148 : vector<1x16xf32>
    %cst_61 = arith.constant 1.000000e+00 : f32
    %150 = vector.broadcast %cst_61 : f32 to vector<1x16xf32>
    %151 = arith.addf %150, %149 : vector<1x16xf32>
    %152 = arith.divf %150, %151 : vector<1x16xf32>
    %153 = vector.extract_strided_slice %54 {offsets = [3, 0], sizes = [1, 16], strides = [1, 1]} : vector<16x16xf32> to vector<1x16xf32>
    %154 = vector.extract_strided_slice %144 {offsets = [0, 16], sizes = [1, 16], strides = [1, 1]} : vector<1x48xf32> to vector<1x16xf32>
    %155 = arith.addf %153, %154 : vector<1x16xf32>
    %156 = arith.negf %155 : vector<1x16xf32>
    %157 = math.exp %156 : vector<1x16xf32>
    %cst_62 = arith.constant 1.000000e+00 : f32
    %158 = vector.broadcast %cst_62 : f32 to vector<1x16xf32>
    %159 = arith.addf %158, %157 : vector<1x16xf32>
    %160 = arith.divf %158, %159 : vector<1x16xf32>
    %161 = vector.extract_strided_slice %55 {offsets = [3, 0], sizes = [1, 16], strides = [1, 1]} : vector<16x16xf32> to vector<1x16xf32>
    %162 = vector.extract_strided_slice %144 {offsets = [0, 32], sizes = [1, 16], strides = [1, 1]} : vector<1x48xf32> to vector<1x16xf32>
    %163 = arith.addf %162, %52 : vector<1x16xf32>
    %164 = arith.mulf %152, %163 : vector<1x16xf32>
    %165 = arith.addf %161, %164 : vector<1x16xf32>
    %166 = math.tanh %165 : vector<1x16xf32>
    %cst_63 = arith.constant 1.000000e+00 : f32
    %167 = vector.broadcast %cst_63 : f32 to vector<1x16xf32>
    %168 = arith.subf %167, %160 : vector<1x16xf32>
    %169 = arith.mulf %168, %166 : vector<1x16xf32>
    %170 = arith.mulf %160, %142 : vector<1x16xf32>
    %171 = arith.addf %169, %170 : vector<1x16xf32>
    %c3 = arith.constant 3 : index
    %c0_64 = arith.constant 0 : index
    %172 = vector.load %arg23[%c3, %c0_64] : memref<16x16xf32, #tpu.memory_space<vmem>>, vector<1x16xf32>
    tpu.vector_store %arg23[%c3, %c0_64], %171 {strides = array<i32>} : memref<16x16xf32, #tpu.memory_space<vmem>>, vector<1x16xf32>,
    %cst_65 = arith.constant dense<0.000000e+00> : vector<1x48xf32>
    %173 = tpu.matmul %171, %50, %cst_65 {dimension_numbers = #tpu.dot_dimension_numbers<[1], [0], [0], [1], [0, 0, 1, 1], [], []>} : vector<1x16xf32>, vector<16x48xf32>, vector<1x48xf32> -> vector<1x48xf32>
    %174 = vector.extract_strided_slice %53 {offsets = [4, 0], sizes = [1, 16], strides = [1, 1]} : vector<16x16xf32> to vector<1x16xf32>
    %175 = vector.extract_strided_slice %173 {offsets = [0, 0], sizes = [1, 16], strides = [1, 1]} : vector<1x48xf32> to vector<1x16xf32>
    %176 = arith.addf %174, %175 : vector<1x16xf32>
    %177 = arith.negf %176 : vector<1x16xf32>
    %178 = math.exp %177 : vector<1x16xf32>
    %cst_66 = arith.constant 1.000000e+00 : f32
    %179 = vector.broadcast %cst_66 : f32 to vector<1x16xf32>
    %180 = arith.addf %179, %178 : vector<1x16xf32>
    %181 = arith.divf %179, %180 : vector<1x16xf32>
    %182 = vector.extract_strided_slice %54 {offsets = [4, 0], sizes = [1, 16], strides = [1, 1]} : vector<16x16xf32> to vector<1x16xf32>
    %183 = vector.extract_strided_slice %173 {offsets = [0, 16], sizes = [1, 16], strides = [1, 1]} : vector<1x48xf32> to vector<1x16xf32>
    %184 = arith.addf %182, %183 : vector<1x16xf32>
    %185 = arith.negf %184 : vector<1x16xf32>
    %186 = math.exp %185 : vector<1x16xf32>
    %cst_67 = arith.constant 1.000000e+00 : f32
    %187 = vector.broadcast %cst_67 : f32 to vector<1x16xf32>
    %188 = arith.addf %187, %186 : vector<1x16xf32>
    %189 = arith.divf %187, %188 : vector<1x16xf32>
    %190 = vector.extract_strided_slice %55 {offsets = [4, 0], sizes = [1, 16], strides = [1, 1]} : vector<16x16xf32> to vector<1x16xf32>
    %191 = vector.extract_strided_slice %173 {offsets = [0, 32], sizes = [1, 16], strides = [1, 1]} : vector<1x48xf32> to vector<1x16xf32>
    %192 = arith.addf %191, %52 : vector<1x16xf32>
    %193 = arith.mulf %181, %192 : vector<1x16xf32>
    %194 = arith.addf %190, %193 : vector<1x16xf32>
    %195 = math.tanh %194 : vector<1x16xf32>
    %cst_68 = arith.constant 1.000000e+00 : f32
    %196 = vector.broadcast %cst_68 : f32 to vector<1x16xf32>
    %197 = arith.subf %196, %189 : vector<1x16xf32>
    %198 = arith.mulf %197, %195 : vector<1x16xf32>
    %199 = arith.mulf %189, %171 : vector<1x16xf32>
    %200 = arith.addf %198, %199 : vector<1x16xf32>
    %c4 = arith.constant 4 : index
    %c0_69 = arith.constant 0 : index
    %201 = vector.load %arg23[%c4, %c0_69] : memref<16x16xf32, #tpu.memory_space<vmem>>, vector<1x16xf32>
    tpu.vector_store %arg23[%c4, %c0_69], %200 {strides = array<i32>} : memref<16x16xf32, #tpu.memory_space<vmem>>, vector<1x16xf32>,
    %cst_70 = arith.constant dense<0.000000e+00> : vector<1x48xf32>
    %202 = tpu.matmul %200, %50, %cst_70 {dimension_numbers = #tpu.dot_dimension_numbers<[1], [0], [0], [1], [0, 0, 1, 1], [], []>} : vector<1x16xf32>, vector<16x48xf32>, vector<1x48xf32> -> vector<1x48xf32>
    %203 = vector.extract_strided_slice %53 {offsets = [5, 0], sizes = [1, 16], strides = [1, 1]} : vector<16x16xf32> to vector<1x16xf32>
    %204 = vector.extract_strided_slice %202 {offsets = [0, 0], sizes = [1, 16], strides = [1, 1]} : vector<1x48xf32> to vector<1x16xf32>
    %205 = arith.addf %203, %204 : vector<1x16xf32>
    %206 = arith.negf %205 : vector<1x16xf32>
    %207 = math.exp %206 : vector<1x16xf32>
    %cst_71 = arith.constant 1.000000e+00 : f32
    %208 = vector.broadcast %cst_71 : f32 to vector<1x16xf32>
    %209 = arith.addf %208, %207 : vector<1x16xf32>
    %210 = arith.divf %208, %209 : vector<1x16xf32>
    %211 = vector.extract_strided_slice %54 {offsets = [5, 0], sizes = [1, 16], strides = [1, 1]} : vector<16x16xf32> to vector<1x16xf32>
    %212 = vector.extract_strided_slice %202 {offsets = [0, 16], sizes = [1, 16], strides = [1, 1]} : vector<1x48xf32> to vector<1x16xf32>
    %213 = arith.addf %211, %212 : vector<1x16xf32>
    %214 = arith.negf %213 : vector<1x16xf32>
    %215 = math.exp %214 : vector<1x16xf32>
    %cst_72 = arith.constant 1.000000e+00 : f32
    %216 = vector.broadcast %cst_72 : f32 to vector<1x16xf32>
    %217 = arith.addf %216, %215 : vector<1x16xf32>
    %218 = arith.divf %216, %217 : vector<1x16xf32>
    %219 = vector.extract_strided_slice %55 {offsets = [5, 0], sizes = [1, 16], strides = [1, 1]} : vector<16x16xf32> to vector<1x16xf32>
    %220 = vector.extract_strided_slice %202 {offsets = [0, 32], sizes = [1, 16], strides = [1, 1]} : vector<1x48xf32> to vector<1x16xf32>
    %221 = arith.addf %220, %52 : vector<1x16xf32>
    %222 = arith.mulf %210, %221 : vector<1x16xf32>
    %223 = arith.addf %219, %222 : vector<1x16xf32>
    %224 = math.tanh %223 : vector<1x16xf32>
    %cst_73 = arith.constant 1.000000e+00 : f32
    %225 = vector.broadcast %cst_73 : f32 to vector<1x16xf32>
    %226 = arith.subf %225, %218 : vector<1x16xf32>
    %227 = arith.mulf %226, %224 : vector<1x16xf32>
    %228 = arith.mulf %218, %200 : vector<1x16xf32>
    %229 = arith.addf %227, %228 : vector<1x16xf32>
    %c5 = arith.constant 5 : index
    %c0_74 = arith.constant 0 : index
    %230 = vector.load %arg23[%c5, %c0_74] : memref<16x16xf32, #tpu.memory_space<vmem>>, vector<1x16xf32>
    tpu.vector_store %arg23[%c5, %c0_74], %229 {strides = array<i32>} : memref<16x16xf32, #tpu.memory_space<vmem>>, vector<1x16xf32>,
    %cst_75 = arith.constant dense<0.000000e+00> : vector<1x48xf32>
    %231 = tpu.matmul %229, %50, %cst_75 {dimension_numbers = #tpu.dot_dimension_numbers<[1], [0], [0], [1], [0, 0, 1, 1], [], []>} : vector<1x16xf32>, vector<16x48xf32>, vector<1x48xf32> -> vector<1x48xf32>
    %232 = vector.extract_strided_slice %53 {offsets = [6, 0], sizes = [1, 16], strides = [1, 1]} : vector<16x16xf32> to vector<1x16xf32>
    %233 = vector.extract_strided_slice %231 {offsets = [0, 0], sizes = [1, 16], strides = [1, 1]} : vector<1x48xf32> to vector<1x16xf32>
    %234 = arith.addf %232, %233 : vector<1x16xf32>
    %235 = arith.negf %234 : vector<1x16xf32>
    %236 = math.exp %235 : vector<1x16xf32>
    %cst_76 = arith.constant 1.000000e+00 : f32
    %237 = vector.broadcast %cst_76 : f32 to vector<1x16xf32>
    %238 = arith.addf %237, %236 : vector<1x16xf32>
    %239 = arith.divf %237, %238 : vector<1x16xf32>
    %240 = vector.extract_strided_slice %54 {offsets = [6, 0], sizes = [1, 16], strides = [1, 1]} : vector<16x16xf32> to vector<1x16xf32>
    %241 = vector.extract_strided_slice %231 {offsets = [0, 16], sizes = [1, 16], strides = [1, 1]} : vector<1x48xf32> to vector<1x16xf32>
    %242 = arith.addf %240, %241 : vector<1x16xf32>
    %243 = arith.negf %242 : vector<1x16xf32>
    %244 = math.exp %243 : vector<1x16xf32>
    %cst_77 = arith.constant 1.000000e+00 : f32
    %245 = vector.broadcast %cst_77 : f32 to vector<1x16xf32>
    %246 = arith.addf %245, %244 : vector<1x16xf32>
    %247 = arith.divf %245, %246 : vector<1x16xf32>
    %248 = vector.extract_strided_slice %55 {offsets = [6, 0], sizes = [1, 16], strides = [1, 1]} : vector<16x16xf32> to vector<1x16xf32>
    %249 = vector.extract_strided_slice %231 {offsets = [0, 32], sizes = [1, 16], strides = [1, 1]} : vector<1x48xf32> to vector<1x16xf32>
    %250 = arith.addf %249, %52 : vector<1x16xf32>
    %251 = arith.mulf %239, %250 : vector<1x16xf32>
    %252 = arith.addf %248, %251 : vector<1x16xf32>
    %253 = math.tanh %252 : vector<1x16xf32>
    %cst_78 = arith.constant 1.000000e+00 : f32
    %254 = vector.broadcast %cst_78 : f32 to vector<1x16xf32>
    %255 = arith.subf %254, %247 : vector<1x16xf32>
    %256 = arith.mulf %255, %253 : vector<1x16xf32>
    %257 = arith.mulf %247, %229 : vector<1x16xf32>
    %258 = arith.addf %256, %257 : vector<1x16xf32>
    %c6 = arith.constant 6 : index
    %c0_79 = arith.constant 0 : index
    %259 = vector.load %arg23[%c6, %c0_79] : memref<16x16xf32, #tpu.memory_space<vmem>>, vector<1x16xf32>
    tpu.vector_store %arg23[%c6, %c0_79], %258 {strides = array<i32>} : memref<16x16xf32, #tpu.memory_space<vmem>>, vector<1x16xf32>,
    %cst_80 = arith.constant dense<0.000000e+00> : vector<1x48xf32>
    %260 = tpu.matmul %258, %50, %cst_80 {dimension_numbers = #tpu.dot_dimension_numbers<[1], [0], [0], [1], [0, 0, 1, 1], [], []>} : vector<1x16xf32>, vector<16x48xf32>, vector<1x48xf32> -> vector<1x48xf32>
    %261 = vector.extract_strided_slice %53 {offsets = [7, 0], sizes = [1, 16], strides = [1, 1]} : vector<16x16xf32> to vector<1x16xf32>
    %262 = vector.extract_strided_slice %260 {offsets = [0, 0], sizes = [1, 16], strides = [1, 1]} : vector<1x48xf32> to vector<1x16xf32>
    %263 = arith.addf %261, %262 : vector<1x16xf32>
    %264 = arith.negf %263 : vector<1x16xf32>
    %265 = math.exp %264 : vector<1x16xf32>
    %cst_81 = arith.constant 1.000000e+00 : f32
    %266 = vector.broadcast %cst_81 : f32 to vector<1x16xf32>
    %267 = arith.addf %266, %265 : vector<1x16xf32>
    %268 = arith.divf %266, %267 : vector<1x16xf32>
    %269 = vector.extract_strided_slice %54 {offsets = [7, 0], sizes = [1, 16], strides = [1, 1]} : vector<16x16xf32> to vector<1x16xf32>
    %270 = vector.extract_strided_slice %260 {offsets = [0, 16], sizes = [1, 16], strides = [1, 1]} : vector<1x48xf32> to vector<1x16xf32>
    %271 = arith.addf %269, %270 : vector<1x16xf32>
    %272 = arith.negf %271 : vector<1x16xf32>
    %273 = math.exp %272 : vector<1x16xf32>
    %cst_82 = arith.constant 1.000000e+00 : f32
    %274 = vector.broadcast %cst_82 : f32 to vector<1x16xf32>
    %275 = arith.addf %274, %273 : vector<1x16xf32>
    %276 = arith.divf %274, %275 : vector<1x16xf32>
    %277 = vector.extract_strided_slice %55 {offsets = [7, 0], sizes = [1, 16], strides = [1, 1]} : vector<16x16xf32> to vector<1x16xf32>
    %278 = vector.extract_strided_slice %260 {offsets = [0, 32], sizes = [1, 16], strides = [1, 1]} : vector<1x48xf32> to vector<1x16xf32>
    %279 = arith.addf %278, %52 : vector<1x16xf32>
    %280 = arith.mulf %268, %279 : vector<1x16xf32>
    %281 = arith.addf %277, %280 : vector<1x16xf32>
    %282 = math.tanh %281 : vector<1x16xf32>
    %cst_83 = arith.constant 1.000000e+00 : f32
    %283 = vector.broadcast %cst_83 : f32 to vector<1x16xf32>
    %284 = arith.subf %283, %276 : vector<1x16xf32>
    %285 = arith.mulf %284, %282 : vector<1x16xf32>
    %286 = arith.mulf %276, %258 : vector<1x16xf32>
    %287 = arith.addf %285, %286 : vector<1x16xf32>
    %c7 = arith.constant 7 : index
    %c0_84 = arith.constant 0 : index
    %288 = vector.load %arg23[%c7, %c0_84] : memref<16x16xf32, #tpu.memory_space<vmem>>, vector<1x16xf32>
    tpu.vector_store %arg23[%c7, %c0_84], %287 {strides = array<i32>} : memref<16x16xf32, #tpu.memory_space<vmem>>, vector<1x16xf32>,
    %cst_85 = arith.constant dense<0.000000e+00> : vector<1x48xf32>
    %289 = tpu.matmul %287, %50, %cst_85 {dimension_numbers = #tpu.dot_dimension_numbers<[1], [0], [0], [1], [0, 0, 1, 1], [], []>} : vector<1x16xf32>, vector<16x48xf32>, vector<1x48xf32> -> vector<1x48xf32>
    %290 = vector.extract_strided_slice %53 {offsets = [8, 0], sizes = [1, 16], strides = [1, 1]} : vector<16x16xf32> to vector<1x16xf32>
    %291 = vector.extract_strided_slice %289 {offsets = [0, 0], sizes = [1, 16], strides = [1, 1]} : vector<1x48xf32> to vector<1x16xf32>
    %292 = arith.addf %290, %291 : vector<1x16xf32>
    %293 = arith.negf %292 : vector<1x16xf32>
    %294 = math.exp %293 : vector<1x16xf32>
    %cst_86 = arith.constant 1.000000e+00 : f32
    %295 = vector.broadcast %cst_86 : f32 to vector<1x16xf32>
    %296 = arith.addf %295, %294 : vector<1x16xf32>
    %297 = arith.divf %295, %296 : vector<1x16xf32>
    %298 = vector.extract_strided_slice %54 {offsets = [8, 0], sizes = [1, 16], strides = [1, 1]} : vector<16x16xf32> to vector<1x16xf32>
    %299 = vector.extract_strided_slice %289 {offsets = [0, 16], sizes = [1, 16], strides = [1, 1]} : vector<1x48xf32> to vector<1x16xf32>
    %300 = arith.addf %298, %299 : vector<1x16xf32>
    %301 = arith.negf %300 : vector<1x16xf32>
    %302 = math.exp %301 : vector<1x16xf32>
    %cst_87 = arith.constant 1.000000e+00 : f32
    %303 = vector.broadcast %cst_87 : f32 to vector<1x16xf32>
    %304 = arith.addf %303, %302 : vector<1x16xf32>
    %305 = arith.divf %303, %304 : vector<1x16xf32>
    %306 = vector.extract_strided_slice %55 {offsets = [8, 0], sizes = [1, 16], strides = [1, 1]} : vector<16x16xf32> to vector<1x16xf32>
    %307 = vector.extract_strided_slice %289 {offsets = [0, 32], sizes = [1, 16], strides = [1, 1]} : vector<1x48xf32> to vector<1x16xf32>
    %308 = arith.addf %307, %52 : vector<1x16xf32>
    %309 = arith.mulf %297, %308 : vector<1x16xf32>
    %310 = arith.addf %306, %309 : vector<1x16xf32>
    %311 = math.tanh %310 : vector<1x16xf32>
    %cst_88 = arith.constant 1.000000e+00 : f32
    %312 = vector.broadcast %cst_88 : f32 to vector<1x16xf32>
    %313 = arith.subf %312, %305 : vector<1x16xf32>
    %314 = arith.mulf %313, %311 : vector<1x16xf32>
    %315 = arith.mulf %305, %287 : vector<1x16xf32>
    %316 = arith.addf %314, %315 : vector<1x16xf32>
    %c8 = arith.constant 8 : index
    %c0_89 = arith.constant 0 : index
    %317 = vector.load %arg23[%c8, %c0_89] : memref<16x16xf32, #tpu.memory_space<vmem>>, vector<1x16xf32>
    tpu.vector_store %arg23[%c8, %c0_89], %316 {strides = array<i32>} : memref<16x16xf32, #tpu.memory_space<vmem>>, vector<1x16xf32>,
    %cst_90 = arith.constant dense<0.000000e+00> : vector<1x48xf32>
    %318 = tpu.matmul %316, %50, %cst_90 {dimension_numbers = #tpu.dot_dimension_numbers<[1], [0], [0], [1], [0, 0, 1, 1], [], []>} : vector<1x16xf32>, vector<16x48xf32>, vector<1x48xf32> -> vector<1x48xf32>
    %319 = vector.extract_strided_slice %53 {offsets = [9, 0], sizes = [1, 16], strides = [1, 1]} : vector<16x16xf32> to vector<1x16xf32>
    %320 = vector.extract_strided_slice %318 {offsets = [0, 0], sizes = [1, 16], strides = [1, 1]} : vector<1x48xf32> to vector<1x16xf32>
    %321 = arith.addf %319, %320 : vector<1x16xf32>
    %322 = arith.negf %321 : vector<1x16xf32>
    %323 = math.exp %322 : vector<1x16xf32>
    %cst_91 = arith.constant 1.000000e+00 : f32
    %324 = vector.broadcast %cst_91 : f32 to vector<1x16xf32>
    %325 = arith.addf %324, %323 : vector<1x16xf32>
    %326 = arith.divf %324, %325 : vector<1x16xf32>
    %327 = vector.extract_strided_slice %54 {offsets = [9, 0], sizes = [1, 16], strides = [1, 1]} : vector<16x16xf32> to vector<1x16xf32>
    %328 = vector.extract_strided_slice %318 {offsets = [0, 16], sizes = [1, 16], strides = [1, 1]} : vector<1x48xf32> to vector<1x16xf32>
    %329 = arith.addf %327, %328 : vector<1x16xf32>
    %330 = arith.negf %329 : vector<1x16xf32>
    %331 = math.exp %330 : vector<1x16xf32>
    %cst_92 = arith.constant 1.000000e+00 : f32
    %332 = vector.broadcast %cst_92 : f32 to vector<1x16xf32>
    %333 = arith.addf %332, %331 : vector<1x16xf32>
    %334 = arith.divf %332, %333 : vector<1x16xf32>
    %335 = vector.extract_strided_slice %55 {offsets = [9, 0], sizes = [1, 16], strides = [1, 1]} : vector<16x16xf32> to vector<1x16xf32>
    %336 = vector.extract_strided_slice %318 {offsets = [0, 32], sizes = [1, 16], strides = [1, 1]} : vector<1x48xf32> to vector<1x16xf32>
    %337 = arith.addf %336, %52 : vector<1x16xf32>
    %338 = arith.mulf %326, %337 : vector<1x16xf32>
    %339 = arith.addf %335, %338 : vector<1x16xf32>
    %340 = math.tanh %339 : vector<1x16xf32>
    %cst_93 = arith.constant 1.000000e+00 : f32
    %341 = vector.broadcast %cst_93 : f32 to vector<1x16xf32>
    %342 = arith.subf %341, %334 : vector<1x16xf32>
    %343 = arith.mulf %342, %340 : vector<1x16xf32>
    %344 = arith.mulf %334, %316 : vector<1x16xf32>
    %345 = arith.addf %343, %344 : vector<1x16xf32>
    %c9 = arith.constant 9 : index
    %c0_94 = arith.constant 0 : index
    %346 = vector.load %arg23[%c9, %c0_94] : memref<16x16xf32, #tpu.memory_space<vmem>>, vector<1x16xf32>
    tpu.vector_store %arg23[%c9, %c0_94], %345 {strides = array<i32>} : memref<16x16xf32, #tpu.memory_space<vmem>>, vector<1x16xf32>,
    %cst_95 = arith.constant dense<0.000000e+00> : vector<1x48xf32>
    %347 = tpu.matmul %345, %50, %cst_95 {dimension_numbers = #tpu.dot_dimension_numbers<[1], [0], [0], [1], [0, 0, 1, 1], [], []>} : vector<1x16xf32>, vector<16x48xf32>, vector<1x48xf32> -> vector<1x48xf32>
    %348 = vector.extract_strided_slice %53 {offsets = [10, 0], sizes = [1, 16], strides = [1, 1]} : vector<16x16xf32> to vector<1x16xf32>
    %349 = vector.extract_strided_slice %347 {offsets = [0, 0], sizes = [1, 16], strides = [1, 1]} : vector<1x48xf32> to vector<1x16xf32>
    %350 = arith.addf %348, %349 : vector<1x16xf32>
    %351 = arith.negf %350 : vector<1x16xf32>
    %352 = math.exp %351 : vector<1x16xf32>
    %cst_96 = arith.constant 1.000000e+00 : f32
    %353 = vector.broadcast %cst_96 : f32 to vector<1x16xf32>
    %354 = arith.addf %353, %352 : vector<1x16xf32>
    %355 = arith.divf %353, %354 : vector<1x16xf32>
    %356 = vector.extract_strided_slice %54 {offsets = [10, 0], sizes = [1, 16], strides = [1, 1]} : vector<16x16xf32> to vector<1x16xf32>
    %357 = vector.extract_strided_slice %347 {offsets = [0, 16], sizes = [1, 16], strides = [1, 1]} : vector<1x48xf32> to vector<1x16xf32>
    %358 = arith.addf %356, %357 : vector<1x16xf32>
    %359 = arith.negf %358 : vector<1x16xf32>
    %360 = math.exp %359 : vector<1x16xf32>
    %cst_97 = arith.constant 1.000000e+00 : f32
    %361 = vector.broadcast %cst_97 : f32 to vector<1x16xf32>
    %362 = arith.addf %361, %360 : vector<1x16xf32>
    %363 = arith.divf %361, %362 : vector<1x16xf32>
    %364 = vector.extract_strided_slice %55 {offsets = [10, 0], sizes = [1, 16], strides = [1, 1]} : vector<16x16xf32> to vector<1x16xf32>
    %365 = vector.extract_strided_slice %347 {offsets = [0, 32], sizes = [1, 16], strides = [1, 1]} : vector<1x48xf32> to vector<1x16xf32>
    %366 = arith.addf %365, %52 : vector<1x16xf32>
    %367 = arith.mulf %355, %366 : vector<1x16xf32>
    %368 = arith.addf %364, %367 : vector<1x16xf32>
    %369 = math.tanh %368 : vector<1x16xf32>
    %cst_98 = arith.constant 1.000000e+00 : f32
    %370 = vector.broadcast %cst_98 : f32 to vector<1x16xf32>
    %371 = arith.subf %370, %363 : vector<1x16xf32>
    %372 = arith.mulf %371, %369 : vector<1x16xf32>
    %373 = arith.mulf %363, %345 : vector<1x16xf32>
    %374 = arith.addf %372, %373 : vector<1x16xf32>
    %c10 = arith.constant 10 : index
    %c0_99 = arith.constant 0 : index
    %375 = vector.load %arg23[%c10, %c0_99] : memref<16x16xf32, #tpu.memory_space<vmem>>, vector<1x16xf32>
    tpu.vector_store %arg23[%c10, %c0_99], %374 {strides = array<i32>} : memref<16x16xf32, #tpu.memory_space<vmem>>, vector<1x16xf32>,
    %cst_100 = arith.constant dense<0.000000e+00> : vector<1x48xf32>
    %376 = tpu.matmul %374, %50, %cst_100 {dimension_numbers = #tpu.dot_dimension_numbers<[1], [0], [0], [1], [0, 0, 1, 1], [], []>} : vector<1x16xf32>, vector<16x48xf32>, vector<1x48xf32> -> vector<1x48xf32>
    %377 = vector.extract_strided_slice %53 {offsets = [11, 0], sizes = [1, 16], strides = [1, 1]} : vector<16x16xf32> to vector<1x16xf32>
    %378 = vector.extract_strided_slice %376 {offsets = [0, 0], sizes = [1, 16], strides = [1, 1]} : vector<1x48xf32> to vector<1x16xf32>
    %379 = arith.addf %377, %378 : vector<1x16xf32>
    %380 = arith.negf %379 : vector<1x16xf32>
    %381 = math.exp %380 : vector<1x16xf32>
    %cst_101 = arith.constant 1.000000e+00 : f32
    %382 = vector.broadcast %cst_101 : f32 to vector<1x16xf32>
    %383 = arith.addf %382, %381 : vector<1x16xf32>
    %384 = arith.divf %382, %383 : vector<1x16xf32>
    %385 = vector.extract_strided_slice %54 {offsets = [11, 0], sizes = [1, 16], strides = [1, 1]} : vector<16x16xf32> to vector<1x16xf32>
    %386 = vector.extract_strided_slice %376 {offsets = [0, 16], sizes = [1, 16], strides = [1, 1]} : vector<1x48xf32> to vector<1x16xf32>
    %387 = arith.addf %385, %386 : vector<1x16xf32>
    %388 = arith.negf %387 : vector<1x16xf32>
    %389 = math.exp %388 : vector<1x16xf32>
    %cst_102 = arith.constant 1.000000e+00 : f32
    %390 = vector.broadcast %cst_102 : f32 to vector<1x16xf32>
    %391 = arith.addf %390, %389 : vector<1x16xf32>
    %392 = arith.divf %390, %391 : vector<1x16xf32>
    %393 = vector.extract_strided_slice %55 {offsets = [11, 0], sizes = [1, 16], strides = [1, 1]} : vector<16x16xf32> to vector<1x16xf32>
    %394 = vector.extract_strided_slice %376 {offsets = [0, 32], sizes = [1, 16], strides = [1, 1]} : vector<1x48xf32> to vector<1x16xf32>
    %395 = arith.addf %394, %52 : vector<1x16xf32>
    %396 = arith.mulf %384, %395 : vector<1x16xf32>
    %397 = arith.addf %393, %396 : vector<1x16xf32>
    %398 = math.tanh %397 : vector<1x16xf32>
    %cst_103 = arith.constant 1.000000e+00 : f32
    %399 = vector.broadcast %cst_103 : f32 to vector<1x16xf32>
    %400 = arith.subf %399, %392 : vector<1x16xf32>
    %401 = arith.mulf %400, %398 : vector<1x16xf32>
    %402 = arith.mulf %392, %374 : vector<1x16xf32>
    %403 = arith.addf %401, %402 : vector<1x16xf32>
    %c11 = arith.constant 11 : index
    %c0_104 = arith.constant 0 : index
    %404 = vector.load %arg23[%c11, %c0_104] : memref<16x16xf32, #tpu.memory_space<vmem>>, vector<1x16xf32>
    tpu.vector_store %arg23[%c11, %c0_104], %403 {strides = array<i32>} : memref<16x16xf32, #tpu.memory_space<vmem>>, vector<1x16xf32>,
    %cst_105 = arith.constant dense<0.000000e+00> : vector<1x48xf32>
    %405 = tpu.matmul %403, %50, %cst_105 {dimension_numbers = #tpu.dot_dimension_numbers<[1], [0], [0], [1], [0, 0, 1, 1], [], []>} : vector<1x16xf32>, vector<16x48xf32>, vector<1x48xf32> -> vector<1x48xf32>
    %406 = vector.extract_strided_slice %53 {offsets = [12, 0], sizes = [1, 16], strides = [1, 1]} : vector<16x16xf32> to vector<1x16xf32>
    %407 = vector.extract_strided_slice %405 {offsets = [0, 0], sizes = [1, 16], strides = [1, 1]} : vector<1x48xf32> to vector<1x16xf32>
    %408 = arith.addf %406, %407 : vector<1x16xf32>
    %409 = arith.negf %408 : vector<1x16xf32>
    %410 = math.exp %409 : vector<1x16xf32>
    %cst_106 = arith.constant 1.000000e+00 : f32
    %411 = vector.broadcast %cst_106 : f32 to vector<1x16xf32>
    %412 = arith.addf %411, %410 : vector<1x16xf32>
    %413 = arith.divf %411, %412 : vector<1x16xf32>
    %414 = vector.extract_strided_slice %54 {offsets = [12, 0], sizes = [1, 16], strides = [1, 1]} : vector<16x16xf32> to vector<1x16xf32>
    %415 = vector.extract_strided_slice %405 {offsets = [0, 16], sizes = [1, 16], strides = [1, 1]} : vector<1x48xf32> to vector<1x16xf32>
    %416 = arith.addf %414, %415 : vector<1x16xf32>
    %417 = arith.negf %416 : vector<1x16xf32>
    %418 = math.exp %417 : vector<1x16xf32>
    %cst_107 = arith.constant 1.000000e+00 : f32
    %419 = vector.broadcast %cst_107 : f32 to vector<1x16xf32>
    %420 = arith.addf %419, %418 : vector<1x16xf32>
    %421 = arith.divf %419, %420 : vector<1x16xf32>
    %422 = vector.extract_strided_slice %55 {offsets = [12, 0], sizes = [1, 16], strides = [1, 1]} : vector<16x16xf32> to vector<1x16xf32>
    %423 = vector.extract_strided_slice %405 {offsets = [0, 32], sizes = [1, 16], strides = [1, 1]} : vector<1x48xf32> to vector<1x16xf32>
    %424 = arith.addf %423, %52 : vector<1x16xf32>
    %425 = arith.mulf %413, %424 : vector<1x16xf32>
    %426 = arith.addf %422, %425 : vector<1x16xf32>
    %427 = math.tanh %426 : vector<1x16xf32>
    %cst_108 = arith.constant 1.000000e+00 : f32
    %428 = vector.broadcast %cst_108 : f32 to vector<1x16xf32>
    %429 = arith.subf %428, %421 : vector<1x16xf32>
    %430 = arith.mulf %429, %427 : vector<1x16xf32>
    %431 = arith.mulf %421, %403 : vector<1x16xf32>
    %432 = arith.addf %430, %431 : vector<1x16xf32>
    %c12 = arith.constant 12 : index
    %c0_109 = arith.constant 0 : index
    %433 = vector.load %arg23[%c12, %c0_109] : memref<16x16xf32, #tpu.memory_space<vmem>>, vector<1x16xf32>
    tpu.vector_store %arg23[%c12, %c0_109], %432 {strides = array<i32>} : memref<16x16xf32, #tpu.memory_space<vmem>>, vector<1x16xf32>,
    %cst_110 = arith.constant dense<0.000000e+00> : vector<1x48xf32>
    %434 = tpu.matmul %432, %50, %cst_110 {dimension_numbers = #tpu.dot_dimension_numbers<[1], [0], [0], [1], [0, 0, 1, 1], [], []>} : vector<1x16xf32>, vector<16x48xf32>, vector<1x48xf32> -> vector<1x48xf32>
    %435 = vector.extract_strided_slice %53 {offsets = [13, 0], sizes = [1, 16], strides = [1, 1]} : vector<16x16xf32> to vector<1x16xf32>
    %436 = vector.extract_strided_slice %434 {offsets = [0, 0], sizes = [1, 16], strides = [1, 1]} : vector<1x48xf32> to vector<1x16xf32>
    %437 = arith.addf %435, %436 : vector<1x16xf32>
    %438 = arith.negf %437 : vector<1x16xf32>
    %439 = math.exp %438 : vector<1x16xf32>
    %cst_111 = arith.constant 1.000000e+00 : f32
    %440 = vector.broadcast %cst_111 : f32 to vector<1x16xf32>
    %441 = arith.addf %440, %439 : vector<1x16xf32>
    %442 = arith.divf %440, %441 : vector<1x16xf32>
    %443 = vector.extract_strided_slice %54 {offsets = [13, 0], sizes = [1, 16], strides = [1, 1]} : vector<16x16xf32> to vector<1x16xf32>
    %444 = vector.extract_strided_slice %434 {offsets = [0, 16], sizes = [1, 16], strides = [1, 1]} : vector<1x48xf32> to vector<1x16xf32>
    %445 = arith.addf %443, %444 : vector<1x16xf32>
    %446 = arith.negf %445 : vector<1x16xf32>
    %447 = math.exp %446 : vector<1x16xf32>
    %cst_112 = arith.constant 1.000000e+00 : f32
    %448 = vector.broadcast %cst_112 : f32 to vector<1x16xf32>
    %449 = arith.addf %448, %447 : vector<1x16xf32>
    %450 = arith.divf %448, %449 : vector<1x16xf32>
    %451 = vector.extract_strided_slice %55 {offsets = [13, 0], sizes = [1, 16], strides = [1, 1]} : vector<16x16xf32> to vector<1x16xf32>
    %452 = vector.extract_strided_slice %434 {offsets = [0, 32], sizes = [1, 16], strides = [1, 1]} : vector<1x48xf32> to vector<1x16xf32>
    %453 = arith.addf %452, %52 : vector<1x16xf32>
    %454 = arith.mulf %442, %453 : vector<1x16xf32>
    %455 = arith.addf %451, %454 : vector<1x16xf32>
    %456 = math.tanh %455 : vector<1x16xf32>
    %cst_113 = arith.constant 1.000000e+00 : f32
    %457 = vector.broadcast %cst_113 : f32 to vector<1x16xf32>
    %458 = arith.subf %457, %450 : vector<1x16xf32>
    %459 = arith.mulf %458, %456 : vector<1x16xf32>
    %460 = arith.mulf %450, %432 : vector<1x16xf32>
    %461 = arith.addf %459, %460 : vector<1x16xf32>
    %c13 = arith.constant 13 : index
    %c0_114 = arith.constant 0 : index
    %462 = vector.load %arg23[%c13, %c0_114] : memref<16x16xf32, #tpu.memory_space<vmem>>, vector<1x16xf32>
    tpu.vector_store %arg23[%c13, %c0_114], %461 {strides = array<i32>} : memref<16x16xf32, #tpu.memory_space<vmem>>, vector<1x16xf32>,
    %cst_115 = arith.constant dense<0.000000e+00> : vector<1x48xf32>
    %463 = tpu.matmul %461, %50, %cst_115 {dimension_numbers = #tpu.dot_dimension_numbers<[1], [0], [0], [1], [0, 0, 1, 1], [], []>} : vector<1x16xf32>, vector<16x48xf32>, vector<1x48xf32> -> vector<1x48xf32>
    %464 = vector.extract_strided_slice %53 {offsets = [14, 0], sizes = [1, 16], strides = [1, 1]} : vector<16x16xf32> to vector<1x16xf32>
    %465 = vector.extract_strided_slice %463 {offsets = [0, 0], sizes = [1, 16], strides = [1, 1]} : vector<1x48xf32> to vector<1x16xf32>
    %466 = arith.addf %464, %465 : vector<1x16xf32>
    %467 = arith.negf %466 : vector<1x16xf32>
    %468 = math.exp %467 : vector<1x16xf32>
    %cst_116 = arith.constant 1.000000e+00 : f32
    %469 = vector.broadcast %cst_116 : f32 to vector<1x16xf32>
    %470 = arith.addf %469, %468 : vector<1x16xf32>
    %471 = arith.divf %469, %470 : vector<1x16xf32>
    %472 = vector.extract_strided_slice %54 {offsets = [14, 0], sizes = [1, 16], strides = [1, 1]} : vector<16x16xf32> to vector<1x16xf32>
    %473 = vector.extract_strided_slice %463 {offsets = [0, 16], sizes = [1, 16], strides = [1, 1]} : vector<1x48xf32> to vector<1x16xf32>
    %474 = arith.addf %472, %473 : vector<1x16xf32>
    %475 = arith.negf %474 : vector<1x16xf32>
    %476 = math.exp %475 : vector<1x16xf32>
    %cst_117 = arith.constant 1.000000e+00 : f32
    %477 = vector.broadcast %cst_117 : f32 to vector<1x16xf32>
    %478 = arith.addf %477, %476 : vector<1x16xf32>
    %479 = arith.divf %477, %478 : vector<1x16xf32>
    %480 = vector.extract_strided_slice %55 {offsets = [14, 0], sizes = [1, 16], strides = [1, 1]} : vector<16x16xf32> to vector<1x16xf32>
    %481 = vector.extract_strided_slice %463 {offsets = [0, 32], sizes = [1, 16], strides = [1, 1]} : vector<1x48xf32> to vector<1x16xf32>
    %482 = arith.addf %481, %52 : vector<1x16xf32>
    %483 = arith.mulf %471, %482 : vector<1x16xf32>
    %484 = arith.addf %480, %483 : vector<1x16xf32>
    %485 = math.tanh %484 : vector<1x16xf32>
    %cst_118 = arith.constant 1.000000e+00 : f32
    %486 = vector.broadcast %cst_118 : f32 to vector<1x16xf32>
    %487 = arith.subf %486, %479 : vector<1x16xf32>
    %488 = arith.mulf %487, %485 : vector<1x16xf32>
    %489 = arith.mulf %479, %461 : vector<1x16xf32>
    %490 = arith.addf %488, %489 : vector<1x16xf32>
    %c14 = arith.constant 14 : index
    %c0_119 = arith.constant 0 : index
    %491 = vector.load %arg23[%c14, %c0_119] : memref<16x16xf32, #tpu.memory_space<vmem>>, vector<1x16xf32>
    tpu.vector_store %arg23[%c14, %c0_119], %490 {strides = array<i32>} : memref<16x16xf32, #tpu.memory_space<vmem>>, vector<1x16xf32>,
    %cst_120 = arith.constant dense<0.000000e+00> : vector<1x48xf32>
    %492 = tpu.matmul %490, %50, %cst_120 {dimension_numbers = #tpu.dot_dimension_numbers<[1], [0], [0], [1], [0, 0, 1, 1], [], []>} : vector<1x16xf32>, vector<16x48xf32>, vector<1x48xf32> -> vector<1x48xf32>
    %493 = vector.extract_strided_slice %53 {offsets = [15, 0], sizes = [1, 16], strides = [1, 1]} : vector<16x16xf32> to vector<1x16xf32>
    %494 = vector.extract_strided_slice %492 {offsets = [0, 0], sizes = [1, 16], strides = [1, 1]} : vector<1x48xf32> to vector<1x16xf32>
    %495 = arith.addf %493, %494 : vector<1x16xf32>
    %496 = arith.negf %495 : vector<1x16xf32>
    %497 = math.exp %496 : vector<1x16xf32>
    %cst_121 = arith.constant 1.000000e+00 : f32
    %498 = vector.broadcast %cst_121 : f32 to vector<1x16xf32>
    %499 = arith.addf %498, %497 : vector<1x16xf32>
    %500 = arith.divf %498, %499 : vector<1x16xf32>
    %501 = vector.extract_strided_slice %54 {offsets = [15, 0], sizes = [1, 16], strides = [1, 1]} : vector<16x16xf32> to vector<1x16xf32>
    %502 = vector.extract_strided_slice %492 {offsets = [0, 16], sizes = [1, 16], strides = [1, 1]} : vector<1x48xf32> to vector<1x16xf32>
    %503 = arith.addf %501, %502 : vector<1x16xf32>
    %504 = arith.negf %503 : vector<1x16xf32>
    %505 = math.exp %504 : vector<1x16xf32>
    %cst_122 = arith.constant 1.000000e+00 : f32
    %506 = vector.broadcast %cst_122 : f32 to vector<1x16xf32>
    %507 = arith.addf %506, %505 : vector<1x16xf32>
    %508 = arith.divf %506, %507 : vector<1x16xf32>
    %509 = vector.extract_strided_slice %55 {offsets = [15, 0], sizes = [1, 16], strides = [1, 1]} : vector<16x16xf32> to vector<1x16xf32>
    %510 = vector.extract_strided_slice %492 {offsets = [0, 32], sizes = [1, 16], strides = [1, 1]} : vector<1x48xf32> to vector<1x16xf32>
    %511 = arith.addf %510, %52 : vector<1x16xf32>
    %512 = arith.mulf %500, %511 : vector<1x16xf32>
    %513 = arith.addf %509, %512 : vector<1x16xf32>
    %514 = math.tanh %513 : vector<1x16xf32>
    %cst_123 = arith.constant 1.000000e+00 : f32
    %515 = vector.broadcast %cst_123 : f32 to vector<1x16xf32>
    %516 = arith.subf %515, %508 : vector<1x16xf32>
    %517 = arith.mulf %516, %514 : vector<1x16xf32>
    %518 = arith.mulf %508, %490 : vector<1x16xf32>
    %519 = arith.addf %517, %518 : vector<1x16xf32>
    %c15 = arith.constant 15 : index
    %c0_124 = arith.constant 0 : index
    %520 = vector.load %arg23[%c15, %c0_124] : memref<16x16xf32, #tpu.memory_space<vmem>>, vector<1x16xf32>
    tpu.vector_store %arg23[%c15, %c0_124], %519 {strides = array<i32>} : memref<16x16xf32, #tpu.memory_space<vmem>>, vector<1x16xf32>,
    %c0_125 = arith.constant 0 : index
    %c0_126 = arith.constant 0 : index
    %521 = vector.load %arg23[%c0_125, %c0_126] : memref<16x16xf32, #tpu.memory_space<vmem>>, vector<16x16xf32>
    %c0_127 = arith.constant 0 : index
    %c0_128 = arith.constant 0 : index
    %c0_129 = arith.constant 0 : index
    %522 = vector.load %arg10[%c0_127, %c0_128, %c0_129] : memref<2x16x48xf32, #tpu.memory_space<vmem>>, vector<1x16x48xf32>
    %523 = vector.shape_cast %522 : vector<1x16x48xf32> to vector<16x48xf32>
    %cst_130 = arith.constant dense<0.000000e+00> : vector<16x48xf32>
    %524 = tpu.matmul %521, %523, %cst_130 {dimension_numbers = #tpu.dot_dimension_numbers<[1], [0], [0], [1], [0, 0, 1, 1], [], []>} : vector<16x16xf32>, vector<16x48xf32>, vector<16x48xf32> -> vector<16x48xf32>
    %c1_131 = arith.constant 1 : index
    %c0_132 = arith.constant 0 : index
    %c0_133 = arith.constant 0 : index
    %525 = vector.load %arg12[%c1_131, %c0_132, %c0_133] : memref<3x1x48xf32, #tpu.memory_space<vmem>>, vector<1x1x48xf32>
    %526 = vector.shape_cast %525 : vector<1x1x48xf32> to vector<1x48xf32>
    %527 = vector.broadcast %526 : vector<1x48xf32> to vector<16x48xf32>
    %528 = arith.addf %524, %527 : vector<16x48xf32>
    %c1_134 = arith.constant 1 : index
    %c0_135 = arith.constant 0 : index
    %c0_136 = arith.constant 0 : index
    %529 = vector.load %arg11[%c1_134, %c0_135, %c0_136] : memref<3x16x48xf32, #tpu.memory_space<vmem>>, vector<1x16x48xf32>
    %530 = vector.shape_cast %529 : vector<1x16x48xf32> to vector<16x48xf32>
    %c1_137 = arith.constant 1 : index
    %c0_138 = arith.constant 0 : index
    %c0_139 = arith.constant 0 : index
    %531 = vector.load %arg13[%c1_137, %c0_138, %c0_139] : memref<3x1x16xf32, #tpu.memory_space<vmem>>, vector<1x1x16xf32>
    %532 = vector.shape_cast %531 : vector<1x1x16xf32> to vector<1x16xf32>
    %533 = vector.extract_strided_slice %528 {offsets = [0, 0], sizes = [16, 16], strides = [1, 1]} : vector<16x48xf32> to vector<16x16xf32>
    %534 = vector.extract_strided_slice %528 {offsets = [0, 16], sizes = [16, 16], strides = [1, 1]} : vector<16x48xf32> to vector<16x16xf32>
    %535 = vector.extract_strided_slice %528 {offsets = [0, 32], sizes = [16, 16], strides = [1, 1]} : vector<16x48xf32> to vector<16x16xf32>
    %cst_140 = arith.constant 0.000000e+00 : f32
    %536 = vector.broadcast %cst_140 : f32 to vector<1x16xf32>
    %cst_141 = arith.constant dense<0.000000e+00> : vector<1x48xf32>
    %537 = tpu.matmul %536, %530, %cst_141 {dimension_numbers = #tpu.dot_dimension_numbers<[1], [0], [0], [1], [0, 0, 1, 1], [], []>} : vector<1x16xf32>, vector<16x48xf32>, vector<1x48xf32> -> vector<1x48xf32>
    %538 = vector.extract_strided_slice %533 {offsets = [0, 0], sizes = [1, 16], strides = [1, 1]} : vector<16x16xf32> to vector<1x16xf32>
    %539 = vector.extract_strided_slice %537 {offsets = [0, 0], sizes = [1, 16], strides = [1, 1]} : vector<1x48xf32> to vector<1x16xf32>
    %540 = arith.addf %538, %539 : vector<1x16xf32>
    %541 = arith.negf %540 : vector<1x16xf32>
    %542 = math.exp %541 : vector<1x16xf32>
    %cst_142 = arith.constant 1.000000e+00 : f32
    %543 = vector.broadcast %cst_142 : f32 to vector<1x16xf32>
    %544 = arith.addf %543, %542 : vector<1x16xf32>
    %545 = arith.divf %543, %544 : vector<1x16xf32>
    %546 = vector.extract_strided_slice %534 {offsets = [0, 0], sizes = [1, 16], strides = [1, 1]} : vector<16x16xf32> to vector<1x16xf32>
    %547 = vector.extract_strided_slice %537 {offsets = [0, 16], sizes = [1, 16], strides = [1, 1]} : vector<1x48xf32> to vector<1x16xf32>
    %548 = arith.addf %546, %547 : vector<1x16xf32>
    %549 = arith.negf %548 : vector<1x16xf32>
    %550 = math.exp %549 : vector<1x16xf32>
    %cst_143 = arith.constant 1.000000e+00 : f32
    %551 = vector.broadcast %cst_143 : f32 to vector<1x16xf32>
    %552 = arith.addf %551, %550 : vector<1x16xf32>
    %553 = arith.divf %551, %552 : vector<1x16xf32>
    %554 = vector.extract_strided_slice %535 {offsets = [0, 0], sizes = [1, 16], strides = [1, 1]} : vector<16x16xf32> to vector<1x16xf32>
    %555 = vector.extract_strided_slice %537 {offsets = [0, 32], sizes = [1, 16], strides = [1, 1]} : vector<1x48xf32> to vector<1x16xf32>
    %556 = arith.addf %555, %532 : vector<1x16xf32>
    %557 = arith.mulf %545, %556 : vector<1x16xf32>
    %558 = arith.addf %554, %557 : vector<1x16xf32>
    %559 = math.tanh %558 : vector<1x16xf32>
    %cst_144 = arith.constant 1.000000e+00 : f32
    %560 = vector.broadcast %cst_144 : f32 to vector<1x16xf32>
    %561 = arith.subf %560, %553 : vector<1x16xf32>
    %562 = arith.mulf %561, %559 : vector<1x16xf32>
    %563 = arith.mulf %553, %536 : vector<1x16xf32>
    %564 = arith.addf %562, %563 : vector<1x16xf32>
    %c0_145 = arith.constant 0 : index
    %c0_146 = arith.constant 0 : index
    %565 = vector.load %arg23[%c0_145, %c0_146] : memref<16x16xf32, #tpu.memory_space<vmem>>, vector<1x16xf32>
    tpu.vector_store %arg23[%c0_145, %c0_146], %564 {strides = array<i32>} : memref<16x16xf32, #tpu.memory_space<vmem>>, vector<1x16xf32>,
    %cst_147 = arith.constant dense<0.000000e+00> : vector<1x48xf32>
    %566 = tpu.matmul %564, %530, %cst_147 {dimension_numbers = #tpu.dot_dimension_numbers<[1], [0], [0], [1], [0, 0, 1, 1], [], []>} : vector<1x16xf32>, vector<16x48xf32>, vector<1x48xf32> -> vector<1x48xf32>
    %567 = vector.extract_strided_slice %533 {offsets = [1, 0], sizes = [1, 16], strides = [1, 1]} : vector<16x16xf32> to vector<1x16xf32>
    %568 = vector.extract_strided_slice %566 {offsets = [0, 0], sizes = [1, 16], strides = [1, 1]} : vector<1x48xf32> to vector<1x16xf32>
    %569 = arith.addf %567, %568 : vector<1x16xf32>
    %570 = arith.negf %569 : vector<1x16xf32>
    %571 = math.exp %570 : vector<1x16xf32>
    %cst_148 = arith.constant 1.000000e+00 : f32
    %572 = vector.broadcast %cst_148 : f32 to vector<1x16xf32>
    %573 = arith.addf %572, %571 : vector<1x16xf32>
    %574 = arith.divf %572, %573 : vector<1x16xf32>
    %575 = vector.extract_strided_slice %534 {offsets = [1, 0], sizes = [1, 16], strides = [1, 1]} : vector<16x16xf32> to vector<1x16xf32>
    %576 = vector.extract_strided_slice %566 {offsets = [0, 16], sizes = [1, 16], strides = [1, 1]} : vector<1x48xf32> to vector<1x16xf32>
    %577 = arith.addf %575, %576 : vector<1x16xf32>
    %578 = arith.negf %577 : vector<1x16xf32>
    %579 = math.exp %578 : vector<1x16xf32>
    %cst_149 = arith.constant 1.000000e+00 : f32
    %580 = vector.broadcast %cst_149 : f32 to vector<1x16xf32>
    %581 = arith.addf %580, %579 : vector<1x16xf32>
    %582 = arith.divf %580, %581 : vector<1x16xf32>
    %583 = vector.extract_strided_slice %535 {offsets = [1, 0], sizes = [1, 16], strides = [1, 1]} : vector<16x16xf32> to vector<1x16xf32>
    %584 = vector.extract_strided_slice %566 {offsets = [0, 32], sizes = [1, 16], strides = [1, 1]} : vector<1x48xf32> to vector<1x16xf32>
    %585 = arith.addf %584, %532 : vector<1x16xf32>
    %586 = arith.mulf %574, %585 : vector<1x16xf32>
    %587 = arith.addf %583, %586 : vector<1x16xf32>
    %588 = math.tanh %587 : vector<1x16xf32>
    %cst_150 = arith.constant 1.000000e+00 : f32
    %589 = vector.broadcast %cst_150 : f32 to vector<1x16xf32>
    %590 = arith.subf %589, %582 : vector<1x16xf32>
    %591 = arith.mulf %590, %588 : vector<1x16xf32>
    %592 = arith.mulf %582, %564 : vector<1x16xf32>
    %593 = arith.addf %591, %592 : vector<1x16xf32>
    %c1_151 = arith.constant 1 : index
    %c0_152 = arith.constant 0 : index
    %594 = vector.load %arg23[%c1_151, %c0_152] : memref<16x16xf32, #tpu.memory_space<vmem>>, vector<1x16xf32>
    tpu.vector_store %arg23[%c1_151, %c0_152], %593 {strides = array<i32>} : memref<16x16xf32, #tpu.memory_space<vmem>>, vector<1x16xf32>,
    %cst_153 = arith.constant dense<0.000000e+00> : vector<1x48xf32>
    %595 = tpu.matmul %593, %530, %cst_153 {dimension_numbers = #tpu.dot_dimension_numbers<[1], [0], [0], [1], [0, 0, 1, 1], [], []>} : vector<1x16xf32>, vector<16x48xf32>, vector<1x48xf32> -> vector<1x48xf32>
    %596 = vector.extract_strided_slice %533 {offsets = [2, 0], sizes = [1, 16], strides = [1, 1]} : vector<16x16xf32> to vector<1x16xf32>
    %597 = vector.extract_strided_slice %595 {offsets = [0, 0], sizes = [1, 16], strides = [1, 1]} : vector<1x48xf32> to vector<1x16xf32>
    %598 = arith.addf %596, %597 : vector<1x16xf32>
    %599 = arith.negf %598 : vector<1x16xf32>
    %600 = math.exp %599 : vector<1x16xf32>
    %cst_154 = arith.constant 1.000000e+00 : f32
    %601 = vector.broadcast %cst_154 : f32 to vector<1x16xf32>
    %602 = arith.addf %601, %600 : vector<1x16xf32>
    %603 = arith.divf %601, %602 : vector<1x16xf32>
    %604 = vector.extract_strided_slice %534 {offsets = [2, 0], sizes = [1, 16], strides = [1, 1]} : vector<16x16xf32> to vector<1x16xf32>
    %605 = vector.extract_strided_slice %595 {offsets = [0, 16], sizes = [1, 16], strides = [1, 1]} : vector<1x48xf32> to vector<1x16xf32>
    %606 = arith.addf %604, %605 : vector<1x16xf32>
    %607 = arith.negf %606 : vector<1x16xf32>
    %608 = math.exp %607 : vector<1x16xf32>
    %cst_155 = arith.constant 1.000000e+00 : f32
    %609 = vector.broadcast %cst_155 : f32 to vector<1x16xf32>
    %610 = arith.addf %609, %608 : vector<1x16xf32>
    %611 = arith.divf %609, %610 : vector<1x16xf32>
    %612 = vector.extract_strided_slice %535 {offsets = [2, 0], sizes = [1, 16], strides = [1, 1]} : vector<16x16xf32> to vector<1x16xf32>
    %613 = vector.extract_strided_slice %595 {offsets = [0, 32], sizes = [1, 16], strides = [1, 1]} : vector<1x48xf32> to vector<1x16xf32>
    %614 = arith.addf %613, %532 : vector<1x16xf32>
    %615 = arith.mulf %603, %614 : vector<1x16xf32>
    %616 = arith.addf %612, %615 : vector<1x16xf32>
    %617 = math.tanh %616 : vector<1x16xf32>
    %cst_156 = arith.constant 1.000000e+00 : f32
    %618 = vector.broadcast %cst_156 : f32 to vector<1x16xf32>
    %619 = arith.subf %618, %611 : vector<1x16xf32>
    %620 = arith.mulf %619, %617 : vector<1x16xf32>
    %621 = arith.mulf %611, %593 : vector<1x16xf32>
    %622 = arith.addf %620, %621 : vector<1x16xf32>
    %c2_157 = arith.constant 2 : index
    %c0_158 = arith.constant 0 : index
    %623 = vector.load %arg23[%c2_157, %c0_158] : memref<16x16xf32, #tpu.memory_space<vmem>>, vector<1x16xf32>
    tpu.vector_store %arg23[%c2_157, %c0_158], %622 {strides = array<i32>} : memref<16x16xf32, #tpu.memory_space<vmem>>, vector<1x16xf32>,
    %cst_159 = arith.constant dense<0.000000e+00> : vector<1x48xf32>
    %624 = tpu.matmul %622, %530, %cst_159 {dimension_numbers = #tpu.dot_dimension_numbers<[1], [0], [0], [1], [0, 0, 1, 1], [], []>} : vector<1x16xf32>, vector<16x48xf32>, vector<1x48xf32> -> vector<1x48xf32>
    %625 = vector.extract_strided_slice %533 {offsets = [3, 0], sizes = [1, 16], strides = [1, 1]} : vector<16x16xf32> to vector<1x16xf32>
    %626 = vector.extract_strided_slice %624 {offsets = [0, 0], sizes = [1, 16], strides = [1, 1]} : vector<1x48xf32> to vector<1x16xf32>
    %627 = arith.addf %625, %626 : vector<1x16xf32>
    %628 = arith.negf %627 : vector<1x16xf32>
    %629 = math.exp %628 : vector<1x16xf32>
    %cst_160 = arith.constant 1.000000e+00 : f32
    %630 = vector.broadcast %cst_160 : f32 to vector<1x16xf32>
    %631 = arith.addf %630, %629 : vector<1x16xf32>
    %632 = arith.divf %630, %631 : vector<1x16xf32>
    %633 = vector.extract_strided_slice %534 {offsets = [3, 0], sizes = [1, 16], strides = [1, 1]} : vector<16x16xf32> to vector<1x16xf32>
    %634 = vector.extract_strided_slice %624 {offsets = [0, 16], sizes = [1, 16], strides = [1, 1]} : vector<1x48xf32> to vector<1x16xf32>
    %635 = arith.addf %633, %634 : vector<1x16xf32>
    %636 = arith.negf %635 : vector<1x16xf32>
    %637 = math.exp %636 : vector<1x16xf32>
    %cst_161 = arith.constant 1.000000e+00 : f32
    %638 = vector.broadcast %cst_161 : f32 to vector<1x16xf32>
    %639 = arith.addf %638, %637 : vector<1x16xf32>
    %640 = arith.divf %638, %639 : vector<1x16xf32>
    %641 = vector.extract_strided_slice %535 {offsets = [3, 0], sizes = [1, 16], strides = [1, 1]} : vector<16x16xf32> to vector<1x16xf32>
    %642 = vector.extract_strided_slice %624 {offsets = [0, 32], sizes = [1, 16], strides = [1, 1]} : vector<1x48xf32> to vector<1x16xf32>
    %643 = arith.addf %642, %532 : vector<1x16xf32>
    %644 = arith.mulf %632, %643 : vector<1x16xf32>
    %645 = arith.addf %641, %644 : vector<1x16xf32>
    %646 = math.tanh %645 : vector<1x16xf32>
    %cst_162 = arith.constant 1.000000e+00 : f32
    %647 = vector.broadcast %cst_162 : f32 to vector<1x16xf32>
    %648 = arith.subf %647, %640 : vector<1x16xf32>
    %649 = arith.mulf %648, %646 : vector<1x16xf32>
    %650 = arith.mulf %640, %622 : vector<1x16xf32>
    %651 = arith.addf %649, %650 : vector<1x16xf32>
    %c3_163 = arith.constant 3 : index
    %c0_164 = arith.constant 0 : index
    %652 = vector.load %arg23[%c3_163, %c0_164] : memref<16x16xf32, #tpu.memory_space<vmem>>, vector<1x16xf32>
    tpu.vector_store %arg23[%c3_163, %c0_164], %651 {strides = array<i32>} : memref<16x16xf32, #tpu.memory_space<vmem>>, vector<1x16xf32>,
    %cst_165 = arith.constant dense<0.000000e+00> : vector<1x48xf32>
    %653 = tpu.matmul %651, %530, %cst_165 {dimension_numbers = #tpu.dot_dimension_numbers<[1], [0], [0], [1], [0, 0, 1, 1], [], []>} : vector<1x16xf32>, vector<16x48xf32>, vector<1x48xf32> -> vector<1x48xf32>
    %654 = vector.extract_strided_slice %533 {offsets = [4, 0], sizes = [1, 16], strides = [1, 1]} : vector<16x16xf32> to vector<1x16xf32>
    %655 = vector.extract_strided_slice %653 {offsets = [0, 0], sizes = [1, 16], strides = [1, 1]} : vector<1x48xf32> to vector<1x16xf32>
    %656 = arith.addf %654, %655 : vector<1x16xf32>
    %657 = arith.negf %656 : vector<1x16xf32>
    %658 = math.exp %657 : vector<1x16xf32>
    %cst_166 = arith.constant 1.000000e+00 : f32
    %659 = vector.broadcast %cst_166 : f32 to vector<1x16xf32>
    %660 = arith.addf %659, %658 : vector<1x16xf32>
    %661 = arith.divf %659, %660 : vector<1x16xf32>
    %662 = vector.extract_strided_slice %534 {offsets = [4, 0], sizes = [1, 16], strides = [1, 1]} : vector<16x16xf32> to vector<1x16xf32>
    %663 = vector.extract_strided_slice %653 {offsets = [0, 16], sizes = [1, 16], strides = [1, 1]} : vector<1x48xf32> to vector<1x16xf32>
    %664 = arith.addf %662, %663 : vector<1x16xf32>
    %665 = arith.negf %664 : vector<1x16xf32>
    %666 = math.exp %665 : vector<1x16xf32>
    %cst_167 = arith.constant 1.000000e+00 : f32
    %667 = vector.broadcast %cst_167 : f32 to vector<1x16xf32>
    %668 = arith.addf %667, %666 : vector<1x16xf32>
    %669 = arith.divf %667, %668 : vector<1x16xf32>
    %670 = vector.extract_strided_slice %535 {offsets = [4, 0], sizes = [1, 16], strides = [1, 1]} : vector<16x16xf32> to vector<1x16xf32>
    %671 = vector.extract_strided_slice %653 {offsets = [0, 32], sizes = [1, 16], strides = [1, 1]} : vector<1x48xf32> to vector<1x16xf32>
    %672 = arith.addf %671, %532 : vector<1x16xf32>
    %673 = arith.mulf %661, %672 : vector<1x16xf32>
    %674 = arith.addf %670, %673 : vector<1x16xf32>
    %675 = math.tanh %674 : vector<1x16xf32>
    %cst_168 = arith.constant 1.000000e+00 : f32
    %676 = vector.broadcast %cst_168 : f32 to vector<1x16xf32>
    %677 = arith.subf %676, %669 : vector<1x16xf32>
    %678 = arith.mulf %677, %675 : vector<1x16xf32>
    %679 = arith.mulf %669, %651 : vector<1x16xf32>
    %680 = arith.addf %678, %679 : vector<1x16xf32>
    %c4_169 = arith.constant 4 : index
    %c0_170 = arith.constant 0 : index
    %681 = vector.load %arg23[%c4_169, %c0_170] : memref<16x16xf32, #tpu.memory_space<vmem>>, vector<1x16xf32>
    tpu.vector_store %arg23[%c4_169, %c0_170], %680 {strides = array<i32>} : memref<16x16xf32, #tpu.memory_space<vmem>>, vector<1x16xf32>,
    %cst_171 = arith.constant dense<0.000000e+00> : vector<1x48xf32>
    %682 = tpu.matmul %680, %530, %cst_171 {dimension_numbers = #tpu.dot_dimension_numbers<[1], [0], [0], [1], [0, 0, 1, 1], [], []>} : vector<1x16xf32>, vector<16x48xf32>, vector<1x48xf32> -> vector<1x48xf32>
    %683 = vector.extract_strided_slice %533 {offsets = [5, 0], sizes = [1, 16], strides = [1, 1]} : vector<16x16xf32> to vector<1x16xf32>
    %684 = vector.extract_strided_slice %682 {offsets = [0, 0], sizes = [1, 16], strides = [1, 1]} : vector<1x48xf32> to vector<1x16xf32>
    %685 = arith.addf %683, %684 : vector<1x16xf32>
    %686 = arith.negf %685 : vector<1x16xf32>
    %687 = math.exp %686 : vector<1x16xf32>
    %cst_172 = arith.constant 1.000000e+00 : f32
    %688 = vector.broadcast %cst_172 : f32 to vector<1x16xf32>
    %689 = arith.addf %688, %687 : vector<1x16xf32>
    %690 = arith.divf %688, %689 : vector<1x16xf32>
    %691 = vector.extract_strided_slice %534 {offsets = [5, 0], sizes = [1, 16], strides = [1, 1]} : vector<16x16xf32> to vector<1x16xf32>
    %692 = vector.extract_strided_slice %682 {offsets = [0, 16], sizes = [1, 16], strides = [1, 1]} : vector<1x48xf32> to vector<1x16xf32>
    %693 = arith.addf %691, %692 : vector<1x16xf32>
    %694 = arith.negf %693 : vector<1x16xf32>
    %695 = math.exp %694 : vector<1x16xf32>
    %cst_173 = arith.constant 1.000000e+00 : f32
    %696 = vector.broadcast %cst_173 : f32 to vector<1x16xf32>
    %697 = arith.addf %696, %695 : vector<1x16xf32>
    %698 = arith.divf %696, %697 : vector<1x16xf32>
    %699 = vector.extract_strided_slice %535 {offsets = [5, 0], sizes = [1, 16], strides = [1, 1]} : vector<16x16xf32> to vector<1x16xf32>
    %700 = vector.extract_strided_slice %682 {offsets = [0, 32], sizes = [1, 16], strides = [1, 1]} : vector<1x48xf32> to vector<1x16xf32>
    %701 = arith.addf %700, %532 : vector<1x16xf32>
    %702 = arith.mulf %690, %701 : vector<1x16xf32>
    %703 = arith.addf %699, %702 : vector<1x16xf32>
    %704 = math.tanh %703 : vector<1x16xf32>
    %cst_174 = arith.constant 1.000000e+00 : f32
    %705 = vector.broadcast %cst_174 : f32 to vector<1x16xf32>
    %706 = arith.subf %705, %698 : vector<1x16xf32>
    %707 = arith.mulf %706, %704 : vector<1x16xf32>
    %708 = arith.mulf %698, %680 : vector<1x16xf32>
    %709 = arith.addf %707, %708 : vector<1x16xf32>
    %c5_175 = arith.constant 5 : index
    %c0_176 = arith.constant 0 : index
    %710 = vector.load %arg23[%c5_175, %c0_176] : memref<16x16xf32, #tpu.memory_space<vmem>>, vector<1x16xf32>
    tpu.vector_store %arg23[%c5_175, %c0_176], %709 {strides = array<i32>} : memref<16x16xf32, #tpu.memory_space<vmem>>, vector<1x16xf32>,
    %cst_177 = arith.constant dense<0.000000e+00> : vector<1x48xf32>
    %711 = tpu.matmul %709, %530, %cst_177 {dimension_numbers = #tpu.dot_dimension_numbers<[1], [0], [0], [1], [0, 0, 1, 1], [], []>} : vector<1x16xf32>, vector<16x48xf32>, vector<1x48xf32> -> vector<1x48xf32>
    %712 = vector.extract_strided_slice %533 {offsets = [6, 0], sizes = [1, 16], strides = [1, 1]} : vector<16x16xf32> to vector<1x16xf32>
    %713 = vector.extract_strided_slice %711 {offsets = [0, 0], sizes = [1, 16], strides = [1, 1]} : vector<1x48xf32> to vector<1x16xf32>
    %714 = arith.addf %712, %713 : vector<1x16xf32>
    %715 = arith.negf %714 : vector<1x16xf32>
    %716 = math.exp %715 : vector<1x16xf32>
    %cst_178 = arith.constant 1.000000e+00 : f32
    %717 = vector.broadcast %cst_178 : f32 to vector<1x16xf32>
    %718 = arith.addf %717, %716 : vector<1x16xf32>
    %719 = arith.divf %717, %718 : vector<1x16xf32>
    %720 = vector.extract_strided_slice %534 {offsets = [6, 0], sizes = [1, 16], strides = [1, 1]} : vector<16x16xf32> to vector<1x16xf32>
    %721 = vector.extract_strided_slice %711 {offsets = [0, 16], sizes = [1, 16], strides = [1, 1]} : vector<1x48xf32> to vector<1x16xf32>
    %722 = arith.addf %720, %721 : vector<1x16xf32>
    %723 = arith.negf %722 : vector<1x16xf32>
    %724 = math.exp %723 : vector<1x16xf32>
    %cst_179 = arith.constant 1.000000e+00 : f32
    %725 = vector.broadcast %cst_179 : f32 to vector<1x16xf32>
    %726 = arith.addf %725, %724 : vector<1x16xf32>
    %727 = arith.divf %725, %726 : vector<1x16xf32>
    %728 = vector.extract_strided_slice %535 {offsets = [6, 0], sizes = [1, 16], strides = [1, 1]} : vector<16x16xf32> to vector<1x16xf32>
    %729 = vector.extract_strided_slice %711 {offsets = [0, 32], sizes = [1, 16], strides = [1, 1]} : vector<1x48xf32> to vector<1x16xf32>
    %730 = arith.addf %729, %532 : vector<1x16xf32>
    %731 = arith.mulf %719, %730 : vector<1x16xf32>
    %732 = arith.addf %728, %731 : vector<1x16xf32>
    %733 = math.tanh %732 : vector<1x16xf32>
    %cst_180 = arith.constant 1.000000e+00 : f32
    %734 = vector.broadcast %cst_180 : f32 to vector<1x16xf32>
    %735 = arith.subf %734, %727 : vector<1x16xf32>
    %736 = arith.mulf %735, %733 : vector<1x16xf32>
    %737 = arith.mulf %727, %709 : vector<1x16xf32>
    %738 = arith.addf %736, %737 : vector<1x16xf32>
    %c6_181 = arith.constant 6 : index
    %c0_182 = arith.constant 0 : index
    %739 = vector.load %arg23[%c6_181, %c0_182] : memref<16x16xf32, #tpu.memory_space<vmem>>, vector<1x16xf32>
    tpu.vector_store %arg23[%c6_181, %c0_182], %738 {strides = array<i32>} : memref<16x16xf32, #tpu.memory_space<vmem>>, vector<1x16xf32>,
    %cst_183 = arith.constant dense<0.000000e+00> : vector<1x48xf32>
    %740 = tpu.matmul %738, %530, %cst_183 {dimension_numbers = #tpu.dot_dimension_numbers<[1], [0], [0], [1], [0, 0, 1, 1], [], []>} : vector<1x16xf32>, vector<16x48xf32>, vector<1x48xf32> -> vector<1x48xf32>
    %741 = vector.extract_strided_slice %533 {offsets = [7, 0], sizes = [1, 16], strides = [1, 1]} : vector<16x16xf32> to vector<1x16xf32>
    %742 = vector.extract_strided_slice %740 {offsets = [0, 0], sizes = [1, 16], strides = [1, 1]} : vector<1x48xf32> to vector<1x16xf32>
    %743 = arith.addf %741, %742 : vector<1x16xf32>
    %744 = arith.negf %743 : vector<1x16xf32>
    %745 = math.exp %744 : vector<1x16xf32>
    %cst_184 = arith.constant 1.000000e+00 : f32
    %746 = vector.broadcast %cst_184 : f32 to vector<1x16xf32>
    %747 = arith.addf %746, %745 : vector<1x16xf32>
    %748 = arith.divf %746, %747 : vector<1x16xf32>
    %749 = vector.extract_strided_slice %534 {offsets = [7, 0], sizes = [1, 16], strides = [1, 1]} : vector<16x16xf32> to vector<1x16xf32>
    %750 = vector.extract_strided_slice %740 {offsets = [0, 16], sizes = [1, 16], strides = [1, 1]} : vector<1x48xf32> to vector<1x16xf32>
    %751 = arith.addf %749, %750 : vector<1x16xf32>
    %752 = arith.negf %751 : vector<1x16xf32>
    %753 = math.exp %752 : vector<1x16xf32>
    %cst_185 = arith.constant 1.000000e+00 : f32
    %754 = vector.broadcast %cst_185 : f32 to vector<1x16xf32>
    %755 = arith.addf %754, %753 : vector<1x16xf32>
    %756 = arith.divf %754, %755 : vector<1x16xf32>
    %757 = vector.extract_strided_slice %535 {offsets = [7, 0], sizes = [1, 16], strides = [1, 1]} : vector<16x16xf32> to vector<1x16xf32>
    %758 = vector.extract_strided_slice %740 {offsets = [0, 32], sizes = [1, 16], strides = [1, 1]} : vector<1x48xf32> to vector<1x16xf32>
    %759 = arith.addf %758, %532 : vector<1x16xf32>
    %760 = arith.mulf %748, %759 : vector<1x16xf32>
    %761 = arith.addf %757, %760 : vector<1x16xf32>
    %762 = math.tanh %761 : vector<1x16xf32>
    %cst_186 = arith.constant 1.000000e+00 : f32
    %763 = vector.broadcast %cst_186 : f32 to vector<1x16xf32>
    %764 = arith.subf %763, %756 : vector<1x16xf32>
    %765 = arith.mulf %764, %762 : vector<1x16xf32>
    %766 = arith.mulf %756, %738 : vector<1x16xf32>
    %767 = arith.addf %765, %766 : vector<1x16xf32>
    %c7_187 = arith.constant 7 : index
    %c0_188 = arith.constant 0 : index
    %768 = vector.load %arg23[%c7_187, %c0_188] : memref<16x16xf32, #tpu.memory_space<vmem>>, vector<1x16xf32>
    tpu.vector_store %arg23[%c7_187, %c0_188], %767 {strides = array<i32>} : memref<16x16xf32, #tpu.memory_space<vmem>>, vector<1x16xf32>,
    %cst_189 = arith.constant dense<0.000000e+00> : vector<1x48xf32>
    %769 = tpu.matmul %767, %530, %cst_189 {dimension_numbers = #tpu.dot_dimension_numbers<[1], [0], [0], [1], [0, 0, 1, 1], [], []>} : vector<1x16xf32>, vector<16x48xf32>, vector<1x48xf32> -> vector<1x48xf32>
    %770 = vector.extract_strided_slice %533 {offsets = [8, 0], sizes = [1, 16], strides = [1, 1]} : vector<16x16xf32> to vector<1x16xf32>
    %771 = vector.extract_strided_slice %769 {offsets = [0, 0], sizes = [1, 16], strides = [1, 1]} : vector<1x48xf32> to vector<1x16xf32>
    %772 = arith.addf %770, %771 : vector<1x16xf32>
    %773 = arith.negf %772 : vector<1x16xf32>
    %774 = math.exp %773 : vector<1x16xf32>
    %cst_190 = arith.constant 1.000000e+00 : f32
    %775 = vector.broadcast %cst_190 : f32 to vector<1x16xf32>
    %776 = arith.addf %775, %774 : vector<1x16xf32>
    %777 = arith.divf %775, %776 : vector<1x16xf32>
    %778 = vector.extract_strided_slice %534 {offsets = [8, 0], sizes = [1, 16], strides = [1, 1]} : vector<16x16xf32> to vector<1x16xf32>
    %779 = vector.extract_strided_slice %769 {offsets = [0, 16], sizes = [1, 16], strides = [1, 1]} : vector<1x48xf32> to vector<1x16xf32>
    %780 = arith.addf %778, %779 : vector<1x16xf32>
    %781 = arith.negf %780 : vector<1x16xf32>
    %782 = math.exp %781 : vector<1x16xf32>
    %cst_191 = arith.constant 1.000000e+00 : f32
    %783 = vector.broadcast %cst_191 : f32 to vector<1x16xf32>
    %784 = arith.addf %783, %782 : vector<1x16xf32>
    %785 = arith.divf %783, %784 : vector<1x16xf32>
    %786 = vector.extract_strided_slice %535 {offsets = [8, 0], sizes = [1, 16], strides = [1, 1]} : vector<16x16xf32> to vector<1x16xf32>
    %787 = vector.extract_strided_slice %769 {offsets = [0, 32], sizes = [1, 16], strides = [1, 1]} : vector<1x48xf32> to vector<1x16xf32>
    %788 = arith.addf %787, %532 : vector<1x16xf32>
    %789 = arith.mulf %777, %788 : vector<1x16xf32>
    %790 = arith.addf %786, %789 : vector<1x16xf32>
    %791 = math.tanh %790 : vector<1x16xf32>
    %cst_192 = arith.constant 1.000000e+00 : f32
    %792 = vector.broadcast %cst_192 : f32 to vector<1x16xf32>
    %793 = arith.subf %792, %785 : vector<1x16xf32>
    %794 = arith.mulf %793, %791 : vector<1x16xf32>
    %795 = arith.mulf %785, %767 : vector<1x16xf32>
    %796 = arith.addf %794, %795 : vector<1x16xf32>
    %c8_193 = arith.constant 8 : index
    %c0_194 = arith.constant 0 : index
    %797 = vector.load %arg23[%c8_193, %c0_194] : memref<16x16xf32, #tpu.memory_space<vmem>>, vector<1x16xf32>
    tpu.vector_store %arg23[%c8_193, %c0_194], %796 {strides = array<i32>} : memref<16x16xf32, #tpu.memory_space<vmem>>, vector<1x16xf32>,
    %cst_195 = arith.constant dense<0.000000e+00> : vector<1x48xf32>
    %798 = tpu.matmul %796, %530, %cst_195 {dimension_numbers = #tpu.dot_dimension_numbers<[1], [0], [0], [1], [0, 0, 1, 1], [], []>} : vector<1x16xf32>, vector<16x48xf32>, vector<1x48xf32> -> vector<1x48xf32>
    %799 = vector.extract_strided_slice %533 {offsets = [9, 0], sizes = [1, 16], strides = [1, 1]} : vector<16x16xf32> to vector<1x16xf32>
    %800 = vector.extract_strided_slice %798 {offsets = [0, 0], sizes = [1, 16], strides = [1, 1]} : vector<1x48xf32> to vector<1x16xf32>
    %801 = arith.addf %799, %800 : vector<1x16xf32>
    %802 = arith.negf %801 : vector<1x16xf32>
    %803 = math.exp %802 : vector<1x16xf32>
    %cst_196 = arith.constant 1.000000e+00 : f32
    %804 = vector.broadcast %cst_196 : f32 to vector<1x16xf32>
    %805 = arith.addf %804, %803 : vector<1x16xf32>
    %806 = arith.divf %804, %805 : vector<1x16xf32>
    %807 = vector.extract_strided_slice %534 {offsets = [9, 0], sizes = [1, 16], strides = [1, 1]} : vector<16x16xf32> to vector<1x16xf32>
    %808 = vector.extract_strided_slice %798 {offsets = [0, 16], sizes = [1, 16], strides = [1, 1]} : vector<1x48xf32> to vector<1x16xf32>
    %809 = arith.addf %807, %808 : vector<1x16xf32>
    %810 = arith.negf %809 : vector<1x16xf32>
    %811 = math.exp %810 : vector<1x16xf32>
    %cst_197 = arith.constant 1.000000e+00 : f32
    %812 = vector.broadcast %cst_197 : f32 to vector<1x16xf32>
    %813 = arith.addf %812, %811 : vector<1x16xf32>
    %814 = arith.divf %812, %813 : vector<1x16xf32>
    %815 = vector.extract_strided_slice %535 {offsets = [9, 0], sizes = [1, 16], strides = [1, 1]} : vector<16x16xf32> to vector<1x16xf32>
    %816 = vector.extract_strided_slice %798 {offsets = [0, 32], sizes = [1, 16], strides = [1, 1]} : vector<1x48xf32> to vector<1x16xf32>
    %817 = arith.addf %816, %532 : vector<1x16xf32>
    %818 = arith.mulf %806, %817 : vector<1x16xf32>
    %819 = arith.addf %815, %818 : vector<1x16xf32>
    %820 = math.tanh %819 : vector<1x16xf32>
    %cst_198 = arith.constant 1.000000e+00 : f32
    %821 = vector.broadcast %cst_198 : f32 to vector<1x16xf32>
    %822 = arith.subf %821, %814 : vector<1x16xf32>
    %823 = arith.mulf %822, %820 : vector<1x16xf32>
    %824 = arith.mulf %814, %796 : vector<1x16xf32>
    %825 = arith.addf %823, %824 : vector<1x16xf32>
    %c9_199 = arith.constant 9 : index
    %c0_200 = arith.constant 0 : index
    %826 = vector.load %arg23[%c9_199, %c0_200] : memref<16x16xf32, #tpu.memory_space<vmem>>, vector<1x16xf32>
    tpu.vector_store %arg23[%c9_199, %c0_200], %825 {strides = array<i32>} : memref<16x16xf32, #tpu.memory_space<vmem>>, vector<1x16xf32>,
    %cst_201 = arith.constant dense<0.000000e+00> : vector<1x48xf32>
    %827 = tpu.matmul %825, %530, %cst_201 {dimension_numbers = #tpu.dot_dimension_numbers<[1], [0], [0], [1], [0, 0, 1, 1], [], []>} : vector<1x16xf32>, vector<16x48xf32>, vector<1x48xf32> -> vector<1x48xf32>
    %828 = vector.extract_strided_slice %533 {offsets = [10, 0], sizes = [1, 16], strides = [1, 1]} : vector<16x16xf32> to vector<1x16xf32>
    %829 = vector.extract_strided_slice %827 {offsets = [0, 0], sizes = [1, 16], strides = [1, 1]} : vector<1x48xf32> to vector<1x16xf32>
    %830 = arith.addf %828, %829 : vector<1x16xf32>
    %831 = arith.negf %830 : vector<1x16xf32>
    %832 = math.exp %831 : vector<1x16xf32>
    %cst_202 = arith.constant 1.000000e+00 : f32
    %833 = vector.broadcast %cst_202 : f32 to vector<1x16xf32>
    %834 = arith.addf %833, %832 : vector<1x16xf32>
    %835 = arith.divf %833, %834 : vector<1x16xf32>
    %836 = vector.extract_strided_slice %534 {offsets = [10, 0], sizes = [1, 16], strides = [1, 1]} : vector<16x16xf32> to vector<1x16xf32>
    %837 = vector.extract_strided_slice %827 {offsets = [0, 16], sizes = [1, 16], strides = [1, 1]} : vector<1x48xf32> to vector<1x16xf32>
    %838 = arith.addf %836, %837 : vector<1x16xf32>
    %839 = arith.negf %838 : vector<1x16xf32>
    %840 = math.exp %839 : vector<1x16xf32>
    %cst_203 = arith.constant 1.000000e+00 : f32
    %841 = vector.broadcast %cst_203 : f32 to vector<1x16xf32>
    %842 = arith.addf %841, %840 : vector<1x16xf32>
    %843 = arith.divf %841, %842 : vector<1x16xf32>
    %844 = vector.extract_strided_slice %535 {offsets = [10, 0], sizes = [1, 16], strides = [1, 1]} : vector<16x16xf32> to vector<1x16xf32>
    %845 = vector.extract_strided_slice %827 {offsets = [0, 32], sizes = [1, 16], strides = [1, 1]} : vector<1x48xf32> to vector<1x16xf32>
    %846 = arith.addf %845, %532 : vector<1x16xf32>
    %847 = arith.mulf %835, %846 : vector<1x16xf32>
    %848 = arith.addf %844, %847 : vector<1x16xf32>
    %849 = math.tanh %848 : vector<1x16xf32>
    %cst_204 = arith.constant 1.000000e+00 : f32
    %850 = vector.broadcast %cst_204 : f32 to vector<1x16xf32>
    %851 = arith.subf %850, %843 : vector<1x16xf32>
    %852 = arith.mulf %851, %849 : vector<1x16xf32>
    %853 = arith.mulf %843, %825 : vector<1x16xf32>
    %854 = arith.addf %852, %853 : vector<1x16xf32>
    %c10_205 = arith.constant 10 : index
    %c0_206 = arith.constant 0 : index
    %855 = vector.load %arg23[%c10_205, %c0_206] : memref<16x16xf32, #tpu.memory_space<vmem>>, vector<1x16xf32>
    tpu.vector_store %arg23[%c10_205, %c0_206], %854 {strides = array<i32>} : memref<16x16xf32, #tpu.memory_space<vmem>>, vector<1x16xf32>,
    %cst_207 = arith.constant dense<0.000000e+00> : vector<1x48xf32>
    %856 = tpu.matmul %854, %530, %cst_207 {dimension_numbers = #tpu.dot_dimension_numbers<[1], [0], [0], [1], [0, 0, 1, 1], [], []>} : vector<1x16xf32>, vector<16x48xf32>, vector<1x48xf32> -> vector<1x48xf32>
    %857 = vector.extract_strided_slice %533 {offsets = [11, 0], sizes = [1, 16], strides = [1, 1]} : vector<16x16xf32> to vector<1x16xf32>
    %858 = vector.extract_strided_slice %856 {offsets = [0, 0], sizes = [1, 16], strides = [1, 1]} : vector<1x48xf32> to vector<1x16xf32>
    %859 = arith.addf %857, %858 : vector<1x16xf32>
    %860 = arith.negf %859 : vector<1x16xf32>
    %861 = math.exp %860 : vector<1x16xf32>
    %cst_208 = arith.constant 1.000000e+00 : f32
    %862 = vector.broadcast %cst_208 : f32 to vector<1x16xf32>
    %863 = arith.addf %862, %861 : vector<1x16xf32>
    %864 = arith.divf %862, %863 : vector<1x16xf32>
    %865 = vector.extract_strided_slice %534 {offsets = [11, 0], sizes = [1, 16], strides = [1, 1]} : vector<16x16xf32> to vector<1x16xf32>
    %866 = vector.extract_strided_slice %856 {offsets = [0, 16], sizes = [1, 16], strides = [1, 1]} : vector<1x48xf32> to vector<1x16xf32>
    %867 = arith.addf %865, %866 : vector<1x16xf32>
    %868 = arith.negf %867 : vector<1x16xf32>
    %869 = math.exp %868 : vector<1x16xf32>
    %cst_209 = arith.constant 1.000000e+00 : f32
    %870 = vector.broadcast %cst_209 : f32 to vector<1x16xf32>
    %871 = arith.addf %870, %869 : vector<1x16xf32>
    %872 = arith.divf %870, %871 : vector<1x16xf32>
    %873 = vector.extract_strided_slice %535 {offsets = [11, 0], sizes = [1, 16], strides = [1, 1]} : vector<16x16xf32> to vector<1x16xf32>
    %874 = vector.extract_strided_slice %856 {offsets = [0, 32], sizes = [1, 16], strides = [1, 1]} : vector<1x48xf32> to vector<1x16xf32>
    %875 = arith.addf %874, %532 : vector<1x16xf32>
    %876 = arith.mulf %864, %875 : vector<1x16xf32>
    %877 = arith.addf %873, %876 : vector<1x16xf32>
    %878 = math.tanh %877 : vector<1x16xf32>
    %cst_210 = arith.constant 1.000000e+00 : f32
    %879 = vector.broadcast %cst_210 : f32 to vector<1x16xf32>
    %880 = arith.subf %879, %872 : vector<1x16xf32>
    %881 = arith.mulf %880, %878 : vector<1x16xf32>
    %882 = arith.mulf %872, %854 : vector<1x16xf32>
    %883 = arith.addf %881, %882 : vector<1x16xf32>
    %c11_211 = arith.constant 11 : index
    %c0_212 = arith.constant 0 : index
    %884 = vector.load %arg23[%c11_211, %c0_212] : memref<16x16xf32, #tpu.memory_space<vmem>>, vector<1x16xf32>
    tpu.vector_store %arg23[%c11_211, %c0_212], %883 {strides = array<i32>} : memref<16x16xf32, #tpu.memory_space<vmem>>, vector<1x16xf32>,
    %cst_213 = arith.constant dense<0.000000e+00> : vector<1x48xf32>
    %885 = tpu.matmul %883, %530, %cst_213 {dimension_numbers = #tpu.dot_dimension_numbers<[1], [0], [0], [1], [0, 0, 1, 1], [], []>} : vector<1x16xf32>, vector<16x48xf32>, vector<1x48xf32> -> vector<1x48xf32>
    %886 = vector.extract_strided_slice %533 {offsets = [12, 0], sizes = [1, 16], strides = [1, 1]} : vector<16x16xf32> to vector<1x16xf32>
    %887 = vector.extract_strided_slice %885 {offsets = [0, 0], sizes = [1, 16], strides = [1, 1]} : vector<1x48xf32> to vector<1x16xf32>
    %888 = arith.addf %886, %887 : vector<1x16xf32>
    %889 = arith.negf %888 : vector<1x16xf32>
    %890 = math.exp %889 : vector<1x16xf32>
    %cst_214 = arith.constant 1.000000e+00 : f32
    %891 = vector.broadcast %cst_214 : f32 to vector<1x16xf32>
    %892 = arith.addf %891, %890 : vector<1x16xf32>
    %893 = arith.divf %891, %892 : vector<1x16xf32>
    %894 = vector.extract_strided_slice %534 {offsets = [12, 0], sizes = [1, 16], strides = [1, 1]} : vector<16x16xf32> to vector<1x16xf32>
    %895 = vector.extract_strided_slice %885 {offsets = [0, 16], sizes = [1, 16], strides = [1, 1]} : vector<1x48xf32> to vector<1x16xf32>
    %896 = arith.addf %894, %895 : vector<1x16xf32>
    %897 = arith.negf %896 : vector<1x16xf32>
    %898 = math.exp %897 : vector<1x16xf32>
    %cst_215 = arith.constant 1.000000e+00 : f32
    %899 = vector.broadcast %cst_215 : f32 to vector<1x16xf32>
    %900 = arith.addf %899, %898 : vector<1x16xf32>
    %901 = arith.divf %899, %900 : vector<1x16xf32>
    %902 = vector.extract_strided_slice %535 {offsets = [12, 0], sizes = [1, 16], strides = [1, 1]} : vector<16x16xf32> to vector<1x16xf32>
    %903 = vector.extract_strided_slice %885 {offsets = [0, 32], sizes = [1, 16], strides = [1, 1]} : vector<1x48xf32> to vector<1x16xf32>
    %904 = arith.addf %903, %532 : vector<1x16xf32>
    %905 = arith.mulf %893, %904 : vector<1x16xf32>
    %906 = arith.addf %902, %905 : vector<1x16xf32>
    %907 = math.tanh %906 : vector<1x16xf32>
    %cst_216 = arith.constant 1.000000e+00 : f32
    %908 = vector.broadcast %cst_216 : f32 to vector<1x16xf32>
    %909 = arith.subf %908, %901 : vector<1x16xf32>
    %910 = arith.mulf %909, %907 : vector<1x16xf32>
    %911 = arith.mulf %901, %883 : vector<1x16xf32>
    %912 = arith.addf %910, %911 : vector<1x16xf32>
    %c12_217 = arith.constant 12 : index
    %c0_218 = arith.constant 0 : index
    %913 = vector.load %arg23[%c12_217, %c0_218] : memref<16x16xf32, #tpu.memory_space<vmem>>, vector<1x16xf32>
    tpu.vector_store %arg23[%c12_217, %c0_218], %912 {strides = array<i32>} : memref<16x16xf32, #tpu.memory_space<vmem>>, vector<1x16xf32>,
    %cst_219 = arith.constant dense<0.000000e+00> : vector<1x48xf32>
    %914 = tpu.matmul %912, %530, %cst_219 {dimension_numbers = #tpu.dot_dimension_numbers<[1], [0], [0], [1], [0, 0, 1, 1], [], []>} : vector<1x16xf32>, vector<16x48xf32>, vector<1x48xf32> -> vector<1x48xf32>
    %915 = vector.extract_strided_slice %533 {offsets = [13, 0], sizes = [1, 16], strides = [1, 1]} : vector<16x16xf32> to vector<1x16xf32>
    %916 = vector.extract_strided_slice %914 {offsets = [0, 0], sizes = [1, 16], strides = [1, 1]} : vector<1x48xf32> to vector<1x16xf32>
    %917 = arith.addf %915, %916 : vector<1x16xf32>
    %918 = arith.negf %917 : vector<1x16xf32>
    %919 = math.exp %918 : vector<1x16xf32>
    %cst_220 = arith.constant 1.000000e+00 : f32
    %920 = vector.broadcast %cst_220 : f32 to vector<1x16xf32>
    %921 = arith.addf %920, %919 : vector<1x16xf32>
    %922 = arith.divf %920, %921 : vector<1x16xf32>
    %923 = vector.extract_strided_slice %534 {offsets = [13, 0], sizes = [1, 16], strides = [1, 1]} : vector<16x16xf32> to vector<1x16xf32>
    %924 = vector.extract_strided_slice %914 {offsets = [0, 16], sizes = [1, 16], strides = [1, 1]} : vector<1x48xf32> to vector<1x16xf32>
    %925 = arith.addf %923, %924 : vector<1x16xf32>
    %926 = arith.negf %925 : vector<1x16xf32>
    %927 = math.exp %926 : vector<1x16xf32>
    %cst_221 = arith.constant 1.000000e+00 : f32
    %928 = vector.broadcast %cst_221 : f32 to vector<1x16xf32>
    %929 = arith.addf %928, %927 : vector<1x16xf32>
    %930 = arith.divf %928, %929 : vector<1x16xf32>
    %931 = vector.extract_strided_slice %535 {offsets = [13, 0], sizes = [1, 16], strides = [1, 1]} : vector<16x16xf32> to vector<1x16xf32>
    %932 = vector.extract_strided_slice %914 {offsets = [0, 32], sizes = [1, 16], strides = [1, 1]} : vector<1x48xf32> to vector<1x16xf32>
    %933 = arith.addf %932, %532 : vector<1x16xf32>
    %934 = arith.mulf %922, %933 : vector<1x16xf32>
    %935 = arith.addf %931, %934 : vector<1x16xf32>
    %936 = math.tanh %935 : vector<1x16xf32>
    %cst_222 = arith.constant 1.000000e+00 : f32
    %937 = vector.broadcast %cst_222 : f32 to vector<1x16xf32>
    %938 = arith.subf %937, %930 : vector<1x16xf32>
    %939 = arith.mulf %938, %936 : vector<1x16xf32>
    %940 = arith.mulf %930, %912 : vector<1x16xf32>
    %941 = arith.addf %939, %940 : vector<1x16xf32>
    %c13_223 = arith.constant 13 : index
    %c0_224 = arith.constant 0 : index
    %942 = vector.load %arg23[%c13_223, %c0_224] : memref<16x16xf32, #tpu.memory_space<vmem>>, vector<1x16xf32>
    tpu.vector_store %arg23[%c13_223, %c0_224], %941 {strides = array<i32>} : memref<16x16xf32, #tpu.memory_space<vmem>>, vector<1x16xf32>,
    %cst_225 = arith.constant dense<0.000000e+00> : vector<1x48xf32>
    %943 = tpu.matmul %941, %530, %cst_225 {dimension_numbers = #tpu.dot_dimension_numbers<[1], [0], [0], [1], [0, 0, 1, 1], [], []>} : vector<1x16xf32>, vector<16x48xf32>, vector<1x48xf32> -> vector<1x48xf32>
    %944 = vector.extract_strided_slice %533 {offsets = [14, 0], sizes = [1, 16], strides = [1, 1]} : vector<16x16xf32> to vector<1x16xf32>
    %945 = vector.extract_strided_slice %943 {offsets = [0, 0], sizes = [1, 16], strides = [1, 1]} : vector<1x48xf32> to vector<1x16xf32>
    %946 = arith.addf %944, %945 : vector<1x16xf32>
    %947 = arith.negf %946 : vector<1x16xf32>
    %948 = math.exp %947 : vector<1x16xf32>
    %cst_226 = arith.constant 1.000000e+00 : f32
    %949 = vector.broadcast %cst_226 : f32 to vector<1x16xf32>
    %950 = arith.addf %949, %948 : vector<1x16xf32>
    %951 = arith.divf %949, %950 : vector<1x16xf32>
    %952 = vector.extract_strided_slice %534 {offsets = [14, 0], sizes = [1, 16], strides = [1, 1]} : vector<16x16xf32> to vector<1x16xf32>
    %953 = vector.extract_strided_slice %943 {offsets = [0, 16], sizes = [1, 16], strides = [1, 1]} : vector<1x48xf32> to vector<1x16xf32>
    %954 = arith.addf %952, %953 : vector<1x16xf32>
    %955 = arith.negf %954 : vector<1x16xf32>
    %956 = math.exp %955 : vector<1x16xf32>
    %cst_227 = arith.constant 1.000000e+00 : f32
    %957 = vector.broadcast %cst_227 : f32 to vector<1x16xf32>
    %958 = arith.addf %957, %956 : vector<1x16xf32>
    %959 = arith.divf %957, %958 : vector<1x16xf32>
    %960 = vector.extract_strided_slice %535 {offsets = [14, 0], sizes = [1, 16], strides = [1, 1]} : vector<16x16xf32> to vector<1x16xf32>
    %961 = vector.extract_strided_slice %943 {offsets = [0, 32], sizes = [1, 16], strides = [1, 1]} : vector<1x48xf32> to vector<1x16xf32>
    %962 = arith.addf %961, %532 : vector<1x16xf32>
    %963 = arith.mulf %951, %962 : vector<1x16xf32>
    %964 = arith.addf %960, %963 : vector<1x16xf32>
    %965 = math.tanh %964 : vector<1x16xf32>
    %cst_228 = arith.constant 1.000000e+00 : f32
    %966 = vector.broadcast %cst_228 : f32 to vector<1x16xf32>
    %967 = arith.subf %966, %959 : vector<1x16xf32>
    %968 = arith.mulf %967, %965 : vector<1x16xf32>
    %969 = arith.mulf %959, %941 : vector<1x16xf32>
    %970 = arith.addf %968, %969 : vector<1x16xf32>
    %c14_229 = arith.constant 14 : index
    %c0_230 = arith.constant 0 : index
    %971 = vector.load %arg23[%c14_229, %c0_230] : memref<16x16xf32, #tpu.memory_space<vmem>>, vector<1x16xf32>
    tpu.vector_store %arg23[%c14_229, %c0_230], %970 {strides = array<i32>} : memref<16x16xf32, #tpu.memory_space<vmem>>, vector<1x16xf32>,
    %cst_231 = arith.constant dense<0.000000e+00> : vector<1x48xf32>
    %972 = tpu.matmul %970, %530, %cst_231 {dimension_numbers = #tpu.dot_dimension_numbers<[1], [0], [0], [1], [0, 0, 1, 1], [], []>} : vector<1x16xf32>, vector<16x48xf32>, vector<1x48xf32> -> vector<1x48xf32>
    %973 = vector.extract_strided_slice %533 {offsets = [15, 0], sizes = [1, 16], strides = [1, 1]} : vector<16x16xf32> to vector<1x16xf32>
    %974 = vector.extract_strided_slice %972 {offsets = [0, 0], sizes = [1, 16], strides = [1, 1]} : vector<1x48xf32> to vector<1x16xf32>
    %975 = arith.addf %973, %974 : vector<1x16xf32>
    %976 = arith.negf %975 : vector<1x16xf32>
    %977 = math.exp %976 : vector<1x16xf32>
    %cst_232 = arith.constant 1.000000e+00 : f32
    %978 = vector.broadcast %cst_232 : f32 to vector<1x16xf32>
    %979 = arith.addf %978, %977 : vector<1x16xf32>
    %980 = arith.divf %978, %979 : vector<1x16xf32>
    %981 = vector.extract_strided_slice %534 {offsets = [15, 0], sizes = [1, 16], strides = [1, 1]} : vector<16x16xf32> to vector<1x16xf32>
    %982 = vector.extract_strided_slice %972 {offsets = [0, 16], sizes = [1, 16], strides = [1, 1]} : vector<1x48xf32> to vector<1x16xf32>
    %983 = arith.addf %981, %982 : vector<1x16xf32>
    %984 = arith.negf %983 : vector<1x16xf32>
    %985 = math.exp %984 : vector<1x16xf32>
    %cst_233 = arith.constant 1.000000e+00 : f32
    %986 = vector.broadcast %cst_233 : f32 to vector<1x16xf32>
    %987 = arith.addf %986, %985 : vector<1x16xf32>
    %988 = arith.divf %986, %987 : vector<1x16xf32>
    %989 = vector.extract_strided_slice %535 {offsets = [15, 0], sizes = [1, 16], strides = [1, 1]} : vector<16x16xf32> to vector<1x16xf32>
    %990 = vector.extract_strided_slice %972 {offsets = [0, 32], sizes = [1, 16], strides = [1, 1]} : vector<1x48xf32> to vector<1x16xf32>
    %991 = arith.addf %990, %532 : vector<1x16xf32>
    %992 = arith.mulf %980, %991 : vector<1x16xf32>
    %993 = arith.addf %989, %992 : vector<1x16xf32>
    %994 = math.tanh %993 : vector<1x16xf32>
    %cst_234 = arith.constant 1.000000e+00 : f32
    %995 = vector.broadcast %cst_234 : f32 to vector<1x16xf32>
    %996 = arith.subf %995, %988 : vector<1x16xf32>
    %997 = arith.mulf %996, %994 : vector<1x16xf32>
    %998 = arith.mulf %988, %970 : vector<1x16xf32>
    %999 = arith.addf %997, %998 : vector<1x16xf32>
    %c15_235 = arith.constant 15 : index
    %c0_236 = arith.constant 0 : index
    %1000 = vector.load %arg23[%c15_235, %c0_236] : memref<16x16xf32, #tpu.memory_space<vmem>>, vector<1x16xf32>
    tpu.vector_store %arg23[%c15_235, %c0_236], %999 {strides = array<i32>} : memref<16x16xf32, #tpu.memory_space<vmem>>, vector<1x16xf32>,
    %c0_237 = arith.constant 0 : index
    %c0_238 = arith.constant 0 : index
    %1001 = vector.load %arg23[%c0_237, %c0_238] : memref<16x16xf32, #tpu.memory_space<vmem>>, vector<16x16xf32>
    %c1_239 = arith.constant 1 : index
    %c0_240 = arith.constant 0 : index
    %c0_241 = arith.constant 0 : index
    %1002 = vector.load %arg10[%c1_239, %c0_240, %c0_241] : memref<2x16x48xf32, #tpu.memory_space<vmem>>, vector<1x16x48xf32>
    %1003 = vector.shape_cast %1002 : vector<1x16x48xf32> to vector<16x48xf32>
    %cst_242 = arith.constant dense<0.000000e+00> : vector<16x48xf32>
    %1004 = tpu.matmul %1001, %1003, %cst_242 {dimension_numbers = #tpu.dot_dimension_numbers<[1], [0], [0], [1], [0, 0, 1, 1], [], []>} : vector<16x16xf32>, vector<16x48xf32>, vector<16x48xf32> -> vector<16x48xf32>
    %c2_243 = arith.constant 2 : index
    %c0_244 = arith.constant 0 : index
    %c0_245 = arith.constant 0 : index
    %1005 = vector.load %arg12[%c2_243, %c0_244, %c0_245] : memref<3x1x48xf32, #tpu.memory_space<vmem>>, vector<1x1x48xf32>
    %1006 = vector.shape_cast %1005 : vector<1x1x48xf32> to vector<1x48xf32>
    %1007 = vector.broadcast %1006 : vector<1x48xf32> to vector<16x48xf32>
    %1008 = arith.addf %1004, %1007 : vector<16x48xf32>
    %c2_246 = arith.constant 2 : index
    %c0_247 = arith.constant 0 : index
    %c0_248 = arith.constant 0 : index
    %1009 = vector.load %arg11[%c2_246, %c0_247, %c0_248] : memref<3x16x48xf32, #tpu.memory_space<vmem>>, vector<1x16x48xf32>
    %1010 = vector.shape_cast %1009 : vector<1x16x48xf32> to vector<16x48xf32>
    %c2_249 = arith.constant 2 : index
    %c0_250 = arith.constant 0 : index
    %c0_251 = arith.constant 0 : index
    %1011 = vector.load %arg13[%c2_249, %c0_250, %c0_251] : memref<3x1x16xf32, #tpu.memory_space<vmem>>, vector<1x1x16xf32>
    %1012 = vector.shape_cast %1011 : vector<1x1x16xf32> to vector<1x16xf32>
    %1013 = vector.extract_strided_slice %1008 {offsets = [0, 0], sizes = [16, 16], strides = [1, 1]} : vector<16x48xf32> to vector<16x16xf32>
    %1014 = vector.extract_strided_slice %1008 {offsets = [0, 16], sizes = [16, 16], strides = [1, 1]} : vector<16x48xf32> to vector<16x16xf32>
    %1015 = vector.extract_strided_slice %1008 {offsets = [0, 32], sizes = [16, 16], strides = [1, 1]} : vector<16x48xf32> to vector<16x16xf32>
    %cst_252 = arith.constant 0.000000e+00 : f32
    %1016 = vector.broadcast %cst_252 : f32 to vector<1x16xf32>
    %cst_253 = arith.constant dense<0.000000e+00> : vector<1x48xf32>
    %1017 = tpu.matmul %1016, %1010, %cst_253 {dimension_numbers = #tpu.dot_dimension_numbers<[1], [0], [0], [1], [0, 0, 1, 1], [], []>} : vector<1x16xf32>, vector<16x48xf32>, vector<1x48xf32> -> vector<1x48xf32>
    %1018 = vector.extract_strided_slice %1013 {offsets = [0, 0], sizes = [1, 16], strides = [1, 1]} : vector<16x16xf32> to vector<1x16xf32>
    %1019 = vector.extract_strided_slice %1017 {offsets = [0, 0], sizes = [1, 16], strides = [1, 1]} : vector<1x48xf32> to vector<1x16xf32>
    %1020 = arith.addf %1018, %1019 : vector<1x16xf32>
    %1021 = arith.negf %1020 : vector<1x16xf32>
    %1022 = math.exp %1021 : vector<1x16xf32>
    %cst_254 = arith.constant 1.000000e+00 : f32
    %1023 = vector.broadcast %cst_254 : f32 to vector<1x16xf32>
    %1024 = arith.addf %1023, %1022 : vector<1x16xf32>
    %1025 = arith.divf %1023, %1024 : vector<1x16xf32>
    %1026 = vector.extract_strided_slice %1014 {offsets = [0, 0], sizes = [1, 16], strides = [1, 1]} : vector<16x16xf32> to vector<1x16xf32>
    %1027 = vector.extract_strided_slice %1017 {offsets = [0, 16], sizes = [1, 16], strides = [1, 1]} : vector<1x48xf32> to vector<1x16xf32>
    %1028 = arith.addf %1026, %1027 : vector<1x16xf32>
    %1029 = arith.negf %1028 : vector<1x16xf32>
    %1030 = math.exp %1029 : vector<1x16xf32>
    %cst_255 = arith.constant 1.000000e+00 : f32
    %1031 = vector.broadcast %cst_255 : f32 to vector<1x16xf32>
    %1032 = arith.addf %1031, %1030 : vector<1x16xf32>
    %1033 = arith.divf %1031, %1032 : vector<1x16xf32>
    %1034 = vector.extract_strided_slice %1015 {offsets = [0, 0], sizes = [1, 16], strides = [1, 1]} : vector<16x16xf32> to vector<1x16xf32>
    %1035 = vector.extract_strided_slice %1017 {offsets = [0, 32], sizes = [1, 16], strides = [1, 1]} : vector<1x48xf32> to vector<1x16xf32>
    %1036 = arith.addf %1035, %1012 : vector<1x16xf32>
    %1037 = arith.mulf %1025, %1036 : vector<1x16xf32>
    %1038 = arith.addf %1034, %1037 : vector<1x16xf32>
    %1039 = math.tanh %1038 : vector<1x16xf32>
    %cst_256 = arith.constant 1.000000e+00 : f32
    %1040 = vector.broadcast %cst_256 : f32 to vector<1x16xf32>
    %1041 = arith.subf %1040, %1033 : vector<1x16xf32>
    %1042 = arith.mulf %1041, %1039 : vector<1x16xf32>
    %1043 = arith.mulf %1033, %1016 : vector<1x16xf32>
    %1044 = arith.addf %1042, %1043 : vector<1x16xf32>
    %c0_257 = arith.constant 0 : index
    %c0_258 = arith.constant 0 : index
    %1045 = vector.load %arg23[%c0_257, %c0_258] : memref<16x16xf32, #tpu.memory_space<vmem>>, vector<1x16xf32>
    tpu.vector_store %arg23[%c0_257, %c0_258], %1044 {strides = array<i32>} : memref<16x16xf32, #tpu.memory_space<vmem>>, vector<1x16xf32>,
    %cst_259 = arith.constant dense<0.000000e+00> : vector<1x48xf32>
    %1046 = tpu.matmul %1044, %1010, %cst_259 {dimension_numbers = #tpu.dot_dimension_numbers<[1], [0], [0], [1], [0, 0, 1, 1], [], []>} : vector<1x16xf32>, vector<16x48xf32>, vector<1x48xf32> -> vector<1x48xf32>
    %1047 = vector.extract_strided_slice %1013 {offsets = [1, 0], sizes = [1, 16], strides = [1, 1]} : vector<16x16xf32> to vector<1x16xf32>
    %1048 = vector.extract_strided_slice %1046 {offsets = [0, 0], sizes = [1, 16], strides = [1, 1]} : vector<1x48xf32> to vector<1x16xf32>
    %1049 = arith.addf %1047, %1048 : vector<1x16xf32>
    %1050 = arith.negf %1049 : vector<1x16xf32>
    %1051 = math.exp %1050 : vector<1x16xf32>
    %cst_260 = arith.constant 1.000000e+00 : f32
    %1052 = vector.broadcast %cst_260 : f32 to vector<1x16xf32>
    %1053 = arith.addf %1052, %1051 : vector<1x16xf32>
    %1054 = arith.divf %1052, %1053 : vector<1x16xf32>
    %1055 = vector.extract_strided_slice %1014 {offsets = [1, 0], sizes = [1, 16], strides = [1, 1]} : vector<16x16xf32> to vector<1x16xf32>
    %1056 = vector.extract_strided_slice %1046 {offsets = [0, 16], sizes = [1, 16], strides = [1, 1]} : vector<1x48xf32> to vector<1x16xf32>
    %1057 = arith.addf %1055, %1056 : vector<1x16xf32>
    %1058 = arith.negf %1057 : vector<1x16xf32>
    %1059 = math.exp %1058 : vector<1x16xf32>
    %cst_261 = arith.constant 1.000000e+00 : f32
    %1060 = vector.broadcast %cst_261 : f32 to vector<1x16xf32>
    %1061 = arith.addf %1060, %1059 : vector<1x16xf32>
    %1062 = arith.divf %1060, %1061 : vector<1x16xf32>
    %1063 = vector.extract_strided_slice %1015 {offsets = [1, 0], sizes = [1, 16], strides = [1, 1]} : vector<16x16xf32> to vector<1x16xf32>
    %1064 = vector.extract_strided_slice %1046 {offsets = [0, 32], sizes = [1, 16], strides = [1, 1]} : vector<1x48xf32> to vector<1x16xf32>
    %1065 = arith.addf %1064, %1012 : vector<1x16xf32>
    %1066 = arith.mulf %1054, %1065 : vector<1x16xf32>
    %1067 = arith.addf %1063, %1066 : vector<1x16xf32>
    %1068 = math.tanh %1067 : vector<1x16xf32>
    %cst_262 = arith.constant 1.000000e+00 : f32
    %1069 = vector.broadcast %cst_262 : f32 to vector<1x16xf32>
    %1070 = arith.subf %1069, %1062 : vector<1x16xf32>
    %1071 = arith.mulf %1070, %1068 : vector<1x16xf32>
    %1072 = arith.mulf %1062, %1044 : vector<1x16xf32>
    %1073 = arith.addf %1071, %1072 : vector<1x16xf32>
    %c1_263 = arith.constant 1 : index
    %c0_264 = arith.constant 0 : index
    %1074 = vector.load %arg23[%c1_263, %c0_264] : memref<16x16xf32, #tpu.memory_space<vmem>>, vector<1x16xf32>
    tpu.vector_store %arg23[%c1_263, %c0_264], %1073 {strides = array<i32>} : memref<16x16xf32, #tpu.memory_space<vmem>>, vector<1x16xf32>,
    %cst_265 = arith.constant dense<0.000000e+00> : vector<1x48xf32>
    %1075 = tpu.matmul %1073, %1010, %cst_265 {dimension_numbers = #tpu.dot_dimension_numbers<[1], [0], [0], [1], [0, 0, 1, 1], [], []>} : vector<1x16xf32>, vector<16x48xf32>, vector<1x48xf32> -> vector<1x48xf32>
    %1076 = vector.extract_strided_slice %1013 {offsets = [2, 0], sizes = [1, 16], strides = [1, 1]} : vector<16x16xf32> to vector<1x16xf32>
    %1077 = vector.extract_strided_slice %1075 {offsets = [0, 0], sizes = [1, 16], strides = [1, 1]} : vector<1x48xf32> to vector<1x16xf32>
    %1078 = arith.addf %1076, %1077 : vector<1x16xf32>
    %1079 = arith.negf %1078 : vector<1x16xf32>
    %1080 = math.exp %1079 : vector<1x16xf32>
    %cst_266 = arith.constant 1.000000e+00 : f32
    %1081 = vector.broadcast %cst_266 : f32 to vector<1x16xf32>
    %1082 = arith.addf %1081, %1080 : vector<1x16xf32>
    %1083 = arith.divf %1081, %1082 : vector<1x16xf32>
    %1084 = vector.extract_strided_slice %1014 {offsets = [2, 0], sizes = [1, 16], strides = [1, 1]} : vector<16x16xf32> to vector<1x16xf32>
    %1085 = vector.extract_strided_slice %1075 {offsets = [0, 16], sizes = [1, 16], strides = [1, 1]} : vector<1x48xf32> to vector<1x16xf32>
    %1086 = arith.addf %1084, %1085 : vector<1x16xf32>
    %1087 = arith.negf %1086 : vector<1x16xf32>
    %1088 = math.exp %1087 : vector<1x16xf32>
    %cst_267 = arith.constant 1.000000e+00 : f32
    %1089 = vector.broadcast %cst_267 : f32 to vector<1x16xf32>
    %1090 = arith.addf %1089, %1088 : vector<1x16xf32>
    %1091 = arith.divf %1089, %1090 : vector<1x16xf32>
    %1092 = vector.extract_strided_slice %1015 {offsets = [2, 0], sizes = [1, 16], strides = [1, 1]} : vector<16x16xf32> to vector<1x16xf32>
    %1093 = vector.extract_strided_slice %1075 {offsets = [0, 32], sizes = [1, 16], strides = [1, 1]} : vector<1x48xf32> to vector<1x16xf32>
    %1094 = arith.addf %1093, %1012 : vector<1x16xf32>
    %1095 = arith.mulf %1083, %1094 : vector<1x16xf32>
    %1096 = arith.addf %1092, %1095 : vector<1x16xf32>
    %1097 = math.tanh %1096 : vector<1x16xf32>
    %cst_268 = arith.constant 1.000000e+00 : f32
    %1098 = vector.broadcast %cst_268 : f32 to vector<1x16xf32>
    %1099 = arith.subf %1098, %1091 : vector<1x16xf32>
    %1100 = arith.mulf %1099, %1097 : vector<1x16xf32>
    %1101 = arith.mulf %1091, %1073 : vector<1x16xf32>
    %1102 = arith.addf %1100, %1101 : vector<1x16xf32>
    %c2_269 = arith.constant 2 : index
    %c0_270 = arith.constant 0 : index
    %1103 = vector.load %arg23[%c2_269, %c0_270] : memref<16x16xf32, #tpu.memory_space<vmem>>, vector<1x16xf32>
    tpu.vector_store %arg23[%c2_269, %c0_270], %1102 {strides = array<i32>} : memref<16x16xf32, #tpu.memory_space<vmem>>, vector<1x16xf32>,
    %cst_271 = arith.constant dense<0.000000e+00> : vector<1x48xf32>
    %1104 = tpu.matmul %1102, %1010, %cst_271 {dimension_numbers = #tpu.dot_dimension_numbers<[1], [0], [0], [1], [0, 0, 1, 1], [], []>} : vector<1x16xf32>, vector<16x48xf32>, vector<1x48xf32> -> vector<1x48xf32>
    %1105 = vector.extract_strided_slice %1013 {offsets = [3, 0], sizes = [1, 16], strides = [1, 1]} : vector<16x16xf32> to vector<1x16xf32>
    %1106 = vector.extract_strided_slice %1104 {offsets = [0, 0], sizes = [1, 16], strides = [1, 1]} : vector<1x48xf32> to vector<1x16xf32>
    %1107 = arith.addf %1105, %1106 : vector<1x16xf32>
    %1108 = arith.negf %1107 : vector<1x16xf32>
    %1109 = math.exp %1108 : vector<1x16xf32>
    %cst_272 = arith.constant 1.000000e+00 : f32
    %1110 = vector.broadcast %cst_272 : f32 to vector<1x16xf32>
    %1111 = arith.addf %1110, %1109 : vector<1x16xf32>
    %1112 = arith.divf %1110, %1111 : vector<1x16xf32>
    %1113 = vector.extract_strided_slice %1014 {offsets = [3, 0], sizes = [1, 16], strides = [1, 1]} : vector<16x16xf32> to vector<1x16xf32>
    %1114 = vector.extract_strided_slice %1104 {offsets = [0, 16], sizes = [1, 16], strides = [1, 1]} : vector<1x48xf32> to vector<1x16xf32>
    %1115 = arith.addf %1113, %1114 : vector<1x16xf32>
    %1116 = arith.negf %1115 : vector<1x16xf32>
    %1117 = math.exp %1116 : vector<1x16xf32>
    %cst_273 = arith.constant 1.000000e+00 : f32
    %1118 = vector.broadcast %cst_273 : f32 to vector<1x16xf32>
    %1119 = arith.addf %1118, %1117 : vector<1x16xf32>
    %1120 = arith.divf %1118, %1119 : vector<1x16xf32>
    %1121 = vector.extract_strided_slice %1015 {offsets = [3, 0], sizes = [1, 16], strides = [1, 1]} : vector<16x16xf32> to vector<1x16xf32>
    %1122 = vector.extract_strided_slice %1104 {offsets = [0, 32], sizes = [1, 16], strides = [1, 1]} : vector<1x48xf32> to vector<1x16xf32>
    %1123 = arith.addf %1122, %1012 : vector<1x16xf32>
    %1124 = arith.mulf %1112, %1123 : vector<1x16xf32>
    %1125 = arith.addf %1121, %1124 : vector<1x16xf32>
    %1126 = math.tanh %1125 : vector<1x16xf32>
    %cst_274 = arith.constant 1.000000e+00 : f32
    %1127 = vector.broadcast %cst_274 : f32 to vector<1x16xf32>
    %1128 = arith.subf %1127, %1120 : vector<1x16xf32>
    %1129 = arith.mulf %1128, %1126 : vector<1x16xf32>
    %1130 = arith.mulf %1120, %1102 : vector<1x16xf32>
    %1131 = arith.addf %1129, %1130 : vector<1x16xf32>
    %c3_275 = arith.constant 3 : index
    %c0_276 = arith.constant 0 : index
    %1132 = vector.load %arg23[%c3_275, %c0_276] : memref<16x16xf32, #tpu.memory_space<vmem>>, vector<1x16xf32>
    tpu.vector_store %arg23[%c3_275, %c0_276], %1131 {strides = array<i32>} : memref<16x16xf32, #tpu.memory_space<vmem>>, vector<1x16xf32>,
    %cst_277 = arith.constant dense<0.000000e+00> : vector<1x48xf32>
    %1133 = tpu.matmul %1131, %1010, %cst_277 {dimension_numbers = #tpu.dot_dimension_numbers<[1], [0], [0], [1], [0, 0, 1, 1], [], []>} : vector<1x16xf32>, vector<16x48xf32>, vector<1x48xf32> -> vector<1x48xf32>
    %1134 = vector.extract_strided_slice %1013 {offsets = [4, 0], sizes = [1, 16], strides = [1, 1]} : vector<16x16xf32> to vector<1x16xf32>
    %1135 = vector.extract_strided_slice %1133 {offsets = [0, 0], sizes = [1, 16], strides = [1, 1]} : vector<1x48xf32> to vector<1x16xf32>
    %1136 = arith.addf %1134, %1135 : vector<1x16xf32>
    %1137 = arith.negf %1136 : vector<1x16xf32>
    %1138 = math.exp %1137 : vector<1x16xf32>
    %cst_278 = arith.constant 1.000000e+00 : f32
    %1139 = vector.broadcast %cst_278 : f32 to vector<1x16xf32>
    %1140 = arith.addf %1139, %1138 : vector<1x16xf32>
    %1141 = arith.divf %1139, %1140 : vector<1x16xf32>
    %1142 = vector.extract_strided_slice %1014 {offsets = [4, 0], sizes = [1, 16], strides = [1, 1]} : vector<16x16xf32> to vector<1x16xf32>
    %1143 = vector.extract_strided_slice %1133 {offsets = [0, 16], sizes = [1, 16], strides = [1, 1]} : vector<1x48xf32> to vector<1x16xf32>
    %1144 = arith.addf %1142, %1143 : vector<1x16xf32>
    %1145 = arith.negf %1144 : vector<1x16xf32>
    %1146 = math.exp %1145 : vector<1x16xf32>
    %cst_279 = arith.constant 1.000000e+00 : f32
    %1147 = vector.broadcast %cst_279 : f32 to vector<1x16xf32>
    %1148 = arith.addf %1147, %1146 : vector<1x16xf32>
    %1149 = arith.divf %1147, %1148 : vector<1x16xf32>
    %1150 = vector.extract_strided_slice %1015 {offsets = [4, 0], sizes = [1, 16], strides = [1, 1]} : vector<16x16xf32> to vector<1x16xf32>
    %1151 = vector.extract_strided_slice %1133 {offsets = [0, 32], sizes = [1, 16], strides = [1, 1]} : vector<1x48xf32> to vector<1x16xf32>
    %1152 = arith.addf %1151, %1012 : vector<1x16xf32>
    %1153 = arith.mulf %1141, %1152 : vector<1x16xf32>
    %1154 = arith.addf %1150, %1153 : vector<1x16xf32>
    %1155 = math.tanh %1154 : vector<1x16xf32>
    %cst_280 = arith.constant 1.000000e+00 : f32
    %1156 = vector.broadcast %cst_280 : f32 to vector<1x16xf32>
    %1157 = arith.subf %1156, %1149 : vector<1x16xf32>
    %1158 = arith.mulf %1157, %1155 : vector<1x16xf32>
    %1159 = arith.mulf %1149, %1131 : vector<1x16xf32>
    %1160 = arith.addf %1158, %1159 : vector<1x16xf32>
    %c4_281 = arith.constant 4 : index
    %c0_282 = arith.constant 0 : index
    %1161 = vector.load %arg23[%c4_281, %c0_282] : memref<16x16xf32, #tpu.memory_space<vmem>>, vector<1x16xf32>
    tpu.vector_store %arg23[%c4_281, %c0_282], %1160 {strides = array<i32>} : memref<16x16xf32, #tpu.memory_space<vmem>>, vector<1x16xf32>,
    %cst_283 = arith.constant dense<0.000000e+00> : vector<1x48xf32>
    %1162 = tpu.matmul %1160, %1010, %cst_283 {dimension_numbers = #tpu.dot_dimension_numbers<[1], [0], [0], [1], [0, 0, 1, 1], [], []>} : vector<1x16xf32>, vector<16x48xf32>, vector<1x48xf32> -> vector<1x48xf32>
    %1163 = vector.extract_strided_slice %1013 {offsets = [5, 0], sizes = [1, 16], strides = [1, 1]} : vector<16x16xf32> to vector<1x16xf32>
    %1164 = vector.extract_strided_slice %1162 {offsets = [0, 0], sizes = [1, 16], strides = [1, 1]} : vector<1x48xf32> to vector<1x16xf32>
    %1165 = arith.addf %1163, %1164 : vector<1x16xf32>
    %1166 = arith.negf %1165 : vector<1x16xf32>
    %1167 = math.exp %1166 : vector<1x16xf32>
    %cst_284 = arith.constant 1.000000e+00 : f32
    %1168 = vector.broadcast %cst_284 : f32 to vector<1x16xf32>
    %1169 = arith.addf %1168, %1167 : vector<1x16xf32>
    %1170 = arith.divf %1168, %1169 : vector<1x16xf32>
    %1171 = vector.extract_strided_slice %1014 {offsets = [5, 0], sizes = [1, 16], strides = [1, 1]} : vector<16x16xf32> to vector<1x16xf32>
    %1172 = vector.extract_strided_slice %1162 {offsets = [0, 16], sizes = [1, 16], strides = [1, 1]} : vector<1x48xf32> to vector<1x16xf32>
    %1173 = arith.addf %1171, %1172 : vector<1x16xf32>
    %1174 = arith.negf %1173 : vector<1x16xf32>
    %1175 = math.exp %1174 : vector<1x16xf32>
    %cst_285 = arith.constant 1.000000e+00 : f32
    %1176 = vector.broadcast %cst_285 : f32 to vector<1x16xf32>
    %1177 = arith.addf %1176, %1175 : vector<1x16xf32>
    %1178 = arith.divf %1176, %1177 : vector<1x16xf32>
    %1179 = vector.extract_strided_slice %1015 {offsets = [5, 0], sizes = [1, 16], strides = [1, 1]} : vector<16x16xf32> to vector<1x16xf32>
    %1180 = vector.extract_strided_slice %1162 {offsets = [0, 32], sizes = [1, 16], strides = [1, 1]} : vector<1x48xf32> to vector<1x16xf32>
    %1181 = arith.addf %1180, %1012 : vector<1x16xf32>
    %1182 = arith.mulf %1170, %1181 : vector<1x16xf32>
    %1183 = arith.addf %1179, %1182 : vector<1x16xf32>
    %1184 = math.tanh %1183 : vector<1x16xf32>
    %cst_286 = arith.constant 1.000000e+00 : f32
    %1185 = vector.broadcast %cst_286 : f32 to vector<1x16xf32>
    %1186 = arith.subf %1185, %1178 : vector<1x16xf32>
    %1187 = arith.mulf %1186, %1184 : vector<1x16xf32>
    %1188 = arith.mulf %1178, %1160 : vector<1x16xf32>
    %1189 = arith.addf %1187, %1188 : vector<1x16xf32>
    %c5_287 = arith.constant 5 : index
    %c0_288 = arith.constant 0 : index
    %1190 = vector.load %arg23[%c5_287, %c0_288] : memref<16x16xf32, #tpu.memory_space<vmem>>, vector<1x16xf32>
    tpu.vector_store %arg23[%c5_287, %c0_288], %1189 {strides = array<i32>} : memref<16x16xf32, #tpu.memory_space<vmem>>, vector<1x16xf32>,
    %cst_289 = arith.constant dense<0.000000e+00> : vector<1x48xf32>
    %1191 = tpu.matmul %1189, %1010, %cst_289 {dimension_numbers = #tpu.dot_dimension_numbers<[1], [0], [0], [1], [0, 0, 1, 1], [], []>} : vector<1x16xf32>, vector<16x48xf32>, vector<1x48xf32> -> vector<1x48xf32>
    %1192 = vector.extract_strided_slice %1013 {offsets = [6, 0], sizes = [1, 16], strides = [1, 1]} : vector<16x16xf32> to vector<1x16xf32>
    %1193 = vector.extract_strided_slice %1191 {offsets = [0, 0], sizes = [1, 16], strides = [1, 1]} : vector<1x48xf32> to vector<1x16xf32>
    %1194 = arith.addf %1192, %1193 : vector<1x16xf32>
    %1195 = arith.negf %1194 : vector<1x16xf32>
    %1196 = math.exp %1195 : vector<1x16xf32>
    %cst_290 = arith.constant 1.000000e+00 : f32
    %1197 = vector.broadcast %cst_290 : f32 to vector<1x16xf32>
    %1198 = arith.addf %1197, %1196 : vector<1x16xf32>
    %1199 = arith.divf %1197, %1198 : vector<1x16xf32>
    %1200 = vector.extract_strided_slice %1014 {offsets = [6, 0], sizes = [1, 16], strides = [1, 1]} : vector<16x16xf32> to vector<1x16xf32>
    %1201 = vector.extract_strided_slice %1191 {offsets = [0, 16], sizes = [1, 16], strides = [1, 1]} : vector<1x48xf32> to vector<1x16xf32>
    %1202 = arith.addf %1200, %1201 : vector<1x16xf32>
    %1203 = arith.negf %1202 : vector<1x16xf32>
    %1204 = math.exp %1203 : vector<1x16xf32>
    %cst_291 = arith.constant 1.000000e+00 : f32
    %1205 = vector.broadcast %cst_291 : f32 to vector<1x16xf32>
    %1206 = arith.addf %1205, %1204 : vector<1x16xf32>
    %1207 = arith.divf %1205, %1206 : vector<1x16xf32>
    %1208 = vector.extract_strided_slice %1015 {offsets = [6, 0], sizes = [1, 16], strides = [1, 1]} : vector<16x16xf32> to vector<1x16xf32>
    %1209 = vector.extract_strided_slice %1191 {offsets = [0, 32], sizes = [1, 16], strides = [1, 1]} : vector<1x48xf32> to vector<1x16xf32>
    %1210 = arith.addf %1209, %1012 : vector<1x16xf32>
    %1211 = arith.mulf %1199, %1210 : vector<1x16xf32>
    %1212 = arith.addf %1208, %1211 : vector<1x16xf32>
    %1213 = math.tanh %1212 : vector<1x16xf32>
    %cst_292 = arith.constant 1.000000e+00 : f32
    %1214 = vector.broadcast %cst_292 : f32 to vector<1x16xf32>
    %1215 = arith.subf %1214, %1207 : vector<1x16xf32>
    %1216 = arith.mulf %1215, %1213 : vector<1x16xf32>
    %1217 = arith.mulf %1207, %1189 : vector<1x16xf32>
    %1218 = arith.addf %1216, %1217 : vector<1x16xf32>
    %c6_293 = arith.constant 6 : index
    %c0_294 = arith.constant 0 : index
    %1219 = vector.load %arg23[%c6_293, %c0_294] : memref<16x16xf32, #tpu.memory_space<vmem>>, vector<1x16xf32>
    tpu.vector_store %arg23[%c6_293, %c0_294], %1218 {strides = array<i32>} : memref<16x16xf32, #tpu.memory_space<vmem>>, vector<1x16xf32>,
    %cst_295 = arith.constant dense<0.000000e+00> : vector<1x48xf32>
    %1220 = tpu.matmul %1218, %1010, %cst_295 {dimension_numbers = #tpu.dot_dimension_numbers<[1], [0], [0], [1], [0, 0, 1, 1], [], []>} : vector<1x16xf32>, vector<16x48xf32>, vector<1x48xf32> -> vector<1x48xf32>
    %1221 = vector.extract_strided_slice %1013 {offsets = [7, 0], sizes = [1, 16], strides = [1, 1]} : vector<16x16xf32> to vector<1x16xf32>
    %1222 = vector.extract_strided_slice %1220 {offsets = [0, 0], sizes = [1, 16], strides = [1, 1]} : vector<1x48xf32> to vector<1x16xf32>
    %1223 = arith.addf %1221, %1222 : vector<1x16xf32>
    %1224 = arith.negf %1223 : vector<1x16xf32>
    %1225 = math.exp %1224 : vector<1x16xf32>
    %cst_296 = arith.constant 1.000000e+00 : f32
    %1226 = vector.broadcast %cst_296 : f32 to vector<1x16xf32>
    %1227 = arith.addf %1226, %1225 : vector<1x16xf32>
    %1228 = arith.divf %1226, %1227 : vector<1x16xf32>
    %1229 = vector.extract_strided_slice %1014 {offsets = [7, 0], sizes = [1, 16], strides = [1, 1]} : vector<16x16xf32> to vector<1x16xf32>
    %1230 = vector.extract_strided_slice %1220 {offsets = [0, 16], sizes = [1, 16], strides = [1, 1]} : vector<1x48xf32> to vector<1x16xf32>
    %1231 = arith.addf %1229, %1230 : vector<1x16xf32>
    %1232 = arith.negf %1231 : vector<1x16xf32>
    %1233 = math.exp %1232 : vector<1x16xf32>
    %cst_297 = arith.constant 1.000000e+00 : f32
    %1234 = vector.broadcast %cst_297 : f32 to vector<1x16xf32>
    %1235 = arith.addf %1234, %1233 : vector<1x16xf32>
    %1236 = arith.divf %1234, %1235 : vector<1x16xf32>
    %1237 = vector.extract_strided_slice %1015 {offsets = [7, 0], sizes = [1, 16], strides = [1, 1]} : vector<16x16xf32> to vector<1x16xf32>
    %1238 = vector.extract_strided_slice %1220 {offsets = [0, 32], sizes = [1, 16], strides = [1, 1]} : vector<1x48xf32> to vector<1x16xf32>
    %1239 = arith.addf %1238, %1012 : vector<1x16xf32>
    %1240 = arith.mulf %1228, %1239 : vector<1x16xf32>
    %1241 = arith.addf %1237, %1240 : vector<1x16xf32>
    %1242 = math.tanh %1241 : vector<1x16xf32>
    %cst_298 = arith.constant 1.000000e+00 : f32
    %1243 = vector.broadcast %cst_298 : f32 to vector<1x16xf32>
    %1244 = arith.subf %1243, %1236 : vector<1x16xf32>
    %1245 = arith.mulf %1244, %1242 : vector<1x16xf32>
    %1246 = arith.mulf %1236, %1218 : vector<1x16xf32>
    %1247 = arith.addf %1245, %1246 : vector<1x16xf32>
    %c7_299 = arith.constant 7 : index
    %c0_300 = arith.constant 0 : index
    %1248 = vector.load %arg23[%c7_299, %c0_300] : memref<16x16xf32, #tpu.memory_space<vmem>>, vector<1x16xf32>
    tpu.vector_store %arg23[%c7_299, %c0_300], %1247 {strides = array<i32>} : memref<16x16xf32, #tpu.memory_space<vmem>>, vector<1x16xf32>,
    %cst_301 = arith.constant dense<0.000000e+00> : vector<1x48xf32>
    %1249 = tpu.matmul %1247, %1010, %cst_301 {dimension_numbers = #tpu.dot_dimension_numbers<[1], [0], [0], [1], [0, 0, 1, 1], [], []>} : vector<1x16xf32>, vector<16x48xf32>, vector<1x48xf32> -> vector<1x48xf32>
    %1250 = vector.extract_strided_slice %1013 {offsets = [8, 0], sizes = [1, 16], strides = [1, 1]} : vector<16x16xf32> to vector<1x16xf32>
    %1251 = vector.extract_strided_slice %1249 {offsets = [0, 0], sizes = [1, 16], strides = [1, 1]} : vector<1x48xf32> to vector<1x16xf32>
    %1252 = arith.addf %1250, %1251 : vector<1x16xf32>
    %1253 = arith.negf %1252 : vector<1x16xf32>
    %1254 = math.exp %1253 : vector<1x16xf32>
    %cst_302 = arith.constant 1.000000e+00 : f32
    %1255 = vector.broadcast %cst_302 : f32 to vector<1x16xf32>
    %1256 = arith.addf %1255, %1254 : vector<1x16xf32>
    %1257 = arith.divf %1255, %1256 : vector<1x16xf32>
    %1258 = vector.extract_strided_slice %1014 {offsets = [8, 0], sizes = [1, 16], strides = [1, 1]} : vector<16x16xf32> to vector<1x16xf32>
    %1259 = vector.extract_strided_slice %1249 {offsets = [0, 16], sizes = [1, 16], strides = [1, 1]} : vector<1x48xf32> to vector<1x16xf32>
    %1260 = arith.addf %1258, %1259 : vector<1x16xf32>
    %1261 = arith.negf %1260 : vector<1x16xf32>
    %1262 = math.exp %1261 : vector<1x16xf32>
    %cst_303 = arith.constant 1.000000e+00 : f32
    %1263 = vector.broadcast %cst_303 : f32 to vector<1x16xf32>
    %1264 = arith.addf %1263, %1262 : vector<1x16xf32>
    %1265 = arith.divf %1263, %1264 : vector<1x16xf32>
    %1266 = vector.extract_strided_slice %1015 {offsets = [8, 0], sizes = [1, 16], strides = [1, 1]} : vector<16x16xf32> to vector<1x16xf32>
    %1267 = vector.extract_strided_slice %1249 {offsets = [0, 32], sizes = [1, 16], strides = [1, 1]} : vector<1x48xf32> to vector<1x16xf32>
    %1268 = arith.addf %1267, %1012 : vector<1x16xf32>
    %1269 = arith.mulf %1257, %1268 : vector<1x16xf32>
    %1270 = arith.addf %1266, %1269 : vector<1x16xf32>
    %1271 = math.tanh %1270 : vector<1x16xf32>
    %cst_304 = arith.constant 1.000000e+00 : f32
    %1272 = vector.broadcast %cst_304 : f32 to vector<1x16xf32>
    %1273 = arith.subf %1272, %1265 : vector<1x16xf32>
    %1274 = arith.mulf %1273, %1271 : vector<1x16xf32>
    %1275 = arith.mulf %1265, %1247 : vector<1x16xf32>
    %1276 = arith.addf %1274, %1275 : vector<1x16xf32>
    %c8_305 = arith.constant 8 : index
    %c0_306 = arith.constant 0 : index
    %1277 = vector.load %arg23[%c8_305, %c0_306] : memref<16x16xf32, #tpu.memory_space<vmem>>, vector<1x16xf32>
    tpu.vector_store %arg23[%c8_305, %c0_306], %1276 {strides = array<i32>} : memref<16x16xf32, #tpu.memory_space<vmem>>, vector<1x16xf32>,
    %cst_307 = arith.constant dense<0.000000e+00> : vector<1x48xf32>
    %1278 = tpu.matmul %1276, %1010, %cst_307 {dimension_numbers = #tpu.dot_dimension_numbers<[1], [0], [0], [1], [0, 0, 1, 1], [], []>} : vector<1x16xf32>, vector<16x48xf32>, vector<1x48xf32> -> vector<1x48xf32>
    %1279 = vector.extract_strided_slice %1013 {offsets = [9, 0], sizes = [1, 16], strides = [1, 1]} : vector<16x16xf32> to vector<1x16xf32>
    %1280 = vector.extract_strided_slice %1278 {offsets = [0, 0], sizes = [1, 16], strides = [1, 1]} : vector<1x48xf32> to vector<1x16xf32>
    %1281 = arith.addf %1279, %1280 : vector<1x16xf32>
    %1282 = arith.negf %1281 : vector<1x16xf32>
    %1283 = math.exp %1282 : vector<1x16xf32>
    %cst_308 = arith.constant 1.000000e+00 : f32
    %1284 = vector.broadcast %cst_308 : f32 to vector<1x16xf32>
    %1285 = arith.addf %1284, %1283 : vector<1x16xf32>
    %1286 = arith.divf %1284, %1285 : vector<1x16xf32>
    %1287 = vector.extract_strided_slice %1014 {offsets = [9, 0], sizes = [1, 16], strides = [1, 1]} : vector<16x16xf32> to vector<1x16xf32>
    %1288 = vector.extract_strided_slice %1278 {offsets = [0, 16], sizes = [1, 16], strides = [1, 1]} : vector<1x48xf32> to vector<1x16xf32>
    %1289 = arith.addf %1287, %1288 : vector<1x16xf32>
    %1290 = arith.negf %1289 : vector<1x16xf32>
    %1291 = math.exp %1290 : vector<1x16xf32>
    %cst_309 = arith.constant 1.000000e+00 : f32
    %1292 = vector.broadcast %cst_309 : f32 to vector<1x16xf32>
    %1293 = arith.addf %1292, %1291 : vector<1x16xf32>
    %1294 = arith.divf %1292, %1293 : vector<1x16xf32>
    %1295 = vector.extract_strided_slice %1015 {offsets = [9, 0], sizes = [1, 16], strides = [1, 1]} : vector<16x16xf32> to vector<1x16xf32>
    %1296 = vector.extract_strided_slice %1278 {offsets = [0, 32], sizes = [1, 16], strides = [1, 1]} : vector<1x48xf32> to vector<1x16xf32>
    %1297 = arith.addf %1296, %1012 : vector<1x16xf32>
    %1298 = arith.mulf %1286, %1297 : vector<1x16xf32>
    %1299 = arith.addf %1295, %1298 : vector<1x16xf32>
    %1300 = math.tanh %1299 : vector<1x16xf32>
    %cst_310 = arith.constant 1.000000e+00 : f32
    %1301 = vector.broadcast %cst_310 : f32 to vector<1x16xf32>
    %1302 = arith.subf %1301, %1294 : vector<1x16xf32>
    %1303 = arith.mulf %1302, %1300 : vector<1x16xf32>
    %1304 = arith.mulf %1294, %1276 : vector<1x16xf32>
    %1305 = arith.addf %1303, %1304 : vector<1x16xf32>
    %c9_311 = arith.constant 9 : index
    %c0_312 = arith.constant 0 : index
    %1306 = vector.load %arg23[%c9_311, %c0_312] : memref<16x16xf32, #tpu.memory_space<vmem>>, vector<1x16xf32>
    tpu.vector_store %arg23[%c9_311, %c0_312], %1305 {strides = array<i32>} : memref<16x16xf32, #tpu.memory_space<vmem>>, vector<1x16xf32>,
    %cst_313 = arith.constant dense<0.000000e+00> : vector<1x48xf32>
    %1307 = tpu.matmul %1305, %1010, %cst_313 {dimension_numbers = #tpu.dot_dimension_numbers<[1], [0], [0], [1], [0, 0, 1, 1], [], []>} : vector<1x16xf32>, vector<16x48xf32>, vector<1x48xf32> -> vector<1x48xf32>
    %1308 = vector.extract_strided_slice %1013 {offsets = [10, 0], sizes = [1, 16], strides = [1, 1]} : vector<16x16xf32> to vector<1x16xf32>
    %1309 = vector.extract_strided_slice %1307 {offsets = [0, 0], sizes = [1, 16], strides = [1, 1]} : vector<1x48xf32> to vector<1x16xf32>
    %1310 = arith.addf %1308, %1309 : vector<1x16xf32>
    %1311 = arith.negf %1310 : vector<1x16xf32>
    %1312 = math.exp %1311 : vector<1x16xf32>
    %cst_314 = arith.constant 1.000000e+00 : f32
    %1313 = vector.broadcast %cst_314 : f32 to vector<1x16xf32>
    %1314 = arith.addf %1313, %1312 : vector<1x16xf32>
    %1315 = arith.divf %1313, %1314 : vector<1x16xf32>
    %1316 = vector.extract_strided_slice %1014 {offsets = [10, 0], sizes = [1, 16], strides = [1, 1]} : vector<16x16xf32> to vector<1x16xf32>
    %1317 = vector.extract_strided_slice %1307 {offsets = [0, 16], sizes = [1, 16], strides = [1, 1]} : vector<1x48xf32> to vector<1x16xf32>
    %1318 = arith.addf %1316, %1317 : vector<1x16xf32>
    %1319 = arith.negf %1318 : vector<1x16xf32>
    %1320 = math.exp %1319 : vector<1x16xf32>
    %cst_315 = arith.constant 1.000000e+00 : f32
    %1321 = vector.broadcast %cst_315 : f32 to vector<1x16xf32>
    %1322 = arith.addf %1321, %1320 : vector<1x16xf32>
    %1323 = arith.divf %1321, %1322 : vector<1x16xf32>
    %1324 = vector.extract_strided_slice %1015 {offsets = [10, 0], sizes = [1, 16], strides = [1, 1]} : vector<16x16xf32> to vector<1x16xf32>
    %1325 = vector.extract_strided_slice %1307 {offsets = [0, 32], sizes = [1, 16], strides = [1, 1]} : vector<1x48xf32> to vector<1x16xf32>
    %1326 = arith.addf %1325, %1012 : vector<1x16xf32>
    %1327 = arith.mulf %1315, %1326 : vector<1x16xf32>
    %1328 = arith.addf %1324, %1327 : vector<1x16xf32>
    %1329 = math.tanh %1328 : vector<1x16xf32>
    %cst_316 = arith.constant 1.000000e+00 : f32
    %1330 = vector.broadcast %cst_316 : f32 to vector<1x16xf32>
    %1331 = arith.subf %1330, %1323 : vector<1x16xf32>
    %1332 = arith.mulf %1331, %1329 : vector<1x16xf32>
    %1333 = arith.mulf %1323, %1305 : vector<1x16xf32>
    %1334 = arith.addf %1332, %1333 : vector<1x16xf32>
    %c10_317 = arith.constant 10 : index
    %c0_318 = arith.constant 0 : index
    %1335 = vector.load %arg23[%c10_317, %c0_318] : memref<16x16xf32, #tpu.memory_space<vmem>>, vector<1x16xf32>
    tpu.vector_store %arg23[%c10_317, %c0_318], %1334 {strides = array<i32>} : memref<16x16xf32, #tpu.memory_space<vmem>>, vector<1x16xf32>,
    %cst_319 = arith.constant dense<0.000000e+00> : vector<1x48xf32>
    %1336 = tpu.matmul %1334, %1010, %cst_319 {dimension_numbers = #tpu.dot_dimension_numbers<[1], [0], [0], [1], [0, 0, 1, 1], [], []>} : vector<1x16xf32>, vector<16x48xf32>, vector<1x48xf32> -> vector<1x48xf32>
    %1337 = vector.extract_strided_slice %1013 {offsets = [11, 0], sizes = [1, 16], strides = [1, 1]} : vector<16x16xf32> to vector<1x16xf32>
    %1338 = vector.extract_strided_slice %1336 {offsets = [0, 0], sizes = [1, 16], strides = [1, 1]} : vector<1x48xf32> to vector<1x16xf32>
    %1339 = arith.addf %1337, %1338 : vector<1x16xf32>
    %1340 = arith.negf %1339 : vector<1x16xf32>
    %1341 = math.exp %1340 : vector<1x16xf32>
    %cst_320 = arith.constant 1.000000e+00 : f32
    %1342 = vector.broadcast %cst_320 : f32 to vector<1x16xf32>
    %1343 = arith.addf %1342, %1341 : vector<1x16xf32>
    %1344 = arith.divf %1342, %1343 : vector<1x16xf32>
    %1345 = vector.extract_strided_slice %1014 {offsets = [11, 0], sizes = [1, 16], strides = [1, 1]} : vector<16x16xf32> to vector<1x16xf32>
    %1346 = vector.extract_strided_slice %1336 {offsets = [0, 16], sizes = [1, 16], strides = [1, 1]} : vector<1x48xf32> to vector<1x16xf32>
    %1347 = arith.addf %1345, %1346 : vector<1x16xf32>
    %1348 = arith.negf %1347 : vector<1x16xf32>
    %1349 = math.exp %1348 : vector<1x16xf32>
    %cst_321 = arith.constant 1.000000e+00 : f32
    %1350 = vector.broadcast %cst_321 : f32 to vector<1x16xf32>
    %1351 = arith.addf %1350, %1349 : vector<1x16xf32>
    %1352 = arith.divf %1350, %1351 : vector<1x16xf32>
    %1353 = vector.extract_strided_slice %1015 {offsets = [11, 0], sizes = [1, 16], strides = [1, 1]} : vector<16x16xf32> to vector<1x16xf32>
    %1354 = vector.extract_strided_slice %1336 {offsets = [0, 32], sizes = [1, 16], strides = [1, 1]} : vector<1x48xf32> to vector<1x16xf32>
    %1355 = arith.addf %1354, %1012 : vector<1x16xf32>
    %1356 = arith.mulf %1344, %1355 : vector<1x16xf32>
    %1357 = arith.addf %1353, %1356 : vector<1x16xf32>
    %1358 = math.tanh %1357 : vector<1x16xf32>
    %cst_322 = arith.constant 1.000000e+00 : f32
    %1359 = vector.broadcast %cst_322 : f32 to vector<1x16xf32>
    %1360 = arith.subf %1359, %1352 : vector<1x16xf32>
    %1361 = arith.mulf %1360, %1358 : vector<1x16xf32>
    %1362 = arith.mulf %1352, %1334 : vector<1x16xf32>
    %1363 = arith.addf %1361, %1362 : vector<1x16xf32>
    %c11_323 = arith.constant 11 : index
    %c0_324 = arith.constant 0 : index
    %1364 = vector.load %arg23[%c11_323, %c0_324] : memref<16x16xf32, #tpu.memory_space<vmem>>, vector<1x16xf32>
    tpu.vector_store %arg23[%c11_323, %c0_324], %1363 {strides = array<i32>} : memref<16x16xf32, #tpu.memory_space<vmem>>, vector<1x16xf32>,
    %cst_325 = arith.constant dense<0.000000e+00> : vector<1x48xf32>
    %1365 = tpu.matmul %1363, %1010, %cst_325 {dimension_numbers = #tpu.dot_dimension_numbers<[1], [0], [0], [1], [0, 0, 1, 1], [], []>} : vector<1x16xf32>, vector<16x48xf32>, vector<1x48xf32> -> vector<1x48xf32>
    %1366 = vector.extract_strided_slice %1013 {offsets = [12, 0], sizes = [1, 16], strides = [1, 1]} : vector<16x16xf32> to vector<1x16xf32>
    %1367 = vector.extract_strided_slice %1365 {offsets = [0, 0], sizes = [1, 16], strides = [1, 1]} : vector<1x48xf32> to vector<1x16xf32>
    %1368 = arith.addf %1366, %1367 : vector<1x16xf32>
    %1369 = arith.negf %1368 : vector<1x16xf32>
    %1370 = math.exp %1369 : vector<1x16xf32>
    %cst_326 = arith.constant 1.000000e+00 : f32
    %1371 = vector.broadcast %cst_326 : f32 to vector<1x16xf32>
    %1372 = arith.addf %1371, %1370 : vector<1x16xf32>
    %1373 = arith.divf %1371, %1372 : vector<1x16xf32>
    %1374 = vector.extract_strided_slice %1014 {offsets = [12, 0], sizes = [1, 16], strides = [1, 1]} : vector<16x16xf32> to vector<1x16xf32>
    %1375 = vector.extract_strided_slice %1365 {offsets = [0, 16], sizes = [1, 16], strides = [1, 1]} : vector<1x48xf32> to vector<1x16xf32>
    %1376 = arith.addf %1374, %1375 : vector<1x16xf32>
    %1377 = arith.negf %1376 : vector<1x16xf32>
    %1378 = math.exp %1377 : vector<1x16xf32>
    %cst_327 = arith.constant 1.000000e+00 : f32
    %1379 = vector.broadcast %cst_327 : f32 to vector<1x16xf32>
    %1380 = arith.addf %1379, %1378 : vector<1x16xf32>
    %1381 = arith.divf %1379, %1380 : vector<1x16xf32>
    %1382 = vector.extract_strided_slice %1015 {offsets = [12, 0], sizes = [1, 16], strides = [1, 1]} : vector<16x16xf32> to vector<1x16xf32>
    %1383 = vector.extract_strided_slice %1365 {offsets = [0, 32], sizes = [1, 16], strides = [1, 1]} : vector<1x48xf32> to vector<1x16xf32>
    %1384 = arith.addf %1383, %1012 : vector<1x16xf32>
    %1385 = arith.mulf %1373, %1384 : vector<1x16xf32>
    %1386 = arith.addf %1382, %1385 : vector<1x16xf32>
    %1387 = math.tanh %1386 : vector<1x16xf32>
    %cst_328 = arith.constant 1.000000e+00 : f32
    %1388 = vector.broadcast %cst_328 : f32 to vector<1x16xf32>
    %1389 = arith.subf %1388, %1381 : vector<1x16xf32>
    %1390 = arith.mulf %1389, %1387 : vector<1x16xf32>
    %1391 = arith.mulf %1381, %1363 : vector<1x16xf32>
    %1392 = arith.addf %1390, %1391 : vector<1x16xf32>
    %c12_329 = arith.constant 12 : index
    %c0_330 = arith.constant 0 : index
    %1393 = vector.load %arg23[%c12_329, %c0_330] : memref<16x16xf32, #tpu.memory_space<vmem>>, vector<1x16xf32>
    tpu.vector_store %arg23[%c12_329, %c0_330], %1392 {strides = array<i32>} : memref<16x16xf32, #tpu.memory_space<vmem>>, vector<1x16xf32>,
    %cst_331 = arith.constant dense<0.000000e+00> : vector<1x48xf32>
    %1394 = tpu.matmul %1392, %1010, %cst_331 {dimension_numbers = #tpu.dot_dimension_numbers<[1], [0], [0], [1], [0, 0, 1, 1], [], []>} : vector<1x16xf32>, vector<16x48xf32>, vector<1x48xf32> -> vector<1x48xf32>
    %1395 = vector.extract_strided_slice %1013 {offsets = [13, 0], sizes = [1, 16], strides = [1, 1]} : vector<16x16xf32> to vector<1x16xf32>
    %1396 = vector.extract_strided_slice %1394 {offsets = [0, 0], sizes = [1, 16], strides = [1, 1]} : vector<1x48xf32> to vector<1x16xf32>
    %1397 = arith.addf %1395, %1396 : vector<1x16xf32>
    %1398 = arith.negf %1397 : vector<1x16xf32>
    %1399 = math.exp %1398 : vector<1x16xf32>
    %cst_332 = arith.constant 1.000000e+00 : f32
    %1400 = vector.broadcast %cst_332 : f32 to vector<1x16xf32>
    %1401 = arith.addf %1400, %1399 : vector<1x16xf32>
    %1402 = arith.divf %1400, %1401 : vector<1x16xf32>
    %1403 = vector.extract_strided_slice %1014 {offsets = [13, 0], sizes = [1, 16], strides = [1, 1]} : vector<16x16xf32> to vector<1x16xf32>
    %1404 = vector.extract_strided_slice %1394 {offsets = [0, 16], sizes = [1, 16], strides = [1, 1]} : vector<1x48xf32> to vector<1x16xf32>
    %1405 = arith.addf %1403, %1404 : vector<1x16xf32>
    %1406 = arith.negf %1405 : vector<1x16xf32>
    %1407 = math.exp %1406 : vector<1x16xf32>
    %cst_333 = arith.constant 1.000000e+00 : f32
    %1408 = vector.broadcast %cst_333 : f32 to vector<1x16xf32>
    %1409 = arith.addf %1408, %1407 : vector<1x16xf32>
    %1410 = arith.divf %1408, %1409 : vector<1x16xf32>
    %1411 = vector.extract_strided_slice %1015 {offsets = [13, 0], sizes = [1, 16], strides = [1, 1]} : vector<16x16xf32> to vector<1x16xf32>
    %1412 = vector.extract_strided_slice %1394 {offsets = [0, 32], sizes = [1, 16], strides = [1, 1]} : vector<1x48xf32> to vector<1x16xf32>
    %1413 = arith.addf %1412, %1012 : vector<1x16xf32>
    %1414 = arith.mulf %1402, %1413 : vector<1x16xf32>
    %1415 = arith.addf %1411, %1414 : vector<1x16xf32>
    %1416 = math.tanh %1415 : vector<1x16xf32>
    %cst_334 = arith.constant 1.000000e+00 : f32
    %1417 = vector.broadcast %cst_334 : f32 to vector<1x16xf32>
    %1418 = arith.subf %1417, %1410 : vector<1x16xf32>
    %1419 = arith.mulf %1418, %1416 : vector<1x16xf32>
    %1420 = arith.mulf %1410, %1392 : vector<1x16xf32>
    %1421 = arith.addf %1419, %1420 : vector<1x16xf32>
    %c13_335 = arith.constant 13 : index
    %c0_336 = arith.constant 0 : index
    %1422 = vector.load %arg23[%c13_335, %c0_336] : memref<16x16xf32, #tpu.memory_space<vmem>>, vector<1x16xf32>
    tpu.vector_store %arg23[%c13_335, %c0_336], %1421 {strides = array<i32>} : memref<16x16xf32, #tpu.memory_space<vmem>>, vector<1x16xf32>,
    %cst_337 = arith.constant dense<0.000000e+00> : vector<1x48xf32>
    %1423 = tpu.matmul %1421, %1010, %cst_337 {dimension_numbers = #tpu.dot_dimension_numbers<[1], [0], [0], [1], [0, 0, 1, 1], [], []>} : vector<1x16xf32>, vector<16x48xf32>, vector<1x48xf32> -> vector<1x48xf32>
    %1424 = vector.extract_strided_slice %1013 {offsets = [14, 0], sizes = [1, 16], strides = [1, 1]} : vector<16x16xf32> to vector<1x16xf32>
    %1425 = vector.extract_strided_slice %1423 {offsets = [0, 0], sizes = [1, 16], strides = [1, 1]} : vector<1x48xf32> to vector<1x16xf32>
    %1426 = arith.addf %1424, %1425 : vector<1x16xf32>
    %1427 = arith.negf %1426 : vector<1x16xf32>
    %1428 = math.exp %1427 : vector<1x16xf32>
    %cst_338 = arith.constant 1.000000e+00 : f32
    %1429 = vector.broadcast %cst_338 : f32 to vector<1x16xf32>
    %1430 = arith.addf %1429, %1428 : vector<1x16xf32>
    %1431 = arith.divf %1429, %1430 : vector<1x16xf32>
    %1432 = vector.extract_strided_slice %1014 {offsets = [14, 0], sizes = [1, 16], strides = [1, 1]} : vector<16x16xf32> to vector<1x16xf32>
    %1433 = vector.extract_strided_slice %1423 {offsets = [0, 16], sizes = [1, 16], strides = [1, 1]} : vector<1x48xf32> to vector<1x16xf32>
    %1434 = arith.addf %1432, %1433 : vector<1x16xf32>
    %1435 = arith.negf %1434 : vector<1x16xf32>
    %1436 = math.exp %1435 : vector<1x16xf32>
    %cst_339 = arith.constant 1.000000e+00 : f32
    %1437 = vector.broadcast %cst_339 : f32 to vector<1x16xf32>
    %1438 = arith.addf %1437, %1436 : vector<1x16xf32>
    %1439 = arith.divf %1437, %1438 : vector<1x16xf32>
    %1440 = vector.extract_strided_slice %1015 {offsets = [14, 0], sizes = [1, 16], strides = [1, 1]} : vector<16x16xf32> to vector<1x16xf32>
    %1441 = vector.extract_strided_slice %1423 {offsets = [0, 32], sizes = [1, 16], strides = [1, 1]} : vector<1x48xf32> to vector<1x16xf32>
    %1442 = arith.addf %1441, %1012 : vector<1x16xf32>
    %1443 = arith.mulf %1431, %1442 : vector<1x16xf32>
    %1444 = arith.addf %1440, %1443 : vector<1x16xf32>
    %1445 = math.tanh %1444 : vector<1x16xf32>
    %cst_340 = arith.constant 1.000000e+00 : f32
    %1446 = vector.broadcast %cst_340 : f32 to vector<1x16xf32>
    %1447 = arith.subf %1446, %1439 : vector<1x16xf32>
    %1448 = arith.mulf %1447, %1445 : vector<1x16xf32>
    %1449 = arith.mulf %1439, %1421 : vector<1x16xf32>
    %1450 = arith.addf %1448, %1449 : vector<1x16xf32>
    %c14_341 = arith.constant 14 : index
    %c0_342 = arith.constant 0 : index
    %1451 = vector.load %arg23[%c14_341, %c0_342] : memref<16x16xf32, #tpu.memory_space<vmem>>, vector<1x16xf32>
    tpu.vector_store %arg23[%c14_341, %c0_342], %1450 {strides = array<i32>} : memref<16x16xf32, #tpu.memory_space<vmem>>, vector<1x16xf32>,
    %cst_343 = arith.constant dense<0.000000e+00> : vector<1x48xf32>
    %1452 = tpu.matmul %1450, %1010, %cst_343 {dimension_numbers = #tpu.dot_dimension_numbers<[1], [0], [0], [1], [0, 0, 1, 1], [], []>} : vector<1x16xf32>, vector<16x48xf32>, vector<1x48xf32> -> vector<1x48xf32>
    %1453 = vector.extract_strided_slice %1013 {offsets = [15, 0], sizes = [1, 16], strides = [1, 1]} : vector<16x16xf32> to vector<1x16xf32>
    %1454 = vector.extract_strided_slice %1452 {offsets = [0, 0], sizes = [1, 16], strides = [1, 1]} : vector<1x48xf32> to vector<1x16xf32>
    %1455 = arith.addf %1453, %1454 : vector<1x16xf32>
    %1456 = arith.negf %1455 : vector<1x16xf32>
    %1457 = math.exp %1456 : vector<1x16xf32>
    %cst_344 = arith.constant 1.000000e+00 : f32
    %1458 = vector.broadcast %cst_344 : f32 to vector<1x16xf32>
    %1459 = arith.addf %1458, %1457 : vector<1x16xf32>
    %1460 = arith.divf %1458, %1459 : vector<1x16xf32>
    %1461 = vector.extract_strided_slice %1014 {offsets = [15, 0], sizes = [1, 16], strides = [1, 1]} : vector<16x16xf32> to vector<1x16xf32>
    %1462 = vector.extract_strided_slice %1452 {offsets = [0, 16], sizes = [1, 16], strides = [1, 1]} : vector<1x48xf32> to vector<1x16xf32>
    %1463 = arith.addf %1461, %1462 : vector<1x16xf32>
    %1464 = arith.negf %1463 : vector<1x16xf32>
    %1465 = math.exp %1464 : vector<1x16xf32>
    %cst_345 = arith.constant 1.000000e+00 : f32
    %1466 = vector.broadcast %cst_345 : f32 to vector<1x16xf32>
    %1467 = arith.addf %1466, %1465 : vector<1x16xf32>
    %1468 = arith.divf %1466, %1467 : vector<1x16xf32>
    %1469 = vector.extract_strided_slice %1015 {offsets = [15, 0], sizes = [1, 16], strides = [1, 1]} : vector<16x16xf32> to vector<1x16xf32>
    %1470 = vector.extract_strided_slice %1452 {offsets = [0, 32], sizes = [1, 16], strides = [1, 1]} : vector<1x48xf32> to vector<1x16xf32>
    %1471 = arith.addf %1470, %1012 : vector<1x16xf32>
    %1472 = arith.mulf %1460, %1471 : vector<1x16xf32>
    %1473 = arith.addf %1469, %1472 : vector<1x16xf32>
    %1474 = math.tanh %1473 : vector<1x16xf32>
    %cst_346 = arith.constant 1.000000e+00 : f32
    %1475 = vector.broadcast %cst_346 : f32 to vector<1x16xf32>
    %1476 = arith.subf %1475, %1468 : vector<1x16xf32>
    %1477 = arith.mulf %1476, %1474 : vector<1x16xf32>
    %1478 = arith.mulf %1468, %1450 : vector<1x16xf32>
    %1479 = arith.addf %1477, %1478 : vector<1x16xf32>
    %c15_347 = arith.constant 15 : index
    %c0_348 = arith.constant 0 : index
    %1480 = vector.load %arg23[%c15_347, %c0_348] : memref<16x16xf32, #tpu.memory_space<vmem>>, vector<1x16xf32>
    tpu.vector_store %arg23[%c15_347, %c0_348], %1479 {strides = array<i32>} : memref<16x16xf32, #tpu.memory_space<vmem>>, vector<1x16xf32>,
    %c0_349 = arith.constant 0 : index
    %c0_350 = arith.constant 0 : index
    %1481 = vector.load %arg23[%c0_349, %c0_350] : memref<16x16xf32, #tpu.memory_space<vmem>>, vector<16x16xf32>
    %c0_351 = arith.constant 0 : index
    %c0_352 = arith.constant 0 : index
    %1482 = vector.load %arg14[%c0_351, %c0_352] : memref<16x16xf32, #tpu.memory_space<vmem>>, vector<16x16xf32>
    %cst_353 = arith.constant dense<0.000000e+00> : vector<16x16xf32>
    %1483 = tpu.matmul %1481, %1482, %cst_353 {dimension_numbers = #tpu.dot_dimension_numbers<[1], [0], [0], [1], [0, 0, 1, 1], [], []>} : vector<16x16xf32>, vector<16x16xf32>, vector<16x16xf32> -> vector<16x16xf32>
    %c0_354 = arith.constant 0 : index
    %c0_355 = arith.constant 0 : index
    %1484 = vector.load %arg15[%c0_354, %c0_355] : memref<1x16xf32, #tpu.memory_space<vmem>>, vector<1x16xf32>
    %1485 = vector.broadcast %1484 : vector<1x16xf32> to vector<16x16xf32>
    %1486 = arith.addf %1483, %1485 : vector<16x16xf32>
    %c0_356 = arith.constant 0 : index
    %c0_357 = arith.constant 0 : index
    %1487 = vector.load %arg16[%c0_356, %c0_357] : memref<16x128xf32, #tpu.memory_space<vmem>>, vector<16x128xf32>
    %cst_358 = arith.constant dense<0.000000e+00> : vector<16x128xf32>
    %1488 = tpu.matmul %1486, %1487, %cst_358 {dimension_numbers = #tpu.dot_dimension_numbers<[1], [0], [0], [1], [0, 0, 1, 1], [], []>} : vector<16x16xf32>, vector<16x128xf32>, vector<16x128xf32> -> vector<16x128xf32>
    %c0_359 = arith.constant 0 : index
    %c0_360 = arith.constant 0 : index
    %1489 = vector.load %arg17[%c0_359, %c0_360] : memref<1x128xf32, #tpu.memory_space<vmem>>, vector<1x128xf32>
    %1490 = vector.broadcast %1489 : vector<1x128xf32> to vector<16x128xf32>
    %1491 = arith.addf %1488, %1490 : vector<16x128xf32>
    %cst_361 = arith.constant 0.000000e+00 : f32
    %1492 = vector.broadcast %cst_361 : f32 to vector<16x128xf32>
    %1493 = arith.maximumf %1491, %1492 : vector<16x128xf32>
    %cst_362 = arith.constant dense<0.000000e+00> : vector<128xf32>
    %1494 = vector.multi_reduction <add>, %1493, %cst_362 [0] : vector<16x128xf32> to vector<128xf32>
    %1495 = vector.shape_cast %1494 : vector<128xf32> to vector<1x128xf32>
    %cst_363 = arith.constant 1.600000e+01 : f32
    %1496 = vector.broadcast %cst_363 : f32 to vector<1x128xf32>
    %1497 = arith.divf %1495, %1496 : vector<1x128xf32>
    %1498 = vector.broadcast %1497 : vector<1x128xf32> to vector<16x128xf32>
    %1499 = arith.subf %1493, %1498 : vector<16x128xf32>
    %1500 = arith.mulf %1499, %1499 : vector<16x128xf32>
    %cst_364 = arith.constant dense<0.000000e+00> : vector<128xf32>
    %1501 = vector.multi_reduction <add>, %1500, %cst_364 [0] : vector<16x128xf32> to vector<128xf32>
    %1502 = vector.shape_cast %1501 : vector<128xf32> to vector<1x128xf32>
    %cst_365 = arith.constant 1.600000e+01 : f32
    %1503 = vector.broadcast %cst_365 : f32 to vector<1x128xf32>
    %1504 = arith.divf %1502, %1503 : vector<1x128xf32>
    %cst_366 = arith.constant 9.99999974E-6 : f32
    %1505 = vector.broadcast %cst_366 : f32 to vector<1x128xf32>
    %1506 = arith.addf %1504, %1505 : vector<1x128xf32>
    %1507 = math.rsqrt %1506 : vector<1x128xf32>
    %1508 = vector.broadcast %1507 : vector<1x128xf32> to vector<16x128xf32>
    %1509 = arith.mulf %1499, %1508 : vector<16x128xf32>
    %c0_367 = arith.constant 0 : index
    %c0_368 = arith.constant 0 : index
    %1510 = vector.load %arg18[%c0_367, %c0_368] : memref<1x128xf32, #tpu.memory_space<vmem>>, vector<1x128xf32>
    %1511 = vector.broadcast %1510 : vector<1x128xf32> to vector<16x128xf32>
    %1512 = arith.mulf %1509, %1511 : vector<16x128xf32>
    %c0_369 = arith.constant 0 : index
    %c0_370 = arith.constant 0 : index
    %1513 = vector.load %arg19[%c0_369, %c0_370] : memref<1x128xf32, #tpu.memory_space<vmem>>, vector<1x128xf32>
    %1514 = vector.broadcast %1513 : vector<1x128xf32> to vector<16x128xf32>
    %1515 = arith.addf %1512, %1514 : vector<16x128xf32>
    %c0_371 = arith.constant 0 : index
    %c0_372 = arith.constant 0 : index
    %1516 = vector.load %arg20[%c0_371, %c0_372] : memref<128x128xf32, #tpu.memory_space<vmem>>, vector<128x128xf32>
    %cst_373 = arith.constant dense<0.000000e+00> : vector<16x128xf32>
    %1517 = tpu.matmul %1515, %1516, %cst_373 {dimension_numbers = #tpu.dot_dimension_numbers<[1], [0], [0], [1], [0, 0, 1, 1], [], []>} : vector<16x128xf32>, vector<128x128xf32>, vector<16x128xf32> -> vector<16x128xf32>
    %c0_374 = arith.constant 0 : index
    %c0_375 = arith.constant 0 : index
    %1518 = vector.load %arg21[%c0_374, %c0_375] : memref<1x128xf32, #tpu.memory_space<vmem>>, vector<1x128xf32>
    %1519 = vector.broadcast %1518 : vector<1x128xf32> to vector<16x128xf32>
    %1520 = arith.addf %1517, %1519 : vector<16x128xf32>
    %cst_376 = arith.constant dense<0xFF800000> : vector<16xf32>
    %1521 = vector.multi_reduction <maximumf>, %1520, %cst_376 [1] : vector<16x128xf32> to vector<16xf32>
    %1522 = vector.shape_cast %1521 : vector<16xf32> to vector<16x1xf32>
    %1523 = vector.broadcast %1522 : vector<16x1xf32> to vector<16x128xf32>
    %1524 = arith.subf %1520, %1523 : vector<16x128xf32>
    %1525 = math.exp %1524 : vector<16x128xf32>
    %cst_377 = arith.constant dense<0.000000e+00> : vector<16xf32>
    %1526 = vector.multi_reduction <add>, %1525, %cst_377 [1] : vector<16x128xf32> to vector<16xf32>
    %1527 = vector.shape_cast %1526 : vector<16xf32> to vector<16x1xf32>
    %1528 = tpu.reciprocal %1527 {approx = true} : vector<16x1xf32> -> vector<16x1xf32>
    %1529 = vector.broadcast %1528 : vector<16x1xf32> to vector<16x128xf32>
    %1530 = arith.mulf %1525, %1529 : vector<16x128xf32>
    %c0_378 = arith.constant 0 : index
    %c0_379 = arith.constant 0 : index
    %1531 = vector.load %arg22[%c0_378, %c0_379] : memref<16x128xf32, #tpu.memory_space<vmem>>, vector<16x128xf32>
    tpu.vector_store %arg22[%c0_378, %c0_379], %1530 {strides = array<i32>} : memref<16x128xf32, #tpu.memory_space<vmem>>, vector<16x128xf32>,
    return
  }
}

</mosaic_0001>

<llo_original>
// kernel: we_stgcn_forward.1
$region0: #{we_stgcn_forward.1}
  #allocation0 [shape = 'u32[]', space=smem, size = 0x4, offset = 0x4, fixed_abs, tag = 'smem constant byte address 0x4 - core index']
  #allocation1 [shape = 'u32[144,128]{1,0:T(1,128)}', space=vmem, size = 0x12000, scoped, tag = 'internal scratch']
  #allocation2 [shape = 'f32[16,16]{1,0:T(8,128)}', space=vmem, size = 0x2000, scoped, tag = 'scratch operand']
  %s0 = inlined_call_operand.vmem [shape: f32[3], index: 0, kind: input, shape index: {}]
  %s1 = inlined_call_operand.vmem [shape: f32[16,8], index: 1, kind: input, shape index: {}]
  %s2 = inlined_call_operand.vmem [shape: f32[3,16,16], index: 2, kind: input, shape index: {}]
  %s3 = inlined_call_operand.vmem [shape: f32[8,8], index: 3, kind: input, shape index: {}]
  %s4 = inlined_call_operand.vmem [shape: f32[16,16], index: 4, kind: input, shape index: {}]
  %s5 = inlined_call_operand.vmem [shape: f32[16,1], index: 5, kind: input, shape index: {}]
  %s6 = inlined_call_operand.vmem [shape: f32[16,32], index: 6, kind: input, shape index: {}]
  %s7 = inlined_call_operand.vmem [shape: f32[32,8], index: 7, kind: input, shape index: {}]
  %s8 = inlined_call_operand.vmem [shape: f32[1,8], index: 8, kind: input, shape index: {}]
  %s9 = inlined_call_operand.vmem [shape: f32[16,48], index: 9, kind: input, shape index: {}]
  %s10 = inlined_call_operand.vmem [shape: f32[2,16,48], index: 10, kind: input, shape index: {}]
  %s11 = inlined_call_operand.vmem [shape: f32[3,16,48], index: 11, kind: input, shape index: {}]
  %s12 = inlined_call_operand.vmem [shape: f32[3,1,48], index: 12, kind: input, shape index: {}]
  %s13 = inlined_call_operand.vmem [shape: f32[3,1,16], index: 13, kind: input, shape index: {}]
  %s14 = inlined_call_operand.vmem [shape: f32[16,16], index: 14, kind: input, shape index: {}]
  %s15 = inlined_call_operand.vmem [shape: f32[1,16], index: 15, kind: input, shape index: {}]
  %s16 = inlined_call_operand.vmem [shape: f32[16,128], index: 16, kind: input, shape index: {}]
  %s17 = inlined_call_operand.vmem [shape: f32[1,128], index: 17, kind: input, shape index: {}]
  %s18 = inlined_call_operand.vmem [shape: f32[1,128], index: 18, kind: input, shape index: {}]
  %s19 = inlined_call_operand.vmem [shape: f32[1,128], index: 19, kind: input, shape index: {}]
  %s20 = inlined_call_operand.vmem [shape: f32[128,128], index: 20, kind: input, shape index: {}]
  %s21 = inlined_call_operand.vmem [shape: f32[1,128], index: 21, kind: input, shape index: {}]
  %s22 = inlined_call_operand.vmem [shape: f32[16,128], index: 22, kind: output, shape index: {}]
  %s23 = sld [smem:[#allocation0]]
  $region102: #{we_stgcn_forward.1} parent=0
    _
  %s25 = ssub.s32 1, %s23
  %s26 = scalar_select 0, %s25, %s23
  $region1: #{we_stgcn_forward.1} parent=0
    #allocation3 [shape = 'u8[512]{0}', space=smem, size = 0x200, scoped, tag = 'input window, operand 0, single buffered']
    #allocation4 [shape = 's32[1]{0}', space=sflag, size = 0x4, scoped, tag = 'scoped memory for we_stgcn_forward.1']
    %27 = vsyncpa [#allocation4], 0
    // Predicated region
    $region2: #{we_stgcn_forward.1} parent=1 // pred_check
      _
    $region3: #{we_stgcn_forward.1} parent=1 // pred_check_branch
      %29 = sbr.rel (0) target = $region5
    $region4: #{we_stgcn_forward.1} parent=1 // pred_region
      %s31 = ssub.s32 16, 16
      %32 = vsyncadd [#allocation4], %s31
      %s34 = sshll.u32 %s0, 4
      %s35 = int_to_ptr.vmem [resolvable:$true] %s34
      %37 = dma.vmem_to_smem %s35, 16, [#allocation3], [#allocation4]
    $region5: #{we_stgcn_forward.1} parent=1 // pred_fallthru
      _
    // Predicated region
    $region6: #{we_stgcn_forward.1} parent=1 // pred_check
      _
    $region7: #{we_stgcn_forward.1} parent=1 // pred_check_branch
      %39 = sbr.rel (0) target = $region9
    $region8: #{we_stgcn_forward.1} parent=1 // pred_region
      _
    $region9: #{we_stgcn_forward.1} parent=1 // pred_fallthru
      _
    // Predicated region
    $region10: #{we_stgcn_forward.1} parent=1 // pred_check
      _
    $region11: #{we_stgcn_forward.1} parent=1 // pred_check_branch
      %41 = sbr.rel (0) target = $region13
    $region12: #{we_stgcn_forward.1} parent=1 // pred_region
      _
    $region13: #{we_stgcn_forward.1} parent=1 // pred_fallthru
      _
    // Predicated region
    $region14: #{we_stgcn_forward.1} parent=1 // pred_check
      _
    $region15: #{we_stgcn_forward.1} parent=1 // pred_check_branch
      %43 = sbr.rel (0) target = $region17
    $region16: #{we_stgcn_forward.1} parent=1 // pred_region
      _
    $region17: #{we_stgcn_forward.1} parent=1 // pred_fallthru
      _
    // Predicated region
    $region18: #{we_stgcn_forward.1} parent=1 // pred_check
      _
    $region19: #{we_stgcn_forward.1} parent=1 // pred_check_branch
      %45 = sbr.rel (0) target = $region21
    $region20: #{we_stgcn_forward.1} parent=1 // pred_region
      _
    $region21: #{we_stgcn_forward.1} parent=1 // pred_fallthru
      _
    // Predicated region
    $region22: #{we_stgcn_forward.1} parent=1 // pred_check
      _
    $region23: #{we_stgcn_forward.1} parent=1 // pred_check_branch
      %47 = sbr.rel (0) target = $region25
    $region24: #{we_stgcn_forward.1} parent=1 // pred_region
      _
    $region25: #{we_stgcn_forward.1} parent=1 // pred_fallthru
      _
    // Predicated region
    $region26: #{we_stgcn_forward.1} parent=1 // pred_check
      _
    $region27: #{we_stgcn_forward.1} parent=1 // pred_check_branch
      %49 = sbr.rel (0) target = $region29
    $region28: #{we_stgcn_forward.1} parent=1 // pred_region
      _
    $region29: #{we_stgcn_forward.1} parent=1 // pred_fallthru
      _
    // Predicated region
    $region30: #{we_stgcn_forward.1} parent=1 // pred_check
      _
    $region31: #{we_stgcn_forward.1} parent=1 // pred_check_branch
      %51 = sbr.rel (0) target = $region33
    $region32: #{we_stgcn_forward.1} parent=1 // pred_region
      _
    $region33: #{we_stgcn_forward.1} parent=1 // pred_fallthru
      _
    // Predicated region
    $region34: #{we_stgcn_forward.1} parent=1 // pred_check
      _
    $region35: #{we_stgcn_forward.1} parent=1 // pred_check_branch
      %53 = sbr.rel (0) target = $region37
    $region36: #{we_stgcn_forward.1} parent=1 // pred_region
      _
    $region37: #{we_stgcn_forward.1} parent=1 // pred_fallthru
      _
    // Predicated region
    $region38: #{we_stgcn_forward.1} parent=1 // pred_check
      _
    $region39: #{we_stgcn_forward.1} parent=1 // pred_check_branch
      %55 = sbr.rel (0) target = $region41
    $region40: #{we_stgcn_forward.1} parent=1 // pred_region
      _
    $region41: #{we_stgcn_forward.1} parent=1 // pred_fallthru
      _
    // Predicated region
    $region42: #{we_stgcn_forward.1} parent=1 // pred_check
      _
    $region43: #{we_stgcn_forward.1} parent=1 // pred_check_branch
      %57 = sbr.rel (0) target = $region45
    $region44: #{we_stgcn_forward.1} parent=1 // pred_region
      _
    $region45: #{we_stgcn_forward.1} parent=1 // pred_fallthru
      _
    // Predicated region
    $region46: #{we_stgcn_forward.1} parent=1 // pred_check
      _
    $region47: #{we_stgcn_forward.1} parent=1 // pred_check_branch
      %59 = sbr.rel (0) target = $region49
    $region48: #{we_stgcn_forward.1} parent=1 // pred_region
      _
    $region49: #{we_stgcn_forward.1} parent=1 // pred_fallthru
      _
    // Predicated region
    $region50: #{we_stgcn_forward.1} parent=1 // pred_check
      _
    $region51: #{we_stgcn_forward.1} parent=1 // pred_check_branch
      %61 = sbr.rel (0) target = $region53
    $region52: #{we_stgcn_forward.1} parent=1 // pred_region
      _
    $region53: #{we_stgcn_forward.1} parent=1 // pred_fallthru
      _
    // Predicated region
    $region54: #{we_stgcn_forward.1} parent=1 // pred_check
      _
    $region55: #{we_stgcn_forward.1} parent=1 // pred_check_branch
      %63 = sbr.rel (0) target = $region57
    $region56: #{we_stgcn_forward.1} parent=1 // pred_region
      _
    $region57: #{we_stgcn_forward.1} parent=1 // pred_fallthru
      _
    // Predicated region
    $region58: #{we_stgcn_forward.1} parent=1 // pred_check
      _
    $region59: #{we_stgcn_forward.1} parent=1 // pred_check_branch
      %65 = sbr.rel (0) target = $region61
    $region60: #{we_stgcn_forward.1} parent=1 // pred_region
      _
    $region61: #{we_stgcn_forward.1} parent=1 // pred_fallthru
      _
    // Predicated region
    $region62: #{we_stgcn_forward.1} parent=1 // pred_check
      _
    $region63: #{we_stgcn_forward.1} parent=1 // pred_check_branch
      %67 = sbr.rel (0) target = $region65
    $region64: #{we_stgcn_forward.1} parent=1 // pred_region
      _
    $region65: #{we_stgcn_forward.1} parent=1 // pred_fallthru
      _
    // Predicated region
    $region66: #{we_stgcn_forward.1} parent=1 // pred_check
      _
    $region67: #{we_stgcn_forward.1} parent=1 // pred_check_branch
      %69 = sbr.rel (0) target = $region69
    $region68: #{we_stgcn_forward.1} parent=1 // pred_region
      _
    $region69: #{we_stgcn_forward.1} parent=1 // pred_fallthru
      _
    // Predicated region
    $region70: #{we_stgcn_forward.1} parent=1 // pred_check
      _
    $region71: #{we_stgcn_forward.1} parent=1 // pred_check_branch
      %71 = sbr.rel (0) target = $region73
    $region72: #{we_stgcn_forward.1} parent=1 // pred_region
      _
    $region73: #{we_stgcn_forward.1} parent=1 // pred_fallthru
      _
    // Predicated region
    $region74: #{we_stgcn_forward.1} parent=1 // pred_check
      _
    $region75: #{we_stgcn_forward.1} parent=1 // pred_check_branch
      %73 = sbr.rel (0) target = $region77
    $region76: #{we_stgcn_forward.1} parent=1 // pred_region
      _
    $region77: #{we_stgcn_forward.1} parent=1 // pred_fallthru
      _
    // Predicated region
    $region78: #{we_stgcn_forward.1} parent=1 // pred_check
      _
    $region79: #{we_stgcn_forward.1} parent=1 // pred_check_branch
      %75 = sbr.rel (0) target = $region81
    $region80: #{we_stgcn_forward.1} parent=1 // pred_region
      _
    $region81: #{we_stgcn_forward.1} parent=1 // pred_fallthru
      _
    // Predicated region
    $region82: #{we_stgcn_forward.1} parent=1 // pred_check
      _
    $region83: #{we_stgcn_forward.1} parent=1 // pred_check_branch
      %77 = sbr.rel (0) target = $region85
    $region84: #{we_stgcn_forward.1} parent=1 // pred_region
      _
    $region85: #{we_stgcn_forward.1} parent=1 // pred_fallthru
      _
    // Predicated region
    $region86: #{we_stgcn_forward.1} parent=1 // pred_check
      _
    $region87: #{we_stgcn_forward.1} parent=1 // pred_check_branch
      %79 = sbr.rel (0) target = $region89
    $region88: #{we_stgcn_forward.1} parent=1 // pred_region
      _
    $region89: #{we_stgcn_forward.1} parent=1 // pred_fallthru
      _
    // Predicated region
    $region90: #{we_stgcn_forward.1} parent=1 // pred_check
      _
    $region91: #{we_stgcn_forward.1} parent=1 // pred_check_branch
      %81 = sbr.rel (0) target = $region93
    $region92: #{we_stgcn_forward.1} parent=1 // pred_region
      %82 = dma.done [#allocation4], 16
    $region93: #{we_stgcn_forward.1} parent=1 // pred_fallthru
      _
    %83 = sfence
    %v84 = vld [vmem:[%s1] sm:$0xff]
    %v85 = vld [vmem:[%s1 + $0x8] sm:$0xff]
    %v86 = vld [vmem:[%s2] sm:$0xff]
    %v87 = vld [vmem:[%s2 + $0x8] sm:$0xff]
    %s88 = sld [smem:[#allocation3]]
    %v89 = vstv %s88
    %vm90 = vcmask 130048
    %v92 = vsel %vm90, %v86, 0
    %v95 = vsel %vm90, %v87, 0
    %97 = vmatprep.subr.mxu0 0.0
    %98 = vmatpush1.msra.mxu0 0.0
    %99 = vmatprep.subr.mxu0 0.0
    %100 = vmatpush1.msra.mxu0 0.0
    %101 = vmatprep.subr.mxu0 0.0
    %102 = vmatpush1.msra.mxu0 0.0
    %103 = vmatprep.subr.mxu0 0.0
    %104 = vmatpush1.msra.mxu0 0.0
    %105 = vmatprep.subr.mxu0 0.0
    %106 = vmatpush1.msra.mxu0 0.0
    %107 = vmatprep.subr.mxu0 0.0
    %108 = vmatpush1.msra.mxu0 0.0
    %109 = vmatprep.subr.mxu0 0.0
    %110 = vmatpush1.msra.mxu0 0.0
    %111 = vmatprep.subr.mxu0 0.0
    %112 = vmatpush1.msra.mxu0 0.0
    %113 = vmatprep.subr.mxu0 0.0
    %114 = vmatpush1.msra.mxu0 0.0
    %115 = vmatprep.subr.mxu0 0.0
    %116 = vmatpush1.msra.mxu0 0.0
    %117 = vmatprep.subr.mxu0 0.0
    %118 = vmatpush1.msra.mxu0 0.0
    %119 = vmatprep.subr.mxu0 0.0
    %120 = vmatpush1.msra.mxu0 0.0
    %121 = vmatprep.subr.mxu0 0.0
    %122 = vmatpush1.msra.mxu0 0.0
    %123 = vmatprep.subr.mxu0 0.0
    %124 = vmatpush1.msra.mxu0 0.0
    %125 = vmatprep.subr.mxu0 0.0
    %126 = vmatpush1.msra.mxu0 %v85
    %127 = vmatprep.subr.mxu0 0.0
    %128 = vmatpush1.msra.mxu0 %v84
    %129 = vmatprep.subr.mxu0 0.0
    %130 = vmatpush2.msra.mxu0 0.0
    %131 = vmatprep.subr.mxu0 0.0
    %132 = vmatpush2.msra.mxu0 0.0
    %133 = vmatprep.subr.mxu0 0.0
    %134 = vmatpush2.msra.mxu0 0.0
    %135 = vmatprep.subr.mxu0 0.0
    %136 = vmatpush2.msra.mxu0 0.0
    %137 = vmatprep.subr.mxu0 0.0
    %138 = vmatpush2.msra.mxu0 0.0
    %139 = vmatprep.subr.mxu0 0.0
    %140 = vmatpush2.msra.mxu0 0.0
    %141 = vmatprep.subr.mxu0 0.0
    %142 = vmatpush2.msra.mxu0 0.0
    %143 = vmatprep.subr.mxu0 0.0
    %144 = vmatpush2.msra.mxu0 0.0
    %145 = vmatprep.subr.mxu0 0.0
    %146 = vmatpush2.msra.mxu0 0.0
    %147 = vmatprep.subr.mxu0 0.0
    %148 = vmatpush2.msra.mxu0 0.0
    %149 = vmatprep.subr.mxu0 0.0
    %150 = vmatpush2.msra.mxu0 0.0
    %151 = vmatprep.subr.mxu0 0.0
    %152 = vmatpush2.msra.mxu0 0.0
    %153 = vmatprep.subr.mxu0 0.0
    %154 = vmatpush2.msra.mxu0 0.0
    %155 = vmatprep.subr.mxu0 0.0
    %156 = vmatpush2.msra.mxu0 0.0
    %157 = vmatprep.subr.mxu0 0.0
    %158 = vmatpush2.msra.mxu0 0.0
    %159 = vmatprep.subr.mxu0 0.0
    %160 = vmatpush2.msra.mxu0 0.0
    %161 = vmatprep.mubr.f32.mxu0 0.0
    %162 = vmatmul.mubr.f32.gmra.mxu0 %v92
    %v163 = vpop.f32.mrf.mxu0
    %v164 = vadd.f32 %v89, %v163
    %v165 = vpop.f32.mrf.mxu0
    %166 = vmatprep.mubr.f32.mxu0 0.0
    %167 = vmatmul.mubr.f32.gmra.mxu0 %v95
    %v168 = vpop.f32.mrf.mxu0
    %v169 = vadd.f32 %v89, %v168
    %v170 = vpop.f32.mrf.mxu0
    %171 = vdwg.mxu0
    %v172 = vtanh.pop %v164
    %v173 = vtanh.pop %v169
    %v174 = vadd.f32 %v172, %v84
    %v175 = vadd.f32 %v173, %v85
    %s176 = scalar_lea.vmem %s2, 16
    %v177 = vld [vmem:[%s176] sm:$0xff]
    %v178 = vld [vmem:[%s176 + $0x8] sm:$0xff]
    %s179 = sld [smem:[#allocation3 + $0x1]]
    %v180 = vstv %s179
    %v182 = vsel %vm90, %v177, 0
    %v185 = vsel %vm90, %v178, 0
    %187 = vmatprep.subr.mxu0 0.0
    %188 = vmatpush1.msra.mxu0 0.0
    %189 = vmatprep.subr.mxu0 0.0
    %190 = vmatpush1.msra.mxu0 0.0
    %191 = vmatprep.subr.mxu0 0.0
    %192 = vmatpush1.msra.mxu0 0.0
    %193 = vmatprep.subr.mxu0 0.0
    %194 = vmatpush1.msra.mxu0 0.0
    %195 = vmatprep.subr.mxu0 0.0
    %196 = vmatpush1.msra.mxu0 0.0
    %197 = vmatprep.subr.mxu0 0.0
    %198 = vmatpush1.msra.mxu0 0.0
    %199 = vmatprep.subr.mxu0 0.0
    %200 = vmatpush1.msra.mxu0 0.0
    %201 = vmatprep.subr.mxu0 0.0
    %202 = vmatpush1.msra.mxu0 0.0
    %203 = vmatprep.subr.mxu0 0.0
    %204 = vmatpush1.msra.mxu0 0.0
    %205 = vmatprep.subr.mxu0 0.0
    %206 = vmatpush1.msra.mxu0 0.0
    %207 = vmatprep.subr.mxu0 0.0
    %208 = vmatpush1.msra.mxu0 0.0
    %209 = vmatprep.subr.mxu0 0.0
    %210 = vmatpush1.msra.mxu0 0.0
    %211 = vmatprep.subr.mxu0 0.0
    %212 = vmatpush1.msra.mxu0 0.0
    %213 = vmatprep.subr.mxu0 0.0
    %214 = vmatpush1.msra.mxu0 0.0
    %215 = vmatprep.subr.mxu0 0.0
    %216 = vmatpush1.msra.mxu0 %v175
    %217 = vmatprep.subr.mxu0 0.0
    %218 = vmatpush1.msra.mxu0 %v174
    %219 = vmatprep.subr.mxu0 0.0
    %220 = vmatpush2.msra.mxu0 0.0
    %221 = vmatprep.subr.mxu0 0.0
    %222 = vmatpush2.msra.mxu0 0.0
    %223 = vmatprep.subr.mxu0 0.0
    %224 = vmatpush2.msra.mxu0 0.0
    %225 = vmatprep.subr.mxu0 0.0
    %226 = vmatpush2.msra.mxu0 0.0
    %227 = vmatprep.subr.mxu0 0.0
    %228 = vmatpush2.msra.mxu0 0.0
    %229 = vmatprep.subr.mxu0 0.0
    %230 = vmatpush2.msra.mxu0 0.0
    %231 = vmatprep.subr.mxu0 0.0
    %232 = vmatpush2.msra.mxu0 0.0
    %233 = vmatprep.subr.mxu0 0.0
    %234 = vmatpush2.msra.mxu0 0.0
    %235 = vmatprep.subr.mxu0 0.0
    %236 = vmatpush2.msra.mxu0 0.0
    %237 = vmatprep.subr.mxu0 0.0
    %238 = vmatpush2.msra.mxu0 0.0
    %239 = vmatprep.subr.mxu0 0.0
    %240 = vmatpush2.msra.mxu0 0.0
    %241 = vmatprep.subr.mxu0 0.0
    %242 = vmatpush2.msra.mxu0 0.0
    %243 = vmatprep.subr.mxu0 0.0
    %244 = vmatpush2.msra.mxu0 0.0
    %245 = vmatprep.subr.mxu0 0.0
    %246 = vmatpush2.msra.mxu0 0.0
    %247 = vmatprep.subr.mxu0 0.0
    %248 = vmatpush2.msra.mxu0 0.0
    %249 = vmatprep.subr.mxu0 0.0
    %250 = vmatpush2.msra.mxu0 0.0
    %251 = vmatprep.mubr.f32.mxu0 0.0
    %252 = vmatmul.mubr.f32.gmra.mxu0 %v182
    %v253 = vpop.f32.mrf.mxu0
    %v254 = vadd.f32 %v180, %v253
    %v255 = vpop.f32.mrf.mxu0
    %256 = vmatprep.mubr.f32.mxu0 0.0
    %257 = vmatmul.mubr.f32.gmra.mxu0 %v185
    %v258 = vpop.f32.mrf.mxu0
    %v259 = vadd.f32 %v180, %v258
    %v260 = vpop.f32.mrf.mxu0
    %261 = vdwg.mxu0
    %v262 = vtanh.pop %v254
    %v263 = vtanh.pop %v259
    %v264 = vadd.f32 %v262, %v174
    %v265 = vadd.f32 %v263, %v175
    %s266 = scalar_lea.vmem %s2, 32
    %v267 = vld [vmem:[%s266] sm:$0xff]
    %v268 = vld [vmem:[%s266 + $0x8] sm:$0xff]
    %s269 = sld [smem:[#allocation3 + $0x2]]
    %v270 = vstv %s269
    %v272 = vsel %vm90, %v267, 0
    %v275 = vsel %vm90, %v268, 0
    %277 = vmatprep.subr.mxu0 0.0
    %278 = vmatpush1.msra.mxu0 0.0
    %279 = vmatprep.subr.mxu0 0.0
    %280 = vmatpush1.msra.mxu0 0.0
    %281 = vmatprep.subr.mxu0 0.0
    %282 = vmatpush1.msra.mxu0 0.0
    %283 = vmatprep.subr.mxu0 0.0
    %284 = vmatpush1.msra.mxu0 0.0
    %285 = vmatprep.subr.mxu0 0.0
    %286 = vmatpush1.msra.mxu0 0.0
    %287 = vmatprep.subr.mxu0 0.0
    %288 = vmatpush1.msra.mxu0 0.0
    %289 = vmatprep.subr.mxu0 0.0
    %290 = vmatpush1.msra.mxu0 0.0
    %291 = vmatprep.subr.mxu0 0.0
    %292 = vmatpush1.msra.mxu0 0.0
    %293 = vmatprep.subr.mxu0 0.0
    %294 = vmatpush1.msra.mxu0 0.0
    %295 = vmatprep.subr.mxu0 0.0
    %296 = vmatpush1.msra.mxu0 0.0
    %297 = vmatprep.subr.mxu0 0.0
    %298 = vmatpush1.msra.mxu0 0.0
    %299 = vmatprep.subr.mxu0 0.0
    %300 = vmatpush1.msra.mxu0 0.0
    %301 = vmatprep.subr.mxu0 0.0
    %302 = vmatpush1.msra.mxu0 0.0
    %303 = vmatprep.subr.mxu0 0.0
    %304 = vmatpush1.msra.mxu0 0.0
    %305 = vmatprep.subr.mxu0 0.0
    %306 = vmatpush1.msra.mxu0 %v265
    %307 = vmatprep.subr.mxu0 0.0
    %308 = vmatpush1.msra.mxu0 %v264
    %309 = vmatprep.subr.mxu0 0.0
    %310 = vmatpush2.msra.mxu0 0.0
    %311 = vmatprep.subr.mxu0 0.0
    %312 = vmatpush2.msra.mxu0 0.0
    %313 = vmatprep.subr.mxu0 0.0
    %314 = vmatpush2.msra.mxu0 0.0
    %315 = vmatprep.subr.mxu0 0.0
    %316 = vmatpush2.msra.mxu0 0.0
    %317 = vmatprep.subr.mxu0 0.0
    %318 = vmatpush2.msra.mxu0 0.0
    %319 = vmatprep.subr.mxu0 0.0
    %320 = vmatpush2.msra.mxu0 0.0
    %321 = vmatprep.subr.mxu0 0.0
    %322 = vmatpush2.msra.mxu0 0.0
    %323 = vmatprep.subr.mxu0 0.0
    %324 = vmatpush2.msra.mxu0 0.0
    %325 = vmatprep.subr.mxu0 0.0
    %326 = vmatpush2.msra.mxu0 0.0
    %327 = vmatprep.subr.mxu0 0.0
    %328 = vmatpush2.msra.mxu0 0.0
    %329 = vmatprep.subr.mxu0 0.0
    %330 = vmatpush2.msra.mxu0 0.0
    %331 = vmatprep.subr.mxu0 0.0
    %332 = vmatpush2.msra.mxu0 0.0
    %333 = vmatprep.subr.mxu0 0.0
    %334 = vmatpush2.msra.mxu0 0.0
    %335 = vmatprep.subr.mxu0 0.0
    %336 = vmatpush2.msra.mxu0 0.0
    %337 = vmatprep.subr.mxu0 0.0
    %338 = vmatpush2.msra.mxu0 0.0
    %339 = vmatprep.subr.mxu0 0.0
    %340 = vmatpush2.msra.mxu0 0.0
    %341 = vmatprep.mubr.f32.mxu0 0.0
    %342 = vmatmul.mubr.f32.gmra.mxu0 %v272
    %v343 = vpop.f32.mrf.mxu0
    %v344 = vadd.f32 %v270, %v343
    %v345 = vpop.f32.mrf.mxu0
    %346 = vmatprep.mubr.f32.mxu0 0.0
    %347 = vmatmul.mubr.f32.gmra.mxu0 %v275
    %v348 = vpop.f32.mrf.mxu0
    %v349 = vadd.f32 %v270, %v348
    %v350 = vpop.f32.mrf.mxu0
    %351 = vdwg.mxu0
    %v352 = vtanh.pop %v344
    %v353 = vtanh.pop %v349
    %v354 = vadd.f32 %v352, %v264
    %v355 = vadd.f32 %v353, %v265
    %v356 = vld [vmem:[%s4] sm:$0xff]
    %v357 = vld [vmem:[%s4 + $0x8] sm:$0xff]
    %v359 = vsel %vm90, %v356, 0
    %v362 = vsel %vm90, %v357, 0
    %364 = vmatprep.subr.mxu0 0.0
    %365 = vmatpush1.msra.mxu0 0.0
    %366 = vmatprep.subr.mxu0 0.0
    %367 = vmatpush1.msra.mxu0 0.0
    %368 = vmatprep.subr.mxu0 0.0
    %369 = vmatpush1.msra.mxu0 0.0
    %370 = vmatprep.subr.mxu0 0.0
    %371 = vmatpush1.msra.mxu0 0.0
    %372 = vmatprep.subr.mxu0 0.0
    %373 = vmatpush1.msra.mxu0 0.0
    %374 = vmatprep.subr.mxu0 0.0
    %375 = vmatpush1.msra.mxu0 0.0
    %376 = vmatprep.subr.mxu0 0.0
    %377 = vmatpush1.msra.mxu0 0.0
    %378 = vmatprep.subr.mxu0 0.0
    %379 = vmatpush1.msra.mxu0 0.0
    %380 = vmatprep.subr.mxu0 0.0
    %381 = vmatpush1.msra.mxu0 0.0
    %382 = vmatprep.subr.mxu0 0.0
    %383 = vmatpush1.msra.mxu0 0.0
    %384 = vmatprep.subr.mxu0 0.0
    %385 = vmatpush1.msra.mxu0 0.0
    %386 = vmatprep.subr.mxu0 0.0
    %387 = vmatpush1.msra.mxu0 0.0
    %388 = vmatprep.subr.mxu0 0.0
    %389 = vmatpush1.msra.mxu0 0.0
    %390 = vmatprep.subr.mxu0 0.0
    %391 = vmatpush1.msra.mxu0 0.0
    %392 = vmatprep.subr.mxu0 0.0
    %393 = vmatpush1.msra.mxu0 %v355
    %394 = vmatprep.subr.mxu0 0.0
    %395 = vmatpush1.msra.mxu0 %v354
    %396 = vmatprep.subr.mxu0 0.0
    %397 = vmatpush2.msra.mxu0 0.0
    %398 = vmatprep.subr.mxu0 0.0
    %399 = vmatpush2.msra.mxu0 0.0
    %400 = vmatprep.subr.mxu0 0.0
    %401 = vmatpush2.msra.mxu0 0.0
    %402 = vmatprep.subr.mxu0 0.0
    %403 = vmatpush2.msra.mxu0 0.0
    %404 = vmatprep.subr.mxu0 0.0
    %405 = vmatpush2.msra.mxu0 0.0
    %406 = vmatprep.subr.mxu0 0.0
    %407 = vmatpush2.msra.mxu0 0.0
    %408 = vmatprep.subr.mxu0 0.0
    %409 = vmatpush2.msra.mxu0 0.0
    %410 = vmatprep.subr.mxu0 0.0
    %411 = vmatpush2.msra.mxu0 0.0
    %412 = vmatprep.subr.mxu0 0.0
    %413 = vmatpush2.msra.mxu0 0.0
    %414 = vmatprep.subr.mxu0 0.0
    %415 = vmatpush2.msra.mxu0 0.0
    %416 = vmatprep.subr.mxu0 0.0
    %417 = vmatpush2.msra.mxu0 0.0
    %418 = vmatprep.subr.mxu0 0.0
    %419 = vmatpush2.msra.mxu0 0.0
    %420 = vmatprep.subr.mxu0 0.0
    %421 = vmatpush2.msra.mxu0 0.0
    %422 = vmatprep.subr.mxu0 0.0
    %423 = vmatpush2.msra.mxu0 0.0
    %424 = vmatprep.subr.mxu0 0.0
    %425 = vmatpush2.msra.mxu0 0.0
    %426 = vmatprep.subr.mxu0 0.0
    %427 = vmatpush2.msra.mxu0 0.0
    %428 = vmatprep.mubr.f32.mxu0 0.0
    %429 = vmatmul.mubr.f32.gmra.mxu0 %v359
    %v430 = vpop.f32.mrf.mxu0
    %v431 = vadd.f32 0.0, %v430
    %v432 = vpop.f32.mrf.mxu0
    %433 = vmatprep.mubr.f32.mxu0 0.0
    %434 = vmatmul.mubr.f32.gmra.mxu0 %v362
    %v435 = vpop.f32.mrf.mxu0
    %v436 = vadd.f32 0.0, %v435
    %v437 = vpop.f32.mrf.mxu0
    %438 = vdwg.mxu0
    %v439 = vld [vmem:[%s3] sm:$0xff]
    %v440 = vld [vmem:[%s5] sm:$0xff]
    %v441 = vld [vmem:[%s5 + $0x8] sm:$0xff]
    %443 = vset.pattern.permute.xlu0 0
    %444 = vperm.xlu0 %443, %v440
    %v445 = vpop.permute.xlu0 %444
    %448 = vset.pattern.permute.xlu0 0
    %449 = vperm.xlu0 %448, %v441
    %v450 = vpop.permute.xlu0 %449
    %vm452 = vcmask 64512
    %v454 = vsel %vm452, %v431, 0
    %v457 = vsel %vm452, %v436, 0
    %459 = vmatprep.subr.mxu0 0.0
    %460 = vmatpush1.msra.mxu0 0.0
    %461 = vmatprep.subr.mxu0 0.0
    %462 = vmatpush1.msra.mxu0 0.0
    %463 = vmatprep.subr.mxu0 0.0
    %464 = vmatpush1.msra.mxu0 0.0
    %465 = vmatprep.subr.mxu0 0.0
    %466 = vmatpush1.msra.mxu0 0.0
    %467 = vmatprep.subr.mxu0 0.0
    %468 = vmatpush1.msra.mxu0 0.0
    %469 = vmatprep.subr.mxu0 0.0
    %470 = vmatpush1.msra.mxu0 0.0
    %471 = vmatprep.subr.mxu0 0.0
    %472 = vmatpush1.msra.mxu0 0.0
    %473 = vmatprep.subr.mxu0 0.0
    %474 = vmatpush1.msra.mxu0 0.0
    %475 = vmatprep.subr.mxu0 0.0
    %476 = vmatpush1.msra.mxu0 0.0
    %477 = vmatprep.subr.mxu0 0.0
    %478 = vmatpush1.msra.mxu0 0.0
    %479 = vmatprep.subr.mxu0 0.0
    %480 = vmatpush1.msra.mxu0 0.0
    %481 = vmatprep.subr.mxu0 0.0
    %482 = vmatpush1.msra.mxu0 0.0
    %483 = vmatprep.subr.mxu0 0.0
    %484 = vmatpush1.msra.mxu0 0.0
    %485 = vmatprep.subr.mxu0 0.0
    %486 = vmatpush1.msra.mxu0 0.0
    %487 = vmatprep.subr.mxu0 0.0
    %488 = vmatpush1.msra.mxu0 0.0
    %489 = vmatprep.subr.mxu0 0.0
    %490 = vmatpush1.msra.mxu0 %v439
    %491 = vmatprep.subr.mxu0 0.0
    %492 = vmatpush2.msra.mxu0 0.0
    %493 = vmatprep.subr.mxu0 0.0
    %494 = vmatpush2.msra.mxu0 0.0
    %495 = vmatprep.subr.mxu0 0.0
    %496 = vmatpush2.msra.mxu0 0.0
    %497 = vmatprep.subr.mxu0 0.0
    %498 = vmatpush2.msra.mxu0 0.0
    %499 = vmatprep.subr.mxu0 0.0
    %500 = vmatpush2.msra.mxu0 0.0
    %501 = vmatprep.subr.mxu0 0.0
    %502 = vmatpush2.msra.mxu0 0.0
    %503 = vmatprep.subr.mxu0 0.0
    %504 = vmatpush2.msra.mxu0 0.0
    %505 = vmatprep.subr.mxu0 0.0
    %506 = vmatpush2.msra.mxu0 0.0
    %507 = vmatprep.subr.mxu0 0.0
    %508 = vmatpush2.msra.mxu0 0.0
    %509 = vmatprep.subr.mxu0 0.0
    %510 = vmatpush2.msra.mxu0 0.0
    %511 = vmatprep.subr.mxu0 0.0
    %512 = vmatpush2.msra.mxu0 0.0
    %513 = vmatprep.subr.mxu0 0.0
    %514 = vmatpush2.msra.mxu0 0.0
    %515 = vmatprep.subr.mxu0 0.0
    %516 = vmatpush2.msra.mxu0 0.0
    %517 = vmatprep.subr.mxu0 0.0
    %518 = vmatpush2.msra.mxu0 0.0
    %519 = vmatprep.subr.mxu0 0.0
    %520 = vmatpush2.msra.mxu0 0.0
    %521 = vmatprep.subr.mxu0 0.0
    %522 = vmatpush2.msra.mxu0 0.0
    %523 = vmatprep.mubr.f32.mxu0 0.0
    %524 = vmatmul.mubr.f32.gmra.mxu0 %v454
    %v525 = vpop.f32.mrf.mxu0
    %v526 = vadd.f32 %v445, %v525
    %v527 = vpop.f32.mrf.mxu0
    %528 = vmatprep.mubr.f32.mxu0 0.0
    %529 = vmatmul.mubr.f32.gmra.mxu0 %v457
    %v530 = vpop.f32.mrf.mxu0
    %v531 = vadd.f32 %v450, %v530
    %v532 = vpop.f32.mrf.mxu0
    %533 = vdwg.mxu0
    %v534 = vtanh.pop %v526
    %v535 = vtanh.pop %v531
    %v536 = vld [vmem:[%s6] sm:$0xff]
    %v537 = vld [vmem:[%s6 + $0x8] sm:$0xff]
    %v538 = vld [vmem:[%s7] sm:$0xff]
    %v539 = vld [vmem:[%s7 + $0x8] sm:$0xff]
    %v540 = vld [vmem:[%s7 + $0x10] sm:$0xff]
    %v541 = vld [vmem:[%s7 + $0x18] sm:$0xff]
    %v542 = vld [vmem:[%s8] sm:$0x1]
    %v544 = vlaneseq
    %v545 = vshrl.u32 %v544, 7
    %v546 = vsub.s32 0, %v545
    %v547 = vrot.slane %v542, %v546
    %vm549 = vcmask 261120
    %v551 = vsel %vm549, %v536, 0
    %v554 = vsel %vm549, %v537, 0
    %556 = vmatprep.subr.mxu0 0.0
    %557 = vmatpush1.msra.mxu0 0.0
    %558 = vmatprep.subr.mxu0 0.0
    %559 = vmatpush1.msra.mxu0 0.0
    %560 = vmatprep.subr.mxu0 0.0
    %561 = vmatpush1.msra.mxu0 0.0
    %562 = vmatprep.subr.mxu0 0.0
    %563 = vmatpush1.msra.mxu0 0.0
    %564 = vmatprep.subr.mxu0 0.0
    %565 = vmatpush1.msra.mxu0 0.0
    %566 = vmatprep.subr.mxu0 0.0
    %567 = vmatpush1.msra.mxu0 0.0
    %568 = vmatprep.subr.mxu0 0.0
    %569 = vmatpush1.msra.mxu0 0.0
    %570 = vmatprep.subr.mxu0 0.0
    %571 = vmatpush1.msra.mxu0 0.0
    %572 = vmatprep.subr.mxu0 0.0
    %573 = vmatpush1.msra.mxu0 0.0
    %574 = vmatprep.subr.mxu0 0.0
    %575 = vmatpush1.msra.mxu0 0.0
    %576 = vmatprep.subr.mxu0 0.0
    %577 = vmatpush1.msra.mxu0 0.0
    %578 = vmatprep.subr.mxu0 0.0
    %579 = vmatpush1.msra.mxu0 0.0
    %580 = vmatprep.subr.mxu0 0.0
    %581 = vmatpush1.msra.mxu0 %v541
    %582 = vmatprep.subr.mxu0 0.0
    %583 = vmatpush1.msra.mxu0 %v540
    %584 = vmatprep.subr.mxu0 0.0
    %585 = vmatpush1.msra.mxu0 %v539
    %586 = vmatprep.subr.mxu0 0.0
    %587 = vmatpush1.msra.mxu0 %v538
    %588 = vmatprep.subr.mxu0 0.0
    %589 = vmatpush2.msra.mxu0 0.0
    %590 = vmatprep.subr.mxu0 0.0
    %591 = vmatpush2.msra.mxu0 0.0
    %592 = vmatprep.subr.mxu0 0.0
    %593 = vmatpush2.msra.mxu0 0.0
    %594 = vmatprep.subr.mxu0 0.0
    %595 = vmatpush2.msra.mxu0 0.0
    %596 = vmatprep.subr.mxu0 0.0
    %597 = vmatpush2.msra.mxu0 0.0
    %598 = vmatprep.subr.mxu0 0.0
    %599 = vmatpush2.msra.mxu0 0.0
    %600 = vmatprep.subr.mxu0 0.0
    %601 = vmatpush2.msra.mxu0 0.0
    %602 = vmatprep.subr.mxu0 0.0
    %603 = vmatpush2.msra.mxu0 0.0
    %604 = vmatprep.subr.mxu0 0.0
    %605 = vmatpush2.msra.mxu0 0.0
    %606 = vmatprep.subr.mxu0 0.0
    %607 = vmatpush2.msra.mxu0 0.0
    %608 = vmatprep.subr.mxu0 0.0
    %609 = vmatpush2.msra.mxu0 0.0
    %610 = vmatprep.subr.mxu0 0.0
    %611 = vmatpush2.msra.mxu0 0.0
    %612 = vmatprep.subr.mxu0 0.0
    %613 = vmatpush2.msra.mxu0 0.0
    %614 = vmatprep.subr.mxu0 0.0
    %615 = vmatpush2.msra.mxu0 0.0
    %616 = vmatprep.subr.mxu0 0.0
    %617 = vmatpush2.msra.mxu0 0.0
    %618 = vmatprep.subr.mxu0 0.0
    %619 = vmatpush2.msra.mxu0 0.0
    %620 = vmatprep.mubr.f32.mxu0 0.0
    %621 = vmatmul.mubr.f32.gmra.mxu0 %v551
    %v622 = vpop.f32.mrf.mxu0
    %v623 = vadd.f32 %v547, %v622
    %v624 = vpop.f32.mrf.mxu0
    %625 = vmatprep.mubr.f32.mxu0 0.0
    %626 = vmatmul.mubr.f32.gmra.mxu0 %v554
    %v627 = vpop.f32.mrf.mxu0
    %v628 = vadd.f32 %v547, %v627
    %v629 = vpop.f32.mrf.mxu0
    %630 = vdwg.mxu0
    %v631 = vld [vmem:[%s9] sm:$0xff]
    %v632 = vld [vmem:[%s9 + $0x8] sm:$0xff]
    %v634 = vsel %vm452, %v623, 0
    %v637 = vsel %vm452, %v628, 0
    %639 = vmatprep.subr.mxu0 0.0
    %640 = vmatpush1.msra.mxu0 0.0
    %641 = vmatprep.subr.mxu0 0.0
    %642 = vmatpush1.msra.mxu0 0.0
    %643 = vmatprep.subr.mxu0 0.0
    %644 = vmatpush1.msra.mxu0 0.0
    %645 = vmatprep.subr.mxu0 0.0
    %646 = vmatpush1.msra.mxu0 0.0
    %647 = vmatprep.subr.mxu0 0.0
    %648 = vmatpush1.msra.mxu0 0.0
    %649 = vmatprep.subr.mxu0 0.0
    %650 = vmatpush1.msra.mxu0 0.0
    %651 = vmatprep.subr.mxu0 0.0
    %652 = vmatpush1.msra.mxu0 0.0
    %653 = vmatprep.subr.mxu0 0.0
    %654 = vmatpush1.msra.mxu0 0.0
    %655 = vmatprep.subr.mxu0 0.0
    %656 = vmatpush1.msra.mxu0 0.0
    %657 = vmatprep.subr.mxu0 0.0
    %658 = vmatpush1.msra.mxu0 0.0
    %659 = vmatprep.subr.mxu0 0.0
    %660 = vmatpush1.msra.mxu0 0.0
    %661 = vmatprep.subr.mxu0 0.0
    %662 = vmatpush1.msra.mxu0 0.0
    %663 = vmatprep.subr.mxu0 0.0
    %664 = vmatpush1.msra.mxu0 0.0
    %665 = vmatprep.subr.mxu0 0.0
    %666 = vmatpush1.msra.mxu0 0.0
    %667 = vmatprep.subr.mxu0 0.0
    %668 = vmatpush1.msra.mxu0 0.0
    %669 = vmatprep.subr.mxu0 0.0
    %670 = vmatpush1.msra.mxu0 %v632
    %671 = vmatprep.subr.mxu0 0.0
    %672 = vmatpush2.msra.mxu0 0.0
    %673 = vmatprep.subr.mxu0 0.0
    %674 = vmatpush2.msra.mxu0 0.0
    %675 = vmatprep.subr.mxu0 0.0
    %676 = vmatpush2.msra.mxu0 0.0
    %677 = vmatprep.subr.mxu0 0.0
    %678 = vmatpush2.msra.mxu0 0.0
    %679 = vmatprep.subr.mxu0 0.0
    %680 = vmatpush2.msra.mxu0 0.0
    %681 = vmatprep.subr.mxu0 0.0
    %682 = vmatpush2.msra.mxu0 0.0
    %683 = vmatprep.subr.mxu0 0.0
    %684 = vmatpush2.msra.mxu0 0.0
    %685 = vmatprep.subr.mxu0 0.0
    %686 = vmatpush2.msra.mxu0 0.0
    %687 = vmatprep.subr.mxu0 0.0
    %688 = vmatpush2.msra.mxu0 0.0
    %689 = vmatprep.subr.mxu0 0.0
    %690 = vmatpush2.msra.mxu0 0.0
    %691 = vmatprep.subr.mxu0 0.0
    %692 = vmatpush2.msra.mxu0 0.0
    %693 = vmatprep.subr.mxu0 0.0
    %694 = vmatpush2.msra.mxu0 0.0
    %695 = vmatprep.subr.mxu0 0.0
    %696 = vmatpush2.msra.mxu0 0.0
    %697 = vmatprep.subr.mxu0 0.0
    %698 = vmatpush2.msra.mxu0 0.0
    %699 = vmatprep.subr.mxu0 0.0
    %700 = vmatpush2.msra.mxu0 0.0
    %701 = vmatprep.subr.mxu0 0.0
    %702 = vmatpush2.msra.mxu0 0.0
    %703 = vmatprep.mubr.f32.mxu0 0.0
    %704 = vmatmul.mubr.f32.gmra.mxu0 %v634
    %v705 = vpop.f32.mrf.mxu0
    %v706 = vadd.f32 0.0, %v705
    %v707 = vpop.f32.mrf.mxu0
    %708 = vmatprep.mubr.f32.mxu0 0.0
    %709 = vmatmul.mubr.f32.gmra.mxu0 %v637
    %v710 = vpop.f32.mrf.mxu0
    %v711 = vadd.f32 0.0, %v710
    %v712 = vpop.f32.mrf.mxu0
    %713 = vdwg.mxu0
    %v715 = vsel %vm452, %v534, 0
    %v718 = vsel %vm452, %v535, 0
    %720 = vmatprep.subr.mxu0 0.0
    %721 = vmatpush1.msra.mxu0 0.0
    %722 = vmatprep.subr.mxu0 0.0
    %723 = vmatpush1.msra.mxu0 0.0
    %724 = vmatprep.subr.mxu0 0.0
    %725 = vmatpush1.msra.mxu0 0.0
    %726 = vmatprep.subr.mxu0 0.0
    %727 = vmatpush1.msra.mxu0 0.0
    %728 = vmatprep.subr.mxu0 0.0
    %729 = vmatpush1.msra.mxu0 0.0
    %730 = vmatprep.subr.mxu0 0.0
    %731 = vmatpush1.msra.mxu0 0.0
    %732 = vmatprep.subr.mxu0 0.0
    %733 = vmatpush1.msra.mxu0 0.0
    %734 = vmatprep.subr.mxu0 0.0
    %735 = vmatpush1.msra.mxu0 0.0
    %736 = vmatprep.subr.mxu0 0.0
    %737 = vmatpush1.msra.mxu0 0.0
    %738 = vmatprep.subr.mxu0 0.0
    %739 = vmatpush1.msra.mxu0 0.0
    %740 = vmatprep.subr.mxu0 0.0
    %741 = vmatpush1.msra.mxu0 0.0
    %742 = vmatprep.subr.mxu0 0.0
    %743 = vmatpush1.msra.mxu0 0.0
    %744 = vmatprep.subr.mxu0 0.0
    %745 = vmatpush1.msra.mxu0 0.0
    %746 = vmatprep.subr.mxu0 0.0
    %747 = vmatpush1.msra.mxu0 0.0
    %748 = vmatprep.subr.mxu0 0.0
    %749 = vmatpush1.msra.mxu0 0.0
    %750 = vmatprep.subr.mxu0 0.0
    %751 = vmatpush1.msra.mxu0 %v631
    %752 = vmatprep.subr.mxu0 0.0
    %753 = vmatpush2.msra.mxu0 0.0
    %754 = vmatprep.subr.mxu0 0.0
    %755 = vmatpush2.msra.mxu0 0.0
    %756 = vmatprep.subr.mxu0 0.0
    %757 = vmatpush2.msra.mxu0 0.0
    %758 = vmatprep.subr.mxu0 0.0
    %759 = vmatpush2.msra.mxu0 0.0
    %760 = vmatprep.subr.mxu0 0.0
    %761 = vmatpush2.msra.mxu0 0.0
    %762 = vmatprep.subr.mxu0 0.0
    %763 = vmatpush2.msra.mxu0 0.0
    %764 = vmatprep.subr.mxu0 0.0
    %765 = vmatpush2.msra.mxu0 0.0
    %766 = vmatprep.subr.mxu0 0.0
    %767 = vmatpush2.msra.mxu0 0.0
    %768 = vmatprep.subr.mxu0 0.0
    %769 = vmatpush2.msra.mxu0 0.0
    %770 = vmatprep.subr.mxu0 0.0
    %771 = vmatpush2.msra.mxu0 0.0
    %772 = vmatprep.subr.mxu0 0.0
    %773 = vmatpush2.msra.mxu0 0.0
    %774 = vmatprep.subr.mxu0 0.0
    %775 = vmatpush2.msra.mxu0 0.0
    %776 = vmatprep.subr.mxu0 0.0
    %777 = vmatpush2.msra.mxu0 0.0
    %778 = vmatprep.subr.mxu0 0.0
    %779 = vmatpush2.msra.mxu0 0.0
    %780 = vmatprep.subr.mxu0 0.0
    %781 = vmatpush2.msra.mxu0 0.0
    %782 = vmatprep.subr.mxu0 0.0
    %783 = vmatpush2.msra.mxu0 0.0
    %784 = vmatprep.mubr.f32.mxu0 0.0
    %785 = vmatmul.mubr.f32.gmra.mxu0 %v715
    %v786 = vpop.f32.mrf.mxu0
    %v787 = vadd.f32 %v706, %v786
    %v788 = vpop.f32.mrf.mxu0
    %789 = vmatprep.mubr.f32.mxu0 0.0
    %790 = vmatmul.mubr.f32.gmra.mxu0 %v718
    %v791 = vpop.f32.mrf.mxu0
    %v792 = vadd.f32 %v711, %v791
    %v793 = vpop.f32.mrf.mxu0
    %794 = vdwg.mxu0
    %v795 = vld [vmem:[%s12] sm:$0x1]
    %v797 = vlaneseq
    %v798 = vshrl.u32 %v797, 7
    %v799 = vsub.s32 0, %v798
    %v800 = vrot.slane %v795, %v799
    %v802 = vadd.f32 %v787, %v800
    %v803 = vadd.f32 %v792, %v800
    %v804 = vld [vmem:[%s11] sm:$0xff]
    %v805 = vld [vmem:[%s11 + $0x8] sm:$0xff]
    %v806 = vld [vmem:[%s13] sm:$0x1]
    %v808 = vsel %vm90, 0.0, 0
    %810 = vmatprep.subr.mxu0 0.0
    %811 = vmatpush1.msra.mxu0 0.0
    %812 = vmatprep.subr.mxu0 0.0
    %813 = vmatpush1.msra.mxu0 0.0
    %814 = vmatprep.subr.mxu0 0.0
    %815 = vmatpush1.msra.mxu0 0.0
    %816 = vmatprep.subr.mxu0 0.0
    %817 = vmatpush1.msra.mxu0 0.0
    %818 = vmatprep.subr.mxu0 0.0
    %819 = vmatpush1.msra.mxu0 0.0
    %820 = vmatprep.subr.mxu0 0.0
    %821 = vmatpush1.msra.mxu0 0.0
    %822 = vmatprep.subr.mxu0 0.0
    %823 = vmatpush1.msra.mxu0 0.0
    %824 = vmatprep.subr.mxu0 0.0
    %825 = vmatpush1.msra.mxu0 0.0
    %826 = vmatprep.subr.mxu0 0.0
    %827 = vmatpush1.msra.mxu0 0.0
    %828 = vmatprep.subr.mxu0 0.0
    %829 = vmatpush1.msra.mxu0 0.0
    %830 = vmatprep.subr.mxu0 0.0
    %831 = vmatpush1.msra.mxu0 0.0
    %832 = vmatprep.subr.mxu0 0.0
    %833 = vmatpush1.msra.mxu0 0.0
    %834 = vmatprep.subr.mxu0 0.0
    %835 = vmatpush1.msra.mxu0 0.0
    %836 = vmatprep.subr.mxu0 0.0
    %837 = vmatpush1.msra.mxu0 0.0
    %838 = vmatprep.subr.mxu0 0.0
    %839 = vmatpush1.msra.mxu0 %v805
    %840 = vmatprep.subr.mxu0 0.0
    %841 = vmatpush1.msra.mxu0 %v804
    %842 = vmatprep.subr.mxu0 0.0
    %843 = vmatpush2.msra.mxu0 0.0
    %844 = vmatprep.subr.mxu0 0.0
    %845 = vmatpush2.msra.mxu0 0.0
    %846 = vmatprep.subr.mxu0 0.0
    %847 = vmatpush2.msra.mxu0 0.0
    %848 = vmatprep.subr.mxu0 0.0
    %849 = vmatpush2.msra.mxu0 0.0
    %850 = vmatprep.subr.mxu0 0.0
    %851 = vmatpush2.msra.mxu0 0.0
    %852 = vmatprep.subr.mxu0 0.0
    %853 = vmatpush2.msra.mxu0 0.0
    %854 = vmatprep.subr.mxu0 0.0
    %855 = vmatpush2.msra.mxu0 0.0
    %856 = vmatprep.subr.mxu0 0.0
    %857 = vmatpush2.msra.mxu0 0.0
    %858 = vmatprep.subr.mxu0 0.0
    %859 = vmatpush2.msra.mxu0 0.0
    %860 = vmatprep.subr.mxu0 0.0
    %861 = vmatpush2.msra.mxu0 0.0
    %862 = vmatprep.subr.mxu0 0.0
    %863 = vmatpush2.msra.mxu0 0.0
    %864 = vmatprep.subr.mxu0 0.0
    %865 = vmatpush2.msra.mxu0 0.0
    %866 = vmatprep.subr.mxu0 0.0
    %867 = vmatpush2.msra.mxu0 0.0
    %868 = vmatprep.subr.mxu0 0.0
    %869 = vmatpush2.msra.mxu0 0.0
    %870 = vmatprep.subr.mxu0 0.0
    %871 = vmatpush2.msra.mxu0 0.0
    %872 = vmatprep.subr.mxu0 0.0
    %873 = vmatpush2.msra.mxu0 0.0
    %874 = vmatprep.mubr.f32.mxu0 0.0
    %875 = vmatmul.mubr.f32.gmra.mxu0 %v808
    %v876 = vpop.f32.mrf.mxu0
    %v877 = vadd.f32 0.0, %v876
    %v878 = vpop.f32.mrf.mxu0
    %879 = vdwg.mxu0
    %v880 = vadd.f32 %v802, %v877
    %v881 = vxor.u32 %v880, 2147483648
    %v882 = vmul.f32 %v881, 1.442695
    %v883 = vpow.pop %v882
    %v884 = vadd.f32 %v883, 1.0
    %v885 = vrcp.pop %v884
    %v886 = vmul.f32 1.0, %v885
    %v888 = vlaneseq
    %v889 = vshrl.u32 %v888, 7
    %v890 = vsub.s32 0, %v889
    %v891 = vrot.slane %v806, %v890
    %892 = vrot.lane.b32.xlu0 %v891, 32
    %v893 = vpop.permute.xlu0 %892
    %v895 = vadd.f32 %v877, %v893
    %897 = vrot.lane.b32.xlu0 %v895, 96
    %v898 = vpop.permute.xlu0 %897
    %v900 = vmul.f32 %v886, %v898
    %902 = vrot.lane.b32.xlu0 %v900, 32
    %v903 = vpop.permute.xlu0 %902
    %v905 = vadd.f32 %v802, %v903
    %v906 = vtanh.pop %v905
    %v907 = vsub.f32 1.0, %v886
    %909 = vrot.lane.b32.xlu0 %v906, 112
    %v910 = vpop.permute.xlu0 %909
    %v912 = vmul.f32 %v907, %v910
    %v913 = vmul.f32 %v886, 0.0
    %v914 = vadd.f32 %v912, %v913
    %916 = vrot.lane.b32.xlu0 %v914, 112
    %v917 = vpop.permute.xlu0 %916
    %vm919 = vcmask 122880
    %920 = vst.msk [vmem:[#allocation2] sm:$0x1] %vm919, %v917
    %v921 = vsel %vm90, %v917, 0
    %923 = vmatprep.subr.mxu0 0.0
    %924 = vmatpush1.msra.mxu0 0.0
    %925 = vmatprep.subr.mxu0 0.0
    %926 = vmatpush1.msra.mxu0 0.0
    %927 = vmatprep.subr.mxu0 0.0
    %928 = vmatpush1.msra.mxu0 0.0
    %929 = vmatprep.subr.mxu0 0.0
    %930 = vmatpush1.msra.mxu0 0.0
    %931 = vmatprep.subr.mxu0 0.0
    %932 = vmatpush1.msra.mxu0 0.0
    %933 = vmatprep.subr.mxu0 0.0
    %934 = vmatpush1.msra.mxu0 0.0
    %935 = vmatprep.subr.mxu0 0.0
    %936 = vmatpush1.msra.mxu0 0.0
    %937 = vmatprep.subr.mxu0 0.0
    %938 = vmatpush1.msra.mxu0 0.0
    %939 = vmatprep.subr.mxu0 0.0
    %940 = vmatpush1.msra.mxu0 0.0
    %941 = vmatprep.subr.mxu0 0.0
    %942 = vmatpush1.msra.mxu0 0.0
    %943 = vmatprep.subr.mxu0 0.0
    %944 = vmatpush1.msra.mxu0 0.0
    %945 = vmatprep.subr.mxu0 0.0
    %946 = vmatpush1.msra.mxu0 0.0
    %947 = vmatprep.subr.mxu0 0.0
    %948 = vmatpush1.msra.mxu0 0.0
    %949 = vmatprep.subr.mxu0 0.0
    %950 = vmatpush1.msra.mxu0 0.0
    %951 = vmatprep.subr.mxu0 0.0
    %952 = vmatpush1.msra.mxu0 %v805
    %953 = vmatprep.subr.mxu0 0.0
    %954 = vmatpush1.msra.mxu0 %v804
    %955 = vmatprep.subr.mxu0 0.0
    %956 = vmatpush2.msra.mxu0 0.0
    %957 = vmatprep.subr.mxu0 0.0
    %958 = vmatpush2.msra.mxu0 0.0
    %959 = vmatprep.subr.mxu0 0.0
    %960 = vmatpush2.msra.mxu0 0.0
    %961 = vmatprep.subr.mxu0 0.0
    %962 = vmatpush2.msra.mxu0 0.0
    %963 = vmatprep.subr.mxu0 0.0
    %964 = vmatpush2.msra.mxu0 0.0
    %965 = vmatprep.subr.mxu0 0.0
    %966 = vmatpush2.msra.mxu0 0.0
    %967 = vmatprep.subr.mxu0 0.0
    %968 = vmatpush2.msra.mxu0 0.0
    %969 = vmatprep.subr.mxu0 0.0
    %970 = vmatpush2.msra.mxu0 0.0
    %971 = vmatprep.subr.mxu0 0.0
    %972 = vmatpush2.msra.mxu0 0.0
    %973 = vmatprep.subr.mxu0 0.0
    %974 = vmatpush2.msra.mxu0 0.0
    %975 = vmatprep.subr.mxu0 0.0
    %976 = vmatpush2.msra.mxu0 0.0
    %977 = vmatprep.subr.mxu0 0.0
    %978 = vmatpush2.msra.mxu0 0.0
    %979 = vmatprep.subr.mxu0 0.0
    %980 = vmatpush2.msra.mxu0 0.0
    %981 = vmatprep.subr.mxu0 0.0
    %982 = vmatpush2.msra.mxu0 0.0
    %983 = vmatprep.subr.mxu0 0.0
    %984 = vmatpush2.msra.mxu0 0.0
    %985 = vmatprep.subr.mxu0 0.0
    %986 = vmatpush2.msra.mxu0 0.0
    %987 = vmatprep.mubr.f32.mxu0 0.0
    %988 = vmatmul.mubr.f32.gmra.mxu0 %v921
    %v989 = vpop.f32.mrf.mxu0
    %v990 = vadd.f32 0.0, %v989
    %v991 = vpop.f32.mrf.mxu0
    %992 = vdwg.mxu0
    %v994 = vrot.slane %v990, 7
    %v996 = vadd.f32 %v802, %v994
    %v997 = vxor.u32 %v996, 2147483648
    %v998 = vmul.f32 %v997, 1.442695
    %v999 = vpow.pop %v998
    %v1000 = vadd.f32 %v999, 1.0
    %v1001 = vrcp.pop %v1000
    %v1002 = vmul.f32 1.0, %v1001
    %v1003 = vadd.f32 %v990, %v893
    %v1005 = vrot.slane %v1003, 7
    %1006 = vrot.lane.b32.xlu0 %v1005, 96
    %v1007 = vpop.permute.xlu0 %1006
    %v1009 = vmul.f32 %v1002, %v1007
    %1011 = vrot.lane.b32.xlu0 %v1009, 32
    %v1012 = vpop.permute.xlu0 %1011
    %v1014 = vadd.f32 %v802, %v1012
    %v1015 = vtanh.pop %v1014
    %v1016 = vsub.f32 1.0, %v1002
    %1018 = vrot.lane.b32.xlu0 %v1015, 112
    %v1019 = vpop.permute.xlu0 %1018
    %v1021 = vmul.f32 %v1016, %v1019
    %v1022 = vrot.slane %v914, 7
    %v1024 = vmul.f32 %v1002, %v1022
    %v1025 = vadd.f32 %v1021, %v1024
    %1027 = vrot.lane.b32.xlu0 %v1025, 112
    %v1028 = vpop.permute.xlu0 %1027
    %vm1030 = vcmask 123905
    %1031 = vst.msk [vmem:[#allocation2] sm:$0x2] %vm1030, %v1028
    %v1032 = vrot.slane %v1025, 1
    %1033 = vrot.lane.b32.xlu0 %v1032, 112
    %v1034 = vpop.permute.xlu0 %1033
    %v1035 = vsel %vm90, %v1034, 0
    %1037 = vmatprep.subr.mxu0 0.0
    %1038 = vmatpush1.msra.mxu0 0.0
    %1039 = vmatprep.subr.mxu0 0.0
    %1040 = vmatpush1.msra.mxu0 0.0
    %1041 = vmatprep.subr.mxu0 0.0
    %1042 = vmatpush1.msra.mxu0 0.0
    %1043 = vmatprep.subr.mxu0 0.0
    %1044 = vmatpush1.msra.mxu0 0.0
    %1045 = vmatprep.subr.mxu0 0.0
    %1046 = vmatpush1.msra.mxu0 0.0
    %1047 = vmatprep.subr.mxu0 0.0
    %1048 = vmatpush1.msra.mxu0 0.0
    %1049 = vmatprep.subr.mxu0 0.0
    %1050 = vmatpush1.msra.mxu0 0.0
    %1051 = vmatprep.subr.mxu0 0.0
    %1052 = vmatpush1.msra.mxu0 0.0
    %1053 = vmatprep.subr.mxu0 0.0
    %1054 = vmatpush1.msra.mxu0 0.0
    %1055 = vmatprep.subr.mxu0 0.0
    %1056 = vmatpush1.msra.mxu0 0.0
    %1057 = vmatprep.subr.mxu0 0.0
    %1058 = vmatpush1.msra.mxu0 0.0
    %1059 = vmatprep.subr.mxu0 0.0
    %1060 = vmatpush1.msra.mxu0 0.0
    %1061 = vmatprep.subr.mxu0 0.0
    %1062 = vmatpush1.msra.mxu0 0.0
    %1063 = vmatprep.subr.mxu0 0.0
    %1064 = vmatpush1.msra.mxu0 0.0
    %1065 = vmatprep.subr.mxu0 0.0
    %1066 = vmatpush1.msra.mxu0 %v805
    %1067 = vmatprep.subr.mxu0 0.0
    %1068 = vmatpush1.msra.mxu0 %v804
    %1069 = vmatprep.subr.mxu0 0.0
    %1070 = vmatpush2.msra.mxu0 0.0
    %1071 = vmatprep.subr.mxu0 0.0
    %1072 = vmatpush2.msra.mxu0 0.0
    %1073 = vmatprep.subr.mxu0 0.0
    %1074 = vmatpush2.msra.mxu0 0.0
    %1075 = vmatprep.subr.mxu0 0.0
    %1076 = vmatpush2.msra.mxu0 0.0
    %1077 = vmatprep.subr.mxu0 0.0
    %1078 = vmatpush2.msra.mxu0 0.0
    %1079 = vmatprep.subr.mxu0 0.0
    %1080 = vmatpush2.msra.mxu0 0.0
    %1081 = vmatprep.subr.mxu0 0.0
    %1082 = vmatpush2.msra.mxu0 0.0
    %1083 = vmatprep.subr.mxu0 0.0
    %1084 = vmatpush2.msra.mxu0 0.0
    %1085 = vmatprep.subr.mxu0 0.0
    %1086 = vmatpush2.msra.mxu0 0.0
    %1087 = vmatprep.subr.mxu0 0.0
    %1088 = vmatpush2.msra.mxu0 0.0
    %1089 = vmatprep.subr.mxu0 0.0
    %1090 = vmatpush2.msra.mxu0 0.0
    %1091 = vmatprep.subr.mxu0 0.0
    %1092 = vmatpush2.msra.mxu0 0.0
    %1093 = vmatprep.subr.mxu0 0.0
    %1094 = vmatpush2.msra.mxu0 0.0
    %1095 = vmatprep.subr.mxu0 0.0
    %1096 = vmatpush2.msra.mxu0 0.0
    %1097 = vmatprep.subr.mxu0 0.0
    %1098 = vmatpush2.msra.mxu0 0.0
    %1099 = vmatprep.subr.mxu0 0.0
    %1100 = vmatpush2.msra.mxu0 0.0
    %1101 = vmatprep.mubr.f32.mxu0 0.0
    %1102 = vmatmul.mubr.f32.gmra.mxu0 %v1035
    %v1103 = vpop.f32.mrf.mxu0
    %v1104 = vadd.f32 0.0, %v1103
    %v1105 = vpop.f32.mrf.mxu0
    %1106 = vdwg.mxu0
    %v1108 = vrot.slane %v1104, 6
    %v1110 = vadd.f32 %v802, %v1108
    %v1111 = vxor.u32 %v1110, 2147483648
    %v1112 = vmul.f32 %v1111, 1.442695
    %v1113 = vpow.pop %v1112
    %v1114 = vadd.f32 %v1113, 1.0
    %v1115 = vrcp.pop %v1114
    %v1116 = vmul.f32 1.0, %v1115
    %v1117 = vadd.f32 %v1104, %v893
    %v1119 = vrot.slane %v1117, 6
    %1120 = vrot.lane.b32.xlu0 %v1119, 96
    %v1121 = vpop.permute.xlu0 %1120
    %v1123 = vmul.f32 %v1116, %v1121
    %1125 = vrot.lane.b32.xlu0 %v1123, 32
    %v1126 = vpop.permute.xlu0 %1125
    %v1128 = vadd.f32 %v802, %v1126
    %v1129 = vtanh.pop %v1128
    %v1130 = vsub.f32 1.0, %v1116
    %1132 = vrot.lane.b32.xlu0 %v1129, 112
    %v1133 = vpop.permute.xlu0 %1132
    %v1135 = vmul.f32 %v1130, %v1133
    %v1136 = vrot.slane %v1025, 7
    %v1138 = vmul.f32 %v1116, %v1136
    %v1139 = vadd.f32 %v1135, %v1138
    %1141 = vrot.lane.b32.xlu0 %v1139, 112
    %v1142 = vpop.permute.xlu0 %1141
    %vm1144 = vcmask 124930
    %1145 = vst.msk [vmem:[#allocation2] sm:$0x4] %vm1144, %v1142
    %v1146 = vrot.slane %v1139, 2
    %1147 = vrot.lane.b32.xlu0 %v1146, 112
    %v1148 = vpop.permute.xlu0 %1147
    %v1149 = vsel %vm90, %v1148, 0
    %1151 = vmatprep.subr.mxu0 0.0
    %1152 = vmatpush1.msra.mxu0 0.0
    %1153 = vmatprep.subr.mxu0 0.0
    %1154 = vmatpush1.msra.mxu0 0.0
    %1155 = vmatprep.subr.mxu0 0.0
    %1156 = vmatpush1.msra.mxu0 0.0
    %1157 = vmatprep.subr.mxu0 0.0
    %1158 = vmatpush1.msra.mxu0 0.0
    %1159 = vmatprep.subr.mxu0 0.0
    %1160 = vmatpush1.msra.mxu0 0.0
    %1161 = vmatprep.subr.mxu0 0.0
    %1162 = vmatpush1.msra.mxu0 0.0
    %1163 = vmatprep.subr.mxu0 0.0
    %1164 = vmatpush1.msra.mxu0 0.0
    %1165 = vmatprep.subr.mxu0 0.0
    %1166 = vmatpush1.msra.mxu0 0.0
    %1167 = vmatprep.subr.mxu0 0.0
    %1168 = vmatpush1.msra.mxu0 0.0
    %1169 = vmatprep.subr.mxu0 0.0
    %1170 = vmatpush1.msra.mxu0 0.0
    %1171 = vmatprep.subr.mxu0 0.0
    %1172 = vmatpush1.msra.mxu0 0.0
    %1173 = vmatprep.subr.mxu0 0.0
    %1174 = vmatpush1.msra.mxu0 0.0
    %1175 = vmatprep.subr.mxu0 0.0
    %1176 = vmatpush1.msra.mxu0 0.0
    %1177 = vmatprep.subr.mxu0 0.0
    %1178 = vmatpush1.msra.mxu0 0.0
    %1179 = vmatprep.subr.mxu0 0.0
    %1180 = vmatpush1.msra.mxu0 %v805
    %1181 = vmatprep.subr.mxu0 0.0
    %1182 = vmatpush1.msra.mxu0 %v804
    %1183 = vmatprep.subr.mxu0 0.0
    %1184 = vmatpush2.msra.mxu0 0.0
    %1185 = vmatprep.subr.mxu0 0.0
    %1186 = vmatpush2.msra.mxu0 0.0
    %1187 = vmatprep.subr.mxu0 0.0
    %1188 = vmatpush2.msra.mxu0 0.0
    %1189 = vmatprep.subr.mxu0 0.0
    %1190 = vmatpush2.msra.mxu0 0.0
    %1191 = vmatprep.subr.mxu0 0.0
    %1192 = vmatpush2.msra.mxu0 0.0
    %1193 = vmatprep.subr.mxu0 0.0
    %1194 = vmatpush2.msra.mxu0 0.0
    %1195 = vmatprep.subr.mxu0 0.0
    %1196 = vmatpush2.msra.mxu0 0.0
    %1197 = vmatprep.subr.mxu0 0.0
    %1198 = vmatpush2.msra.mxu0 0.0
    %1199 = vmatprep.subr.mxu0 0.0
    %1200 = vmatpush2.msra.mxu0 0.0
    %1201 = vmatprep.subr.mxu0 0.0
    %1202 = vmatpush2.msra.mxu0 0.0
    %1203 = vmatprep.subr.mxu0 0.0
    %1204 = vmatpush2.msra.mxu0 0.0
    %1205 = vmatprep.subr.mxu0 0.0
    %1206 = vmatpush2.msra.mxu0 0.0
    %1207 = vmatprep.subr.mxu0 0.0
    %1208 = vmatpush2.msra.mxu0 0.0
    %1209 = vmatprep.subr.mxu0 0.0
    %1210 = vmatpush2.msra.mxu0 0.0
    %1211 = vmatprep.subr.mxu0 0.0
    %1212 = vmatpush2.msra.mxu0 0.0
    %1213 = vmatprep.subr.mxu0 0.0
    %1214 = vmatpush2.msra.mxu0 0.0
    %1215 = vmatprep.mubr.f32.mxu0 0.0
    %1216 = vmatmul.mubr.f32.gmra.mxu0 %v1149
    %v1217 = vpop.f32.mrf.mxu0
    %v1218 = vadd.f32 0.0, %v1217
    %v1219 = vpop.f32.mrf.mxu0
    %1220 = vdwg.mxu0
    %v1222 = vrot.slane %v1218, 5
    %v1224 = vadd.f32 %v802, %v1222
    %v1225 = vxor.u32 %v1224, 2147483648
    %v1226 = vmul.f32 %v1225, 1.442695
    %v1227 = vpow.pop %v1226
    %v1228 = vadd.f32 %v1227, 1.0
    %v1229 = vrcp.pop %v1228
    %v1230 = vmul.f32 1.0, %v1229
    %v1231 = vadd.f32 %v1218, %v893
    %v1233 = vrot.slane %v1231, 5
    %1234 = vrot.lane.b32.xlu0 %v1233, 96
    %v1235 = vpop.permute.xlu0 %1234
    %v1237 = vmul.f32 %v1230, %v1235
    %1239 = vrot.lane.b32.xlu0 %v1237, 32
    %v1240 = vpop.permute.xlu0 %1239
    %v1242 = vadd.f32 %v802, %v1240
    %v1243 = vtanh.pop %v1242
    %v1244 = vsub.f32 1.0, %v1230
    %1246 = vrot.lane.b32.xlu0 %v1243, 112
    %v1247 = vpop.permute.xlu0 %1246
    %v1249 = vmul.f32 %v1244, %v1247
    %v1250 = vrot.slane %v1139, 7
    %v1252 = vmul.f32 %v1230, %v1250
    %v1253 = vadd.f32 %v1249, %v1252
    %1255 = vrot.lane.b32.xlu0 %v1253, 112
    %v1256 = vpop.permute.xlu0 %1255
    %vm1258 = vcmask 125955
    %1259 = vst.msk [vmem:[#allocation2] sm:$0x8] %vm1258, %v1256
    %v1260 = vrot.slane %v1253, 3
    %1261 = vrot.lane.b32.xlu0 %v1260, 112
    %v1262 = vpop.permute.xlu0 %1261
    %v1263 = vsel %vm90, %v1262, 0
    %1265 = vmatprep.subr.mxu0 0.0
    %1266 = vmatpush1.msra.mxu0 0.0
    %1267 = vmatprep.subr.mxu0 0.0
    %1268 = vmatpush1.msra.mxu0 0.0
    %1269 = vmatprep.subr.mxu0 0.0
    %1270 = vmatpush1.msra.mxu0 0.0
    %1271 = vmatprep.subr.mxu0 0.0
    %1272 = vmatpush1.msra.mxu0 0.0
    %1273 = vmatprep.subr.mxu0 0.0
    %1274 = vmatpush1.msra.mxu0 0.0
    %1275 = vmatprep.subr.mxu0 0.0
    %1276 = vmatpush1.msra.mxu0 0.0
    %1277 = vmatprep.subr.mxu0 0.0
    %1278 = vmatpush1.msra.mxu0 0.0
    %1279 = vmatprep.subr.mxu0 0.0
    %1280 = vmatpush1.msra.mxu0 0.0
    %1281 = vmatprep.subr.mxu0 0.0
    %1282 = vmatpush1.msra.mxu0 0.0
    %1283 = vmatprep.subr.mxu0 0.0
    %1284 = vmatpush1.msra.mxu0 0.0
    %1285 = vmatprep.subr.mxu0 0.0
    %1286 = vmatpush1.msra.mxu0 0.0
    %1287 = vmatprep.subr.mxu0 0.0
    %1288 = vmatpush1.msra.mxu0 0.0
    %1289 = vmatprep.subr.mxu0 0.0
    %1290 = vmatpush1.msra.mxu0 0.0
    %1291 = vmatprep.subr.mxu0 0.0
    %1292 = vmatpush1.msra.mxu0 0.0
    %1293 = vmatprep.subr.mxu0 0.0
    %1294 = vmatpush1.msra.mxu0 %v805
    %1295 = vmatprep.subr.mxu0 0.0
    %1296 = vmatpush1.msra.mxu0 %v804
    %1297 = vmatprep.subr.mxu0 0.0
    %1298 = vmatpush2.msra.mxu0 0.0
    %1299 = vmatprep.subr.mxu0 0.0
    %1300 = vmatpush2.msra.mxu0 0.0
    %1301 = vmatprep.subr.mxu0 0.0
    %1302 = vmatpush2.msra.mxu0 0.0
    %1303 = vmatprep.subr.mxu0 0.0
    %1304 = vmatpush2.msra.mxu0 0.0
    %1305 = vmatprep.subr.mxu0 0.0
    %1306 = vmatpush2.msra.mxu0 0.0
    %1307 = vmatprep.subr.mxu0 0.0
    %1308 = vmatpush2.msra.mxu0 0.0
    %1309 = vmatprep.subr.mxu0 0.0
    %1310 = vmatpush2.msra.mxu0 0.0
    %1311 = vmatprep.subr.mxu0 0.0
    %1312 = vmatpush2.msra.mxu0 0.0
    %1313 = vmatprep.subr.mxu0 0.0
    %1314 = vmatpush2.msra.mxu0 0.0
    %1315 = vmatprep.subr.mxu0 0.0
    %1316 = vmatpush2.msra.mxu0 0.0
    %1317 = vmatprep.subr.mxu0 0.0
    %1318 = vmatpush2.msra.mxu0 0.0
    %1319 = vmatprep.subr.mxu0 0.0
    %1320 = vmatpush2.msra.mxu0 0.0
    %1321 = vmatprep.subr.mxu0 0.0
    %1322 = vmatpush2.msra.mxu0 0.0
    %1323 = vmatprep.subr.mxu0 0.0
    %1324 = vmatpush2.msra.mxu0 0.0
    %1325 = vmatprep.subr.mxu0 0.0
    %1326 = vmatpush2.msra.mxu0 0.0
    %1327 = vmatprep.subr.mxu0 0.0
    %1328 = vmatpush2.msra.mxu0 0.0
    %1329 = vmatprep.mubr.f32.mxu0 0.0
    %1330 = vmatmul.mubr.f32.gmra.mxu0 %v1263
    %v1331 = vpop.f32.mrf.mxu0
    %v1332 = vadd.f32 0.0, %v1331
    %v1333 = vpop.f32.mrf.mxu0
    %1334 = vdwg.mxu0
    %v1336 = vrot.slane %v1332, 4
    %v1338 = vadd.f32 %v802, %v1336
    %v1339 = vxor.u32 %v1338, 2147483648
    %v1340 = vmul.f32 %v1339, 1.442695
    %v1341 = vpow.pop %v1340
    %v1342 = vadd.f32 %v1341, 1.0
    %v1343 = vrcp.pop %v1342
    %v1344 = vmul.f32 1.0, %v1343
    %v1345 = vadd.f32 %v1332, %v893
    %v1347 = vrot.slane %v1345, 4
    %1348 = vrot.lane.b32.xlu0 %v1347, 96
    %v1349 = vpop.permute.xlu0 %1348
    %v1351 = vmul.f32 %v1344, %v1349
    %1353 = vrot.lane.b32.xlu0 %v1351, 32
    %v1354 = vpop.permute.xlu0 %1353
    %v1356 = vadd.f32 %v802, %v1354
    %v1357 = vtanh.pop %v1356
    %v1358 = vsub.f32 1.0, %v1344
    %1360 = vrot.lane.b32.xlu0 %v1357, 112
    %v1361 = vpop.permute.xlu0 %1360
    %v1363 = vmul.f32 %v1358, %v1361
    %v1364 = vrot.slane %v1253, 7
    %v1366 = vmul.f32 %v1344, %v1364
    %v1367 = vadd.f32 %v1363, %v1366
    %1369 = vrot.lane.b32.xlu0 %v1367, 112
    %v1370 = vpop.permute.xlu0 %1369
    %vm1372 = vcmask 126980
    %1373 = vst.msk [vmem:[#allocation2] sm:$0x10] %vm1372, %v1370
    %v1374 = vrot.slane %v1367, 4
    %1375 = vrot.lane.b32.xlu0 %v1374, 112
    %v1376 = vpop.permute.xlu0 %1375
    %v1377 = vsel %vm90, %v1376, 0
    %1379 = vmatprep.subr.mxu0 0.0
    %1380 = vmatpush1.msra.mxu0 0.0
    %1381 = vmatprep.subr.mxu0 0.0
    %1382 = vmatpush1.msra.mxu0 0.0
    %1383 = vmatprep.subr.mxu0 0.0
    %1384 = vmatpush1.msra.mxu0 0.0
    %1385 = vmatprep.subr.mxu0 0.0
    %1386 = vmatpush1.msra.mxu0 0.0
    %1387 = vmatprep.subr.mxu0 0.0
    %1388 = vmatpush1.msra.mxu0 0.0
    %1389 = vmatprep.subr.mxu0 0.0
    %1390 = vmatpush1.msra.mxu0 0.0
    %1391 = vmatprep.subr.mxu0 0.0
    %1392 = vmatpush1.msra.mxu0 0.0
    %1393 = vmatprep.subr.mxu0 0.0
    %1394 = vmatpush1.msra.mxu0 0.0
    %1395 = vmatprep.subr.mxu0 0.0
    %1396 = vmatpush1.msra.mxu0 0.0
    %1397 = vmatprep.subr.mxu0 0.0
    %1398 = vmatpush1.msra.mxu0 0.0
    %1399 = vmatprep.subr.mxu0 0.0
    %1400 = vmatpush1.msra.mxu0 0.0
    %1401 = vmatprep.subr.mxu0 0.0
    %1402 = vmatpush1.msra.mxu0 0.0
    %1403 = vmatprep.subr.mxu0 0.0
    %1404 = vmatpush1.msra.mxu0 0.0
    %1405 = vmatprep.subr.mxu0 0.0
    %1406 = vmatpush1.msra.mxu0 0.0
    %1407 = vmatprep.subr.mxu0 0.0
    %1408 = vmatpush1.msra.mxu0 %v805
    %1409 = vmatprep.subr.mxu0 0.0
    %1410 = vmatpush1.msra.mxu0 %v804
    %1411 = vmatprep.subr.mxu0 0.0
    %1412 = vmatpush2.msra.mxu0 0.0
    %1413 = vmatprep.subr.mxu0 0.0
    %1414 = vmatpush2.msra.mxu0 0.0
    %1415 = vmatprep.subr.mxu0 0.0
    %1416 = vmatpush2.msra.mxu0 0.0
    %1417 = vmatprep.subr.mxu0 0.0
    %1418 = vmatpush2.msra.mxu0 0.0
    %1419 = vmatprep.subr.mxu0 0.0
    %1420 = vmatpush2.msra.mxu0 0.0
    %1421 = vmatprep.subr.mxu0 0.0
    %1422 = vmatpush2.msra.mxu0 0.0
    %1423 = vmatprep.subr.mxu0 0.0
    %1424 = vmatpush2.msra.mxu0 0.0
    %1425 = vmatprep.subr.mxu0 0.0
    %1426 = vmatpush2.msra.mxu0 0.0
    %1427 = vmatprep.subr.mxu0 0.0
    %1428 = vmatpush2.msra.mxu0 0.0
    %1429 = vmatprep.subr.mxu0 0.0
    %1430 = vmatpush2.msra.mxu0 0.0
    %1431 = vmatprep.subr.mxu0 0.0
    %1432 = vmatpush2.msra.mxu0 0.0
    %1433 = vmatprep.subr.mxu0 0.0
    %1434 = vmatpush2.msra.mxu0 0.0
    %1435 = vmatprep.subr.mxu0 0.0
    %1436 = vmatpush2.msra.mxu0 0.0
    %1437 = vmatprep.subr.mxu0 0.0
    %1438 = vmatpush2.msra.mxu0 0.0
    %1439 = vmatprep.subr.mxu0 0.0
    %1440 = vmatpush2.msra.mxu0 0.0
    %1441 = vmatprep.subr.mxu0 0.0
    %1442 = vmatpush2.msra.mxu0 0.0
    %1443 = vmatprep.mubr.f32.mxu0 0.0
    %1444 = vmatmul.mubr.f32.gmra.mxu0 %v1377
    %v1445 = vpop.f32.mrf.mxu0
    %v1446 = vadd.f32 0.0, %v1445
    %v1447 = vpop.f32.mrf.mxu0
    %1448 = vdwg.mxu0
    %v1450 = vrot.slane %v1446, 3
    %v1452 = vadd.f32 %v802, %v1450
    %v1453 = vxor.u32 %v1452, 2147483648
    %v1454 = vmul.f32 %v1453, 1.442695
    %v1455 = vpow.pop %v1454
    %v1456 = vadd.f32 %v1455, 1.0
    %v1457 = vrcp.pop %v1456
    %v1458 = vmul.f32 1.0, %v1457
    %v1459 = vadd.f32 %v1446, %v893
    %v1461 = vrot.slane %v1459, 3
    %1462 = vrot.lane.b32.xlu0 %v1461, 96
    %v1463 = vpop.permute.xlu0 %1462
    %v1465 = vmul.f32 %v1458, %v1463
    %1467 = vrot.lane.b32.xlu0 %v1465, 32
    %v1468 = vpop.permute.xlu0 %1467
    %v1470 = vadd.f32 %v802, %v1468
    %v1471 = vtanh.pop %v1470
    %v1472 = vsub.f32 1.0, %v1458
    %1474 = vrot.lane.b32.xlu0 %v1471, 112
    %v1475 = vpop.permute.xlu0 %1474
    %v1477 = vmul.f32 %v1472, %v1475
    %v1478 = vrot.slane %v1367, 7
    %v1480 = vmul.f32 %v1458, %v1478
    %v1481 = vadd.f32 %v1477, %v1480
    %1483 = vrot.lane.b32.xlu0 %v1481, 112
    %v1484 = vpop.permute.xlu0 %1483
    %vm1486 = vcmask 128005
    %1487 = vst.msk [vmem:[#allocation2] sm:$0x20] %vm1486, %v1484
    %v1488 = vrot.slane %v1481, 5
    %1489 = vrot.lane.b32.xlu0 %v1488, 112
    %v1490 = vpop.permute.xlu0 %1489
    %v1491 = vsel %vm90, %v1490, 0
    %1493 = vmatprep.subr.mxu0 0.0
    %1494 = vmatpush1.msra.mxu0 0.0
    %1495 = vmatprep.subr.mxu0 0.0
    %1496 = vmatpush1.msra.mxu0 0.0
    %1497 = vmatprep.subr.mxu0 0.0
    %1498 = vmatpush1.msra.mxu0 0.0
    %1499 = vmatprep.subr.mxu0 0.0
    %1500 = vmatpush1.msra.mxu0 0.0
    %1501 = vmatprep.subr.mxu0 0.0
    %1502 = vmatpush1.msra.mxu0 0.0
    %1503 = vmatprep.subr.mxu0 0.0
    %1504 = vmatpush1.msra.mxu0 0.0
    %1505 = vmatprep.subr.mxu0 0.0
    %1506 = vmatpush1.msra.mxu0 0.0
    %1507 = vmatprep.subr.mxu0 0.0
    %1508 = vmatpush1.msra.mxu0 0.0
    %1509 = vmatprep.subr.mxu0 0.0
    %1510 = vmatpush1.msra.mxu0 0.0
    %1511 = vmatprep.subr.mxu0 0.0
    %1512 = vmatpush1.msra.mxu0 0.0
    %1513 = vmatprep.subr.mxu0 0.0
    %1514 = vmatpush1.msra.mxu0 0.0
    %1515 = vmatprep.subr.mxu0 0.0
    %1516 = vmatpush1.msra.mxu0 0.0
    %1517 = vmatprep.subr.mxu0 0.0
    %1518 = vmatpush1.msra.mxu0 0.0
    %1519 = vmatprep.subr.mxu0 0.0
    %1520 = vmatpush1.msra.mxu0 0.0
    %1521 = vmatprep.subr.mxu0 0.0
    %1522 = vmatpush1.msra.mxu0 %v805
    %1523 = vmatprep.subr.mxu0 0.0
    %1524 = vmatpush1.msra.mxu0 %v804
    %1525 = vmatprep.subr.mxu0 0.0
    %1526 = vmatpush2.msra.mxu0 0.0
    %1527 = vmatprep.subr.mxu0 0.0
    %1528 = vmatpush2.msra.mxu0 0.0
    %1529 = vmatprep.subr.mxu0 0.0
    %1530 = vmatpush2.msra.mxu0 0.0
    %1531 = vmatprep.subr.mxu0 0.0
    %1532 = vmatpush2.msra.mxu0 0.0
    %1533 = vmatprep.subr.mxu0 0.0
    %1534 = vmatpush2.msra.mxu0 0.0
    %1535 = vmatprep.subr.mxu0 0.0
    %1536 = vmatpush2.msra.mxu0 0.0
    %1537 = vmatprep.subr.mxu0 0.0
    %1538 = vmatpush2.msra.mxu0 0.0
    %1539 = vmatprep.subr.mxu0 0.0
    %1540 = vmatpush2.msra.mxu0 0.0
    %1541 = vmatprep.subr.mxu0 0.0
    %1542 = vmatpush2.msra.mxu0 0.0
    %1543 = vmatprep.subr.mxu0 0.0
    %1544 = vmatpush2.msra.mxu0 0.0
    %1545 = vmatprep.subr.mxu0 0.0
    %1546 = vmatpush2.msra.mxu0 0.0
    %1547 = vmatprep.subr.mxu0 0.0
    %1548 = vmatpush2.msra.mxu0 0.0
    %1549 = vmatprep.subr.mxu0 0.0
    %1550 = vmatpush2.msra.mxu0 0.0
    %1551 = vmatprep.subr.mxu0 0.0
    %1552 = vmatpush2.msra.mxu0 0.0
    %1553 = vmatprep.subr.mxu0 0.0
    %1554 = vmatpush2.msra.mxu0 0.0
    %1555 = vmatprep.subr.mxu0 0.0
    %1556 = vmatpush2.msra.mxu0 0.0
    %1557 = vmatprep.mubr.f32.mxu0 0.0
    %1558 = vmatmul.mubr.f32.gmra.mxu0 %v1491
    %v1559 = vpop.f32.mrf.mxu0
    %v1560 = vadd.f32 0.0, %v1559
    %v1561 = vpop.f32.mrf.mxu0
    %1562 = vdwg.mxu0
    %v1564 = vrot.slane %v1560, 2
    %v1566 = vadd.f32 %v802, %v1564
    %v1567 = vxor.u32 %v1566, 2147483648
    %v1568 = vmul.f32 %v1567, 1.442695
    %v1569 = vpow.pop %v1568
    %v1570 = vadd.f32 %v1569, 1.0
    %v1571 = vrcp.pop %v1570
    %v1572 = vmul.f32 1.0, %v1571
    %v1573 = vadd.f32 %v1560, %v893
    %v1575 = vrot.slane %v1573, 2
    %1576 = vrot.lane.b32.xlu0 %v1575, 96
    %v1577 = vpop.permute.xlu0 %1576
    %v1579 = vmul.f32 %v1572, %v1577
    %1581 = vrot.lane.b32.xlu0 %v1579, 32
    %v1582 = vpop.permute.xlu0 %1581
    %v1584 = vadd.f32 %v802, %v1582
    %v1585 = vtanh.pop %v1584
    %v1586 = vsub.f32 1.0, %v1572
    %1588 = vrot.lane.b32.xlu0 %v1585, 112
    %v1589 = vpop.permute.xlu0 %1588
    %v1591 = vmul.f32 %v1586, %v1589
    %v1592 = vrot.slane %v1481, 7
    %v1594 = vmul.f32 %v1572, %v1592
    %v1595 = vadd.f32 %v1591, %v1594
    %1597 = vrot.lane.b32.xlu0 %v1595, 112
    %v1598 = vpop.permute.xlu0 %1597
    %vm1600 = vcmask 129030
    %1601 = vst.msk [vmem:[#allocation2] sm:$0x40] %vm1600, %v1598
    %v1602 = vrot.slane %v1595, 6
    %1603 = vrot.lane.b32.xlu0 %v1602, 112
    %v1604 = vpop.permute.xlu0 %1603
    %v1605 = vsel %vm90, %v1604, 0
    %1607 = vmatprep.subr.mxu0 0.0
    %1608 = vmatpush1.msra.mxu0 0.0
    %1609 = vmatprep.subr.mxu0 0.0
    %1610 = vmatpush1.msra.mxu0 0.0
    %1611 = vmatprep.subr.mxu0 0.0
    %1612 = vmatpush1.msra.mxu0 0.0
    %1613 = vmatprep.subr.mxu0 0.0
    %1614 = vmatpush1.msra.mxu0 0.0
    %1615 = vmatprep.subr.mxu0 0.0
    %1616 = vmatpush1.msra.mxu0 0.0
    %1617 = vmatprep.subr.mxu0 0.0
    %1618 = vmatpush1.msra.mxu0 0.0
    %1619 = vmatprep.subr.mxu0 0.0
    %1620 = vmatpush1.msra.mxu0 0.0
    %1621 = vmatprep.subr.mxu0 0.0
    %1622 = vmatpush1.msra.mxu0 0.0
    %1623 = vmatprep.subr.mxu0 0.0
    %1624 = vmatpush1.msra.mxu0 0.0
    %1625 = vmatprep.subr.mxu0 0.0
    %1626 = vmatpush1.msra.mxu0 0.0
    %1627 = vmatprep.subr.mxu0 0.0
    %1628 = vmatpush1.msra.mxu0 0.0
    %1629 = vmatprep.subr.mxu0 0.0
    %1630 = vmatpush1.msra.mxu0 0.0
    %1631 = vmatprep.subr.mxu0 0.0
    %1632 = vmatpush1.msra.mxu0 0.0
    %1633 = vmatprep.subr.mxu0 0.0
    %1634 = vmatpush1.msra.mxu0 0.0
    %1635 = vmatprep.subr.mxu0 0.0
    %1636 = vmatpush1.msra.mxu0 %v805
    %1637 = vmatprep.subr.mxu0 0.0
    %1638 = vmatpush1.msra.mxu0 %v804
    %1639 = vmatprep.subr.mxu0 0.0
    %1640 = vmatpush2.msra.mxu0 0.0
    %1641 = vmatprep.subr.mxu0 0.0
    %1642 = vmatpush2.msra.mxu0 0.0
    %1643 = vmatprep.subr.mxu0 0.0
    %1644 = vmatpush2.msra.mxu0 0.0
    %1645 = vmatprep.subr.mxu0 0.0
    %1646 = vmatpush2.msra.mxu0 0.0
    %1647 = vmatprep.subr.mxu0 0.0
    %1648 = vmatpush2.msra.mxu0 0.0
    %1649 = vmatprep.subr.mxu0 0.0
    %1650 = vmatpush2.msra.mxu0 0.0
    %1651 = vmatprep.subr.mxu0 0.0
    %1652 = vmatpush2.msra.mxu0 0.0
    %1653 = vmatprep.subr.mxu0 0.0
    %1654 = vmatpush2.msra.mxu0 0.0
    %1655 = vmatprep.subr.mxu0 0.0
    %1656 = vmatpush2.msra.mxu0 0.0
    %1657 = vmatprep.subr.mxu0 0.0
    %1658 = vmatpush2.msra.mxu0 0.0
    %1659 = vmatprep.subr.mxu0 0.0
    %1660 = vmatpush2.msra.mxu0 0.0
    %1661 = vmatprep.subr.mxu0 0.0
    %1662 = vmatpush2.msra.mxu0 0.0
    %1663 = vmatprep.subr.mxu0 0.0
    %1664 = vmatpush2.msra.mxu0 0.0
    %1665 = vmatprep.subr.mxu0 0.0
    %1666 = vmatpush2.msra.mxu0 0.0
    %1667 = vmatprep.subr.mxu0 0.0
    %1668 = vmatpush2.msra.mxu0 0.0
    %1669 = vmatprep.subr.mxu0 0.0
    %1670 = vmatpush2.msra.mxu0 0.0
    %1671 = vmatprep.mubr.f32.mxu0 0.0
    %1672 = vmatmul.mubr.f32.gmra.mxu0 %v1605
    %v1673 = vpop.f32.mrf.mxu0
    %v1674 = vadd.f32 0.0, %v1673
    %v1675 = vpop.f32.mrf.mxu0
    %1676 = vdwg.mxu0
    %v1678 = vrot.slane %v1674, 1
    %v1680 = vadd.f32 %v802, %v1678
    %v1681 = vxor.u32 %v1680, 2147483648
    %v1682 = vmul.f32 %v1681, 1.442695
    %v1683 = vpow.pop %v1682
    %v1684 = vadd.f32 %v1683, 1.0
    %v1685 = vrcp.pop %v1684
    %v1686 = vmul.f32 1.0, %v1685
    %v1687 = vadd.f32 %v1674, %v893
    %v1689 = vrot.slane %v1687, 1
    %1690 = vrot.lane.b32.xlu0 %v1689, 96
    %v1691 = vpop.permute.xlu0 %1690
    %v1693 = vmul.f32 %v1686, %v1691
    %1695 = vrot.lane.b32.xlu0 %v1693, 32
    %v1696 = vpop.permute.xlu0 %1695
    %v1698 = vadd.f32 %v802, %v1696
    %v1699 = vtanh.pop %v1698
    %v1700 = vsub.f32 1.0, %v1686
    %1702 = vrot.lane.b32.xlu0 %v1699, 112
    %v1703 = vpop.permute.xlu0 %1702
    %v1705 = vmul.f32 %v1700, %v1703
    %v1706 = vrot.slane %v1595, 7
    %v1708 = vmul.f32 %v1686, %v1706
    %v1709 = vadd.f32 %v1705, %v1708
    %1711 = vrot.lane.b32.xlu0 %v1709, 112
    %v1712 = vpop.permute.xlu0 %1711
    %vm1714 = vcmask 130055
    %1715 = vst.msk [vmem:[#allocation2] sm:$0x80] %vm1714, %v1712
    %v1716 = vrot.slane %v1709, 7
    %1717 = vrot.lane.b32.xlu0 %v1716, 112
    %v1718 = vpop.permute.xlu0 %1717
    %v1719 = vsel %vm90, %v1718, 0
    %1721 = vmatprep.subr.mxu0 0.0
    %1722 = vmatpush1.msra.mxu0 0.0
    %1723 = vmatprep.subr.mxu0 0.0
    %1724 = vmatpush1.msra.mxu0 0.0
    %1725 = vmatprep.subr.mxu0 0.0
    %1726 = vmatpush1.msra.mxu0 0.0
    %1727 = vmatprep.subr.mxu0 0.0
    %1728 = vmatpush1.msra.mxu0 0.0
    %1729 = vmatprep.subr.mxu0 0.0
    %1730 = vmatpush1.msra.mxu0 0.0
    %1731 = vmatprep.subr.mxu0 0.0
    %1732 = vmatpush1.msra.mxu0 0.0
    %1733 = vmatprep.subr.mxu0 0.0
    %1734 = vmatpush1.msra.mxu0 0.0
    %1735 = vmatprep.subr.mxu0 0.0
    %1736 = vmatpush1.msra.mxu0 0.0
    %1737 = vmatprep.subr.mxu0 0.0
    %1738 = vmatpush1.msra.mxu0 0.0
    %1739 = vmatprep.subr.mxu0 0.0
    %1740 = vmatpush1.msra.mxu0 0.0
    %1741 = vmatprep.subr.mxu0 0.0
    %1742 = vmatpush1.msra.mxu0 0.0
    %1743 = vmatprep.subr.mxu0 0.0
    %1744 = vmatpush1.msra.mxu0 0.0
    %1745 = vmatprep.subr.mxu0 0.0
    %1746 = vmatpush1.msra.mxu0 0.0
    %1747 = vmatprep.subr.mxu0 0.0
    %1748 = vmatpush1.msra.mxu0 0.0
    %1749 = vmatprep.subr.mxu0 0.0
    %1750 = vmatpush1.msra.mxu0 %v805
    %1751 = vmatprep.subr.mxu0 0.0
    %1752 = vmatpush1.msra.mxu0 %v804
    %1753 = vmatprep.subr.mxu0 0.0
    %1754 = vmatpush2.msra.mxu0 0.0
    %1755 = vmatprep.subr.mxu0 0.0
    %1756 = vmatpush2.msra.mxu0 0.0
    %1757 = vmatprep.subr.mxu0 0.0
    %1758 = vmatpush2.msra.mxu0 0.0
    %1759 = vmatprep.subr.mxu0 0.0
    %1760 = vmatpush2.msra.mxu0 0.0
    %1761 = vmatprep.subr.mxu0 0.0
    %1762 = vmatpush2.msra.mxu0 0.0
    %1763 = vmatprep.subr.mxu0 0.0
    %1764 = vmatpush2.msra.mxu0 0.0
    %1765 = vmatprep.subr.mxu0 0.0
    %1766 = vmatpush2.msra.mxu0 0.0
    %1767 = vmatprep.subr.mxu0 0.0
    %1768 = vmatpush2.msra.mxu0 0.0
    %1769 = vmatprep.subr.mxu0 0.0
    %1770 = vmatpush2.msra.mxu0 0.0
    %1771 = vmatprep.subr.mxu0 0.0
    %1772 = vmatpush2.msra.mxu0 0.0
    %1773 = vmatprep.subr.mxu0 0.0
    %1774 = vmatpush2.msra.mxu0 0.0
    %1775 = vmatprep.subr.mxu0 0.0
    %1776 = vmatpush2.msra.mxu0 0.0
    %1777 = vmatprep.subr.mxu0 0.0
    %1778 = vmatpush2.msra.mxu0 0.0
    %1779 = vmatprep.subr.mxu0 0.0
    %1780 = vmatpush2.msra.mxu0 0.0
    %1781 = vmatprep.subr.mxu0 0.0
    %1782 = vmatpush2.msra.mxu0 0.0
    %1783 = vmatprep.subr.mxu0 0.0
    %1784 = vmatpush2.msra.mxu0 0.0
    %1785 = vmatprep.mubr.f32.mxu0 0.0
    %1786 = vmatmul.mubr.f32.gmra.mxu0 %v1719
    %v1787 = vpop.f32.mrf.mxu0
    %v1788 = vadd.f32 0.0, %v1787
    %v1789 = vpop.f32.mrf.mxu0
    %1790 = vdwg.mxu0
    %v1791 = vadd.f32 %v803, %v1788
    %v1792 = vxor.u32 %v1791, 2147483648
    %v1793 = vmul.f32 %v1792, 1.442695
    %v1794 = vpow.pop %v1793
    %v1795 = vadd.f32 %v1794, 1.0
    %v1796 = vrcp.pop %v1795
    %v1797 = vmul.f32 1.0, %v1796
    %v1798 = vadd.f32 %v1788, %v893
    %1800 = vrot.lane.b32.xlu0 %v1798, 96
    %v1801 = vpop.permute.xlu0 %1800
    %v1803 = vmul.f32 %v1797, %v1801
    %1805 = vrot.lane.b32.xlu0 %v1803, 32
    %v1806 = vpop.permute.xlu0 %1805
    %v1808 = vadd.f32 %v803, %v1806
    %v1809 = vtanh.pop %v1808
    %v1810 = vsub.f32 1.0, %v1797
    %1812 = vrot.lane.b32.xlu0 %v1809, 112
    %v1813 = vpop.permute.xlu0 %1812
    %v1815 = vmul.f32 %v1810, %v1813
    %v1817 = vmul.f32 %v1797, %v1716
    %v1818 = vadd.f32 %v1815, %v1817
    %1820 = vrot.lane.b32.xlu0 %v1818, 112
    %v1821 = vpop.permute.xlu0 %1820
    %1823 = vst.msk [vmem:[#allocation2 + $0x8] sm:$0x1] %vm919, %v1821
    %v1824 = vsel %vm90, %v1821, 0
    %1826 = vmatprep.subr.mxu0 0.0
    %1827 = vmatpush1.msra.mxu0 0.0
    %1828 = vmatprep.subr.mxu0 0.0
    %1829 = vmatpush1.msra.mxu0 0.0
    %1830 = vmatprep.subr.mxu0 0.0
    %1831 = vmatpush1.msra.mxu0 0.0
    %1832 = vmatprep.subr.mxu0 0.0
    %1833 = vmatpush1.msra.mxu0 0.0
    %1834 = vmatprep.subr.mxu0 0.0
    %1835 = vmatpush1.msra.mxu0 0.0
    %1836 = vmatprep.subr.mxu0 0.0
    %1837 = vmatpush1.msra.mxu0 0.0
    %1838 = vmatprep.subr.mxu0 0.0
    %1839 = vmatpush1.msra.mxu0 0.0
    %1840 = vmatprep.subr.mxu0 0.0
    %1841 = vmatpush1.msra.mxu0 0.0
    %1842 = vmatprep.subr.mxu0 0.0
    %1843 = vmatpush1.msra.mxu0 0.0
    %1844 = vmatprep.subr.mxu0 0.0
    %1845 = vmatpush1.msra.mxu0 0.0
    %1846 = vmatprep.subr.mxu0 0.0
    %1847 = vmatpush1.msra.mxu0 0.0
    %1848 = vmatprep.subr.mxu0 0.0
    %1849 = vmatpush1.msra.mxu0 0.0
    %1850 = vmatprep.subr.mxu0 0.0
    %1851 = vmatpush1.msra.mxu0 0.0
    %1852 = vmatprep.subr.mxu0 0.0
    %1853 = vmatpush1.msra.mxu0 0.0
    %1854 = vmatprep.subr.mxu0 0.0
    %1855 = vmatpush1.msra.mxu0 %v805
    %1856 = vmatprep.subr.mxu0 0.0
    %1857 = vmatpush1.msra.mxu0 %v804
    %1858 = vmatprep.subr.mxu0 0.0
    %1859 = vmatpush2.msra.mxu0 0.0
    %1860 = vmatprep.subr.mxu0 0.0
    %1861 = vmatpush2.msra.mxu0 0.0
    %1862 = vmatprep.subr.mxu0 0.0
    %1863 = vmatpush2.msra.mxu0 0.0
    %1864 = vmatprep.subr.mxu0 0.0
    %1865 = vmatpush2.msra.mxu0 0.0
    %1866 = vmatprep.subr.mxu0 0.0
    %1867 = vmatpush2.msra.mxu0 0.0
    %1868 = vmatprep.subr.mxu0 0.0
    %1869 = vmatpush2.msra.mxu0 0.0
    %1870 = vmatprep.subr.mxu0 0.0
    %1871 = vmatpush2.msra.mxu0 0.0
    %1872 = vmatprep.subr.mxu0 0.0
    %1873 = vmatpush2.msra.mxu0 0.0
    %1874 = vmatprep.subr.mxu0 0.0
    %1875 = vmatpush2.msra.mxu0 0.0
    %1876 = vmatprep.subr.mxu0 0.0
    %1877 = vmatpush2.msra.mxu0 0.0
    %1878 = vmatprep.subr.mxu0 0.0
    %1879 = vmatpush2.msra.mxu0 0.0
    %1880 = vmatprep.subr.mxu0 0.0
    %1881 = vmatpush2.msra.mxu0 0.0
    %1882 = vmatprep.subr.mxu0 0.0
    %1883 = vmatpush2.msra.mxu0 0.0
    %1884 = vmatprep.subr.mxu0 0.0
    %1885 = vmatpush2.msra.mxu0 0.0
    %1886 = vmatprep.subr.mxu0 0.0
    %1887 = vmatpush2.msra.mxu0 0.0
    %1888 = vmatprep.subr.mxu0 0.0
    %1889 = vmatpush2.msra.mxu0 0.0
    %1890 = vmatprep.mubr.f32.mxu0 0.0
    %1891 = vmatmul.mubr.f32.gmra.mxu0 %v1824
    %v1892 = vpop.f32.mrf.mxu0
    %v1893 = vadd.f32 0.0, %v1892
    %v1894 = vpop.f32.mrf.mxu0
    %1895 = vdwg.mxu0
    %v1897 = vrot.slane %v1893, 7
    %v1899 = vadd.f32 %v803, %v1897
    %v1900 = vxor.u32 %v1899, 2147483648
    %v1901 = vmul.f32 %v1900, 1.442695
    %v1902 = vpow.pop %v1901
    %v1903 = vadd.f32 %v1902, 1.0
    %v1904 = vrcp.pop %v1903
    %v1905 = vmul.f32 1.0, %v1904
    %v1906 = vadd.f32 %v1893, %v893
    %v1908 = vrot.slane %v1906, 7
    %1909 = vrot.lane.b32.xlu0 %v1908, 96
    %v1910 = vpop.permute.xlu0 %1909
    %v1912 = vmul.f32 %v1905, %v1910
    %1914 = vrot.lane.b32.xlu0 %v1912, 32
    %v1915 = vpop.permute.xlu0 %1914
    %v1917 = vadd.f32 %v803, %v1915
    %v1918 = vtanh.pop %v1917
    %v1919 = vsub.f32 1.0, %v1905
    %1921 = vrot.lane.b32.xlu0 %v1918, 112
    %v1922 = vpop.permute.xlu0 %1921
    %v1924 = vmul.f32 %v1919, %v1922
    %v1925 = vrot.slane %v1818, 7
    %v1927 = vmul.f32 %v1905, %v1925
    %v1928 = vadd.f32 %v1924, %v1927
    %1930 = vrot.lane.b32.xlu0 %v1928, 112
    %v1931 = vpop.permute.xlu0 %1930
    %1933 = vst.msk [vmem:[#allocation2 + $0x8] sm:$0x2] %vm1030, %v1931
    %v1934 = vrot.slane %v1928, 1
    %1935 = vrot.lane.b32.xlu0 %v1934, 112
    %v1936 = vpop.permute.xlu0 %1935
    %v1937 = vsel %vm90, %v1936, 0
    %1939 = vmatprep.subr.mxu0 0.0
    %1940 = vmatpush1.msra.mxu0 0.0
    %1941 = vmatprep.subr.mxu0 0.0
    %1942 = vmatpush1.msra.mxu0 0.0
    %1943 = vmatprep.subr.mxu0 0.0
    %1944 = vmatpush1.msra.mxu0 0.0
    %1945 = vmatprep.subr.mxu0 0.0
    %1946 = vmatpush1.msra.mxu0 0.0
    %1947 = vmatprep.subr.mxu0 0.0
    %1948 = vmatpush1.msra.mxu0 0.0
    %1949 = vmatprep.subr.mxu0 0.0
    %1950 = vmatpush1.msra.mxu0 0.0
    %1951 = vmatprep.subr.mxu0 0.0
    %1952 = vmatpush1.msra.mxu0 0.0
    %1953 = vmatprep.subr.mxu0 0.0
    %1954 = vmatpush1.msra.mxu0 0.0
    %1955 = vmatprep.subr.mxu0 0.0
    %1956 = vmatpush1.msra.mxu0 0.0
    %1957 = vmatprep.subr.mxu0 0.0
    %1958 = vmatpush1.msra.mxu0 0.0
    %1959 = vmatprep.subr.mxu0 0.0
    %1960 = vmatpush1.msra.mxu0 0.0
    %1961 = vmatprep.subr.mxu0 0.0
    %1962 = vmatpush1.msra.mxu0 0.0
    %1963 = vmatprep.subr.mxu0 0.0
    %1964 = vmatpush1.msra.mxu0 0.0
    %1965 = vmatprep.subr.mxu0 0.0
    %1966 = vmatpush1.msra.mxu0 0.0
    %1967 = vmatprep.subr.mxu0 0.0
    %1968 = vmatpush1.msra.mxu0 %v805
    %1969 = vmatprep.subr.mxu0 0.0
    %1970 = vmatpush1.msra.mxu0 %v804
    %1971 = vmatprep.subr.mxu0 0.0
    %1972 = vmatpush2.msra.mxu0 0.0
    %1973 = vmatprep.subr.mxu0 0.0
    %1974 = vmatpush2.msra.mxu0 0.0
    %1975 = vmatprep.subr.mxu0 0.0
    %1976 = vmatpush2.msra.mxu0 0.0
    %1977 = vmatprep.subr.mxu0 0.0
    %1978 = vmatpush2.msra.mxu0 0.0
    %1979 = vmatprep.subr.mxu0 0.0
    %1980 = vmatpush2.msra.mxu0 0.0
    %1981 = vmatprep.subr.mxu0 0.0
    %1982 = vmatpush2.msra.mxu0 0.0
    %1983 = vmatprep.subr.mxu0 0.0
    %1984 = vmatpush2.msra.mxu0 0.0
    %1985 = vmatprep.subr.mxu0 0.0
    %1986 = vmatpush2.msra.mxu0 0.0
    %1987 = vmatprep.subr.mxu0 0.0
    %1988 = vmatpush2.msra.mxu0 0.0
    %1989 = vmatprep.subr.mxu0 0.0
    %1990 = vmatpush2.msra.mxu0 0.0
    %1991 = vmatprep.subr.mxu0 0.0
    %1992 = vmatpush2.msra.mxu0 0.0
    %1993 = vmatprep.subr.mxu0 0.0
    %1994 = vmatpush2.msra.mxu0 0.0
    %1995 = vmatprep.subr.mxu0 0.0
    %1996 = vmatpush2.msra.mxu0 0.0
    %1997 = vmatprep.subr.mxu0 0.0
    %1998 = vmatpush2.msra.mxu0 0.0
    %1999 = vmatprep.subr.mxu0 0.0
    %2000 = vmatpush2.msra.mxu0 0.0
    %2001 = vmatprep.subr.mxu0 0.0
    %2002 = vmatpush2.msra.mxu0 0.0
    %2003 = vmatprep.mubr.f32.mxu0 0.0
    %2004 = vmatmul.mubr.f32.gmra.mxu0 %v1937
    %v2005 = vpop.f32.mrf.mxu0
    %v2006 = vadd.f32 0.0, %v2005
    %v2007 = vpop.f32.mrf.mxu0
    %2008 = vdwg.mxu0
    %v2010 = vrot.slane %v2006, 6
    %v2012 = vadd.f32 %v803, %v2010
    %v2013 = vxor.u32 %v2012, 2147483648
    %v2014 = vmul.f32 %v2013, 1.442695
    %v2015 = vpow.pop %v2014
    %v2016 = vadd.f32 %v2015, 1.0
    %v2017 = vrcp.pop %v2016
    %v2018 = vmul.f32 1.0, %v2017
    %v2019 = vadd.f32 %v2006, %v893
    %v2021 = vrot.slane %v2019, 6
    %2022 = vrot.lane.b32.xlu0 %v2021, 96
    %v2023 = vpop.permute.xlu0 %2022
    %v2025 = vmul.f32 %v2018, %v2023
    %2027 = vrot.lane.b32.xlu0 %v2025, 32
    %v2028 = vpop.permute.xlu0 %2027
    %v2030 = vadd.f32 %v803, %v2028
    %v2031 = vtanh.pop %v2030
    %v2032 = vsub.f32 1.0, %v2018
    %2034 = vrot.lane.b32.xlu0 %v2031, 112
    %v2035 = vpop.permute.xlu0 %2034
    %v2037 = vmul.f32 %v2032, %v2035
    %v2038 = vrot.slane %v1928, 7
    %v2040 = vmul.f32 %v2018, %v2038
    %v2041 = vadd.f32 %v2037, %v2040
    %2043 = vrot.lane.b32.xlu0 %v2041, 112
    %v2044 = vpop.permute.xlu0 %2043
    %2046 = vst.msk [vmem:[#allocation2 + $0x8] sm:$0x4] %vm1144, %v2044
    %v2047 = vrot.slane %v2041, 2
    %2048 = vrot.lane.b32.xlu0 %v2047, 112
    %v2049 = vpop.permute.xlu0 %2048
    %v2050 = vsel %vm90, %v2049, 0
    %2052 = vmatprep.subr.mxu0 0.0
    %2053 = vmatpush1.msra.mxu0 0.0
    %2054 = vmatprep.subr.mxu0 0.0
    %2055 = vmatpush1.msra.mxu0 0.0
    %2056 = vmatprep.subr.mxu0 0.0
    %2057 = vmatpush1.msra.mxu0 0.0
    %2058 = vmatprep.subr.mxu0 0.0
    %2059 = vmatpush1.msra.mxu0 0.0
    %2060 = vmatprep.subr.mxu0 0.0
    %2061 = vmatpush1.msra.mxu0 0.0
    %2062 = vmatprep.subr.mxu0 0.0
    %2063 = vmatpush1.msra.mxu0 0.0
    %2064 = vmatprep.subr.mxu0 0.0
    %2065 = vmatpush1.msra.mxu0 0.0
    %2066 = vmatprep.subr.mxu0 0.0
    %2067 = vmatpush1.msra.mxu0 0.0
    %2068 = vmatprep.subr.mxu0 0.0
    %2069 = vmatpush1.msra.mxu0 0.0
    %2070 = vmatprep.subr.mxu0 0.0
    %2071 = vmatpush1.msra.mxu0 0.0
    %2072 = vmatprep.subr.mxu0 0.0
    %2073 = vmatpush1.msra.mxu0 0.0
    %2074 = vmatprep.subr.mxu0 0.0
    %2075 = vmatpush1.msra.mxu0 0.0
    %2076 = vmatprep.subr.mxu0 0.0
    %2077 = vmatpush1.msra.mxu0 0.0
    %2078 = vmatprep.subr.mxu0 0.0
    %2079 = vmatpush1.msra.mxu0 0.0
    %2080 = vmatprep.subr.mxu0 0.0
    %2081 = vmatpush1.msra.mxu0 %v805
    %2082 = vmatprep.subr.mxu0 0.0
    %2083 = vmatpush1.msra.mxu0 %v804
    %2084 = vmatprep.subr.mxu0 0.0
    %2085 = vmatpush2.msra.mxu0 0.0
    %2086 = vmatprep.subr.mxu0 0.0
    %2087 = vmatpush2.msra.mxu0 0.0
    %2088 = vmatprep.subr.mxu0 0.0
    %2089 = vmatpush2.msra.mxu0 0.0
    %2090 = vmatprep.subr.mxu0 0.0
    %2091 = vmatpush2.msra.mxu0 0.0
    %2092 = vmatprep.subr.mxu0 0.0
    %2093 = vmatpush2.msra.mxu0 0.0
    %2094 = vmatprep.subr.mxu0 0.0
    %2095 = vmatpush2.msra.mxu0 0.0
    %2096 = vmatprep.subr.mxu0 0.0
    %2097 = vmatpush2.msra.mxu0 0.0
    %2098 = vmatprep.subr.mxu0 0.0
    %2099 = vmatpush2.msra.mxu0 0.0
    %2100 = vmatprep.subr.mxu0 0.0
    %2101 = vmatpush2.msra.mxu0 0.0
    %2102 = vmatprep.subr.mxu0 0.0
    %2103 = vmatpush2.msra.mxu0 0.0
    %2104 = vmatprep.subr.mxu0 0.0
    %2105 = vmatpush2.msra.mxu0 0.0
    %2106 = vmatprep.subr.mxu0 0.0
    %2107 = vmatpush2.msra.mxu0 0.0
    %2108 = vmatprep.subr.mxu0 0.0
    %2109 = vmatpush2.msra.mxu0 0.0
    %2110 = vmatprep.subr.mxu0 0.0
    %2111 = vmatpush2.msra.mxu0 0.0
    %2112 = vmatprep.subr.mxu0 0.0
    %2113 = vmatpush2.msra.mxu0 0.0
    %2114 = vmatprep.subr.mxu0 0.0
    %2115 = vmatpush2.msra.mxu0 0.0
    %2116 = vmatprep.mubr.f32.mxu0 0.0
    %2117 = vmatmul.mubr.f32.gmra.mxu0 %v2050
    %v2118 = vpop.f32.mrf.mxu0
    %v2119 = vadd.f32 0.0, %v2118
    %v2120 = vpop.f32.mrf.mxu0
    %2121 = vdwg.mxu0
    %v2123 = vrot.slane %v2119, 5
    %v2125 = vadd.f32 %v803, %v2123
    %v2126 = vxor.u32 %v2125, 2147483648
    %v2127 = vmul.f32 %v2126, 1.442695
    %v2128 = vpow.pop %v2127
    %v2129 = vadd.f32 %v2128, 1.0
    %v2130 = vrcp.pop %v2129
    %v2131 = vmul.f32 1.0, %v2130
    %v2132 = vadd.f32 %v2119, %v893
    %v2134 = vrot.slane %v2132, 5
    %2135 = vrot.lane.b32.xlu0 %v2134, 96
    %v2136 = vpop.permute.xlu0 %2135
    %v2138 = vmul.f32 %v2131, %v2136
    %2140 = vrot.lane.b32.xlu0 %v2138, 32
    %v2141 = vpop.permute.xlu0 %2140
    %v2143 = vadd.f32 %v803, %v2141
    %v2144 = vtanh.pop %v2143
    %v2145 = vsub.f32 1.0, %v2131
    %2147 = vrot.lane.b32.xlu0 %v2144, 112
    %v2148 = vpop.permute.xlu0 %2147
    %v2150 = vmul.f32 %v2145, %v2148
    %v2151 = vrot.slane %v2041, 7
    %v2153 = vmul.f32 %v2131, %v2151
    %v2154 = vadd.f32 %v2150, %v2153
    %2156 = vrot.lane.b32.xlu0 %v2154, 112
    %v2157 = vpop.permute.xlu0 %2156
    %2159 = vst.msk [vmem:[#allocation2 + $0x8] sm:$0x8] %vm1258, %v2157
    %v2160 = vrot.slane %v2154, 3
    %2161 = vrot.lane.b32.xlu0 %v2160, 112
    %v2162 = vpop.permute.xlu0 %2161
    %v2163 = vsel %vm90, %v2162, 0
    %2165 = vmatprep.subr.mxu0 0.0
    %2166 = vmatpush1.msra.mxu0 0.0
    %2167 = vmatprep.subr.mxu0 0.0
    %2168 = vmatpush1.msra.mxu0 0.0
    %2169 = vmatprep.subr.mxu0 0.0
    %2170 = vmatpush1.msra.mxu0 0.0
    %2171 = vmatprep.subr.mxu0 0.0
    %2172 = vmatpush1.msra.mxu0 0.0
    %2173 = vmatprep.subr.mxu0 0.0
    %2174 = vmatpush1.msra.mxu0 0.0
    %2175 = vmatprep.subr.mxu0 0.0
    %2176 = vmatpush1.msra.mxu0 0.0
    %2177 = vmatprep.subr.mxu0 0.0
    %2178 = vmatpush1.msra.mxu0 0.0
    %2179 = vmatprep.subr.mxu0 0.0
    %2180 = vmatpush1.msra.mxu0 0.0
    %2181 = vmatprep.subr.mxu0 0.0
    %2182 = vmatpush1.msra.mxu0 0.0
    %2183 = vmatprep.subr.mxu0 0.0
    %2184 = vmatpush1.msra.mxu0 0.0
    %2185 = vmatprep.subr.mxu0 0.0
    %2186 = vmatpush1.msra.mxu0 0.0
    %2187 = vmatprep.subr.mxu0 0.0
    %2188 = vmatpush1.msra.mxu0 0.0
    %2189 = vmatprep.subr.mxu0 0.0
    %2190 = vmatpush1.msra.mxu0 0.0
    %2191 = vmatprep.subr.mxu0 0.0
    %2192 = vmatpush1.msra.mxu0 0.0
    %2193 = vmatprep.subr.mxu0 0.0
    %2194 = vmatpush1.msra.mxu0 %v805
    %2195 = vmatprep.subr.mxu0 0.0
    %2196 = vmatpush1.msra.mxu0 %v804
    %2197 = vmatprep.subr.mxu0 0.0
    %2198 = vmatpush2.msra.mxu0 0.0
    %2199 = vmatprep.subr.mxu0 0.0
    %2200 = vmatpush2.msra.mxu0 0.0
    %2201 = vmatprep.subr.mxu0 0.0
    %2202 = vmatpush2.msra.mxu0 0.0
    %2203 = vmatprep.subr.mxu0 0.0
    %2204 = vmatpush2.msra.mxu0 0.0
    %2205 = vmatprep.subr.mxu0 0.0
    %2206 = vmatpush2.msra.mxu0 0.0
    %2207 = vmatprep.subr.mxu0 0.0
    %2208 = vmatpush2.msra.mxu0 0.0
    %2209 = vmatprep.subr.mxu0 0.0
    %2210 = vmatpush2.msra.mxu0 0.0
    %2211 = vmatprep.subr.mxu0 0.0
    %2212 = vmatpush2.msra.mxu0 0.0
    %2213 = vmatprep.subr.mxu0 0.0
    %2214 = vmatpush2.msra.mxu0 0.0
    %2215 = vmatprep.subr.mxu0 0.0
    %2216 = vmatpush2.msra.mxu0 0.0
    %2217 = vmatprep.subr.mxu0 0.0
    %2218 = vmatpush2.msra.mxu0 0.0
    %2219 = vmatprep.subr.mxu0 0.0
    %2220 = vmatpush2.msra.mxu0 0.0
    %2221 = vmatprep.subr.mxu0 0.0
    %2222 = vmatpush2.msra.mxu0 0.0
    %2223 = vmatprep.subr.mxu0 0.0
    %2224 = vmatpush2.msra.mxu0 0.0
    %2225 = vmatprep.subr.mxu0 0.0
    %2226 = vmatpush2.msra.mxu0 0.0
    %2227 = vmatprep.subr.mxu0 0.0
    %2228 = vmatpush2.msra.mxu0 0.0
    %2229 = vmatprep.mubr.f32.mxu0 0.0
    %2230 = vmatmul.mubr.f32.gmra.mxu0 %v2163
    %v2231 = vpop.f32.mrf.mxu0
    %v2232 = vadd.f32 0.0, %v2231
    %v2233 = vpop.f32.mrf.mxu0
    %2234 = vdwg.mxu0
    %v2236 = vrot.slane %v2232, 4
    %v2238 = vadd.f32 %v803, %v2236
    %v2239 = vxor.u32 %v2238, 2147483648
    %v2240 = vmul.f32 %v2239, 1.442695
    %v2241 = vpow.pop %v2240
    %v2242 = vadd.f32 %v2241, 1.0
    %v2243 = vrcp.pop %v2242
    %v2244 = vmul.f32 1.0, %v2243
    %v2245 = vadd.f32 %v2232, %v893
    %v2247 = vrot.slane %v2245, 4
    %2248 = vrot.lane.b32.xlu0 %v2247, 96
    %v2249 = vpop.permute.xlu0 %2248
    %v2251 = vmul.f32 %v2244, %v2249
    %2253 = vrot.lane.b32.xlu0 %v2251, 32
    %v2254 = vpop.permute.xlu0 %2253
    %v2256 = vadd.f32 %v803, %v2254
    %v2257 = vtanh.pop %v2256
    %v2258 = vsub.f32 1.0, %v2244
    %2260 = vrot.lane.b32.xlu0 %v2257, 112
    %v2261 = vpop.permute.xlu0 %2260
    %v2263 = vmul.f32 %v2258, %v2261
    %v2264 = vrot.slane %v2154, 7
    %v2266 = vmul.f32 %v2244, %v2264
    %v2267 = vadd.f32 %v2263, %v2266
    %2269 = vrot.lane.b32.xlu0 %v2267, 112
    %v2270 = vpop.permute.xlu0 %2269
    %2272 = vst.msk [vmem:[#allocation2 + $0x8] sm:$0x10] %vm1372, %v2270
    %v2273 = vrot.slane %v2267, 4
    %2274 = vrot.lane.b32.xlu0 %v2273, 112
    %v2275 = vpop.permute.xlu0 %2274
    %v2276 = vsel %vm90, %v2275, 0
    %2278 = vmatprep.subr.mxu0 0.0
    %2279 = vmatpush1.msra.mxu0 0.0
    %2280 = vmatprep.subr.mxu0 0.0
    %2281 = vmatpush1.msra.mxu0 0.0
    %2282 = vmatprep.subr.mxu0 0.0
    %2283 = vmatpush1.msra.mxu0 0.0
    %2284 = vmatprep.subr.mxu0 0.0
    %2285 = vmatpush1.msra.mxu0 0.0
    %2286 = vmatprep.subr.mxu0 0.0
    %2287 = vmatpush1.msra.mxu0 0.0
    %2288 = vmatprep.subr.mxu0 0.0
    %2289 = vmatpush1.msra.mxu0 0.0
    %2290 = vmatprep.subr.mxu0 0.0
    %2291 = vmatpush1.msra.mxu0 0.0
    %2292 = vmatprep.subr.mxu0 0.0
    %2293 = vmatpush1.msra.mxu0 0.0
    %2294 = vmatprep.subr.mxu0 0.0
    %2295 = vmatpush1.msra.mxu0 0.0
    %2296 = vmatprep.subr.mxu0 0.0
    %2297 = vmatpush1.msra.mxu0 0.0
    %2298 = vmatprep.subr.mxu0 0.0
    %2299 = vmatpush1.msra.mxu0 0.0
    %2300 = vmatprep.subr.mxu0 0.0
    %2301 = vmatpush1.msra.mxu0 0.0
    %2302 = vmatprep.subr.mxu0 0.0
    %2303 = vmatpush1.msra.mxu0 0.0
    %2304 = vmatprep.subr.mxu0 0.0
    %2305 = vmatpush1.msra.mxu0 0.0
    %2306 = vmatprep.subr.mxu0 0.0
    %2307 = vmatpush1.msra.mxu0 %v805
    %2308 = vmatprep.subr.mxu0 0.0
    %2309 = vmatpush1.msra.mxu0 %v804
    %2310 = vmatprep.subr.mxu0 0.0
    %2311 = vmatpush2.msra.mxu0 0.0
    %2312 = vmatprep.subr.mxu0 0.0
    %2313 = vmatpush2.msra.mxu0 0.0
    %2314 = vmatprep.subr.mxu0 0.0
    %2315 = vmatpush2.msra.mxu0 0.0
    %2316 = vmatprep.subr.mxu0 0.0
    %2317 = vmatpush2.msra.mxu0 0.0
    %2318 = vmatprep.subr.mxu0 0.0
    %2319 = vmatpush2.msra.mxu0 0.0
    %2320 = vmatprep.subr.mxu0 0.0
    %2321 = vmatpush2.msra.mxu0 0.0
    %2322 = vmatprep.subr.mxu0 0.0
    %2323 = vmatpush2.msra.mxu0 0.0
    %2324 = vmatprep.subr.mxu0 0.0
    %2325 = vmatpush2.msra.mxu0 0.0
    %2326 = vmatprep.subr.mxu0 0.0
    %2327 = vmatpush2.msra.mxu0 0.0
    %2328 = vmatprep.subr.mxu0 0.0
    %2329 = vmatpush2.msra.mxu0 0.0
    %2330 = vmatprep.subr.mxu0 0.0
    %2331 = vmatpush2.msra.mxu0 0.0
    %2332 = vmatprep.subr.mxu0 0.0
    %2333 = vmatpush2.msra.mxu0 0.0
    %2334 = vmatprep.subr.mxu0 0.0
    %2335 = vmatpush2.msra.mxu0 0.0
    %2336 = vmatprep.subr.mxu0 0.0
    %2337 = vmatpush2.msra.mxu0 0.0
    %2338 = vmatprep.subr.mxu0 0.0
    %2339 = vmatpush2.msra.mxu0 0.0
    %2340 = vmatprep.subr.mxu0 0.0
    %2341 = vmatpush2.msra.mxu0 0.0
    %2342 = vmatprep.mubr.f32.mxu0 0.0
    %2343 = vmatmul.mubr.f32.gmra.mxu0 %v2276
    %v2344 = vpop.f32.mrf.mxu0
    %v2345 = vadd.f32 0.0, %v2344
    %v2346 = vpop.f32.mrf.mxu0
    %2347 = vdwg.mxu0
    %v2349 = vrot.slane %v2345, 3
    %v2351 = vadd.f32 %v803, %v2349
    %v2352 = vxor.u32 %v2351, 2147483648
    %v2353 = vmul.f32 %v2352, 1.442695
    %v2354 = vpow.pop %v2353
    %v2355 = vadd.f32 %v2354, 1.0
    %v2356 = vrcp.pop %v2355
    %v2357 = vmul.f32 1.0, %v2356
    %v2358 = vadd.f32 %v2345, %v893
    %v2360 = vrot.slane %v2358, 3
    %2361 = vrot.lane.b32.xlu0 %v2360, 96
    %v2362 = vpop.permute.xlu0 %2361
    %v2364 = vmul.f32 %v2357, %v2362
    %2366 = vrot.lane.b32.xlu0 %v2364, 32
    %v2367 = vpop.permute.xlu0 %2366
    %v2369 = vadd.f32 %v803, %v2367
    %v2370 = vtanh.pop %v2369
    %v2371 = vsub.f32 1.0, %v2357
    %2373 = vrot.lane.b32.xlu0 %v2370, 112
    %v2374 = vpop.permute.xlu0 %2373
    %v2376 = vmul.f32 %v2371, %v2374
    %v2377 = vrot.slane %v2267, 7
    %v2379 = vmul.f32 %v2357, %v2377
    %v2380 = vadd.f32 %v2376, %v2379
    %2382 = vrot.lane.b32.xlu0 %v2380, 112
    %v2383 = vpop.permute.xlu0 %2382
    %2385 = vst.msk [vmem:[#allocation2 + $0x8] sm:$0x20] %vm1486, %v2383
    %v2386 = vrot.slane %v2380, 5
    %2387 = vrot.lane.b32.xlu0 %v2386, 112
    %v2388 = vpop.permute.xlu0 %2387
    %v2389 = vsel %vm90, %v2388, 0
    %2391 = vmatprep.subr.mxu0 0.0
    %2392 = vmatpush1.msra.mxu0 0.0
    %2393 = vmatprep.subr.mxu0 0.0
    %2394 = vmatpush1.msra.mxu0 0.0
    %2395 = vmatprep.subr.mxu0 0.0
    %2396 = vmatpush1.msra.mxu0 0.0
    %2397 = vmatprep.subr.mxu0 0.0
    %2398 = vmatpush1.msra.mxu0 0.0
    %2399 = vmatprep.subr.mxu0 0.0
    %2400 = vmatpush1.msra.mxu0 0.0
    %2401 = vmatprep.subr.mxu0 0.0
    %2402 = vmatpush1.msra.mxu0 0.0
    %2403 = vmatprep.subr.mxu0 0.0
    %2404 = vmatpush1.msra.mxu0 0.0
    %2405 = vmatprep.subr.mxu0 0.0
    %2406 = vmatpush1.msra.mxu0 0.0
    %2407 = vmatprep.subr.mxu0 0.0
    %2408 = vmatpush1.msra.mxu0 0.0
    %2409 = vmatprep.subr.mxu0 0.0
    %2410 = vmatpush1.msra.mxu0 0.0
    %2411 = vmatprep.subr.mxu0 0.0
    %2412 = vmatpush1.msra.mxu0 0.0
    %2413 = vmatprep.subr.mxu0 0.0
    %2414 = vmatpush1.msra.mxu0 0.0
    %2415 = vmatprep.subr.mxu0 0.0
    %2416 = vmatpush1.msra.mxu0 0.0
    %2417 = vmatprep.subr.mxu0 0.0
    %2418 = vmatpush1.msra.mxu0 0.0
    %2419 = vmatprep.subr.mxu0 0.0
    %2420 = vmatpush1.msra.mxu0 %v805
    %2421 = vmatprep.subr.mxu0 0.0
    %2422 = vmatpush1.msra.mxu0 %v804
    %2423 = vmatprep.subr.mxu0 0.0
    %2424 = vmatpush2.msra.mxu0 0.0
    %2425 = vmatprep.subr.mxu0 0.0
    %2426 = vmatpush2.msra.mxu0 0.0
    %2427 = vmatprep.subr.mxu0 0.0
    %2428 = vmatpush2.msra.mxu0 0.0
    %2429 = vmatprep.subr.mxu0 0.0
    %2430 = vmatpush2.msra.mxu0 0.0
    %2431 = vmatprep.subr.mxu0 0.0
    %2432 = vmatpush2.msra.mxu0 0.0
    %2433 = vmatprep.subr.mxu0 0.0
    %2434 = vmatpush2.msra.mxu0 0.0
    %2435 = vmatprep.subr.mxu0 0.0
    %2436 = vmatpush2.msra.mxu0 0.0
    %2437 = vmatprep.subr.mxu0 0.0
    %2438 = vmatpush2.msra.mxu0 0.0
    %2439 = vmatprep.subr.mxu0 0.0
    %2440 = vmatpush2.msra.mxu0 0.0
    %2441 = vmatprep.subr.mxu0 0.0
    %2442 = vmatpush2.msra.mxu0 0.0
    %2443 = vmatprep.subr.mxu0 0.0
    %2444 = vmatpush2.msra.mxu0 0.0
    %2445 = vmatprep.subr.mxu0 0.0
    %2446 = vmatpush2.msra.mxu0 0.0
    %2447 = vmatprep.subr.mxu0 0.0
    %2448 = vmatpush2.msra.mxu0 0.0
    %2449 = vmatprep.subr.mxu0 0.0
    %2450 = vmatpush2.msra.mxu0 0.0
    %2451 = vmatprep.subr.mxu0 0.0
    %2452 = vmatpush2.msra.mxu0 0.0
    %2453 = vmatprep.subr.mxu0 0.0
    %2454 = vmatpush2.msra.mxu0 0.0
    %2455 = vmatprep.mubr.f32.mxu0 0.0
    %2456 = vmatmul.mubr.f32.gmra.mxu0 %v2389
    %v2457 = vpop.f32.mrf.mxu0
    %v2458 = vadd.f32 0.0, %v2457
    %v2459 = vpop.f32.mrf.mxu0
    %2460 = vdwg.mxu0
    %v2462 = vrot.slane %v2458, 2
    %v2464 = vadd.f32 %v803, %v2462
    %v2465 = vxor.u32 %v2464, 2147483648
    %v2466 = vmul.f32 %v2465, 1.442695
    %v2467 = vpow.pop %v2466
    %v2468 = vadd.f32 %v2467, 1.0
    %v2469 = vrcp.pop %v2468
    %v2470 = vmul.f32 1.0, %v2469
    %v2471 = vadd.f32 %v2458, %v893
    %v2473 = vrot.slane %v2471, 2
    %2474 = vrot.lane.b32.xlu0 %v2473, 96
    %v2475 = vpop.permute.xlu0 %2474
    %v2477 = vmul.f32 %v2470, %v2475
    %2479 = vrot.lane.b32.xlu0 %v2477, 32
    %v2480 = vpop.permute.xlu0 %2479
    %v2482 = vadd.f32 %v803, %v2480
    %v2483 = vtanh.pop %v2482
    %v2484 = vsub.f32 1.0, %v2470
    %2486 = vrot.lane.b32.xlu0 %v2483, 112
    %v2487 = vpop.permute.xlu0 %2486
    %v2489 = vmul.f32 %v2484, %v2487
    %v2490 = vrot.slane %v2380, 7
    %v2492 = vmul.f32 %v2470, %v2490
    %v2493 = vadd.f32 %v2489, %v2492
    %2495 = vrot.lane.b32.xlu0 %v2493, 112
    %v2496 = vpop.permute.xlu0 %2495
    %2498 = vst.msk [vmem:[#allocation2 + $0x8] sm:$0x40] %vm1600, %v2496
    %v2499 = vrot.slane %v2493, 6
    %2500 = vrot.lane.b32.xlu0 %v2499, 112
    %v2501 = vpop.permute.xlu0 %2500
    %v2502 = vsel %vm90, %v2501, 0
    %2504 = vmatprep.subr.mxu0 0.0
    %2505 = vmatpush1.msra.mxu0 0.0
    %2506 = vmatprep.subr.mxu0 0.0
    %2507 = vmatpush1.msra.mxu0 0.0
    %2508 = vmatprep.subr.mxu0 0.0
    %2509 = vmatpush1.msra.mxu0 0.0
    %2510 = vmatprep.subr.mxu0 0.0
    %2511 = vmatpush1.msra.mxu0 0.0
    %2512 = vmatprep.subr.mxu0 0.0
    %2513 = vmatpush1.msra.mxu0 0.0
    %2514 = vmatprep.subr.mxu0 0.0
    %2515 = vmatpush1.msra.mxu0 0.0
    %2516 = vmatprep.subr.mxu0 0.0
    %2517 = vmatpush1.msra.mxu0 0.0
    %2518 = vmatprep.subr.mxu0 0.0
    %2519 = vmatpush1.msra.mxu0 0.0
    %2520 = vmatprep.subr.mxu0 0.0
    %2521 = vmatpush1.msra.mxu0 0.0
    %2522 = vmatprep.subr.mxu0 0.0
    %2523 = vmatpush1.msra.mxu0 0.0
    %2524 = vmatprep.subr.mxu0 0.0
    %2525 = vmatpush1.msra.mxu0 0.0
    %2526 = vmatprep.subr.mxu0 0.0
    %2527 = vmatpush1.msra.mxu0 0.0
    %2528 = vmatprep.subr.mxu0 0.0
    %2529 = vmatpush1.msra.mxu0 0.0
    %2530 = vmatprep.subr.mxu0 0.0
    %2531 = vmatpush1.msra.mxu0 0.0
    %2532 = vmatprep.subr.mxu0 0.0
    %2533 = vmatpush1.msra.mxu0 %v805
    %2534 = vmatprep.subr.mxu0 0.0
    %2535 = vmatpush1.msra.mxu0 %v804
    %2536 = vmatprep.subr.mxu0 0.0
    %2537 = vmatpush2.msra.mxu0 0.0
    %2538 = vmatprep.subr.mxu0 0.0
    %2539 = vmatpush2.msra.mxu0 0.0
    %2540 = vmatprep.subr.mxu0 0.0
    %2541 = vmatpush2.msra.mxu0 0.0
    %2542 = vmatprep.subr.mxu0 0.0
    %2543 = vmatpush2.msra.mxu0 0.0
    %2544 = vmatprep.subr.mxu0 0.0
    %2545 = vmatpush2.msra.mxu0 0.0
    %2546 = vmatprep.subr.mxu0 0.0
    %2547 = vmatpush2.msra.mxu0 0.0
    %2548 = vmatprep.subr.mxu0 0.0
    %2549 = vmatpush2.msra.mxu0 0.0
    %2550 = vmatprep.subr.mxu0 0.0
    %2551 = vmatpush2.msra.mxu0 0.0
    %2552 = vmatprep.subr.mxu0 0.0
    %2553 = vmatpush2.msra.mxu0 0.0
    %2554 = vmatprep.subr.mxu0 0.0
    %2555 = vmatpush2.msra.mxu0 0.0
    %2556 = vmatprep.subr.mxu0 0.0
    %2557 = vmatpush2.msra.mxu0 0.0
    %2558 = vmatprep.subr.mxu0 0.0
    %2559 = vmatpush2.msra.mxu0 0.0
    %2560 = vmatprep.subr.mxu0 0.0
    %2561 = vmatpush2.msra.mxu0 0.0
    %2562 = vmatprep.subr.mxu0 0.0
    %2563 = vmatpush2.msra.mxu0 0.0
    %2564 = vmatprep.subr.mxu0 0.0
    %2565 = vmatpush2.msra.mxu0 0.0
    %2566 = vmatprep.subr.mxu0 0.0
    %2567 = vmatpush2.msra.mxu0 0.0
    %2568 = vmatprep.mubr.f32.mxu0 0.0
    %2569 = vmatmul.mubr.f32.gmra.mxu0 %v2502
    %v2570 = vpop.f32.mrf.mxu0
    %v2571 = vadd.f32 0.0, %v2570
    %v2572 = vpop.f32.mrf.mxu0
    %2573 = vdwg.mxu0
    %v2575 = vrot.slane %v2571, 1
    %v2577 = vadd.f32 %v803, %v2575
    %v2578 = vxor.u32 %v2577, 2147483648
    %v2579 = vmul.f32 %v2578, 1.442695
    %v2580 = vpow.pop %v2579
    %v2581 = vadd.f32 %v2580, 1.0
    %v2582 = vrcp.pop %v2581
    %v2583 = vmul.f32 1.0, %v2582
    %v2584 = vadd.f32 %v2571, %v893
    %v2586 = vrot.slane %v2584, 1
    %2587 = vrot.lane.b32.xlu0 %v2586, 96
    %v2588 = vpop.permute.xlu0 %2587
    %v2590 = vmul.f32 %v2583, %v2588
    %2592 = vrot.lane.b32.xlu0 %v2590, 32
    %v2593 = vpop.permute.xlu0 %2592
    %v2595 = vadd.f32 %v803, %v2593
    %v2596 = vtanh.pop %v2595
    %v2597 = vsub.f32 1.0, %v2583
    %2599 = vrot.lane.b32.xlu0 %v2596, 112
    %v2600 = vpop.permute.xlu0 %2599
    %v2602 = vmul.f32 %v2597, %v2600
    %v2603 = vrot.slane %v2493, 7
    %v2605 = vmul.f32 %v2583, %v2603
    %v2606 = vadd.f32 %v2602, %v2605
    %2608 = vrot.lane.b32.xlu0 %v2606, 112
    %v2609 = vpop.permute.xlu0 %2608
    %2611 = vst.msk [vmem:[#allocation2 + $0x8] sm:$0x80] %vm1714, %v2609
    %v2612 = vld [vmem:[#allocation2] sm:$0xff]
    %v2613 = vld [vmem:[#allocation2 + $0x8] sm:$0xff]
    %v2614 = vld [vmem:[%s10] sm:$0xff]
    %v2615 = vld [vmem:[%s10 + $0x8] sm:$0xff]
    %s2616 = scalar_lea.vmem %s12, 1
    %v2617 = vld [vmem:[%s2616] sm:$0x1]
    %v2619 = vlaneseq
    %v2620 = vshrl.u32 %v2619, 7
    %v2621 = vsub.s32 0, %v2620
    %v2622 = vrot.slane %v2617, %v2621
    %v2625 = vsel %vm90, %v2612, 0
    %v2628 = vsel %vm90, %v2613, 0
    %2630 = vmatprep.subr.mxu0 0.0
    %2631 = vmatpush1.msra.mxu0 0.0
    %2632 = vmatprep.subr.mxu0 0.0
    %2633 = vmatpush1.msra.mxu0 0.0
    %2634 = vmatprep.subr.mxu0 0.0
    %2635 = vmatpush1.msra.mxu0 0.0
    %2636 = vmatprep.subr.mxu0 0.0
    %2637 = vmatpush1.msra.mxu0 0.0
    %2638 = vmatprep.subr.mxu0 0.0
    %2639 = vmatpush1.msra.mxu0 0.0
    %2640 = vmatprep.subr.mxu0 0.0
    %2641 = vmatpush1.msra.mxu0 0.0
    %2642 = vmatprep.subr.mxu0 0.0
    %2643 = vmatpush1.msra.mxu0 0.0
    %2644 = vmatprep.subr.mxu0 0.0
    %2645 = vmatpush1.msra.mxu0 0.0
    %2646 = vmatprep.subr.mxu0 0.0
    %2647 = vmatpush1.msra.mxu0 0.0
    %2648 = vmatprep.subr.mxu0 0.0
    %2649 = vmatpush1.msra.mxu0 0.0
    %2650 = vmatprep.subr.mxu0 0.0
    %2651 = vmatpush1.msra.mxu0 0.0
    %2652 = vmatprep.subr.mxu0 0.0
    %2653 = vmatpush1.msra.mxu0 0.0
    %2654 = vmatprep.subr.mxu0 0.0
    %2655 = vmatpush1.msra.mxu0 0.0
    %2656 = vmatprep.subr.mxu0 0.0
    %2657 = vmatpush1.msra.mxu0 0.0
    %2658 = vmatprep.subr.mxu0 0.0
    %2659 = vmatpush1.msra.mxu0 %v2615
    %2660 = vmatprep.subr.mxu0 0.0
    %2661 = vmatpush1.msra.mxu0 %v2614
    %2662 = vmatprep.subr.mxu0 0.0
    %2663 = vmatpush2.msra.mxu0 0.0
    %2664 = vmatprep.subr.mxu0 0.0
    %2665 = vmatpush2.msra.mxu0 0.0
    %2666 = vmatprep.subr.mxu0 0.0
    %2667 = vmatpush2.msra.mxu0 0.0
    %2668 = vmatprep.subr.mxu0 0.0
    %2669 = vmatpush2.msra.mxu0 0.0
    %2670 = vmatprep.subr.mxu0 0.0
    %2671 = vmatpush2.msra.mxu0 0.0
    %2672 = vmatprep.subr.mxu0 0.0
    %2673 = vmatpush2.msra.mxu0 0.0
    %2674 = vmatprep.subr.mxu0 0.0
    %2675 = vmatpush2.msra.mxu0 0.0
    %2676 = vmatprep.subr.mxu0 0.0
    %2677 = vmatpush2.msra.mxu0 0.0
    %2678 = vmatprep.subr.mxu0 0.0
    %2679 = vmatpush2.msra.mxu0 0.0
    %2680 = vmatprep.subr.mxu0 0.0
    %2681 = vmatpush2.msra.mxu0 0.0
    %2682 = vmatprep.subr.mxu0 0.0
    %2683 = vmatpush2.msra.mxu0 0.0
    %2684 = vmatprep.subr.mxu0 0.0
    %2685 = vmatpush2.msra.mxu0 0.0
    %2686 = vmatprep.subr.mxu0 0.0
    %2687 = vmatpush2.msra.mxu0 0.0
    %2688 = vmatprep.subr.mxu0 0.0
    %2689 = vmatpush2.msra.mxu0 0.0
    %2690 = vmatprep.subr.mxu0 0.0
    %2691 = vmatpush2.msra.mxu0 0.0
    %2692 = vmatprep.subr.mxu0 0.0
    %2693 = vmatpush2.msra.mxu0 0.0
    %2694 = vmatprep.mubr.f32.mxu0 0.0
    %2695 = vmatmul.mubr.f32.gmra.mxu0 %v2625
    %v2696 = vpop.f32.mrf.mxu0
    %v2697 = vadd.f32 %v2622, %v2696
    %v2698 = vpop.f32.mrf.mxu0
    %2699 = vmatprep.mubr.f32.mxu0 0.0
    %2700 = vmatmul.mubr.f32.gmra.mxu0 %v2628
    %v2701 = vpop.f32.mrf.mxu0
    %v2702 = vadd.f32 %v2622, %v2701
    %v2703 = vpop.f32.mrf.mxu0
    %2704 = vdwg.mxu0
    %s2705 = scalar_lea.vmem %s11, 16
    %v2706 = vld [vmem:[%s2705] sm:$0xff]
    %v2707 = vld [vmem:[%s2705 + $0x8] sm:$0xff]
    %s2708 = scalar_lea.vmem %s13, 1
    %v2709 = vld [vmem:[%s2708] sm:$0x1]
    %2710 = vmatprep.subr.mxu0 0.0
    %2711 = vmatpush1.msra.mxu0 0.0
    %2712 = vmatprep.subr.mxu0 0.0
    %2713 = vmatpush1.msra.mxu0 0.0
    %2714 = vmatprep.subr.mxu0 0.0
    %2715 = vmatpush1.msra.mxu0 0.0
    %2716 = vmatprep.subr.mxu0 0.0
    %2717 = vmatpush1.msra.mxu0 0.0
    %2718 = vmatprep.subr.mxu0 0.0
    %2719 = vmatpush1.msra.mxu0 0.0
    %2720 = vmatprep.subr.mxu0 0.0
    %2721 = vmatpush1.msra.mxu0 0.0
    %2722 = vmatprep.subr.mxu0 0.0
    %2723 = vmatpush1.msra.mxu0 0.0
    %2724 = vmatprep.subr.mxu0 0.0
    %2725 = vmatpush1.msra.mxu0 0.0
    %2726 = vmatprep.subr.mxu0 0.0
    %2727 = vmatpush1.msra.mxu0 0.0
    %2728 = vmatprep.subr.mxu0 0.0
    %2729 = vmatpush1.msra.mxu0 0.0
    %2730 = vmatprep.subr.mxu0 0.0
    %2731 = vmatpush1.msra.mxu0 0.0
    %2732 = vmatprep.subr.mxu0 0.0
    %2733 = vmatpush1.msra.mxu0 0.0
    %2734 = vmatprep.subr.mxu0 0.0
    %2735 = vmatpush1.msra.mxu0 0.0
    %2736 = vmatprep.subr.mxu0 0.0
    %2737 = vmatpush1.msra.mxu0 0.0
    %2738 = vmatprep.subr.mxu0 0.0
    %2739 = vmatpush1.msra.mxu0 %v2707
    %2740 = vmatprep.subr.mxu0 0.0
    %2741 = vmatpush1.msra.mxu0 %v2706
    %2742 = vmatprep.subr.mxu0 0.0
    %2743 = vmatpush2.msra.mxu0 0.0
    %2744 = vmatprep.subr.mxu0 0.0
    %2745 = vmatpush2.msra.mxu0 0.0
    %2746 = vmatprep.subr.mxu0 0.0
    %2747 = vmatpush2.msra.mxu0 0.0
    %2748 = vmatprep.subr.mxu0 0.0
    %2749 = vmatpush2.msra.mxu0 0.0
    %2750 = vmatprep.subr.mxu0 0.0
    %2751 = vmatpush2.msra.mxu0 0.0
    %2752 = vmatprep.subr.mxu0 0.0
    %2753 = vmatpush2.msra.mxu0 0.0
    %2754 = vmatprep.subr.mxu0 0.0
    %2755 = vmatpush2.msra.mxu0 0.0
    %2756 = vmatprep.subr.mxu0 0.0
    %2757 = vmatpush2.msra.mxu0 0.0
    %2758 = vmatprep.subr.mxu0 0.0
    %2759 = vmatpush2.msra.mxu0 0.0
    %2760 = vmatprep.subr.mxu0 0.0
    %2761 = vmatpush2.msra.mxu0 0.0
    %2762 = vmatprep.subr.mxu0 0.0
    %2763 = vmatpush2.msra.mxu0 0.0
    %2764 = vmatprep.subr.mxu0 0.0
    %2765 = vmatpush2.msra.mxu0 0.0
    %2766 = vmatprep.subr.mxu0 0.0
    %2767 = vmatpush2.msra.mxu0 0.0
    %2768 = vmatprep.subr.mxu0 0.0
    %2769 = vmatpush2.msra.mxu0 0.0
    %2770 = vmatprep.subr.mxu0 0.0
    %2771 = vmatpush2.msra.mxu0 0.0
    %2772 = vmatprep.subr.mxu0 0.0
    %2773 = vmatpush2.msra.mxu0 0.0
    %2774 = vmatprep.mubr.f32.mxu0 0.0
    %2775 = vmatmul.mubr.f32.gmra.mxu0 %v808
    %v2776 = vpop.f32.mrf.mxu0
    %v2777 = vadd.f32 0.0, %v2776
    %v2778 = vpop.f32.mrf.mxu0
    %2779 = vdwg.mxu0
    %v2780 = vadd.f32 %v2697, %v2777
    %v2781 = vxor.u32 %v2780, 2147483648
    %v2782 = vmul.f32 %v2781, 1.442695
    %v2783 = vpow.pop %v2782
    %v2784 = vadd.f32 %v2783, 1.0
    %v2785 = vrcp.pop %v2784
    %v2786 = vmul.f32 1.0, %v2785
    %v2788 = vlaneseq
    %v2789 = vshrl.u32 %v2788, 7
    %v2790 = vsub.s32 0, %v2789
    %v2791 = vrot.slane %v2709, %v2790
    %2792 = vrot.lane.b32.xlu0 %v2791, 32
    %v2793 = vpop.permute.xlu0 %2792
    %v2795 = vadd.f32 %v2777, %v2793
    %2797 = vrot.lane.b32.xlu0 %v2795, 96
    %v2798 = vpop.permute.xlu0 %2797
    %v2800 = vmul.f32 %v2786, %v2798
    %2802 = vrot.lane.b32.xlu0 %v2800, 32
    %v2803 = vpop.permute.xlu0 %2802
    %v2805 = vadd.f32 %v2697, %v2803
    %v2806 = vtanh.pop %v2805
    %v2807 = vsub.f32 1.0, %v2786
    %2809 = vrot.lane.b32.xlu0 %v2806, 112
    %v2810 = vpop.permute.xlu0 %2809
    %v2812 = vmul.f32 %v2807, %v2810
    %v2813 = vmul.f32 %v2786, 0.0
    %v2814 = vadd.f32 %v2812, %v2813
    %2816 = vrot.lane.b32.xlu0 %v2814, 112
    %v2817 = vpop.permute.xlu0 %2816
    %2819 = vst.msk [vmem:[#allocation2] sm:$0x1] %vm919, %v2817
    %v2820 = vsel %vm90, %v2817, 0
    %2822 = vmatprep.subr.mxu0 0.0
    %2823 = vmatpush1.msra.mxu0 0.0
    %2824 = vmatprep.subr.mxu0 0.0
    %2825 = vmatpush1.msra.mxu0 0.0
    %2826 = vmatprep.subr.mxu0 0.0
    %2827 = vmatpush1.msra.mxu0 0.0
    %2828 = vmatprep.subr.mxu0 0.0
    %2829 = vmatpush1.msra.mxu0 0.0
    %2830 = vmatprep.subr.mxu0 0.0
    %2831 = vmatpush1.msra.mxu0 0.0
    %2832 = vmatprep.subr.mxu0 0.0
    %2833 = vmatpush1.msra.mxu0 0.0
    %2834 = vmatprep.subr.mxu0 0.0
    %2835 = vmatpush1.msra.mxu0 0.0
    %2836 = vmatprep.subr.mxu0 0.0
    %2837 = vmatpush1.msra.mxu0 0.0
    %2838 = vmatprep.subr.mxu0 0.0
    %2839 = vmatpush1.msra.mxu0 0.0
    %2840 = vmatprep.subr.mxu0 0.0
    %2841 = vmatpush1.msra.mxu0 0.0
    %2842 = vmatprep.subr.mxu0 0.0
    %2843 = vmatpush1.msra.mxu0 0.0
    %2844 = vmatprep.subr.mxu0 0.0
    %2845 = vmatpush1.msra.mxu0 0.0
    %2846 = vmatprep.subr.mxu0 0.0
    %2847 = vmatpush1.msra.mxu0 0.0
    %2848 = vmatprep.subr.mxu0 0.0
    %2849 = vmatpush1.msra.mxu0 0.0
    %2850 = vmatprep.subr.mxu0 0.0
    %2851 = vmatpush1.msra.mxu0 %v2707
    %2852 = vmatprep.subr.mxu0 0.0
    %2853 = vmatpush1.msra.mxu0 %v2706
    %2854 = vmatprep.subr.mxu0 0.0
    %2855 = vmatpush2.msra.mxu0 0.0
    %2856 = vmatprep.subr.mxu0 0.0
    %2857 = vmatpush2.msra.mxu0 0.0
    %2858 = vmatprep.subr.mxu0 0.0
    %2859 = vmatpush2.msra.mxu0 0.0
    %2860 = vmatprep.subr.mxu0 0.0
    %2861 = vmatpush2.msra.mxu0 0.0
    %2862 = vmatprep.subr.mxu0 0.0
    %2863 = vmatpush2.msra.mxu0 0.0
    %2864 = vmatprep.subr.mxu0 0.0
    %2865 = vmatpush2.msra.mxu0 0.0
    %2866 = vmatprep.subr.mxu0 0.0
    %2867 = vmatpush2.msra.mxu0 0.0
    %2868 = vmatprep.subr.mxu0 0.0
    %2869 = vmatpush2.msra.mxu0 0.0
    %2870 = vmatprep.subr.mxu0 0.0
    %2871 = vmatpush2.msra.mxu0 0.0
    %2872 = vmatprep.subr.mxu0 0.0
    %2873 = vmatpush2.msra.mxu0 0.0
    %2874 = vmatprep.subr.mxu0 0.0
    %2875 = vmatpush2.msra.mxu0 0.0
    %2876 = vmatprep.subr.mxu0 0.0
    %2877 = vmatpush2.msra.mxu0 0.0
    %2878 = vmatprep.subr.mxu0 0.0
    %2879 = vmatpush2.msra.mxu0 0.0
    %2880 = vmatprep.subr.mxu0 0.0
    %2881 = vmatpush2.msra.mxu0 0.0
    %2882 = vmatprep.subr.mxu0 0.0
    %2883 = vmatpush2.msra.mxu0 0.0
    %2884 = vmatprep.subr.mxu0 0.0
    %2885 = vmatpush2.msra.mxu0 0.0
    %2886 = vmatprep.mubr.f32.mxu0 0.0
    %2887 = vmatmul.mubr.f32.gmra.mxu0 %v2820
    %v2888 = vpop.f32.mrf.mxu0
    %v2889 = vadd.f32 0.0, %v2888
    %v2890 = vpop.f32.mrf.mxu0
    %2891 = vdwg.mxu0
    %v2893 = vrot.slane %v2889, 7
    %v2895 = vadd.f32 %v2697, %v2893
    %v2896 = vxor.u32 %v2895, 2147483648
    %v2897 = vmul.f32 %v2896, 1.442695
    %v2898 = vpow.pop %v2897
    %v2899 = vadd.f32 %v2898, 1.0
    %v2900 = vrcp.pop %v2899
    %v2901 = vmul.f32 1.0, %v2900
    %v2902 = vadd.f32 %v2889, %v2793
    %v2904 = vrot.slane %v2902, 7
    %2905 = vrot.lane.b32.xlu0 %v2904, 96
    %v2906 = vpop.permute.xlu0 %2905
    %v2908 = vmul.f32 %v2901, %v2906
    %2910 = vrot.lane.b32.xlu0 %v2908, 32
    %v2911 = vpop.permute.xlu0 %2910
    %v2913 = vadd.f32 %v2697, %v2911
    %v2914 = vtanh.pop %v2913
    %v2915 = vsub.f32 1.0, %v2901
    %2917 = vrot.lane.b32.xlu0 %v2914, 112
    %v2918 = vpop.permute.xlu0 %2917
    %v2920 = vmul.f32 %v2915, %v2918
    %v2921 = vrot.slane %v2814, 7
    %v2923 = vmul.f32 %v2901, %v2921
    %v2924 = vadd.f32 %v2920, %v2923
    %2926 = vrot.lane.b32.xlu0 %v2924, 112
    %v2927 = vpop.permute.xlu0 %2926
    %2929 = vst.msk [vmem:[#allocation2] sm:$0x2] %vm1030, %v2927
    %v2930 = vrot.slane %v2924, 1
    %2931 = vrot.lane.b32.xlu0 %v2930, 112
    %v2932 = vpop.permute.xlu0 %2931
    %v2933 = vsel %vm90, %v2932, 0
    %2935 = vmatprep.subr.mxu0 0.0
    %2936 = vmatpush1.msra.mxu0 0.0
    %2937 = vmatprep.subr.mxu0 0.0
    %2938 = vmatpush1.msra.mxu0 0.0
    %2939 = vmatprep.subr.mxu0 0.0
    %2940 = vmatpush1.msra.mxu0 0.0
    %2941 = vmatprep.subr.mxu0 0.0
    %2942 = vmatpush1.msra.mxu0 0.0
    %2943 = vmatprep.subr.mxu0 0.0
    %2944 = vmatpush1.msra.mxu0 0.0
    %2945 = vmatprep.subr.mxu0 0.0
    %2946 = vmatpush1.msra.mxu0 0.0
    %2947 = vmatprep.subr.mxu0 0.0
    %2948 = vmatpush1.msra.mxu0 0.0
    %2949 = vmatprep.subr.mxu0 0.0
    %2950 = vmatpush1.msra.mxu0 0.0
    %2951 = vmatprep.subr.mxu0 0.0
    %2952 = vmatpush1.msra.mxu0 0.0
    %2953 = vmatprep.subr.mxu0 0.0
    %2954 = vmatpush1.msra.mxu0 0.0
    %2955 = vmatprep.subr.mxu0 0.0
    %2956 = vmatpush1.msra.mxu0 0.0
    %2957 = vmatprep.subr.mxu0 0.0
    %2958 = vmatpush1.msra.mxu0 0.0
    %2959 = vmatprep.subr.mxu0 0.0
    %2960 = vmatpush1.msra.mxu0 0.0
    %2961 = vmatprep.subr.mxu0 0.0
    %2962 = vmatpush1.msra.mxu0 0.0
    %2963 = vmatprep.subr.mxu0 0.0
    %2964 = vmatpush1.msra.mxu0 %v2707
    %2965 = vmatprep.subr.mxu0 0.0
    %2966 = vmatpush1.msra.mxu0 %v2706
    %2967 = vmatprep.subr.mxu0 0.0
    %2968 = vmatpush2.msra.mxu0 0.0
    %2969 = vmatprep.subr.mxu0 0.0
    %2970 = vmatpush2.msra.mxu0 0.0
    %2971 = vmatprep.subr.mxu0 0.0
    %2972 = vmatpush2.msra.mxu0 0.0
    %2973 = vmatprep.subr.mxu0 0.0
    %2974 = vmatpush2.msra.mxu0 0.0
    %2975 = vmatprep.subr.mxu0 0.0
    %2976 = vmatpush2.msra.mxu0 0.0
    %2977 = vmatprep.subr.mxu0 0.0
    %2978 = vmatpush2.msra.mxu0 0.0
    %2979 = vmatprep.subr.mxu0 0.0
    %2980 = vmatpush2.msra.mxu0 0.0
    %2981 = vmatprep.subr.mxu0 0.0
    %2982 = vmatpush2.msra.mxu0 0.0
    %2983 = vmatprep.subr.mxu0 0.0
    %2984 = vmatpush2.msra.mxu0 0.0
    %2985 = vmatprep.subr.mxu0 0.0
    %2986 = vmatpush2.msra.mxu0 0.0
    %2987 = vmatprep.subr.mxu0 0.0
    %2988 = vmatpush2.msra.mxu0 0.0
    %2989 = vmatprep.subr.mxu0 0.0
    %2990 = vmatpush2.msra.mxu0 0.0
    %2991 = vmatprep.subr.mxu0 0.0
    %2992 = vmatpush2.msra.mxu0 0.0
    %2993 = vmatprep.subr.mxu0 0.0
    %2994 = vmatpush2.msra.mxu0 0.0
    %2995 = vmatprep.subr.mxu0 0.0
    %2996 = vmatpush2.msra.mxu0 0.0
    %2997 = vmatprep.subr.mxu0 0.0
    %2998 = vmatpush2.msra.mxu0 0.0
    %2999 = vmatprep.mubr.f32.mxu0 0.0
    %3000 = vmatmul.mubr.f32.gmra.mxu0 %v2933
    %v3001 = vpop.f32.mrf.mxu0
    %v3002 = vadd.f32 0.0, %v3001
    %v3003 = vpop.f32.mrf.mxu0
    %3004 = vdwg.mxu0
    %v3006 = vrot.slane %v3002, 6
    %v3008 = vadd.f32 %v2697, %v3006
    %v3009 = vxor.u32 %v3008, 2147483648
    %v3010 = vmul.f32 %v3009, 1.442695
    %v3011 = vpow.pop %v3010
    %v3012 = vadd.f32 %v3011, 1.0
    %v3013 = vrcp.pop %v3012
    %v3014 = vmul.f32 1.0, %v3013
    %v3015 = vadd.f32 %v3002, %v2793
    %v3017 = vrot.slane %v3015, 6
    %3018 = vrot.lane.b32.xlu0 %v3017, 96
    %v3019 = vpop.permute.xlu0 %3018
    %v3021 = vmul.f32 %v3014, %v3019
    %3023 = vrot.lane.b32.xlu0 %v3021, 32
    %v3024 = vpop.permute.xlu0 %3023
    %v3026 = vadd.f32 %v2697, %v3024
    %v3027 = vtanh.pop %v3026
    %v3028 = vsub.f32 1.0, %v3014
    %3030 = vrot.lane.b32.xlu0 %v3027, 112
    %v3031 = vpop.permute.xlu0 %3030
    %v3033 = vmul.f32 %v3028, %v3031
    %v3034 = vrot.slane %v2924, 7
    %v3036 = vmul.f32 %v3014, %v3034
    %v3037 = vadd.f32 %v3033, %v3036
    %3039 = vrot.lane.b32.xlu0 %v3037, 112
    %v3040 = vpop.permute.xlu0 %3039
    %3042 = vst.msk [vmem:[#allocation2] sm:$0x4] %vm1144, %v3040
    %v3043 = vrot.slane %v3037, 2
    %3044 = vrot.lane.b32.xlu0 %v3043, 112
    %v3045 = vpop.permute.xlu0 %3044
    %v3046 = vsel %vm90, %v3045, 0
    %3048 = vmatprep.subr.mxu0 0.0
    %3049 = vmatpush1.msra.mxu0 0.0
    %3050 = vmatprep.subr.mxu0 0.0
    %3051 = vmatpush1.msra.mxu0 0.0
    %3052 = vmatprep.subr.mxu0 0.0
    %3053 = vmatpush1.msra.mxu0 0.0
    %3054 = vmatprep.subr.mxu0 0.0
    %3055 = vmatpush1.msra.mxu0 0.0
    %3056 = vmatprep.subr.mxu0 0.0
    %3057 = vmatpush1.msra.mxu0 0.0
    %3058 = vmatprep.subr.mxu0 0.0
    %3059 = vmatpush1.msra.mxu0 0.0
    %3060 = vmatprep.subr.mxu0 0.0
    %3061 = vmatpush1.msra.mxu0 0.0
    %3062 = vmatprep.subr.mxu0 0.0
    %3063 = vmatpush1.msra.mxu0 0.0
    %3064 = vmatprep.subr.mxu0 0.0
    %3065 = vmatpush1.msra.mxu0 0.0
    %3066 = vmatprep.subr.mxu0 0.0
    %3067 = vmatpush1.msra.mxu0 0.0
    %3068 = vmatprep.subr.mxu0 0.0
    %3069 = vmatpush1.msra.mxu0 0.0
    %3070 = vmatprep.subr.mxu0 0.0
    %3071 = vmatpush1.msra.mxu0 0.0
    %3072 = vmatprep.subr.mxu0 0.0
    %3073 = vmatpush1.msra.mxu0 0.0
    %3074 = vmatprep.subr.mxu0 0.0
    %3075 = vmatpush1.msra.mxu0 0.0
    %3076 = vmatprep.subr.mxu0 0.0
    %3077 = vmatpush1.msra.mxu0 %v2707
    %3078 = vmatprep.subr.mxu0 0.0
    %3079 = vmatpush1.msra.mxu0 %v2706
    %3080 = vmatprep.subr.mxu0 0.0
    %3081 = vmatpush2.msra.mxu0 0.0
    %3082 = vmatprep.subr.mxu0 0.0
    %3083 = vmatpush2.msra.mxu0 0.0
    %3084 = vmatprep.subr.mxu0 0.0
    %3085 = vmatpush2.msra.mxu0 0.0
    %3086 = vmatprep.subr.mxu0 0.0
    %3087 = vmatpush2.msra.mxu0 0.0
    %3088 = vmatprep.subr.mxu0 0.0
    %3089 = vmatpush2.msra.mxu0 0.0
    %3090 = vmatprep.subr.mxu0 0.0
    %3091 = vmatpush2.msra.mxu0 0.0
    %3092 = vmatprep.subr.mxu0 0.0
    %3093 = vmatpush2.msra.mxu0 0.0
    %3094 = vmatprep.subr.mxu0 0.0
    %3095 = vmatpush2.msra.mxu0 0.0
    %3096 = vmatprep.subr.mxu0 0.0
    %3097 = vmatpush2.msra.mxu0 0.0
    %3098 = vmatprep.subr.mxu0 0.0
    %3099 = vmatpush2.msra.mxu0 0.0
    %3100 = vmatprep.subr.mxu0 0.0
    %3101 = vmatpush2.msra.mxu0 0.0
    %3102 = vmatprep.subr.mxu0 0.0
    %3103 = vmatpush2.msra.mxu0 0.0
    %3104 = vmatprep.subr.mxu0 0.0
    %3105 = vmatpush2.msra.mxu0 0.0
    %3106 = vmatprep.subr.mxu0 0.0
    %3107 = vmatpush2.msra.mxu0 0.0
    %3108 = vmatprep.subr.mxu0 0.0
    %3109 = vmatpush2.msra.mxu0 0.0
    %3110 = vmatprep.subr.mxu0 0.0
    %3111 = vmatpush2.msra.mxu0 0.0
    %3112 = vmatprep.mubr.f32.mxu0 0.0
    %3113 = vmatmul.mubr.f32.gmra.mxu0 %v3046
    %v3114 = vpop.f32.mrf.mxu0
    %v3115 = vadd.f32 0.0, %v3114
    %v3116 = vpop.f32.mrf.mxu0
    %3117 = vdwg.mxu0
    %v3119 = vrot.slane %v3115, 5
    %v3121 = vadd.f32 %v2697, %v3119
    %v3122 = vxor.u32 %v3121, 2147483648
    %v3123 = vmul.f32 %v3122, 1.442695
    %v3124 = vpow.pop %v3123
    %v3125 = vadd.f32 %v3124, 1.0
    %v3126 = vrcp.pop %v3125
    %v3127 = vmul.f32 1.0, %v3126
    %v3128 = vadd.f32 %v3115, %v2793
    %v3130 = vrot.slane %v3128, 5
    %3131 = vrot.lane.b32.xlu0 %v3130, 96
    %v3132 = vpop.permute.xlu0 %3131
    %v3134 = vmul.f32 %v3127, %v3132
    %3136 = vrot.lane.b32.xlu0 %v3134, 32
    %v3137 = vpop.permute.xlu0 %3136
    %v3139 = vadd.f32 %v2697, %v3137
    %v3140 = vtanh.pop %v3139
    %v3141 = vsub.f32 1.0, %v3127
    %3143 = vrot.lane.b32.xlu0 %v3140, 112
    %v3144 = vpop.permute.xlu0 %3143
    %v3146 = vmul.f32 %v3141, %v3144
    %v3147 = vrot.slane %v3037, 7
    %v3149 = vmul.f32 %v3127, %v3147
    %v3150 = vadd.f32 %v3146, %v3149
    %3152 = vrot.lane.b32.xlu0 %v3150, 112
    %v3153 = vpop.permute.xlu0 %3152
    %3155 = vst.msk [vmem:[#allocation2] sm:$0x8] %vm1258, %v3153
    %v3156 = vrot.slane %v3150, 3
    %3157 = vrot.lane.b32.xlu0 %v3156, 112
    %v3158 = vpop.permute.xlu0 %3157
    %v3159 = vsel %vm90, %v3158, 0
    %3161 = vmatprep.subr.mxu0 0.0
    %3162 = vmatpush1.msra.mxu0 0.0
    %3163 = vmatprep.subr.mxu0 0.0
    %3164 = vmatpush1.msra.mxu0 0.0
    %3165 = vmatprep.subr.mxu0 0.0
    %3166 = vmatpush1.msra.mxu0 0.0
    %3167 = vmatprep.subr.mxu0 0.0
    %3168 = vmatpush1.msra.mxu0 0.0
    %3169 = vmatprep.subr.mxu0 0.0
    %3170 = vmatpush1.msra.mxu0 0.0
    %3171 = vmatprep.subr.mxu0 0.0
    %3172 = vmatpush1.msra.mxu0 0.0
    %3173 = vmatprep.subr.mxu0 0.0
    %3174 = vmatpush1.msra.mxu0 0.0
    %3175 = vmatprep.subr.mxu0 0.0
    %3176 = vmatpush1.msra.mxu0 0.0
    %3177 = vmatprep.subr.mxu0 0.0
    %3178 = vmatpush1.msra.mxu0 0.0
    %3179 = vmatprep.subr.mxu0 0.0
    %3180 = vmatpush1.msra.mxu0 0.0
    %3181 = vmatprep.subr.mxu0 0.0
    %3182 = vmatpush1.msra.mxu0 0.0
    %3183 = vmatprep.subr.mxu0 0.0
    %3184 = vmatpush1.msra.mxu0 0.0
    %3185 = vmatprep.subr.mxu0 0.0
    %3186 = vmatpush1.msra.mxu0 0.0
    %3187 = vmatprep.subr.mxu0 0.0
    %3188 = vmatpush1.msra.mxu0 0.0
    %3189 = vmatprep.subr.mxu0 0.0
    %3190 = vmatpush1.msra.mxu0 %v2707
    %3191 = vmatprep.subr.mxu0 0.0
    %3192 = vmatpush1.msra.mxu0 %v2706
    %3193 = vmatprep.subr.mxu0 0.0
    %3194 = vmatpush2.msra.mxu0 0.0
    %3195 = vmatprep.subr.mxu0 0.0
    %3196 = vmatpush2.msra.mxu0 0.0
    %3197 = vmatprep.subr.mxu0 0.0
    %3198 = vmatpush2.msra.mxu0 0.0
    %3199 = vmatprep.subr.mxu0 0.0
    %3200 = vmatpush2.msra.mxu0 0.0
    %3201 = vmatprep.subr.mxu0 0.0
    %3202 = vmatpush2.msra.mxu0 0.0
    %3203 = vmatprep.subr.mxu0 0.0
    %3204 = vmatpush2.msra.mxu0 0.0
    %3205 = vmatprep.subr.mxu0 0.0
    %3206 = vmatpush2.msra.mxu0 0.0
    %3207 = vmatprep.subr.mxu0 0.0
    %3208 = vmatpush2.msra.mxu0 0.0
    %3209 = vmatprep.subr.mxu0 0.0
    %3210 = vmatpush2.msra.mxu0 0.0
    %3211 = vmatprep.subr.mxu0 0.0
    %3212 = vmatpush2.msra.mxu0 0.0
    %3213 = vmatprep.subr.mxu0 0.0
    %3214 = vmatpush2.msra.mxu0 0.0
    %3215 = vmatprep.subr.mxu0 0.0
    %3216 = vmatpush2.msra.mxu0 0.0
    %3217 = vmatprep.subr.mxu0 0.0
    %3218 = vmatpush2.msra.mxu0 0.0
    %3219 = vmatprep.subr.mxu0 0.0
    %3220 = vmatpush2.msra.mxu0 0.0
    %3221 = vmatprep.subr.mxu0 0.0
    %3222 = vmatpush2.msra.mxu0 0.0
    %3223 = vmatprep.subr.mxu0 0.0
    %3224 = vmatpush2.msra.mxu0 0.0
    %3225 = vmatprep.mubr.f32.mxu0 0.0
    %3226 = vmatmul.mubr.f32.gmra.mxu0 %v3159
    %v3227 = vpop.f32.mrf.mxu0
    %v3228 = vadd.f32 0.0, %v3227
    %v3229 = vpop.f32.mrf.mxu0
    %3230 = vdwg.mxu0
    %v3232 = vrot.slane %v3228, 4
    %v3234 = vadd.f32 %v2697, %v3232
    %v3235 = vxor.u32 %v3234, 2147483648
    %v3236 = vmul.f32 %v3235, 1.442695
    %v3237 = vpow.pop %v3236
    %v3238 = vadd.f32 %v3237, 1.0
    %v3239 = vrcp.pop %v3238
    %v3240 = vmul.f32 1.0, %v3239
    %v3241 = vadd.f32 %v3228, %v2793
    %v3243 = vrot.slane %v3241, 4
    %3244 = vrot.lane.b32.xlu0 %v3243, 96
    %v3245 = vpop.permute.xlu0 %3244
    %v3247 = vmul.f32 %v3240, %v3245
    %3249 = vrot.lane.b32.xlu0 %v3247, 32
    %v3250 = vpop.permute.xlu0 %3249
    %v3252 = vadd.f32 %v2697, %v3250
    %v3253 = vtanh.pop %v3252
    %v3254 = vsub.f32 1.0, %v3240
    %3256 = vrot.lane.b32.xlu0 %v3253, 112
    %v3257 = vpop.permute.xlu0 %3256
    %v3259 = vmul.f32 %v3254, %v3257
    %v3260 = vrot.slane %v3150, 7
    %v3262 = vmul.f32 %v3240, %v3260
    %v3263 = vadd.f32 %v3259, %v3262
    %3265 = vrot.lane.b32.xlu0 %v3263, 112
    %v3266 = vpop.permute.xlu0 %3265
    %3268 = vst.msk [vmem:[#allocation2] sm:$0x10] %vm1372, %v3266
    %v3269 = vrot.slane %v3263, 4
    %3270 = vrot.lane.b32.xlu0 %v3269, 112
    %v3271 = vpop.permute.xlu0 %3270
    %v3272 = vsel %vm90, %v3271, 0
    %3274 = vmatprep.subr.mxu0 0.0
    %3275 = vmatpush1.msra.mxu0 0.0
    %3276 = vmatprep.subr.mxu0 0.0
    %3277 = vmatpush1.msra.mxu0 0.0
    %3278 = vmatprep.subr.mxu0 0.0
    %3279 = vmatpush1.msra.mxu0 0.0
    %3280 = vmatprep.subr.mxu0 0.0
    %3281 = vmatpush1.msra.mxu0 0.0
    %3282 = vmatprep.subr.mxu0 0.0
    %3283 = vmatpush1.msra.mxu0 0.0
    %3284 = vmatprep.subr.mxu0 0.0
    %3285 = vmatpush1.msra.mxu0 0.0
    %3286 = vmatprep.subr.mxu0 0.0
    %3287 = vmatpush1.msra.mxu0 0.0
    %3288 = vmatprep.subr.mxu0 0.0
    %3289 = vmatpush1.msra.mxu0 0.0
    %3290 = vmatprep.subr.mxu0 0.0
    %3291 = vmatpush1.msra.mxu0 0.0
    %3292 = vmatprep.subr.mxu0 0.0
    %3293 = vmatpush1.msra.mxu0 0.0
    %3294 = vmatprep.subr.mxu0 0.0
    %3295 = vmatpush1.msra.mxu0 0.0
    %3296 = vmatprep.subr.mxu0 0.0
    %3297 = vmatpush1.msra.mxu0 0.0
    %3298 = vmatprep.subr.mxu0 0.0
    %3299 = vmatpush1.msra.mxu0 0.0
    %3300 = vmatprep.subr.mxu0 0.0
    %3301 = vmatpush1.msra.mxu0 0.0
    %3302 = vmatprep.subr.mxu0 0.0
    %3303 = vmatpush1.msra.mxu0 %v2707
    %3304 = vmatprep.subr.mxu0 0.0
    %3305 = vmatpush1.msra.mxu0 %v2706
    %3306 = vmatprep.subr.mxu0 0.0
    %3307 = vmatpush2.msra.mxu0 0.0
    %3308 = vmatprep.subr.mxu0 0.0
    %3309 = vmatpush2.msra.mxu0 0.0
    %3310 = vmatprep.subr.mxu0 0.0
    %3311 = vmatpush2.msra.mxu0 0.0
    %3312 = vmatprep.subr.mxu0 0.0
    %3313 = vmatpush2.msra.mxu0 0.0
    %3314 = vmatprep.subr.mxu0 0.0
    %3315 = vmatpush2.msra.mxu0 0.0
    %3316 = vmatprep.subr.mxu0 0.0
    %3317 = vmatpush2.msra.mxu0 0.0
    %3318 = vmatprep.subr.mxu0 0.0
    %3319 = vmatpush2.msra.mxu0 0.0
    %3320 = vmatprep.subr.mxu0 0.0
    %3321 = vmatpush2.msra.mxu0 0.0
    %3322 = vmatprep.subr.mxu0 0.0
    %3323 = vmatpush2.msra.mxu0 0.0
    %3324 = vmatprep.subr.mxu0 0.0
    %3325 = vmatpush2.msra.mxu0 0.0
    %3326 = vmatprep.subr.mxu0 0.0
    %3327 = vmatpush2.msra.mxu0 0.0
    %3328 = vmatprep.subr.mxu0 0.0
    %3329 = vmatpush2.msra.mxu0 0.0
    %3330 = vmatprep.subr.mxu0 0.0
    %3331 = vmatpush2.msra.mxu0 0.0
    %3332 = vmatprep.subr.mxu0 0.0
    %3333 = vmatpush2.msra.mxu0 0.0
    %3334 = vmatprep.subr.mxu0 0.0
    %3335 = vmatpush2.msra.mxu0 0.0
    %3336 = vmatprep.subr.mxu0 0.0
    %3337 = vmatpush2.msra.mxu0 0.0
    %3338 = vmatprep.mubr.f32.mxu0 0.0
    %3339 = vmatmul.mubr.f32.gmra.mxu0 %v3272
    %v3340 = vpop.f32.mrf.mxu0
    %v3341 = vadd.f32 0.0, %v3340
    %v3342 = vpop.f32.mrf.mxu0
    %3343 = vdwg.mxu0
    %v3345 = vrot.slane %v3341, 3
    %v3347 = vadd.f32 %v2697, %v3345
    %v3348 = vxor.u32 %v3347, 2147483648
    %v3349 = vmul.f32 %v3348, 1.442695
    %v3350 = vpow.pop %v3349
    %v3351 = vadd.f32 %v3350, 1.0
    %v3352 = vrcp.pop %v3351
    %v3353 = vmul.f32 1.0, %v3352
    %v3354 = vadd.f32 %v3341, %v2793
    %v3356 = vrot.slane %v3354, 3
    %3357 = vrot.lane.b32.xlu0 %v3356, 96
    %v3358 = vpop.permute.xlu0 %3357
    %v3360 = vmul.f32 %v3353, %v3358
    %3362 = vrot.lane.b32.xlu0 %v3360, 32
    %v3363 = vpop.permute.xlu0 %3362
    %v3365 = vadd.f32 %v2697, %v3363
    %v3366 = vtanh.pop %v3365
    %v3367 = vsub.f32 1.0, %v3353
    %3369 = vrot.lane.b32.xlu0 %v3366, 112
    %v3370 = vpop.permute.xlu0 %3369
    %v3372 = vmul.f32 %v3367, %v3370
    %v3373 = vrot.slane %v3263, 7
    %v3375 = vmul.f32 %v3353, %v3373
    %v3376 = vadd.f32 %v3372, %v3375
    %3378 = vrot.lane.b32.xlu0 %v3376, 112
    %v3379 = vpop.permute.xlu0 %3378
    %3381 = vst.msk [vmem:[#allocation2] sm:$0x20] %vm1486, %v3379
    %v3382 = vrot.slane %v3376, 5
    %3383 = vrot.lane.b32.xlu0 %v3382, 112
    %v3384 = vpop.permute.xlu0 %3383
    %v3385 = vsel %vm90, %v3384, 0
    %3387 = vmatprep.subr.mxu0 0.0
    %3388 = vmatpush1.msra.mxu0 0.0
    %3389 = vmatprep.subr.mxu0 0.0
    %3390 = vmatpush1.msra.mxu0 0.0
    %3391 = vmatprep.subr.mxu0 0.0
    %3392 = vmatpush1.msra.mxu0 0.0
    %3393 = vmatprep.subr.mxu0 0.0
    %3394 = vmatpush1.msra.mxu0 0.0
    %3395 = vmatprep.subr.mxu0 0.0
    %3396 = vmatpush1.msra.mxu0 0.0
    %3397 = vmatprep.subr.mxu0 0.0
    %3398 = vmatpush1.msra.mxu0 0.0
    %3399 = vmatprep.subr.mxu0 0.0
    %3400 = vmatpush1.msra.mxu0 0.0
    %3401 = vmatprep.subr.mxu0 0.0
    %3402 = vmatpush1.msra.mxu0 0.0
    %3403 = vmatprep.subr.mxu0 0.0
    %3404 = vmatpush1.msra.mxu0 0.0
    %3405 = vmatprep.subr.mxu0 0.0
    %3406 = vmatpush1.msra.mxu0 0.0
    %3407 = vmatprep.subr.mxu0 0.0
    %3408 = vmatpush1.msra.mxu0 0.0
    %3409 = vmatprep.subr.mxu0 0.0
    %3410 = vmatpush1.msra.mxu0 0.0
    %3411 = vmatprep.subr.mxu0 0.0
    %3412 = vmatpush1.msra.mxu0 0.0
    %3413 = vmatprep.subr.mxu0 0.0
    %3414 = vmatpush1.msra.mxu0 0.0
    %3415 = vmatprep.subr.mxu0 0.0
    %3416 = vmatpush1.msra.mxu0 %v2707
    %3417 = vmatprep.subr.mxu0 0.0
    %3418 = vmatpush1.msra.mxu0 %v2706
    %3419 = vmatprep.subr.mxu0 0.0
    %3420 = vmatpush2.msra.mxu0 0.0
    %3421 = vmatprep.subr.mxu0 0.0
    %3422 = vmatpush2.msra.mxu0 0.0
    %3423 = vmatprep.subr.mxu0 0.0
    %3424 = vmatpush2.msra.mxu0 0.0
    %3425 = vmatprep.subr.mxu0 0.0
    %3426 = vmatpush2.msra.mxu0 0.0
    %3427 = vmatprep.subr.mxu0 0.0
    %3428 = vmatpush2.msra.mxu0 0.0
    %3429 = vmatprep.subr.mxu0 0.0
    %3430 = vmatpush2.msra.mxu0 0.0
    %3431 = vmatprep.subr.mxu0 0.0
    %3432 = vmatpush2.msra.mxu0 0.0
    %3433 = vmatprep.subr.mxu0 0.0
    %3434 = vmatpush2.msra.mxu0 0.0
    %3435 = vmatprep.subr.mxu0 0.0
    %3436 = vmatpush2.msra.mxu0 0.0
    %3437 = vmatprep.subr.mxu0 0.0
    %3438 = vmatpush2.msra.mxu0 0.0
    %3439 = vmatprep.subr.mxu0 0.0
    %3440 = vmatpush2.msra.mxu0 0.0
    %3441 = vmatprep.subr.mxu0 0.0
    %3442 = vmatpush2.msra.mxu0 0.0
    %3443 = vmatprep.subr.mxu0 0.0
    %3444 = vmatpush2.msra.mxu0 0.0
    %3445 = vmatprep.subr.mxu0 0.0
    %3446 = vmatpush2.msra.mxu0 0.0
    %3447 = vmatprep.subr.mxu0 0.0
    %3448 = vmatpush2.msra.mxu0 0.0
    %3449 = vmatprep.subr.mxu0 0.0
    %3450 = vmatpush2.msra.mxu0 0.0
    %3451 = vmatprep.mubr.f32.mxu0 0.0
    %3452 = vmatmul.mubr.f32.gmra.mxu0 %v3385
    %v3453 = vpop.f32.mrf.mxu0
    %v3454 = vadd.f32 0.0, %v3453
    %v3455 = vpop.f32.mrf.mxu0
    %3456 = vdwg.mxu0
    %v3458 = vrot.slane %v3454, 2
    %v3460 = vadd.f32 %v2697, %v3458
    %v3461 = vxor.u32 %v3460, 2147483648
    %v3462 = vmul.f32 %v3461, 1.442695
    %v3463 = vpow.pop %v3462
    %v3464 = vadd.f32 %v3463, 1.0
    %v3465 = vrcp.pop %v3464
    %v3466 = vmul.f32 1.0, %v3465
    %v3467 = vadd.f32 %v3454, %v2793
    %v3469 = vrot.slane %v3467, 2
    %3470 = vrot.lane.b32.xlu0 %v3469, 96
    %v3471 = vpop.permute.xlu0 %3470
    %v3473 = vmul.f32 %v3466, %v3471
    %3475 = vrot.lane.b32.xlu0 %v3473, 32
    %v3476 = vpop.permute.xlu0 %3475
    %v3478 = vadd.f32 %v2697, %v3476
    %v3479 = vtanh.pop %v3478
    %v3480 = vsub.f32 1.0, %v3466
    %3482 = vrot.lane.b32.xlu0 %v3479, 112
    %v3483 = vpop.permute.xlu0 %3482
    %v3485 = vmul.f32 %v3480, %v3483
    %v3486 = vrot.slane %v3376, 7
    %v3488 = vmul.f32 %v3466, %v3486
    %v3489 = vadd.f32 %v3485, %v3488
    %3491 = vrot.lane.b32.xlu0 %v3489, 112
    %v3492 = vpop.permute.xlu0 %3491
    %3494 = vst.msk [vmem:[#allocation2] sm:$0x40] %vm1600, %v3492
    %v3495 = vrot.slane %v3489, 6
    %3496 = vrot.lane.b32.xlu0 %v3495, 112
    %v3497 = vpop.permute.xlu0 %3496
    %v3498 = vsel %vm90, %v3497, 0
    %3500 = vmatprep.subr.mxu0 0.0
    %3501 = vmatpush1.msra.mxu0 0.0
    %3502 = vmatprep.subr.mxu0 0.0
    %3503 = vmatpush1.msra.mxu0 0.0
    %3504 = vmatprep.subr.mxu0 0.0
    %3505 = vmatpush1.msra.mxu0 0.0
    %3506 = vmatprep.subr.mxu0 0.0
    %3507 = vmatpush1.msra.mxu0 0.0
    %3508 = vmatprep.subr.mxu0 0.0
    %3509 = vmatpush1.msra.mxu0 0.0
    %3510 = vmatprep.subr.mxu0 0.0
    %3511 = vmatpush1.msra.mxu0 0.0
    %3512 = vmatprep.subr.mxu0 0.0
    %3513 = vmatpush1.msra.mxu0 0.0
    %3514 = vmatprep.subr.mxu0 0.0
    %3515 = vmatpush1.msra.mxu0 0.0
    %3516 = vmatprep.subr.mxu0 0.0
    %3517 = vmatpush1.msra.mxu0 0.0
    %3518 = vmatprep.subr.mxu0 0.0
    %3519 = vmatpush1.msra.mxu0 0.0
    %3520 = vmatprep.subr.mxu0 0.0
    %3521 = vmatpush1.msra.mxu0 0.0
    %3522 = vmatprep.subr.mxu0 0.0
    %3523 = vmatpush1.msra.mxu0 0.0
    %3524 = vmatprep.subr.mxu0 0.0
    %3525 = vmatpush1.msra.mxu0 0.0
    %3526 = vmatprep.subr.mxu0 0.0
    %3527 = vmatpush1.msra.mxu0 0.0
    %3528 = vmatprep.subr.mxu0 0.0
    %3529 = vmatpush1.msra.mxu0 %v2707
    %3530 = vmatprep.subr.mxu0 0.0
    %3531 = vmatpush1.msra.mxu0 %v2706
    %3532 = vmatprep.subr.mxu0 0.0
    %3533 = vmatpush2.msra.mxu0 0.0
    %3534 = vmatprep.subr.mxu0 0.0
    %3535 = vmatpush2.msra.mxu0 0.0
    %3536 = vmatprep.subr.mxu0 0.0
    %3537 = vmatpush2.msra.mxu0 0.0
    %3538 = vmatprep.subr.mxu0 0.0
    %3539 = vmatpush2.msra.mxu0 0.0
    %3540 = vmatprep.subr.mxu0 0.0
    %3541 = vmatpush2.msra.mxu0 0.0
    %3542 = vmatprep.subr.mxu0 0.0
    %3543 = vmatpush2.msra.mxu0 0.0
    %3544 = vmatprep.subr.mxu0 0.0
    %3545 = vmatpush2.msra.mxu0 0.0
    %3546 = vmatprep.subr.mxu0 0.0
    %3547 = vmatpush2.msra.mxu0 0.0
    %3548 = vmatprep.subr.mxu0 0.0
    %3549 = vmatpush2.msra.mxu0 0.0
    %3550 = vmatprep.subr.mxu0 0.0
    %3551 = vmatpush2.msra.mxu0 0.0
    %3552 = vmatprep.subr.mxu0 0.0
    %3553 = vmatpush2.msra.mxu0 0.0
    %3554 = vmatprep.subr.mxu0 0.0
    %3555 = vmatpush2.msra.mxu0 0.0
    %3556 = vmatprep.subr.mxu0 0.0
    %3557 = vmatpush2.msra.mxu0 0.0
    %3558 = vmatprep.subr.mxu0 0.0
    %3559 = vmatpush2.msra.mxu0 0.0
    %3560 = vmatprep.subr.mxu0 0.0
    %3561 = vmatpush2.msra.mxu0 0.0
    %3562 = vmatprep.subr.mxu0 0.0
    %3563 = vmatpush2.msra.mxu0 0.0
    %3564 = vmatprep.mubr.f32.mxu0 0.0
    %3565 = vmatmul.mubr.f32.gmra.mxu0 %v3498
    %v3566 = vpop.f32.mrf.mxu0
    %v3567 = vadd.f32 0.0, %v3566
    %v3568 = vpop.f32.mrf.mxu0
    %3569 = vdwg.mxu0
    %v3571 = vrot.slane %v3567, 1
    %v3573 = vadd.f32 %v2697, %v3571
    %v3574 = vxor.u32 %v3573, 2147483648
    %v3575 = vmul.f32 %v3574, 1.442695
    %v3576 = vpow.pop %v3575
    %v3577 = vadd.f32 %v3576, 1.0
    %v3578 = vrcp.pop %v3577
    %v3579 = vmul.f32 1.0, %v3578
    %v3580 = vadd.f32 %v3567, %v2793
    %v3582 = vrot.slane %v3580, 1
    %3583 = vrot.lane.b32.xlu0 %v3582, 96
    %v3584 = vpop.permute.xlu0 %3583
    %v3586 = vmul.f32 %v3579, %v3584
    %3588 = vrot.lane.b32.xlu0 %v3586, 32
    %v3589 = vpop.permute.xlu0 %3588
    %v3591 = vadd.f32 %v2697, %v3589
    %v3592 = vtanh.pop %v3591
    %v3593 = vsub.f32 1.0, %v3579
    %3595 = vrot.lane.b32.xlu0 %v3592, 112
    %v3596 = vpop.permute.xlu0 %3595
    %v3598 = vmul.f32 %v3593, %v3596
    %v3599 = vrot.slane %v3489, 7
    %v3601 = vmul.f32 %v3579, %v3599
    %v3602 = vadd.f32 %v3598, %v3601
    %3604 = vrot.lane.b32.xlu0 %v3602, 112
    %v3605 = vpop.permute.xlu0 %3604
    %3607 = vst.msk [vmem:[#allocation2] sm:$0x80] %vm1714, %v3605
    %v3608 = vrot.slane %v3602, 7
    %3609 = vrot.lane.b32.xlu0 %v3608, 112
    %v3610 = vpop.permute.xlu0 %3609
    %v3611 = vsel %vm90, %v3610, 0
    %3613 = vmatprep.subr.mxu0 0.0
    %3614 = vmatpush1.msra.mxu0 0.0
    %3615 = vmatprep.subr.mxu0 0.0
    %3616 = vmatpush1.msra.mxu0 0.0
    %3617 = vmatprep.subr.mxu0 0.0
    %3618 = vmatpush1.msra.mxu0 0.0
    %3619 = vmatprep.subr.mxu0 0.0
    %3620 = vmatpush1.msra.mxu0 0.0
    %3621 = vmatprep.subr.mxu0 0.0
    %3622 = vmatpush1.msra.mxu0 0.0
    %3623 = vmatprep.subr.mxu0 0.0
    %3624 = vmatpush1.msra.mxu0 0.0
    %3625 = vmatprep.subr.mxu0 0.0
    %3626 = vmatpush1.msra.mxu0 0.0
    %3627 = vmatprep.subr.mxu0 0.0
    %3628 = vmatpush1.msra.mxu0 0.0
    %3629 = vmatprep.subr.mxu0 0.0
    %3630 = vmatpush1.msra.mxu0 0.0
    %3631 = vmatprep.subr.mxu0 0.0
    %3632 = vmatpush1.msra.mxu0 0.0
    %3633 = vmatprep.subr.mxu0 0.0
    %3634 = vmatpush1.msra.mxu0 0.0
    %3635 = vmatprep.subr.mxu0 0.0
    %3636 = vmatpush1.msra.mxu0 0.0
    %3637 = vmatprep.subr.mxu0 0.0
    %3638 = vmatpush1.msra.mxu0 0.0
    %3639 = vmatprep.subr.mxu0 0.0
    %3640 = vmatpush1.msra.mxu0 0.0
    %3641 = vmatprep.subr.mxu0 0.0
    %3642 = vmatpush1.msra.mxu0 %v2707
    %3643 = vmatprep.subr.mxu0 0.0
    %3644 = vmatpush1.msra.mxu0 %v2706
    %3645 = vmatprep.subr.mxu0 0.0
    %3646 = vmatpush2.msra.mxu0 0.0
    %3647 = vmatprep.subr.mxu0 0.0
    %3648 = vmatpush2.msra.mxu0 0.0
    %3649 = vmatprep.subr.mxu0 0.0
    %3650 = vmatpush2.msra.mxu0 0.0
    %3651 = vmatprep.subr.mxu0 0.0
    %3652 = vmatpush2.msra.mxu0 0.0
    %3653 = vmatprep.subr.mxu0 0.0
    %3654 = vmatpush2.msra.mxu0 0.0
    %3655 = vmatprep.subr.mxu0 0.0
    %3656 = vmatpush2.msra.mxu0 0.0
    %3657 = vmatprep.subr.mxu0 0.0
    %3658 = vmatpush2.msra.mxu0 0.0
    %3659 = vmatprep.subr.mxu0 0.0
    %3660 = vmatpush2.msra.mxu0 0.0
    %3661 = vmatprep.subr.mxu0 0.0
    %3662 = vmatpush2.msra.mxu0 0.0
    %3663 = vmatprep.subr.mxu0 0.0
    %3664 = vmatpush2.msra.mxu0 0.0
    %3665 = vmatprep.subr.mxu0 0.0
    %3666 = vmatpush2.msra.mxu0 0.0
    %3667 = vmatprep.subr.mxu0 0.0
    %3668 = vmatpush2.msra.mxu0 0.0
    %3669 = vmatprep.subr.mxu0 0.0
    %3670 = vmatpush2.msra.mxu0 0.0
    %3671 = vmatprep.subr.mxu0 0.0
    %3672 = vmatpush2.msra.mxu0 0.0
    %3673 = vmatprep.subr.mxu0 0.0
    %3674 = vmatpush2.msra.mxu0 0.0
    %3675 = vmatprep.subr.mxu0 0.0
    %3676 = vmatpush2.msra.mxu0 0.0
    %3677 = vmatprep.mubr.f32.mxu0 0.0
    %3678 = vmatmul.mubr.f32.gmra.mxu0 %v3611
    %v3679 = vpop.f32.mrf.mxu0
    %v3680 = vadd.f32 0.0, %v3679
    %v3681 = vpop.f32.mrf.mxu0
    %3682 = vdwg.mxu0
    %v3683 = vadd.f32 %v2702, %v3680
    %v3684 = vxor.u32 %v3683, 2147483648
    %v3685 = vmul.f32 %v3684, 1.442695
    %v3686 = vpow.pop %v3685
    %v3687 = vadd.f32 %v3686, 1.0
    %v3688 = vrcp.pop %v3687
    %v3689 = vmul.f32 1.0, %v3688
    %v3690 = vadd.f32 %v3680, %v2793
    %3692 = vrot.lane.b32.xlu0 %v3690, 96
    %v3693 = vpop.permute.xlu0 %3692
    %v3695 = vmul.f32 %v3689, %v3693
    %3697 = vrot.lane.b32.xlu0 %v3695, 32
    %v3698 = vpop.permute.xlu0 %3697
    %v3700 = vadd.f32 %v2702, %v3698
    %v3701 = vtanh.pop %v3700
    %v3702 = vsub.f32 1.0, %v3689
    %3704 = vrot.lane.b32.xlu0 %v3701, 112
    %v3705 = vpop.permute.xlu0 %3704
    %v3707 = vmul.f32 %v3702, %v3705
    %v3709 = vmul.f32 %v3689, %v3608
    %v3710 = vadd.f32 %v3707, %v3709
    %3712 = vrot.lane.b32.xlu0 %v3710, 112
    %v3713 = vpop.permute.xlu0 %3712
    %3715 = vst.msk [vmem:[#allocation2 + $0x8] sm:$0x1] %vm919, %v3713
    %v3716 = vsel %vm90, %v3713, 0
    %3718 = vmatprep.subr.mxu0 0.0
    %3719 = vmatpush1.msra.mxu0 0.0
    %3720 = vmatprep.subr.mxu0 0.0
    %3721 = vmatpush1.msra.mxu0 0.0
    %3722 = vmatprep.subr.mxu0 0.0
    %3723 = vmatpush1.msra.mxu0 0.0
    %3724 = vmatprep.subr.mxu0 0.0
    %3725 = vmatpush1.msra.mxu0 0.0
    %3726 = vmatprep.subr.mxu0 0.0
    %3727 = vmatpush1.msra.mxu0 0.0
    %3728 = vmatprep.subr.mxu0 0.0
    %3729 = vmatpush1.msra.mxu0 0.0
    %3730 = vmatprep.subr.mxu0 0.0
    %3731 = vmatpush1.msra.mxu0 0.0
    %3732 = vmatprep.subr.mxu0 0.0
    %3733 = vmatpush1.msra.mxu0 0.0
    %3734 = vmatprep.subr.mxu0 0.0
    %3735 = vmatpush1.msra.mxu0 0.0
    %3736 = vmatprep.subr.mxu0 0.0
    %3737 = vmatpush1.msra.mxu0 0.0
    %3738 = vmatprep.subr.mxu0 0.0
    %3739 = vmatpush1.msra.mxu0 0.0
    %3740 = vmatprep.subr.mxu0 0.0
    %3741 = vmatpush1.msra.mxu0 0.0
    %3742 = vmatprep.subr.mxu0 0.0
    %3743 = vmatpush1.msra.mxu0 0.0
    %3744 = vmatprep.subr.mxu0 0.0
    %3745 = vmatpush1.msra.mxu0 0.0
    %3746 = vmatprep.subr.mxu0 0.0
    %3747 = vmatpush1.msra.mxu0 %v2707
    %3748 = vmatprep.subr.mxu0 0.0
    %3749 = vmatpush1.msra.mxu0 %v2706
    %3750 = vmatprep.subr.mxu0 0.0
    %3751 = vmatpush2.msra.mxu0 0.0
    %3752 = vmatprep.subr.mxu0 0.0
    %3753 = vmatpush2.msra.mxu0 0.0
    %3754 = vmatprep.subr.mxu0 0.0
    %3755 = vmatpush2.msra.mxu0 0.0
    %3756 = vmatprep.subr.mxu0 0.0
    %3757 = vmatpush2.msra.mxu0 0.0
    %3758 = vmatprep.subr.mxu0 0.0
    %3759 = vmatpush2.msra.mxu0 0.0
    %3760 = vmatprep.subr.mxu0 0.0
    %3761 = vmatpush2.msra.mxu0 0.0
    %3762 = vmatprep.subr.mxu0 0.0
    %3763 = vmatpush2.msra.mxu0 0.0
    %3764 = vmatprep.subr.mxu0 0.0
    %3765 = vmatpush2.msra.mxu0 0.0
    %3766 = vmatprep.subr.mxu0 0.0
    %3767 = vmatpush2.msra.mxu0 0.0
    %3768 = vmatprep.subr.mxu0 0.0
    %3769 = vmatpush2.msra.mxu0 0.0
    %3770 = vmatprep.subr.mxu0 0.0
    %3771 = vmatpush2.msra.mxu0 0.0
    %3772 = vmatprep.subr.mxu0 0.0
    %3773 = vmatpush2.msra.mxu0 0.0
    %3774 = vmatprep.subr.mxu0 0.0
    %3775 = vmatpush2.msra.mxu0 0.0
    %3776 = vmatprep.subr.mxu0 0.0
    %3777 = vmatpush2.msra.mxu0 0.0
    %3778 = vmatprep.subr.mxu0 0.0
    %3779 = vmatpush2.msra.mxu0 0.0
    %3780 = vmatprep.subr.mxu0 0.0
    %3781 = vmatpush2.msra.mxu0 0.0
    %3782 = vmatprep.mubr.f32.mxu0 0.0
    %3783 = vmatmul.mubr.f32.gmra.mxu0 %v3716
    %v3784 = vpop.f32.mrf.mxu0
    %v3785 = vadd.f32 0.0, %v3784
    %v3786 = vpop.f32.mrf.mxu0
    %3787 = vdwg.mxu0
    %v3789 = vrot.slane %v3785, 7
    %v3791 = vadd.f32 %v2702, %v3789
    %v3792 = vxor.u32 %v3791, 2147483648
    %v3793 = vmul.f32 %v3792, 1.442695
    %v3794 = vpow.pop %v3793
    %v3795 = vadd.f32 %v3794, 1.0
    %v3796 = vrcp.pop %v3795
    %v3797 = vmul.f32 1.0, %v3796
    %v3798 = vadd.f32 %v3785, %v2793
    %v3800 = vrot.slane %v3798, 7
    %3801 = vrot.lane.b32.xlu0 %v3800, 96
    %v3802 = vpop.permute.xlu0 %3801
    %v3804 = vmul.f32 %v3797, %v3802
    %3806 = vrot.lane.b32.xlu0 %v3804, 32
    %v3807 = vpop.permute.xlu0 %3806
    %v3809 = vadd.f32 %v2702, %v3807
    %v3810 = vtanh.pop %v3809
    %v3811 = vsub.f32 1.0, %v3797
    %3813 = vrot.lane.b32.xlu0 %v3810, 112
    %v3814 = vpop.permute.xlu0 %3813
    %v3816 = vmul.f32 %v3811, %v3814
    %v3817 = vrot.slane %v3710, 7
    %v3819 = vmul.f32 %v3797, %v3817
    %v3820 = vadd.f32 %v3816, %v3819
    %3822 = vrot.lane.b32.xlu0 %v3820, 112
    %v3823 = vpop.permute.xlu0 %3822
    %3825 = vst.msk [vmem:[#allocation2 + $0x8] sm:$0x2] %vm1030, %v3823
    %v3826 = vrot.slane %v3820, 1
    %3827 = vrot.lane.b32.xlu0 %v3826, 112
    %v3828 = vpop.permute.xlu0 %3827
    %v3829 = vsel %vm90, %v3828, 0
    %3831 = vmatprep.subr.mxu0 0.0
    %3832 = vmatpush1.msra.mxu0 0.0
    %3833 = vmatprep.subr.mxu0 0.0
    %3834 = vmatpush1.msra.mxu0 0.0
    %3835 = vmatprep.subr.mxu0 0.0
    %3836 = vmatpush1.msra.mxu0 0.0
    %3837 = vmatprep.subr.mxu0 0.0
    %3838 = vmatpush1.msra.mxu0 0.0
    %3839 = vmatprep.subr.mxu0 0.0
    %3840 = vmatpush1.msra.mxu0 0.0
    %3841 = vmatprep.subr.mxu0 0.0
    %3842 = vmatpush1.msra.mxu0 0.0
    %3843 = vmatprep.subr.mxu0 0.0
    %3844 = vmatpush1.msra.mxu0 0.0
    %3845 = vmatprep.subr.mxu0 0.0
    %3846 = vmatpush1.msra.mxu0 0.0
    %3847 = vmatprep.subr.mxu0 0.0
    %3848 = vmatpush1.msra.mxu0 0.0
    %3849 = vmatprep.subr.mxu0 0.0
    %3850 = vmatpush1.msra.mxu0 0.0
    %3851 = vmatprep.subr.mxu0 0.0
    %3852 = vmatpush1.msra.mxu0 0.0
    %3853 = vmatprep.subr.mxu0 0.0
    %3854 = vmatpush1.msra.mxu0 0.0
    %3855 = vmatprep.subr.mxu0 0.0
    %3856 = vmatpush1.msra.mxu0 0.0
    %3857 = vmatprep.subr.mxu0 0.0
    %3858 = vmatpush1.msra.mxu0 0.0
    %3859 = vmatprep.subr.mxu0 0.0
    %3860 = vmatpush1.msra.mxu0 %v2707
    %3861 = vmatprep.subr.mxu0 0.0
    %3862 = vmatpush1.msra.mxu0 %v2706
    %3863 = vmatprep.subr.mxu0 0.0
    %3864 = vmatpush2.msra.mxu0 0.0
    %3865 = vmatprep.subr.mxu0 0.0
    %3866 = vmatpush2.msra.mxu0 0.0
    %3867 = vmatprep.subr.mxu0 0.0
    %3868 = vmatpush2.msra.mxu0 0.0
    %3869 = vmatprep.subr.mxu0 0.0
    %3870 = vmatpush2.msra.mxu0 0.0
    %3871 = vmatprep.subr.mxu0 0.0
    %3872 = vmatpush2.msra.mxu0 0.0
    %3873 = vmatprep.subr.mxu0 0.0
    %3874 = vmatpush2.msra.mxu0 0.0
    %3875 = vmatprep.subr.mxu0 0.0
    %3876 = vmatpush2.msra.mxu0 0.0
    %3877 = vmatprep.subr.mxu0 0.0
    %3878 = vmatpush2.msra.mxu0 0.0
    %3879 = vmatprep.subr.mxu0 0.0
    %3880 = vmatpush2.msra.mxu0 0.0
    %3881 = vmatprep.subr.mxu0 0.0
    %3882 = vmatpush2.msra.mxu0 0.0
    %3883 = vmatprep.subr.mxu0 0.0
    %3884 = vmatpush2.msra.mxu0 0.0
    %3885 = vmatprep.subr.mxu0 0.0
    %3886 = vmatpush2.msra.mxu0 0.0
    %3887 = vmatprep.subr.mxu0 0.0
    %3888 = vmatpush2.msra.mxu0 0.0
    %3889 = vmatprep.subr.mxu0 0.0
    %3890 = vmatpush2.msra.mxu0 0.0
    %3891 = vmatprep.subr.mxu0 0.0
    %3892 = vmatpush2.msra.mxu0 0.0
    %3893 = vmatprep.subr.mxu0 0.0
    %3894 = vmatpush2.msra.mxu0 0.0
    %3895 = vmatprep.mubr.f32.mxu0 0.0
    %3896 = vmatmul.mubr.f32.gmra.mxu0 %v3829
    %v3897 = vpop.f32.mrf.mxu0
    %v3898 = vadd.f32 0.0, %v3897
    %v3899 = vpop.f32.mrf.mxu0
    %3900 = vdwg.mxu0
    %v3902 = vrot.slane %v3898, 6
    %v3904 = vadd.f32 %v2702, %v3902
    %v3905 = vxor.u32 %v3904, 2147483648
    %v3906 = vmul.f32 %v3905, 1.442695
    %v3907 = vpow.pop %v3906
    %v3908 = vadd.f32 %v3907, 1.0
    %v3909 = vrcp.pop %v3908
    %v3910 = vmul.f32 1.0, %v3909
    %v3911 = vadd.f32 %v3898, %v2793
    %v3913 = vrot.slane %v3911, 6
    %3914 = vrot.lane.b32.xlu0 %v3913, 96
    %v3915 = vpop.permute.xlu0 %3914
    %v3917 = vmul.f32 %v3910, %v3915
    %3919 = vrot.lane.b32.xlu0 %v3917, 32
    %v3920 = vpop.permute.xlu0 %3919
    %v3922 = vadd.f32 %v2702, %v3920
    %v3923 = vtanh.pop %v3922
    %v3924 = vsub.f32 1.0, %v3910
    %3926 = vrot.lane.b32.xlu0 %v3923, 112
    %v3927 = vpop.permute.xlu0 %3926
    %v3929 = vmul.f32 %v3924, %v3927
    %v3930 = vrot.slane %v3820, 7
    %v3932 = vmul.f32 %v3910, %v3930
    %v3933 = vadd.f32 %v3929, %v3932
    %3935 = vrot.lane.b32.xlu0 %v3933, 112
    %v3936 = vpop.permute.xlu0 %3935
    %3938 = vst.msk [vmem:[#allocation2 + $0x8] sm:$0x4] %vm1144, %v3936
    %v3939 = vrot.slane %v3933, 2
    %3940 = vrot.lane.b32.xlu0 %v3939, 112
    %v3941 = vpop.permute.xlu0 %3940
    %v3942 = vsel %vm90, %v3941, 0
    %3944 = vmatprep.subr.mxu0 0.0
    %3945 = vmatpush1.msra.mxu0 0.0
    %3946 = vmatprep.subr.mxu0 0.0
    %3947 = vmatpush1.msra.mxu0 0.0
    %3948 = vmatprep.subr.mxu0 0.0
    %3949 = vmatpush1.msra.mxu0 0.0
    %3950 = vmatprep.subr.mxu0 0.0
    %3951 = vmatpush1.msra.mxu0 0.0
    %3952 = vmatprep.subr.mxu0 0.0
    %3953 = vmatpush1.msra.mxu0 0.0
    %3954 = vmatprep.subr.mxu0 0.0
    %3955 = vmatpush1.msra.mxu0 0.0
    %3956 = vmatprep.subr.mxu0 0.0
    %3957 = vmatpush1.msra.mxu0 0.0
    %3958 = vmatprep.subr.mxu0 0.0
    %3959 = vmatpush1.msra.mxu0 0.0
    %3960 = vmatprep.subr.mxu0 0.0
    %3961 = vmatpush1.msra.mxu0 0.0
    %3962 = vmatprep.subr.mxu0 0.0
    %3963 = vmatpush1.msra.mxu0 0.0
    %3964 = vmatprep.subr.mxu0 0.0
    %3965 = vmatpush1.msra.mxu0 0.0
    %3966 = vmatprep.subr.mxu0 0.0
    %3967 = vmatpush1.msra.mxu0 0.0
    %3968 = vmatprep.subr.mxu0 0.0
    %3969 = vmatpush1.msra.mxu0 0.0
    %3970 = vmatprep.subr.mxu0 0.0
    %3971 = vmatpush1.msra.mxu0 0.0
    %3972 = vmatprep.subr.mxu0 0.0
    %3973 = vmatpush1.msra.mxu0 %v2707
    %3974 = vmatprep.subr.mxu0 0.0
    %3975 = vmatpush1.msra.mxu0 %v2706
    %3976 = vmatprep.subr.mxu0 0.0
    %3977 = vmatpush2.msra.mxu0 0.0
    %3978 = vmatprep.subr.mxu0 0.0
    %3979 = vmatpush2.msra.mxu0 0.0
    %3980 = vmatprep.subr.mxu0 0.0
    %3981 = vmatpush2.msra.mxu0 0.0
    %3982 = vmatprep.subr.mxu0 0.0
    %3983 = vmatpush2.msra.mxu0 0.0
    %3984 = vmatprep.subr.mxu0 0.0
    %3985 = vmatpush2.msra.mxu0 0.0
    %3986 = vmatprep.subr.mxu0 0.0
    %3987 = vmatpush2.msra.mxu0 0.0
    %3988 = vmatprep.subr.mxu0 0.0
    %3989 = vmatpush2.msra.mxu0 0.0
    %3990 = vmatprep.subr.mxu0 0.0
    %3991 = vmatpush2.msra.mxu0 0.0
    %3992 = vmatprep.subr.mxu0 0.0
    %3993 = vmatpush2.msra.mxu0 0.0
    %3994 = vmatprep.subr.mxu0 0.0
    %3995 = vmatpush2.msra.mxu0 0.0
    %3996 = vmatprep.subr.mxu0 0.0
    %3997 = vmatpush2.msra.mxu0 0.0
    %3998 = vmatprep.subr.mxu0 0.0
    %3999 = vmatpush2.msra.mxu0 0.0
    %4000 = vmatprep.subr.mxu0 0.0
    %4001 = vmatpush2.msra.mxu0 0.0
    %4002 = vmatprep.subr.mxu0 0.0
    %4003 = vmatpush2.msra.mxu0 0.0
    %4004 = vmatprep.subr.mxu0 0.0
    %4005 = vmatpush2.msra.mxu0 0.0
    %4006 = vmatprep.subr.mxu0 0.0
    %4007 = vmatpush2.msra.mxu0 0.0
    %4008 = vmatprep.mubr.f32.mxu0 0.0
    %4009 = vmatmul.mubr.f32.gmra.mxu0 %v3942
    %v4010 = vpop.f32.mrf.mxu0
    %v4011 = vadd.f32 0.0, %v4010
    %v4012 = vpop.f32.mrf.mxu0
    %4013 = vdwg.mxu0
    %v4015 = vrot.slane %v4011, 5
    %v4017 = vadd.f32 %v2702, %v4015
    %v4018 = vxor.u32 %v4017, 2147483648
    %v4019 = vmul.f32 %v4018, 1.442695
    %v4020 = vpow.pop %v4019
    %v4021 = vadd.f32 %v4020, 1.0
    %v4022 = vrcp.pop %v4021
    %v4023 = vmul.f32 1.0, %v4022
    %v4024 = vadd.f32 %v4011, %v2793
    %v4026 = vrot.slane %v4024, 5
    %4027 = vrot.lane.b32.xlu0 %v4026, 96
    %v4028 = vpop.permute.xlu0 %4027
    %v4030 = vmul.f32 %v4023, %v4028
    %4032 = vrot.lane.b32.xlu0 %v4030, 32
    %v4033 = vpop.permute.xlu0 %4032
    %v4035 = vadd.f32 %v2702, %v4033
    %v4036 = vtanh.pop %v4035
    %v4037 = vsub.f32 1.0, %v4023
    %4039 = vrot.lane.b32.xlu0 %v4036, 112
    %v4040 = vpop.permute.xlu0 %4039
    %v4042 = vmul.f32 %v4037, %v4040
    %v4043 = vrot.slane %v3933, 7
    %v4045 = vmul.f32 %v4023, %v4043
    %v4046 = vadd.f32 %v4042, %v4045
    %4048 = vrot.lane.b32.xlu0 %v4046, 112
    %v4049 = vpop.permute.xlu0 %4048
    %4051 = vst.msk [vmem:[#allocation2 + $0x8] sm:$0x8] %vm1258, %v4049
    %v4052 = vrot.slane %v4046, 3
    %4053 = vrot.lane.b32.xlu0 %v4052, 112
    %v4054 = vpop.permute.xlu0 %4053
    %v4055 = vsel %vm90, %v4054, 0
    %4057 = vmatprep.subr.mxu0 0.0
    %4058 = vmatpush1.msra.mxu0 0.0
    %4059 = vmatprep.subr.mxu0 0.0
    %4060 = vmatpush1.msra.mxu0 0.0
    %4061 = vmatprep.subr.mxu0 0.0
    %4062 = vmatpush1.msra.mxu0 0.0
    %4063 = vmatprep.subr.mxu0 0.0
    %4064 = vmatpush1.msra.mxu0 0.0
    %4065 = vmatprep.subr.mxu0 0.0
    %4066 = vmatpush1.msra.mxu0 0.0
    %4067 = vmatprep.subr.mxu0 0.0
    %4068 = vmatpush1.msra.mxu0 0.0
    %4069 = vmatprep.subr.mxu0 0.0
    %4070 = vmatpush1.msra.mxu0 0.0
    %4071 = vmatprep.subr.mxu0 0.0
    %4072 = vmatpush1.msra.mxu0 0.0
    %4073 = vmatprep.subr.mxu0 0.0
    %4074 = vmatpush1.msra.mxu0 0.0
    %4075 = vmatprep.subr.mxu0 0.0
    %4076 = vmatpush1.msra.mxu0 0.0
    %4077 = vmatprep.subr.mxu0 0.0
    %4078 = vmatpush1.msra.mxu0 0.0
    %4079 = vmatprep.subr.mxu0 0.0
    %4080 = vmatpush1.msra.mxu0 0.0
    %4081 = vmatprep.subr.mxu0 0.0
    %4082 = vmatpush1.msra.mxu0 0.0
    %4083 = vmatprep.subr.mxu0 0.0
    %4084 = vmatpush1.msra.mxu0 0.0
    %4085 = vmatprep.subr.mxu0 0.0
    %4086 = vmatpush1.msra.mxu0 %v2707
    %4087 = vmatprep.subr.mxu0 0.0
    %4088 = vmatpush1.msra.mxu0 %v2706
    %4089 = vmatprep.subr.mxu0 0.0
    %4090 = vmatpush2.msra.mxu0 0.0
    %4091 = vmatprep.subr.mxu0 0.0
    %4092 = vmatpush2.msra.mxu0 0.0
    %4093 = vmatprep.subr.mxu0 0.0
    %4094 = vmatpush2.msra.mxu0 0.0
    %4095 = vmatprep.subr.mxu0 0.0
    %4096 = vmatpush2.msra.mxu0 0.0
    %4097 = vmatprep.subr.mxu0 0.0
    %4098 = vmatpush2.msra.mxu0 0.0
    %4099 = vmatprep.subr.mxu0 0.0
    %4100 = vmatpush2.msra.mxu0 0.0
    %4101 = vmatprep.subr.mxu0 0.0
    %4102 = vmatpush2.msra.mxu0 0.0
    %4103 = vmatprep.subr.mxu0 0.0
    %4104 = vmatpush2.msra.mxu0 0.0
    %4105 = vmatprep.subr.mxu0 0.0
    %4106 = vmatpush2.msra.mxu0 0.0
    %4107 = vmatprep.subr.mxu0 0.0
    %4108 = vmatpush2.msra.mxu0 0.0
    %4109 = vmatprep.subr.mxu0 0.0
    %4110 = vmatpush2.msra.mxu0 0.0
    %4111 = vmatprep.subr.mxu0 0.0
    %4112 = vmatpush2.msra.mxu0 0.0
    %4113 = vmatprep.subr.mxu0 0.0
    %4114 = vmatpush2.msra.mxu0 0.0
    %4115 = vmatprep.subr.mxu0 0.0
    %4116 = vmatpush2.msra.mxu0 0.0
    %4117 = vmatprep.subr.mxu0 0.0
    %4118 = vmatpush2.msra.mxu0 0.0
    %4119 = vmatprep.subr.mxu0 0.0
    %4120 = vmatpush2.msra.mxu0 0.0
    %4121 = vmatprep.mubr.f32.mxu0 0.0
    %4122 = vmatmul.mubr.f32.gmra.mxu0 %v4055
    %v4123 = vpop.f32.mrf.mxu0
    %v4124 = vadd.f32 0.0, %v4123
    %v4125 = vpop.f32.mrf.mxu0
    %4126 = vdwg.mxu0
    %v4128 = vrot.slane %v4124, 4
    %v4130 = vadd.f32 %v2702, %v4128
    %v4131 = vxor.u32 %v4130, 2147483648
    %v4132 = vmul.f32 %v4131, 1.442695
    %v4133 = vpow.pop %v4132
    %v4134 = vadd.f32 %v4133, 1.0
    %v4135 = vrcp.pop %v4134
    %v4136 = vmul.f32 1.0, %v4135
    %v4137 = vadd.f32 %v4124, %v2793
    %v4139 = vrot.slane %v4137, 4
    %4140 = vrot.lane.b32.xlu0 %v4139, 96
    %v4141 = vpop.permute.xlu0 %4140
    %v4143 = vmul.f32 %v4136, %v4141
    %4145 = vrot.lane.b32.xlu0 %v4143, 32
    %v4146 = vpop.permute.xlu0 %4145
    %v4148 = vadd.f32 %v2702, %v4146
    %v4149 = vtanh.pop %v4148
    %v4150 = vsub.f32 1.0, %v4136
    %4152 = vrot.lane.b32.xlu0 %v4149, 112
    %v4153 = vpop.permute.xlu0 %4152
    %v4155 = vmul.f32 %v4150, %v4153
    %v4156 = vrot.slane %v4046, 7
    %v4158 = vmul.f32 %v4136, %v4156
    %v4159 = vadd.f32 %v4155, %v4158
    %4161 = vrot.lane.b32.xlu0 %v4159, 112
    %v4162 = vpop.permute.xlu0 %4161
    %4164 = vst.msk [vmem:[#allocation2 + $0x8] sm:$0x10] %vm1372, %v4162
    %v4165 = vrot.slane %v4159, 4
    %4166 = vrot.lane.b32.xlu0 %v4165, 112
    %v4167 = vpop.permute.xlu0 %4166
    %v4168 = vsel %vm90, %v4167, 0
    %4170 = vmatprep.subr.mxu0 0.0
    %4171 = vmatpush1.msra.mxu0 0.0
    %4172 = vmatprep.subr.mxu0 0.0
    %4173 = vmatpush1.msra.mxu0 0.0
    %4174 = vmatprep.subr.mxu0 0.0
    %4175 = vmatpush1.msra.mxu0 0.0
    %4176 = vmatprep.subr.mxu0 0.0
    %4177 = vmatpush1.msra.mxu0 0.0
    %4178 = vmatprep.subr.mxu0 0.0
    %4179 = vmatpush1.msra.mxu0 0.0
    %4180 = vmatprep.subr.mxu0 0.0
    %4181 = vmatpush1.msra.mxu0 0.0
    %4182 = vmatprep.subr.mxu0 0.0
    %4183 = vmatpush1.msra.mxu0 0.0
    %4184 = vmatprep.subr.mxu0 0.0
    %4185 = vmatpush1.msra.mxu0 0.0
    %4186 = vmatprep.subr.mxu0 0.0
    %4187 = vmatpush1.msra.mxu0 0.0
    %4188 = vmatprep.subr.mxu0 0.0
    %4189 = vmatpush1.msra.mxu0 0.0
    %4190 = vmatprep.subr.mxu0 0.0
    %4191 = vmatpush1.msra.mxu0 0.0
    %4192 = vmatprep.subr.mxu0 0.0
    %4193 = vmatpush1.msra.mxu0 0.0
    %4194 = vmatprep.subr.mxu0 0.0
    %4195 = vmatpush1.msra.mxu0 0.0
    %4196 = vmatprep.subr.mxu0 0.0
    %4197 = vmatpush1.msra.mxu0 0.0
    %4198 = vmatprep.subr.mxu0 0.0
    %4199 = vmatpush1.msra.mxu0 %v2707
    %4200 = vmatprep.subr.mxu0 0.0
    %4201 = vmatpush1.msra.mxu0 %v2706
    %4202 = vmatprep.subr.mxu0 0.0
    %4203 = vmatpush2.msra.mxu0 0.0
    %4204 = vmatprep.subr.mxu0 0.0
    %4205 = vmatpush2.msra.mxu0 0.0
    %4206 = vmatprep.subr.mxu0 0.0
    %4207 = vmatpush2.msra.mxu0 0.0
    %4208 = vmatprep.subr.mxu0 0.0
    %4209 = vmatpush2.msra.mxu0 0.0
    %4210 = vmatprep.subr.mxu0 0.0
    %4211 = vmatpush2.msra.mxu0 0.0
    %4212 = vmatprep.subr.mxu0 0.0
    %4213 = vmatpush2.msra.mxu0 0.0
    %4214 = vmatprep.subr.mxu0 0.0
    %4215 = vmatpush2.msra.mxu0 0.0
    %4216 = vmatprep.subr.mxu0 0.0
    %4217 = vmatpush2.msra.mxu0 0.0
    %4218 = vmatprep.subr.mxu0 0.0
    %4219 = vmatpush2.msra.mxu0 0.0
    %4220 = vmatprep.subr.mxu0 0.0
    %4221 = vmatpush2.msra.mxu0 0.0
    %4222 = vmatprep.subr.mxu0 0.0
    %4223 = vmatpush2.msra.mxu0 0.0
    %4224 = vmatprep.subr.mxu0 0.0
    %4225 = vmatpush2.msra.mxu0 0.0
    %4226 = vmatprep.subr.mxu0 0.0
    %4227 = vmatpush2.msra.mxu0 0.0
    %4228 = vmatprep.subr.mxu0 0.0
    %4229 = vmatpush2.msra.mxu0 0.0
    %4230 = vmatprep.subr.mxu0 0.0
    %4231 = vmatpush2.msra.mxu0 0.0
    %4232 = vmatprep.subr.mxu0 0.0
    %4233 = vmatpush2.msra.mxu0 0.0
    %4234 = vmatprep.mubr.f32.mxu0 0.0
    %4235 = vmatmul.mubr.f32.gmra.mxu0 %v4168
    %v4236 = vpop.f32.mrf.mxu0
    %v4237 = vadd.f32 0.0, %v4236
    %v4238 = vpop.f32.mrf.mxu0
    %4239 = vdwg.mxu0
    %v4241 = vrot.slane %v4237, 3
    %v4243 = vadd.f32 %v2702, %v4241
    %v4244 = vxor.u32 %v4243, 2147483648
    %v4245 = vmul.f32 %v4244, 1.442695
    %v4246 = vpow.pop %v4245
    %v4247 = vadd.f32 %v4246, 1.0
    %v4248 = vrcp.pop %v4247
    %v4249 = vmul.f32 1.0, %v4248
    %v4250 = vadd.f32 %v4237, %v2793
    %v4252 = vrot.slane %v4250, 3
    %4253 = vrot.lane.b32.xlu0 %v4252, 96
    %v4254 = vpop.permute.xlu0 %4253
    %v4256 = vmul.f32 %v4249, %v4254
    %4258 = vrot.lane.b32.xlu0 %v4256, 32
    %v4259 = vpop.permute.xlu0 %4258
    %v4261 = vadd.f32 %v2702, %v4259
    %v4262 = vtanh.pop %v4261
    %v4263 = vsub.f32 1.0, %v4249
    %4265 = vrot.lane.b32.xlu0 %v4262, 112
    %v4266 = vpop.permute.xlu0 %4265
    %v4268 = vmul.f32 %v4263, %v4266
    %v4269 = vrot.slane %v4159, 7
    %v4271 = vmul.f32 %v4249, %v4269
    %v4272 = vadd.f32 %v4268, %v4271
    %4274 = vrot.lane.b32.xlu0 %v4272, 112
    %v4275 = vpop.permute.xlu0 %4274
    %4277 = vst.msk [vmem:[#allocation2 + $0x8] sm:$0x20] %vm1486, %v4275
    %v4278 = vrot.slane %v4272, 5
    %4279 = vrot.lane.b32.xlu0 %v4278, 112
    %v4280 = vpop.permute.xlu0 %4279
    %v4281 = vsel %vm90, %v4280, 0
    %4283 = vmatprep.subr.mxu0 0.0
    %4284 = vmatpush1.msra.mxu0 0.0
    %4285 = vmatprep.subr.mxu0 0.0
    %4286 = vmatpush1.msra.mxu0 0.0
    %4287 = vmatprep.subr.mxu0 0.0
    %4288 = vmatpush1.msra.mxu0 0.0
    %4289 = vmatprep.subr.mxu0 0.0
    %4290 = vmatpush1.msra.mxu0 0.0
    %4291 = vmatprep.subr.mxu0 0.0
    %4292 = vmatpush1.msra.mxu0 0.0
    %4293 = vmatprep.subr.mxu0 0.0
    %4294 = vmatpush1.msra.mxu0 0.0
    %4295 = vmatprep.subr.mxu0 0.0
    %4296 = vmatpush1.msra.mxu0 0.0
    %4297 = vmatprep.subr.mxu0 0.0
    %4298 = vmatpush1.msra.mxu0 0.0
    %4299 = vmatprep.subr.mxu0 0.0
    %4300 = vmatpush1.msra.mxu0 0.0
    %4301 = vmatprep.subr.mxu0 0.0
    %4302 = vmatpush1.msra.mxu0 0.0
    %4303 = vmatprep.subr.mxu0 0.0
    %4304 = vmatpush1.msra.mxu0 0.0
    %4305 = vmatprep.subr.mxu0 0.0
    %4306 = vmatpush1.msra.mxu0 0.0
    %4307 = vmatprep.subr.mxu0 0.0
    %4308 = vmatpush1.msra.mxu0 0.0
    %4309 = vmatprep.subr.mxu0 0.0
    %4310 = vmatpush1.msra.mxu0 0.0
    %4311 = vmatprep.subr.mxu0 0.0
    %4312 = vmatpush1.msra.mxu0 %v2707
    %4313 = vmatprep.subr.mxu0 0.0
    %4314 = vmatpush1.msra.mxu0 %v2706
    %4315 = vmatprep.subr.mxu0 0.0
    %4316 = vmatpush2.msra.mxu0 0.0
    %4317 = vmatprep.subr.mxu0 0.0
    %4318 = vmatpush2.msra.mxu0 0.0
    %4319 = vmatprep.subr.mxu0 0.0
    %4320 = vmatpush2.msra.mxu0 0.0
    %4321 = vmatprep.subr.mxu0 0.0
    %4322 = vmatpush2.msra.mxu0 0.0
    %4323 = vmatprep.subr.mxu0 0.0
    %4324 = vmatpush2.msra.mxu0 0.0
    %4325 = vmatprep.subr.mxu0 0.0
    %4326 = vmatpush2.msra.mxu0 0.0
    %4327 = vmatprep.subr.mxu0 0.0
    %4328 = vmatpush2.msra.mxu0 0.0
    %4329 = vmatprep.subr.mxu0 0.0
    %4330 = vmatpush2.msra.mxu0 0.0
    %4331 = vmatprep.subr.mxu0 0.0
    %4332 = vmatpush2.msra.mxu0 0.0
    %4333 = vmatprep.subr.mxu0 0.0
    %4334 = vmatpush2.msra.mxu0 0.0
    %4335 = vmatprep.subr.mxu0 0.0
    %4336 = vmatpush2.msra.mxu0 0.0
    %4337 = vmatprep.subr.mxu0 0.0
    %4338 = vmatpush2.msra.mxu0 0.0
    %4339 = vmatprep.subr.mxu0 0.0
    %4340 = vmatpush2.msra.mxu0 0.0
    %4341 = vmatprep.subr.mxu0 0.0
    %4342 = vmatpush2.msra.mxu0 0.0
    %4343 = vmatprep.subr.mxu0 0.0
    %4344 = vmatpush2.msra.mxu0 0.0
    %4345 = vmatprep.subr.mxu0 0.0
    %4346 = vmatpush2.msra.mxu0 0.0
    %4347 = vmatprep.mubr.f32.mxu0 0.0
    %4348 = vmatmul.mubr.f32.gmra.mxu0 %v4281
    %v4349 = vpop.f32.mrf.mxu0
    %v4350 = vadd.f32 0.0, %v4349
    %v4351 = vpop.f32.mrf.mxu0
    %4352 = vdwg.mxu0
    %v4354 = vrot.slane %v4350, 2
    %v4356 = vadd.f32 %v2702, %v4354
    %v4357 = vxor.u32 %v4356, 2147483648
    %v4358 = vmul.f32 %v4357, 1.442695
    %v4359 = vpow.pop %v4358
    %v4360 = vadd.f32 %v4359, 1.0
    %v4361 = vrcp.pop %v4360
    %v4362 = vmul.f32 1.0, %v4361
    %v4363 = vadd.f32 %v4350, %v2793
    %v4365 = vrot.slane %v4363, 2
    %4366 = vrot.lane.b32.xlu0 %v4365, 96
    %v4367 = vpop.permute.xlu0 %4366
    %v4369 = vmul.f32 %v4362, %v4367
    %4371 = vrot.lane.b32.xlu0 %v4369, 32
    %v4372 = vpop.permute.xlu0 %4371
    %v4374 = vadd.f32 %v2702, %v4372
    %v4375 = vtanh.pop %v4374
    %v4376 = vsub.f32 1.0, %v4362
    %4378 = vrot.lane.b32.xlu0 %v4375, 112
    %v4379 = vpop.permute.xlu0 %4378
    %v4381 = vmul.f32 %v4376, %v4379
    %v4382 = vrot.slane %v4272, 7
    %v4384 = vmul.f32 %v4362, %v4382
    %v4385 = vadd.f32 %v4381, %v4384
    %4387 = vrot.lane.b32.xlu0 %v4385, 112
    %v4388 = vpop.permute.xlu0 %4387
    %4390 = vst.msk [vmem:[#allocation2 + $0x8] sm:$0x40] %vm1600, %v4388
    %v4391 = vrot.slane %v4385, 6
    %4392 = vrot.lane.b32.xlu0 %v4391, 112
    %v4393 = vpop.permute.xlu0 %4392
    %v4394 = vsel %vm90, %v4393, 0
    %4396 = vmatprep.subr.mxu0 0.0
    %4397 = vmatpush1.msra.mxu0 0.0
    %4398 = vmatprep.subr.mxu0 0.0
    %4399 = vmatpush1.msra.mxu0 0.0
    %4400 = vmatprep.subr.mxu0 0.0
    %4401 = vmatpush1.msra.mxu0 0.0
    %4402 = vmatprep.subr.mxu0 0.0
    %4403 = vmatpush1.msra.mxu0 0.0
    %4404 = vmatprep.subr.mxu0 0.0
    %4405 = vmatpush1.msra.mxu0 0.0
    %4406 = vmatprep.subr.mxu0 0.0
    %4407 = vmatpush1.msra.mxu0 0.0
    %4408 = vmatprep.subr.mxu0 0.0
    %4409 = vmatpush1.msra.mxu0 0.0
    %4410 = vmatprep.subr.mxu0 0.0
    %4411 = vmatpush1.msra.mxu0 0.0
    %4412 = vmatprep.subr.mxu0 0.0
    %4413 = vmatpush1.msra.mxu0 0.0
    %4414 = vmatprep.subr.mxu0 0.0
    %4415 = vmatpush1.msra.mxu0 0.0
    %4416 = vmatprep.subr.mxu0 0.0
    %4417 = vmatpush1.msra.mxu0 0.0
    %4418 = vmatprep.subr.mxu0 0.0
    %4419 = vmatpush1.msra.mxu0 0.0
    %4420 = vmatprep.subr.mxu0 0.0
    %4421 = vmatpush1.msra.mxu0 0.0
    %4422 = vmatprep.subr.mxu0 0.0
    %4423 = vmatpush1.msra.mxu0 0.0
    %4424 = vmatprep.subr.mxu0 0.0
    %4425 = vmatpush1.msra.mxu0 %v2707
    %4426 = vmatprep.subr.mxu0 0.0
    %4427 = vmatpush1.msra.mxu0 %v2706
    %4428 = vmatprep.subr.mxu0 0.0
    %4429 = vmatpush2.msra.mxu0 0.0
    %4430 = vmatprep.subr.mxu0 0.0
    %4431 = vmatpush2.msra.mxu0 0.0
    %4432 = vmatprep.subr.mxu0 0.0
    %4433 = vmatpush2.msra.mxu0 0.0
    %4434 = vmatprep.subr.mxu0 0.0
    %4435 = vmatpush2.msra.mxu0 0.0
    %4436 = vmatprep.subr.mxu0 0.0
    %4437 = vmatpush2.msra.mxu0 0.0
    %4438 = vmatprep.subr.mxu0 0.0
    %4439 = vmatpush2.msra.mxu0 0.0
    %4440 = vmatprep.subr.mxu0 0.0
    %4441 = vmatpush2.msra.mxu0 0.0
    %4442 = vmatprep.subr.mxu0 0.0
    %4443 = vmatpush2.msra.mxu0 0.0
    %4444 = vmatprep.subr.mxu0 0.0
    %4445 = vmatpush2.msra.mxu0 0.0
    %4446 = vmatprep.subr.mxu0 0.0
    %4447 = vmatpush2.msra.mxu0 0.0
    %4448 = vmatprep.subr.mxu0 0.0
    %4449 = vmatpush2.msra.mxu0 0.0
    %4450 = vmatprep.subr.mxu0 0.0
    %4451 = vmatpush2.msra.mxu0 0.0
    %4452 = vmatprep.subr.mxu0 0.0
    %4453 = vmatpush2.msra.mxu0 0.0
    %4454 = vmatprep.subr.mxu0 0.0
    %4455 = vmatpush2.msra.mxu0 0.0
    %4456 = vmatprep.subr.mxu0 0.0
    %4457 = vmatpush2.msra.mxu0 0.0
    %4458 = vmatprep.subr.mxu0 0.0
    %4459 = vmatpush2.msra.mxu0 0.0
    %4460 = vmatprep.mubr.f32.mxu0 0.0
    %4461 = vmatmul.mubr.f32.gmra.mxu0 %v4394
    %v4462 = vpop.f32.mrf.mxu0
    %v4463 = vadd.f32 0.0, %v4462
    %v4464 = vpop.f32.mrf.mxu0
    %4465 = vdwg.mxu0
    %v4467 = vrot.slane %v4463, 1
    %v4469 = vadd.f32 %v2702, %v4467
    %v4470 = vxor.u32 %v4469, 2147483648
    %v4471 = vmul.f32 %v4470, 1.442695
    %v4472 = vpow.pop %v4471
    %v4473 = vadd.f32 %v4472, 1.0
    %v4474 = vrcp.pop %v4473
    %v4475 = vmul.f32 1.0, %v4474
    %v4476 = vadd.f32 %v4463, %v2793
    %v4478 = vrot.slane %v4476, 1
    %4479 = vrot.lane.b32.xlu0 %v4478, 96
    %v4480 = vpop.permute.xlu0 %4479
    %v4482 = vmul.f32 %v4475, %v4480
    %4484 = vrot.lane.b32.xlu0 %v4482, 32
    %v4485 = vpop.permute.xlu0 %4484
    %v4487 = vadd.f32 %v2702, %v4485
    %v4488 = vtanh.pop %v4487
    %v4489 = vsub.f32 1.0, %v4475
    %4491 = vrot.lane.b32.xlu0 %v4488, 112
    %v4492 = vpop.permute.xlu0 %4491
    %v4494 = vmul.f32 %v4489, %v4492
    %v4495 = vrot.slane %v4385, 7
    %v4497 = vmul.f32 %v4475, %v4495
    %v4498 = vadd.f32 %v4494, %v4497
    %4500 = vrot.lane.b32.xlu0 %v4498, 112
    %v4501 = vpop.permute.xlu0 %4500
    %4503 = vst.msk [vmem:[#allocation2 + $0x8] sm:$0x80] %vm1714, %v4501
    %v4504 = vld [vmem:[#allocation2] sm:$0xff]
    %v4505 = vld [vmem:[#allocation2 + $0x8] sm:$0xff]
    %s4506 = scalar_lea.vmem %s10, 16
    %v4507 = vld [vmem:[%s4506] sm:$0xff]
    %v4508 = vld [vmem:[%s4506 + $0x8] sm:$0xff]
    %s4509 = scalar_lea.vmem %s12, 2
    %v4510 = vld [vmem:[%s4509] sm:$0x1]
    %v4512 = vlaneseq
    %v4513 = vshrl.u32 %v4512, 7
    %v4514 = vsub.s32 0, %v4513
    %v4515 = vrot.slane %v4510, %v4514
    %v4518 = vsel %vm90, %v4504, 0
    %v4521 = vsel %vm90, %v4505, 0
    %4523 = vmatprep.subr.mxu0 0.0
    %4524 = vmatpush1.msra.mxu0 0.0
    %4525 = vmatprep.subr.mxu0 0.0
    %4526 = vmatpush1.msra.mxu0 0.0
    %4527 = vmatprep.subr.mxu0 0.0
    %4528 = vmatpush1.msra.mxu0 0.0
    %4529 = vmatprep.subr.mxu0 0.0
    %4530 = vmatpush1.msra.mxu0 0.0
    %4531 = vmatprep.subr.mxu0 0.0
    %4532 = vmatpush1.msra.mxu0 0.0
    %4533 = vmatprep.subr.mxu0 0.0
    %4534 = vmatpush1.msra.mxu0 0.0
    %4535 = vmatprep.subr.mxu0 0.0
    %4536 = vmatpush1.msra.mxu0 0.0
    %4537 = vmatprep.subr.mxu0 0.0
    %4538 = vmatpush1.msra.mxu0 0.0
    %4539 = vmatprep.subr.mxu0 0.0
    %4540 = vmatpush1.msra.mxu0 0.0
    %4541 = vmatprep.subr.mxu0 0.0
    %4542 = vmatpush1.msra.mxu0 0.0
    %4543 = vmatprep.subr.mxu0 0.0
    %4544 = vmatpush1.msra.mxu0 0.0
    %4545 = vmatprep.subr.mxu0 0.0
    %4546 = vmatpush1.msra.mxu0 0.0
    %4547 = vmatprep.subr.mxu0 0.0
    %4548 = vmatpush1.msra.mxu0 0.0
    %4549 = vmatprep.subr.mxu0 0.0
    %4550 = vmatpush1.msra.mxu0 0.0
    %4551 = vmatprep.subr.mxu0 0.0
    %4552 = vmatpush1.msra.mxu0 %v4508
    %4553 = vmatprep.subr.mxu0 0.0
    %4554 = vmatpush1.msra.mxu0 %v4507
    %4555 = vmatprep.subr.mxu0 0.0
    %4556 = vmatpush2.msra.mxu0 0.0
    %4557 = vmatprep.subr.mxu0 0.0
    %4558 = vmatpush2.msra.mxu0 0.0
    %4559 = vmatprep.subr.mxu0 0.0
    %4560 = vmatpush2.msra.mxu0 0.0
    %4561 = vmatprep.subr.mxu0 0.0
    %4562 = vmatpush2.msra.mxu0 0.0
    %4563 = vmatprep.subr.mxu0 0.0
    %4564 = vmatpush2.msra.mxu0 0.0
    %4565 = vmatprep.subr.mxu0 0.0
    %4566 = vmatpush2.msra.mxu0 0.0
    %4567 = vmatprep.subr.mxu0 0.0
    %4568 = vmatpush2.msra.mxu0 0.0
    %4569 = vmatprep.subr.mxu0 0.0
    %4570 = vmatpush2.msra.mxu0 0.0
    %4571 = vmatprep.subr.mxu0 0.0
    %4572 = vmatpush2.msra.mxu0 0.0
    %4573 = vmatprep.subr.mxu0 0.0
    %4574 = vmatpush2.msra.mxu0 0.0
    %4575 = vmatprep.subr.mxu0 0.0
    %4576 = vmatpush2.msra.mxu0 0.0
    %4577 = vmatprep.subr.mxu0 0.0
    %4578 = vmatpush2.msra.mxu0 0.0
    %4579 = vmatprep.subr.mxu0 0.0
    %4580 = vmatpush2.msra.mxu0 0.0
    %4581 = vmatprep.subr.mxu0 0.0
    %4582 = vmatpush2.msra.mxu0 0.0
    %4583 = vmatprep.subr.mxu0 0.0
    %4584 = vmatpush2.msra.mxu0 0.0
    %4585 = vmatprep.subr.mxu0 0.0
    %4586 = vmatpush2.msra.mxu0 0.0
    %4587 = vmatprep.mubr.f32.mxu0 0.0
    %4588 = vmatmul.mubr.f32.gmra.mxu0 %v4518
    %v4589 = vpop.f32.mrf.mxu0
    %v4590 = vadd.f32 %v4515, %v4589
    %v4591 = vpop.f32.mrf.mxu0
    %4592 = vmatprep.mubr.f32.mxu0 0.0
    %4593 = vmatmul.mubr.f32.gmra.mxu0 %v4521
    %v4594 = vpop.f32.mrf.mxu0
    %v4595 = vadd.f32 %v4515, %v4594
    %v4596 = vpop.f32.mrf.mxu0
    %4597 = vdwg.mxu0
    %s4598 = scalar_lea.vmem %s11, 32
    %v4599 = vld [vmem:[%s4598] sm:$0xff]
    %v4600 = vld [vmem:[%s4598 + $0x8] sm:$0xff]
    %s4601 = scalar_lea.vmem %s13, 2
    %v4602 = vld [vmem:[%s4601] sm:$0x1]
    %4603 = vmatprep.subr.mxu0 0.0
    %4604 = vmatpush1.msra.mxu0 0.0
    %4605 = vmatprep.subr.mxu0 0.0
    %4606 = vmatpush1.msra.mxu0 0.0
    %4607 = vmatprep.subr.mxu0 0.0
    %4608 = vmatpush1.msra.mxu0 0.0
    %4609 = vmatprep.subr.mxu0 0.0
    %4610 = vmatpush1.msra.mxu0 0.0
    %4611 = vmatprep.subr.mxu0 0.0
    %4612 = vmatpush1.msra.mxu0 0.0
    %4613 = vmatprep.subr.mxu0 0.0
    %4614 = vmatpush1.msra.mxu0 0.0
    %4615 = vmatprep.subr.mxu0 0.0
    %4616 = vmatpush1.msra.mxu0 0.0
    %4617 = vmatprep.subr.mxu0 0.0
    %4618 = vmatpush1.msra.mxu0 0.0
    %4619 = vmatprep.subr.mxu0 0.0
    %4620 = vmatpush1.msra.mxu0 0.0
    %4621 = vmatprep.subr.mxu0 0.0
    %4622 = vmatpush1.msra.mxu0 0.0
    %4623 = vmatprep.subr.mxu0 0.0
    %4624 = vmatpush1.msra.mxu0 0.0
    %4625 = vmatprep.subr.mxu0 0.0
    %4626 = vmatpush1.msra.mxu0 0.0
    %4627 = vmatprep.subr.mxu0 0.0
    %4628 = vmatpush1.msra.mxu0 0.0
    %4629 = vmatprep.subr.mxu0 0.0
    %4630 = vmatpush1.msra.mxu0 0.0
    %4631 = vmatprep.subr.mxu0 0.0
    %4632 = vmatpush1.msra.mxu0 %v4600
    %4633 = vmatprep.subr.mxu0 0.0
    %4634 = vmatpush1.msra.mxu0 %v4599
    %4635 = vmatprep.subr.mxu0 0.0
    %4636 = vmatpush2.msra.mxu0 0.0
    %4637 = vmatprep.subr.mxu0 0.0
    %4638 = vmatpush2.msra.mxu0 0.0
    %4639 = vmatprep.subr.mxu0 0.0
    %4640 = vmatpush2.msra.mxu0 0.0
    %4641 = vmatprep.subr.mxu0 0.0
    %4642 = vmatpush2.msra.mxu0 0.0
    %4643 = vmatprep.subr.mxu0 0.0
    %4644 = vmatpush2.msra.mxu0 0.0
    %4645 = vmatprep.subr.mxu0 0.0
    %4646 = vmatpush2.msra.mxu0 0.0
    %4647 = vmatprep.subr.mxu0 0.0
    %4648 = vmatpush2.msra.mxu0 0.0
    %4649 = vmatprep.subr.mxu0 0.0
    %4650 = vmatpush2.msra.mxu0 0.0
    %4651 = vmatprep.subr.mxu0 0.0
    %4652 = vmatpush2.msra.mxu0 0.0
    %4653 = vmatprep.subr.mxu0 0.0
    %4654 = vmatpush2.msra.mxu0 0.0
    %4655 = vmatprep.subr.mxu0 0.0
    %4656 = vmatpush2.msra.mxu0 0.0
    %4657 = vmatprep.subr.mxu0 0.0
    %4658 = vmatpush2.msra.mxu0 0.0
    %4659 = vmatprep.subr.mxu0 0.0
    %4660 = vmatpush2.msra.mxu0 0.0
    %4661 = vmatprep.subr.mxu0 0.0
    %4662 = vmatpush2.msra.mxu0 0.0
    %4663 = vmatprep.subr.mxu0 0.0
    %4664 = vmatpush2.msra.mxu0 0.0
    %4665 = vmatprep.subr.mxu0 0.0
    %4666 = vmatpush2.msra.mxu0 0.0
    %4667 = vmatprep.mubr.f32.mxu0 0.0
    %4668 = vmatmul.mubr.f32.gmra.mxu0 %v808
    %v4669 = vpop.f32.mrf.mxu0
    %v4670 = vadd.f32 0.0, %v4669
    %v4671 = vpop.f32.mrf.mxu0
    %4672 = vdwg.mxu0
    %v4673 = vadd.f32 %v4590, %v4670
    %v4674 = vxor.u32 %v4673, 2147483648
    %v4675 = vmul.f32 %v4674, 1.442695
    %v4676 = vpow.pop %v4675
    %v4677 = vadd.f32 %v4676, 1.0
    %v4678 = vrcp.pop %v4677
    %v4679 = vmul.f32 1.0, %v4678
    %v4681 = vlaneseq
    %v4682 = vshrl.u32 %v4681, 7
    %v4683 = vsub.s32 0, %v4682
    %v4684 = vrot.slane %v4602, %v4683
    %4685 = vrot.lane.b32.xlu0 %v4684, 32
    %v4686 = vpop.permute.xlu0 %4685
    %v4688 = vadd.f32 %v4670, %v4686
    %4690 = vrot.lane.b32.xlu0 %v4688, 96
    %v4691 = vpop.permute.xlu0 %4690
    %v4693 = vmul.f32 %v4679, %v4691
    %4695 = vrot.lane.b32.xlu0 %v4693, 32
    %v4696 = vpop.permute.xlu0 %4695
    %v4698 = vadd.f32 %v4590, %v4696
    %v4699 = vtanh.pop %v4698
    %v4700 = vsub.f32 1.0, %v4679
    %4702 = vrot.lane.b32.xlu0 %v4699, 112
    %v4703 = vpop.permute.xlu0 %4702
    %v4705 = vmul.f32 %v4700, %v4703
    %v4706 = vmul.f32 %v4679, 0.0
    %v4707 = vadd.f32 %v4705, %v4706
    %4709 = vrot.lane.b32.xlu0 %v4707, 112
    %v4710 = vpop.permute.xlu0 %4709
    %4712 = vst.msk [vmem:[#allocation2] sm:$0x1] %vm919, %v4710
    %v4713 = vsel %vm90, %v4710, 0
    %4715 = vmatprep.subr.mxu0 0.0
    %4716 = vmatpush1.msra.mxu0 0.0
    %4717 = vmatprep.subr.mxu0 0.0
    %4718 = vmatpush1.msra.mxu0 0.0
    %4719 = vmatprep.subr.mxu0 0.0
    %4720 = vmatpush1.msra.mxu0 0.0
    %4721 = vmatprep.subr.mxu0 0.0
    %4722 = vmatpush1.msra.mxu0 0.0
    %4723 = vmatprep.subr.mxu0 0.0
    %4724 = vmatpush1.msra.mxu0 0.0
    %4725 = vmatprep.subr.mxu0 0.0
    %4726 = vmatpush1.msra.mxu0 0.0
    %4727 = vmatprep.subr.mxu0 0.0
    %4728 = vmatpush1.msra.mxu0 0.0
    %4729 = vmatprep.subr.mxu0 0.0
    %4730 = vmatpush1.msra.mxu0 0.0
    %4731 = vmatprep.subr.mxu0 0.0
    %4732 = vmatpush1.msra.mxu0 0.0
    %4733 = vmatprep.subr.mxu0 0.0
    %4734 = vmatpush1.msra.mxu0 0.0
    %4735 = vmatprep.subr.mxu0 0.0
    %4736 = vmatpush1.msra.mxu0 0.0
    %4737 = vmatprep.subr.mxu0 0.0
    %4738 = vmatpush1.msra.mxu0 0.0
    %4739 = vmatprep.subr.mxu0 0.0
    %4740 = vmatpush1.msra.mxu0 0.0
    %4741 = vmatprep.subr.mxu0 0.0
    %4742 = vmatpush1.msra.mxu0 0.0
    %4743 = vmatprep.subr.mxu0 0.0
    %4744 = vmatpush1.msra.mxu0 %v4600
    %4745 = vmatprep.subr.mxu0 0.0
    %4746 = vmatpush1.msra.mxu0 %v4599
    %4747 = vmatprep.subr.mxu0 0.0
    %4748 = vmatpush2.msra.mxu0 0.0
    %4749 = vmatprep.subr.mxu0 0.0
    %4750 = vmatpush2.msra.mxu0 0.0
    %4751 = vmatprep.subr.mxu0 0.0
    %4752 = vmatpush2.msra.mxu0 0.0
    %4753 = vmatprep.subr.mxu0 0.0
    %4754 = vmatpush2.msra.mxu0 0.0
    %4755 = vmatprep.subr.mxu0 0.0
    %4756 = vmatpush2.msra.mxu0 0.0
    %4757 = vmatprep.subr.mxu0 0.0
    %4758 = vmatpush2.msra.mxu0 0.0
    %4759 = vmatprep.subr.mxu0 0.0
    %4760 = vmatpush2.msra.mxu0 0.0
    %4761 = vmatprep.subr.mxu0 0.0
    %4762 = vmatpush2.msra.mxu0 0.0
    %4763 = vmatprep.subr.mxu0 0.0
    %4764 = vmatpush2.msra.mxu0 0.0
    %4765 = vmatprep.subr.mxu0 0.0
    %4766 = vmatpush2.msra.mxu0 0.0
    %4767 = vmatprep.subr.mxu0 0.0
    %4768 = vmatpush2.msra.mxu0 0.0
    %4769 = vmatprep.subr.mxu0 0.0
    %4770 = vmatpush2.msra.mxu0 0.0
    %4771 = vmatprep.subr.mxu0 0.0
    %4772 = vmatpush2.msra.mxu0 0.0
    %4773 = vmatprep.subr.mxu0 0.0
    %4774 = vmatpush2.msra.mxu0 0.0
    %4775 = vmatprep.subr.mxu0 0.0
    %4776 = vmatpush2.msra.mxu0 0.0
    %4777 = vmatprep.subr.mxu0 0.0
    %4778 = vmatpush2.msra.mxu0 0.0
    %4779 = vmatprep.mubr.f32.mxu0 0.0
    %4780 = vmatmul.mubr.f32.gmra.mxu0 %v4713
    %v4781 = vpop.f32.mrf.mxu0
    %v4782 = vadd.f32 0.0, %v4781
    %v4783 = vpop.f32.mrf.mxu0
    %4784 = vdwg.mxu0
    %v4786 = vrot.slane %v4782, 7
    %v4788 = vadd.f32 %v4590, %v4786
    %v4789 = vxor.u32 %v4788, 2147483648
    %v4790 = vmul.f32 %v4789, 1.442695
    %v4791 = vpow.pop %v4790
    %v4792 = vadd.f32 %v4791, 1.0
    %v4793 = vrcp.pop %v4792
    %v4794 = vmul.f32 1.0, %v4793
    %v4795 = vadd.f32 %v4782, %v4686
    %v4797 = vrot.slane %v4795, 7
    %4798 = vrot.lane.b32.xlu0 %v4797, 96
    %v4799 = vpop.permute.xlu0 %4798
    %v4801 = vmul.f32 %v4794, %v4799
    %4803 = vrot.lane.b32.xlu0 %v4801, 32
    %v4804 = vpop.permute.xlu0 %4803
    %v4806 = vadd.f32 %v4590, %v4804
    %v4807 = vtanh.pop %v4806
    %v4808 = vsub.f32 1.0, %v4794
    %4810 = vrot.lane.b32.xlu0 %v4807, 112
    %v4811 = vpop.permute.xlu0 %4810
    %v4813 = vmul.f32 %v4808, %v4811
    %v4814 = vrot.slane %v4707, 7
    %v4816 = vmul.f32 %v4794, %v4814
    %v4817 = vadd.f32 %v4813, %v4816
    %4819 = vrot.lane.b32.xlu0 %v4817, 112
    %v4820 = vpop.permute.xlu0 %4819
    %4822 = vst.msk [vmem:[#allocation2] sm:$0x2] %vm1030, %v4820
    %v4823 = vrot.slane %v4817, 1
    %4824 = vrot.lane.b32.xlu0 %v4823, 112
    %v4825 = vpop.permute.xlu0 %4824
    %v4826 = vsel %vm90, %v4825, 0
    %4828 = vmatprep.subr.mxu0 0.0
    %4829 = vmatpush1.msra.mxu0 0.0
    %4830 = vmatprep.subr.mxu0 0.0
    %4831 = vmatpush1.msra.mxu0 0.0
    %4832 = vmatprep.subr.mxu0 0.0
    %4833 = vmatpush1.msra.mxu0 0.0
    %4834 = vmatprep.subr.mxu0 0.0
    %4835 = vmatpush1.msra.mxu0 0.0
    %4836 = vmatprep.subr.mxu0 0.0
    %4837 = vmatpush1.msra.mxu0 0.0
    %4838 = vmatprep.subr.mxu0 0.0
    %4839 = vmatpush1.msra.mxu0 0.0
    %4840 = vmatprep.subr.mxu0 0.0
    %4841 = vmatpush1.msra.mxu0 0.0
    %4842 = vmatprep.subr.mxu0 0.0
    %4843 = vmatpush1.msra.mxu0 0.0
    %4844 = vmatprep.subr.mxu0 0.0
    %4845 = vmatpush1.msra.mxu0 0.0
    %4846 = vmatprep.subr.mxu0 0.0
    %4847 = vmatpush1.msra.mxu0 0.0
    %4848 = vmatprep.subr.mxu0 0.0
    %4849 = vmatpush1.msra.mxu0 0.0
    %4850 = vmatprep.subr.mxu0 0.0
    %4851 = vmatpush1.msra.mxu0 0.0
    %4852 = vmatprep.subr.mxu0 0.0
    %4853 = vmatpush1.msra.mxu0 0.0
    %4854 = vmatprep.subr.mxu0 0.0
    %4855 = vmatpush1.msra.mxu0 0.0
    %4856 = vmatprep.subr.mxu0 0.0
    %4857 = vmatpush1.msra.mxu0 %v4600
    %4858 = vmatprep.subr.mxu0 0.0
    %4859 = vmatpush1.msra.mxu0 %v4599
    %4860 = vmatprep.subr.mxu0 0.0
    %4861 = vmatpush2.msra.mxu0 0.0
    %4862 = vmatprep.subr.mxu0 0.0
    %4863 = vmatpush2.msra.mxu0 0.0
    %4864 = vmatprep.subr.mxu0 0.0
    %4865 = vmatpush2.msra.mxu0 0.0
    %4866 = vmatprep.subr.mxu0 0.0
    %4867 = vmatpush2.msra.mxu0 0.0
    %4868 = vmatprep.subr.mxu0 0.0
    %4869 = vmatpush2.msra.mxu0 0.0
    %4870 = vmatprep.subr.mxu0 0.0
    %4871 = vmatpush2.msra.mxu0 0.0
    %4872 = vmatprep.subr.mxu0 0.0
    %4873 = vmatpush2.msra.mxu0 0.0
    %4874 = vmatprep.subr.mxu0 0.0
    %4875 = vmatpush2.msra.mxu0 0.0
    %4876 = vmatprep.subr.mxu0 0.0
    %4877 = vmatpush2.msra.mxu0 0.0
    %4878 = vmatprep.subr.mxu0 0.0
    %4879 = vmatpush2.msra.mxu0 0.0
    %4880 = vmatprep.subr.mxu0 0.0
    %4881 = vmatpush2.msra.mxu0 0.0
    %4882 = vmatprep.subr.mxu0 0.0
    %4883 = vmatpush2.msra.mxu0 0.0
    %4884 = vmatprep.subr.mxu0 0.0
    %4885 = vmatpush2.msra.mxu0 0.0
    %4886 = vmatprep.subr.mxu0 0.0
    %4887 = vmatpush2.msra.mxu0 0.0
    %4888 = vmatprep.subr.mxu0 0.0
    %4889 = vmatpush2.msra.mxu0 0.0
    %4890 = vmatprep.subr.mxu0 0.0
    %4891 = vmatpush2.msra.mxu0 0.0
    %4892 = vmatprep.mubr.f32.mxu0 0.0
    %4893 = vmatmul.mubr.f32.gmra.mxu0 %v4826
    %v4894 = vpop.f32.mrf.mxu0
    %v4895 = vadd.f32 0.0, %v4894
    %v4896 = vpop.f32.mrf.mxu0
    %4897 = vdwg.mxu0
    %v4899 = vrot.slane %v4895, 6
    %v4901 = vadd.f32 %v4590, %v4899
    %v4902 = vxor.u32 %v4901, 2147483648
    %v4903 = vmul.f32 %v4902, 1.442695
    %v4904 = vpow.pop %v4903
    %v4905 = vadd.f32 %v4904, 1.0
    %v4906 = vrcp.pop %v4905
    %v4907 = vmul.f32 1.0, %v4906
    %v4908 = vadd.f32 %v4895, %v4686
    %v4910 = vrot.slane %v4908, 6
    %4911 = vrot.lane.b32.xlu0 %v4910, 96
    %v4912 = vpop.permute.xlu0 %4911
    %v4914 = vmul.f32 %v4907, %v4912
    %4916 = vrot.lane.b32.xlu0 %v4914, 32
    %v4917 = vpop.permute.xlu0 %4916
    %v4919 = vadd.f32 %v4590, %v4917
    %v4920 = vtanh.pop %v4919
    %v4921 = vsub.f32 1.0, %v4907
    %4923 = vrot.lane.b32.xlu0 %v4920, 112
    %v4924 = vpop.permute.xlu0 %4923
    %v4926 = vmul.f32 %v4921, %v4924
    %v4927 = vrot.slane %v4817, 7
    %v4929 = vmul.f32 %v4907, %v4927
    %v4930 = vadd.f32 %v4926, %v4929
    %4932 = vrot.lane.b32.xlu0 %v4930, 112
    %v4933 = vpop.permute.xlu0 %4932
    %4935 = vst.msk [vmem:[#allocation2] sm:$0x4] %vm1144, %v4933
    %v4936 = vrot.slane %v4930, 2
    %4937 = vrot.lane.b32.xlu0 %v4936, 112
    %v4938 = vpop.permute.xlu0 %4937
    %v4939 = vsel %vm90, %v4938, 0
    %4941 = vmatprep.subr.mxu0 0.0
    %4942 = vmatpush1.msra.mxu0 0.0
    %4943 = vmatprep.subr.mxu0 0.0
    %4944 = vmatpush1.msra.mxu0 0.0
    %4945 = vmatprep.subr.mxu0 0.0
    %4946 = vmatpush1.msra.mxu0 0.0
    %4947 = vmatprep.subr.mxu0 0.0
    %4948 = vmatpush1.msra.mxu0 0.0
    %4949 = vmatprep.subr.mxu0 0.0
    %4950 = vmatpush1.msra.mxu0 0.0
    %4951 = vmatprep.subr.mxu0 0.0
    %4952 = vmatpush1.msra.mxu0 0.0
    %4953 = vmatprep.subr.mxu0 0.0
    %4954 = vmatpush1.msra.mxu0 0.0
    %4955 = vmatprep.subr.mxu0 0.0
    %4956 = vmatpush1.msra.mxu0 0.0
    %4957 = vmatprep.subr.mxu0 0.0
    %4958 = vmatpush1.msra.mxu0 0.0
    %4959 = vmatprep.subr.mxu0 0.0
    %4960 = vmatpush1.msra.mxu0 0.0
    %4961 = vmatprep.subr.mxu0 0.0
    %4962 = vmatpush1.msra.mxu0 0.0
    %4963 = vmatprep.subr.mxu0 0.0
    %4964 = vmatpush1.msra.mxu0 0.0
    %4965 = vmatprep.subr.mxu0 0.0
    %4966 = vmatpush1.msra.mxu0 0.0
    %4967 = vmatprep.subr.mxu0 0.0
    %4968 = vmatpush1.msra.mxu0 0.0
    %4969 = vmatprep.subr.mxu0 0.0
    %4970 = vmatpush1.msra.mxu0 %v4600
    %4971 = vmatprep.subr.mxu0 0.0
    %4972 = vmatpush1.msra.mxu0 %v4599
    %4973 = vmatprep.subr.mxu0 0.0
    %4974 = vmatpush2.msra.mxu0 0.0
    %4975 = vmatprep.subr.mxu0 0.0
    %4976 = vmatpush2.msra.mxu0 0.0
    %4977 = vmatprep.subr.mxu0 0.0
    %4978 = vmatpush2.msra.mxu0 0.0
    %4979 = vmatprep.subr.mxu0 0.0
    %4980 = vmatpush2.msra.mxu0 0.0
    %4981 = vmatprep.subr.mxu0 0.0
    %4982 = vmatpush2.msra.mxu0 0.0
    %4983 = vmatprep.subr.mxu0 0.0
    %4984 = vmatpush2.msra.mxu0 0.0
    %4985 = vmatprep.subr.mxu0 0.0
    %4986 = vmatpush2.msra.mxu0 0.0
    %4987 = vmatprep.subr.mxu0 0.0
    %4988 = vmatpush2.msra.mxu0 0.0
    %4989 = vmatprep.subr.mxu0 0.0
    %4990 = vmatpush2.msra.mxu0 0.0
    %4991 = vmatprep.subr.mxu0 0.0
    %4992 = vmatpush2.msra.mxu0 0.0
    %4993 = vmatprep.subr.mxu0 0.0
    %4994 = vmatpush2.msra.mxu0 0.0
    %4995 = vmatprep.subr.mxu0 0.0
    %4996 = vmatpush2.msra.mxu0 0.0
    %4997 = vmatprep.subr.mxu0 0.0
    %4998 = vmatpush2.msra.mxu0 0.0
    %4999 = vmatprep.subr.mxu0 0.0
    %5000 = vmatpush2.msra.mxu0 0.0
    %5001 = vmatprep.subr.mxu0 0.0
    %5002 = vmatpush2.msra.mxu0 0.0
    %5003 = vmatprep.subr.mxu0 0.0
    %5004 = vmatpush2.msra.mxu0 0.0
    %5005 = vmatprep.mubr.f32.mxu0 0.0
    %5006 = vmatmul.mubr.f32.gmra.mxu0 %v4939
    %v5007 = vpop.f32.mrf.mxu0
    %v5008 = vadd.f32 0.0, %v5007
    %v5009 = vpop.f32.mrf.mxu0
    %5010 = vdwg.mxu0
    %v5012 = vrot.slane %v5008, 5
    %v5014 = vadd.f32 %v4590, %v5012
    %v5015 = vxor.u32 %v5014, 2147483648
    %v5016 = vmul.f32 %v5015, 1.442695
    %v5017 = vpow.pop %v5016
    %v5018 = vadd.f32 %v5017, 1.0
    %v5019 = vrcp.pop %v5018
    %v5020 = vmul.f32 1.0, %v5019
    %v5021 = vadd.f32 %v5008, %v4686
    %v5023 = vrot.slane %v5021, 5
    %5024 = vrot.lane.b32.xlu0 %v5023, 96
    %v5025 = vpop.permute.xlu0 %5024
    %v5027 = vmul.f32 %v5020, %v5025
    %5029 = vrot.lane.b32.xlu0 %v5027, 32
    %v5030 = vpop.permute.xlu0 %5029
    %v5032 = vadd.f32 %v4590, %v5030
    %v5033 = vtanh.pop %v5032
    %v5034 = vsub.f32 1.0, %v5020
    %5036 = vrot.lane.b32.xlu0 %v5033, 112
    %v5037 = vpop.permute.xlu0 %5036
    %v5039 = vmul.f32 %v5034, %v5037
    %v5040 = vrot.slane %v4930, 7
    %v5042 = vmul.f32 %v5020, %v5040
    %v5043 = vadd.f32 %v5039, %v5042
    %5045 = vrot.lane.b32.xlu0 %v5043, 112
    %v5046 = vpop.permute.xlu0 %5045
    %5048 = vst.msk [vmem:[#allocation2] sm:$0x8] %vm1258, %v5046
    %v5049 = vrot.slane %v5043, 3
    %5050 = vrot.lane.b32.xlu0 %v5049, 112
    %v5051 = vpop.permute.xlu0 %5050
    %v5052 = vsel %vm90, %v5051, 0
    %5054 = vmatprep.subr.mxu0 0.0
    %5055 = vmatpush1.msra.mxu0 0.0
    %5056 = vmatprep.subr.mxu0 0.0
    %5057 = vmatpush1.msra.mxu0 0.0
    %5058 = vmatprep.subr.mxu0 0.0
    %5059 = vmatpush1.msra.mxu0 0.0
    %5060 = vmatprep.subr.mxu0 0.0
    %5061 = vmatpush1.msra.mxu0 0.0
    %5062 = vmatprep.subr.mxu0 0.0
    %5063 = vmatpush1.msra.mxu0 0.0
    %5064 = vmatprep.subr.mxu0 0.0
    %5065 = vmatpush1.msra.mxu0 0.0
    %5066 = vmatprep.subr.mxu0 0.0
    %5067 = vmatpush1.msra.mxu0 0.0
    %5068 = vmatprep.subr.mxu0 0.0
    %5069 = vmatpush1.msra.mxu0 0.0
    %5070 = vmatprep.subr.mxu0 0.0
    %5071 = vmatpush1.msra.mxu0 0.0
    %5072 = vmatprep.subr.mxu0 0.0
    %5073 = vmatpush1.msra.mxu0 0.0
    %5074 = vmatprep.subr.mxu0 0.0
    %5075 = vmatpush1.msra.mxu0 0.0
    %5076 = vmatprep.subr.mxu0 0.0
    %5077 = vmatpush1.msra.mxu0 0.0
    %5078 = vmatprep.subr.mxu0 0.0
    %5079 = vmatpush1.msra.mxu0 0.0
    %5080 = vmatprep.subr.mxu0 0.0
    %5081 = vmatpush1.msra.mxu0 0.0
    %5082 = vmatprep.subr.mxu0 0.0
    %5083 = vmatpush1.msra.mxu0 %v4600
    %5084 = vmatprep.subr.mxu0 0.0
    %5085 = vmatpush1.msra.mxu0 %v4599
    %5086 = vmatprep.subr.mxu0 0.0
    %5087 = vmatpush2.msra.mxu0 0.0
    %5088 = vmatprep.subr.mxu0 0.0
    %5089 = vmatpush2.msra.mxu0 0.0
    %5090 = vmatprep.subr.mxu0 0.0
    %5091 = vmatpush2.msra.mxu0 0.0
    %5092 = vmatprep.subr.mxu0 0.0
    %5093 = vmatpush2.msra.mxu0 0.0
    %5094 = vmatprep.subr.mxu0 0.0
    %5095 = vmatpush2.msra.mxu0 0.0
    %5096 = vmatprep.subr.mxu0 0.0
    %5097 = vmatpush2.msra.mxu0 0.0
    %5098 = vmatprep.subr.mxu0 0.0
    %5099 = vmatpush2.msra.mxu0 0.0
    %5100 = vmatprep.subr.mxu0 0.0
    %5101 = vmatpush2.msra.mxu0 0.0
    %5102 = vmatprep.subr.mxu0 0.0
    %5103 = vmatpush2.msra.mxu0 0.0
    %5104 = vmatprep.subr.mxu0 0.0
    %5105 = vmatpush2.msra.mxu0 0.0
    %5106 = vmatprep.subr.mxu0 0.0
    %5107 = vmatpush2.msra.mxu0 0.0
    %5108 = vmatprep.subr.mxu0 0.0
    %5109 = vmatpush2.msra.mxu0 0.0
    %5110 = vmatprep.subr.mxu0 0.0
    %5111 = vmatpush2.msra.mxu0 0.0
    %5112 = vmatprep.subr.mxu0 0.0
    %5113 = vmatpush2.msra.mxu0 0.0
    %5114 = vmatprep.subr.mxu0 0.0
    %5115 = vmatpush2.msra.mxu0 0.0
    %5116 = vmatprep.subr.mxu0 0.0
    %5117 = vmatpush2.msra.mxu0 0.0
    %5118 = vmatprep.mubr.f32.mxu0 0.0
    %5119 = vmatmul.mubr.f32.gmra.mxu0 %v5052
    %v5120 = vpop.f32.mrf.mxu0
    %v5121 = vadd.f32 0.0, %v5120
    %v5122 = vpop.f32.mrf.mxu0
    %5123 = vdwg.mxu0
    %v5125 = vrot.slane %v5121, 4
    %v5127 = vadd.f32 %v4590, %v5125
    %v5128 = vxor.u32 %v5127, 2147483648
    %v5129 = vmul.f32 %v5128, 1.442695
    %v5130 = vpow.pop %v5129
    %v5131 = vadd.f32 %v5130, 1.0
    %v5132 = vrcp.pop %v5131
    %v5133 = vmul.f32 1.0, %v5132
    %v5134 = vadd.f32 %v5121, %v4686
    %v5136 = vrot.slane %v5134, 4
    %5137 = vrot.lane.b32.xlu0 %v5136, 96
    %v5138 = vpop.permute.xlu0 %5137
    %v5140 = vmul.f32 %v5133, %v5138
    %5142 = vrot.lane.b32.xlu0 %v5140, 32
    %v5143 = vpop.permute.xlu0 %5142
    %v5145 = vadd.f32 %v4590, %v5143
    %v5146 = vtanh.pop %v5145
    %v5147 = vsub.f32 1.0, %v5133
    %5149 = vrot.lane.b32.xlu0 %v5146, 112
    %v5150 = vpop.permute.xlu0 %5149
    %v5152 = vmul.f32 %v5147, %v5150
    %v5153 = vrot.slane %v5043, 7
    %v5155 = vmul.f32 %v5133, %v5153
    %v5156 = vadd.f32 %v5152, %v5155
    %5158 = vrot.lane.b32.xlu0 %v5156, 112
    %v5159 = vpop.permute.xlu0 %5158
    %5161 = vst.msk [vmem:[#allocation2] sm:$0x10] %vm1372, %v5159
    %v5162 = vrot.slane %v5156, 4
    %5163 = vrot.lane.b32.xlu0 %v5162, 112
    %v5164 = vpop.permute.xlu0 %5163
    %v5165 = vsel %vm90, %v5164, 0
    %5167 = vmatprep.subr.mxu0 0.0
    %5168 = vmatpush1.msra.mxu0 0.0
    %5169 = vmatprep.subr.mxu0 0.0
    %5170 = vmatpush1.msra.mxu0 0.0
    %5171 = vmatprep.subr.mxu0 0.0
    %5172 = vmatpush1.msra.mxu0 0.0
    %5173 = vmatprep.subr.mxu0 0.0
    %5174 = vmatpush1.msra.mxu0 0.0
    %5175 = vmatprep.subr.mxu0 0.0
    %5176 = vmatpush1.msra.mxu0 0.0
    %5177 = vmatprep.subr.mxu0 0.0
    %5178 = vmatpush1.msra.mxu0 0.0
    %5179 = vmatprep.subr.mxu0 0.0
    %5180 = vmatpush1.msra.mxu0 0.0
    %5181 = vmatprep.subr.mxu0 0.0
    %5182 = vmatpush1.msra.mxu0 0.0
    %5183 = vmatprep.subr.mxu0 0.0
    %5184 = vmatpush1.msra.mxu0 0.0
    %5185 = vmatprep.subr.mxu0 0.0
    %5186 = vmatpush1.msra.mxu0 0.0
    %5187 = vmatprep.subr.mxu0 0.0
    %5188 = vmatpush1.msra.mxu0 0.0
    %5189 = vmatprep.subr.mxu0 0.0
    %5190 = vmatpush1.msra.mxu0 0.0
    %5191 = vmatprep.subr.mxu0 0.0
    %5192 = vmatpush1.msra.mxu0 0.0
    %5193 = vmatprep.subr.mxu0 0.0
    %5194 = vmatpush1.msra.mxu0 0.0
    %5195 = vmatprep.subr.mxu0 0.0
    %5196 = vmatpush1.msra.mxu0 %v4600
    %5197 = vmatprep.subr.mxu0 0.0
    %5198 = vmatpush1.msra.mxu0 %v4599
    %5199 = vmatprep.subr.mxu0 0.0
    %5200 = vmatpush2.msra.mxu0 0.0
    %5201 = vmatprep.subr.mxu0 0.0
    %5202 = vmatpush2.msra.mxu0 0.0
    %5203 = vmatprep.subr.mxu0 0.0
    %5204 = vmatpush2.msra.mxu0 0.0
    %5205 = vmatprep.subr.mxu0 0.0
    %5206 = vmatpush2.msra.mxu0 0.0
    %5207 = vmatprep.subr.mxu0 0.0
    %5208 = vmatpush2.msra.mxu0 0.0
    %5209 = vmatprep.subr.mxu0 0.0
    %5210 = vmatpush2.msra.mxu0 0.0
    %5211 = vmatprep.subr.mxu0 0.0
    %5212 = vmatpush2.msra.mxu0 0.0
    %5213 = vmatprep.subr.mxu0 0.0
    %5214 = vmatpush2.msra.mxu0 0.0
    %5215 = vmatprep.subr.mxu0 0.0
    %5216 = vmatpush2.msra.mxu0 0.0
    %5217 = vmatprep.subr.mxu0 0.0
    %5218 = vmatpush2.msra.mxu0 0.0
    %5219 = vmatprep.subr.mxu0 0.0
    %5220 = vmatpush2.msra.mxu0 0.0
    %5221 = vmatprep.subr.mxu0 0.0
    %5222 = vmatpush2.msra.mxu0 0.0
    %5223 = vmatprep.subr.mxu0 0.0
    %5224 = vmatpush2.msra.mxu0 0.0
    %5225 = vmatprep.subr.mxu0 0.0
    %5226 = vmatpush2.msra.mxu0 0.0
    %5227 = vmatprep.subr.mxu0 0.0
    %5228 = vmatpush2.msra.mxu0 0.0
    %5229 = vmatprep.subr.mxu0 0.0
    %5230 = vmatpush2.msra.mxu0 0.0
    %5231 = vmatprep.mubr.f32.mxu0 0.0
    %5232 = vmatmul.mubr.f32.gmra.mxu0 %v5165
    %v5233 = vpop.f32.mrf.mxu0
    %v5234 = vadd.f32 0.0, %v5233
    %v5235 = vpop.f32.mrf.mxu0
    %5236 = vdwg.mxu0
    %v5238 = vrot.slane %v5234, 3
    %v5240 = vadd.f32 %v4590, %v5238
    %v5241 = vxor.u32 %v5240, 2147483648
    %v5242 = vmul.f32 %v5241, 1.442695
    %v5243 = vpow.pop %v5242
    %v5244 = vadd.f32 %v5243, 1.0
    %v5245 = vrcp.pop %v5244
    %v5246 = vmul.f32 1.0, %v5245
    %v5247 = vadd.f32 %v5234, %v4686
    %v5249 = vrot.slane %v5247, 3
    %5250 = vrot.lane.b32.xlu0 %v5249, 96
    %v5251 = vpop.permute.xlu0 %5250
    %v5253 = vmul.f32 %v5246, %v5251
    %5255 = vrot.lane.b32.xlu0 %v5253, 32
    %v5256 = vpop.permute.xlu0 %5255
    %v5258 = vadd.f32 %v4590, %v5256
    %v5259 = vtanh.pop %v5258
    %v5260 = vsub.f32 1.0, %v5246
    %5262 = vrot.lane.b32.xlu0 %v5259, 112
    %v5263 = vpop.permute.xlu0 %5262
    %v5265 = vmul.f32 %v5260, %v5263
    %v5266 = vrot.slane %v5156, 7
    %v5268 = vmul.f32 %v5246, %v5266
    %v5269 = vadd.f32 %v5265, %v5268
    %5271 = vrot.lane.b32.xlu0 %v5269, 112
    %v5272 = vpop.permute.xlu0 %5271
    %5274 = vst.msk [vmem:[#allocation2] sm:$0x20] %vm1486, %v5272
    %v5275 = vrot.slane %v5269, 5
    %5276 = vrot.lane.b32.xlu0 %v5275, 112
    %v5277 = vpop.permute.xlu0 %5276
    %v5278 = vsel %vm90, %v5277, 0
    %5280 = vmatprep.subr.mxu0 0.0
    %5281 = vmatpush1.msra.mxu0 0.0
    %5282 = vmatprep.subr.mxu0 0.0
    %5283 = vmatpush1.msra.mxu0 0.0
    %5284 = vmatprep.subr.mxu0 0.0
    %5285 = vmatpush1.msra.mxu0 0.0
    %5286 = vmatprep.subr.mxu0 0.0
    %5287 = vmatpush1.msra.mxu0 0.0
    %5288 = vmatprep.subr.mxu0 0.0
    %5289 = vmatpush1.msra.mxu0 0.0
    %5290 = vmatprep.subr.mxu0 0.0
    %5291 = vmatpush1.msra.mxu0 0.0
    %5292 = vmatprep.subr.mxu0 0.0
    %5293 = vmatpush1.msra.mxu0 0.0
    %5294 = vmatprep.subr.mxu0 0.0
    %5295 = vmatpush1.msra.mxu0 0.0
    %5296 = vmatprep.subr.mxu0 0.0
    %5297 = vmatpush1.msra.mxu0 0.0
    %5298 = vmatprep.subr.mxu0 0.0
    %5299 = vmatpush1.msra.mxu0 0.0
    %5300 = vmatprep.subr.mxu0 0.0
    %5301 = vmatpush1.msra.mxu0 0.0
    %5302 = vmatprep.subr.mxu0 0.0
    %5303 = vmatpush1.msra.mxu0 0.0
    %5304 = vmatprep.subr.mxu0 0.0
    %5305 = vmatpush1.msra.mxu0 0.0
    %5306 = vmatprep.subr.mxu0 0.0
    %5307 = vmatpush1.msra.mxu0 0.0
    %5308 = vmatprep.subr.mxu0 0.0
    %5309 = vmatpush1.msra.mxu0 %v4600
    %5310 = vmatprep.subr.mxu0 0.0
    %5311 = vmatpush1.msra.mxu0 %v4599
    %5312 = vmatprep.subr.mxu0 0.0
    %5313 = vmatpush2.msra.mxu0 0.0
    %5314 = vmatprep.subr.mxu0 0.0
    %5315 = vmatpush2.msra.mxu0 0.0
    %5316 = vmatprep.subr.mxu0 0.0
    %5317 = vmatpush2.msra.mxu0 0.0
    %5318 = vmatprep.subr.mxu0 0.0
    %5319 = vmatpush2.msra.mxu0 0.0
    %5320 = vmatprep.subr.mxu0 0.0
    %5321 = vmatpush2.msra.mxu0 0.0
    %5322 = vmatprep.subr.mxu0 0.0
    %5323 = vmatpush2.msra.mxu0 0.0
    %5324 = vmatprep.subr.mxu0 0.0
    %5325 = vmatpush2.msra.mxu0 0.0
    %5326 = vmatprep.subr.mxu0 0.0
    %5327 = vmatpush2.msra.mxu0 0.0
    %5328 = vmatprep.subr.mxu0 0.0
    %5329 = vmatpush2.msra.mxu0 0.0
    %5330 = vmatprep.subr.mxu0 0.0
    %5331 = vmatpush2.msra.mxu0 0.0
    %5332 = vmatprep.subr.mxu0 0.0
    %5333 = vmatpush2.msra.mxu0 0.0
    %5334 = vmatprep.subr.mxu0 0.0
    %5335 = vmatpush2.msra.mxu0 0.0
    %5336 = vmatprep.subr.mxu0 0.0
    %5337 = vmatpush2.msra.mxu0 0.0
    %5338 = vmatprep.subr.mxu0 0.0
    %5339 = vmatpush2.msra.mxu0 0.0
    %5340 = vmatprep.subr.mxu0 0.0
    %5341 = vmatpush2.msra.mxu0 0.0
    %5342 = vmatprep.subr.mxu0 0.0
    %5343 = vmatpush2.msra.mxu0 0.0
    %5344 = vmatprep.mubr.f32.mxu0 0.0
    %5345 = vmatmul.mubr.f32.gmra.mxu0 %v5278
    %v5346 = vpop.f32.mrf.mxu0
    %v5347 = vadd.f32 0.0, %v5346
    %v5348 = vpop.f32.mrf.mxu0
    %5349 = vdwg.mxu0
    %v5351 = vrot.slane %v5347, 2
    %v5353 = vadd.f32 %v4590, %v5351
    %v5354 = vxor.u32 %v5353, 2147483648
    %v5355 = vmul.f32 %v5354, 1.442695
    %v5356 = vpow.pop %v5355
    %v5357 = vadd.f32 %v5356, 1.0
    %v5358 = vrcp.pop %v5357
    %v5359 = vmul.f32 1.0, %v5358
    %v5360 = vadd.f32 %v5347, %v4686
    %v5362 = vrot.slane %v5360, 2
    %5363 = vrot.lane.b32.xlu0 %v5362, 96
    %v5364 = vpop.permute.xlu0 %5363
    %v5366 = vmul.f32 %v5359, %v5364
    %5368 = vrot.lane.b32.xlu0 %v5366, 32
    %v5369 = vpop.permute.xlu0 %5368
    %v5371 = vadd.f32 %v4590, %v5369
    %v5372 = vtanh.pop %v5371
    %v5373 = vsub.f32 1.0, %v5359
    %5375 = vrot.lane.b32.xlu0 %v5372, 112
    %v5376 = vpop.permute.xlu0 %5375
    %v5378 = vmul.f32 %v5373, %v5376
    %v5379 = vrot.slane %v5269, 7
    %v5381 = vmul.f32 %v5359, %v5379
    %v5382 = vadd.f32 %v5378, %v5381
    %5384 = vrot.lane.b32.xlu0 %v5382, 112
    %v5385 = vpop.permute.xlu0 %5384
    %5387 = vst.msk [vmem:[#allocation2] sm:$0x40] %vm1600, %v5385
    %v5388 = vrot.slane %v5382, 6
    %5389 = vrot.lane.b32.xlu0 %v5388, 112
    %v5390 = vpop.permute.xlu0 %5389
    %v5391 = vsel %vm90, %v5390, 0
    %5393 = vmatprep.subr.mxu0 0.0
    %5394 = vmatpush1.msra.mxu0 0.0
    %5395 = vmatprep.subr.mxu0 0.0
    %5396 = vmatpush1.msra.mxu0 0.0
    %5397 = vmatprep.subr.mxu0 0.0
    %5398 = vmatpush1.msra.mxu0 0.0
    %5399 = vmatprep.subr.mxu0 0.0
    %5400 = vmatpush1.msra.mxu0 0.0
    %5401 = vmatprep.subr.mxu0 0.0
    %5402 = vmatpush1.msra.mxu0 0.0
    %5403 = vmatprep.subr.mxu0 0.0
    %5404 = vmatpush1.msra.mxu0 0.0
    %5405 = vmatprep.subr.mxu0 0.0
    %5406 = vmatpush1.msra.mxu0 0.0
    %5407 = vmatprep.subr.mxu0 0.0
    %5408 = vmatpush1.msra.mxu0 0.0
    %5409 = vmatprep.subr.mxu0 0.0
    %5410 = vmatpush1.msra.mxu0 0.0
    %5411 = vmatprep.subr.mxu0 0.0
    %5412 = vmatpush1.msra.mxu0 0.0
    %5413 = vmatprep.subr.mxu0 0.0
    %5414 = vmatpush1.msra.mxu0 0.0
    %5415 = vmatprep.subr.mxu0 0.0
    %5416 = vmatpush1.msra.mxu0 0.0
    %5417 = vmatprep.subr.mxu0 0.0
    %5418 = vmatpush1.msra.mxu0 0.0
    %5419 = vmatprep.subr.mxu0 0.0
    %5420 = vmatpush1.msra.mxu0 0.0
    %5421 = vmatprep.subr.mxu0 0.0
    %5422 = vmatpush1.msra.mxu0 %v4600
    %5423 = vmatprep.subr.mxu0 0.0
    %5424 = vmatpush1.msra.mxu0 %v4599
    %5425 = vmatprep.subr.mxu0 0.0
    %5426 = vmatpush2.msra.mxu0 0.0
    %5427 = vmatprep.subr.mxu0 0.0
    %5428 = vmatpush2.msra.mxu0 0.0
    %5429 = vmatprep.subr.mxu0 0.0
    %5430 = vmatpush2.msra.mxu0 0.0
    %5431 = vmatprep.subr.mxu0 0.0
    %5432 = vmatpush2.msra.mxu0 0.0
    %5433 = vmatprep.subr.mxu0 0.0
    %5434 = vmatpush2.msra.mxu0 0.0
    %5435 = vmatprep.subr.mxu0 0.0
    %5436 = vmatpush2.msra.mxu0 0.0
    %5437 = vmatprep.subr.mxu0 0.0
    %5438 = vmatpush2.msra.mxu0 0.0
    %5439 = vmatprep.subr.mxu0 0.0
    %5440 = vmatpush2.msra.mxu0 0.0
    %5441 = vmatprep.subr.mxu0 0.0
    %5442 = vmatpush2.msra.mxu0 0.0
    %5443 = vmatprep.subr.mxu0 0.0
    %5444 = vmatpush2.msra.mxu0 0.0
    %5445 = vmatprep.subr.mxu0 0.0
    %5446 = vmatpush2.msra.mxu0 0.0
    %5447 = vmatprep.subr.mxu0 0.0
    %5448 = vmatpush2.msra.mxu0 0.0
    %5449 = vmatprep.subr.mxu0 0.0
    %5450 = vmatpush2.msra.mxu0 0.0
    %5451 = vmatprep.subr.mxu0 0.0
    %5452 = vmatpush2.msra.mxu0 0.0
    %5453 = vmatprep.subr.mxu0 0.0
    %5454 = vmatpush2.msra.mxu0 0.0
    %5455 = vmatprep.subr.mxu0 0.0
    %5456 = vmatpush2.msra.mxu0 0.0
    %5457 = vmatprep.mubr.f32.mxu0 0.0
    %5458 = vmatmul.mubr.f32.gmra.mxu0 %v5391
    %v5459 = vpop.f32.mrf.mxu0
    %v5460 = vadd.f32 0.0, %v5459
    %v5461 = vpop.f32.mrf.mxu0
    %5462 = vdwg.mxu0
    %v5464 = vrot.slane %v5460, 1
    %v5466 = vadd.f32 %v4590, %v5464
    %v5467 = vxor.u32 %v5466, 2147483648
    %v5468 = vmul.f32 %v5467, 1.442695
    %v5469 = vpow.pop %v5468
    %v5470 = vadd.f32 %v5469, 1.0
    %v5471 = vrcp.pop %v5470
    %v5472 = vmul.f32 1.0, %v5471
    %v5473 = vadd.f32 %v5460, %v4686
    %v5475 = vrot.slane %v5473, 1
    %5476 = vrot.lane.b32.xlu0 %v5475, 96
    %v5477 = vpop.permute.xlu0 %5476
    %v5479 = vmul.f32 %v5472, %v5477
    %5481 = vrot.lane.b32.xlu0 %v5479, 32
    %v5482 = vpop.permute.xlu0 %5481
    %v5484 = vadd.f32 %v4590, %v5482
    %v5485 = vtanh.pop %v5484
    %v5486 = vsub.f32 1.0, %v5472
    %5488 = vrot.lane.b32.xlu0 %v5485, 112
    %v5489 = vpop.permute.xlu0 %5488
    %v5491 = vmul.f32 %v5486, %v5489
    %v5492 = vrot.slane %v5382, 7
    %v5494 = vmul.f32 %v5472, %v5492
    %v5495 = vadd.f32 %v5491, %v5494
    %5497 = vrot.lane.b32.xlu0 %v5495, 112
    %v5498 = vpop.permute.xlu0 %5497
    %5500 = vst.msk [vmem:[#allocation2] sm:$0x80] %vm1714, %v5498
    %v5501 = vrot.slane %v5495, 7
    %5502 = vrot.lane.b32.xlu0 %v5501, 112
    %v5503 = vpop.permute.xlu0 %5502
    %v5504 = vsel %vm90, %v5503, 0
    %5506 = vmatprep.subr.mxu0 0.0
    %5507 = vmatpush1.msra.mxu0 0.0
    %5508 = vmatprep.subr.mxu0 0.0
    %5509 = vmatpush1.msra.mxu0 0.0
    %5510 = vmatprep.subr.mxu0 0.0
    %5511 = vmatpush1.msra.mxu0 0.0
    %5512 = vmatprep.subr.mxu0 0.0
    %5513 = vmatpush1.msra.mxu0 0.0
    %5514 = vmatprep.subr.mxu0 0.0
    %5515 = vmatpush1.msra.mxu0 0.0
    %5516 = vmatprep.subr.mxu0 0.0
    %5517 = vmatpush1.msra.mxu0 0.0
    %5518 = vmatprep.subr.mxu0 0.0
    %5519 = vmatpush1.msra.mxu0 0.0
    %5520 = vmatprep.subr.mxu0 0.0
    %5521 = vmatpush1.msra.mxu0 0.0
    %5522 = vmatprep.subr.mxu0 0.0
    %5523 = vmatpush1.msra.mxu0 0.0
    %5524 = vmatprep.subr.mxu0 0.0
    %5525 = vmatpush1.msra.mxu0 0.0
    %5526 = vmatprep.subr.mxu0 0.0
    %5527 = vmatpush1.msra.mxu0 0.0
    %5528 = vmatprep.subr.mxu0 0.0
    %5529 = vmatpush1.msra.mxu0 0.0
    %5530 = vmatprep.subr.mxu0 0.0
    %5531 = vmatpush1.msra.mxu0 0.0
    %5532 = vmatprep.subr.mxu0 0.0
    %5533 = vmatpush1.msra.mxu0 0.0
    %5534 = vmatprep.subr.mxu0 0.0
    %5535 = vmatpush1.msra.mxu0 %v4600
    %5536 = vmatprep.subr.mxu0 0.0
    %5537 = vmatpush1.msra.mxu0 %v4599
    %5538 = vmatprep.subr.mxu0 0.0
    %5539 = vmatpush2.msra.mxu0 0.0
    %5540 = vmatprep.subr.mxu0 0.0
    %5541 = vmatpush2.msra.mxu0 0.0
    %5542 = vmatprep.subr.mxu0 0.0
    %5543 = vmatpush2.msra.mxu0 0.0
    %5544 = vmatprep.subr.mxu0 0.0
    %5545 = vmatpush2.msra.mxu0 0.0
    %5546 = vmatprep.subr.mxu0 0.0
    %5547 = vmatpush2.msra.mxu0 0.0
    %5548 = vmatprep.subr.mxu0 0.0
    %5549 = vmatpush2.msra.mxu0 0.0
    %5550 = vmatprep.subr.mxu0 0.0
    %5551 = vmatpush2.msra.mxu0 0.0
    %5552 = vmatprep.subr.mxu0 0.0
    %5553 = vmatpush2.msra.mxu0 0.0
    %5554 = vmatprep.subr.mxu0 0.0
    %5555 = vmatpush2.msra.mxu0 0.0
    %5556 = vmatprep.subr.mxu0 0.0
    %5557 = vmatpush2.msra.mxu0 0.0
    %5558 = vmatprep.subr.mxu0 0.0
    %5559 = vmatpush2.msra.mxu0 0.0
    %5560 = vmatprep.subr.mxu0 0.0
    %5561 = vmatpush2.msra.mxu0 0.0
    %5562 = vmatprep.subr.mxu0 0.0
    %5563 = vmatpush2.msra.mxu0 0.0
    %5564 = vmatprep.subr.mxu0 0.0
    %5565 = vmatpush2.msra.mxu0 0.0
    %5566 = vmatprep.subr.mxu0 0.0
    %5567 = vmatpush2.msra.mxu0 0.0
    %5568 = vmatprep.subr.mxu0 0.0
    %5569 = vmatpush2.msra.mxu0 0.0
    %5570 = vmatprep.mubr.f32.mxu0 0.0
    %5571 = vmatmul.mubr.f32.gmra.mxu0 %v5504
    %v5572 = vpop.f32.mrf.mxu0
    %v5573 = vadd.f32 0.0, %v5572
    %v5574 = vpop.f32.mrf.mxu0
    %5575 = vdwg.mxu0
    %v5576 = vadd.f32 %v4595, %v5573
    %v5577 = vxor.u32 %v5576, 2147483648
    %v5578 = vmul.f32 %v5577, 1.442695
    %v5579 = vpow.pop %v5578
    %v5580 = vadd.f32 %v5579, 1.0
    %v5581 = vrcp.pop %v5580
    %v5582 = vmul.f32 1.0, %v5581
    %v5583 = vadd.f32 %v5573, %v4686
    %5585 = vrot.lane.b32.xlu0 %v5583, 96
    %v5586 = vpop.permute.xlu0 %5585
    %v5588 = vmul.f32 %v5582, %v5586
    %5590 = vrot.lane.b32.xlu0 %v5588, 32
    %v5591 = vpop.permute.xlu0 %5590
    %v5593 = vadd.f32 %v4595, %v5591
    %v5594 = vtanh.pop %v5593
    %v5595 = vsub.f32 1.0, %v5582
    %5597 = vrot.lane.b32.xlu0 %v5594, 112
    %v5598 = vpop.permute.xlu0 %5597
    %v5600 = vmul.f32 %v5595, %v5598
    %v5602 = vmul.f32 %v5582, %v5501
    %v5603 = vadd.f32 %v5600, %v5602
    %5605 = vrot.lane.b32.xlu0 %v5603, 112
    %v5606 = vpop.permute.xlu0 %5605
    %5608 = vst.msk [vmem:[#allocation2 + $0x8] sm:$0x1] %vm919, %v5606
    %v5609 = vsel %vm90, %v5606, 0
    %5611 = vmatprep.subr.mxu0 0.0
    %5612 = vmatpush1.msra.mxu0 0.0
    %5613 = vmatprep.subr.mxu0 0.0
    %5614 = vmatpush1.msra.mxu0 0.0
    %5615 = vmatprep.subr.mxu0 0.0
    %5616 = vmatpush1.msra.mxu0 0.0
    %5617 = vmatprep.subr.mxu0 0.0
    %5618 = vmatpush1.msra.mxu0 0.0
    %5619 = vmatprep.subr.mxu0 0.0
    %5620 = vmatpush1.msra.mxu0 0.0
    %5621 = vmatprep.subr.mxu0 0.0
    %5622 = vmatpush1.msra.mxu0 0.0
    %5623 = vmatprep.subr.mxu0 0.0
    %5624 = vmatpush1.msra.mxu0 0.0
    %5625 = vmatprep.subr.mxu0 0.0
    %5626 = vmatpush1.msra.mxu0 0.0
    %5627 = vmatprep.subr.mxu0 0.0
    %5628 = vmatpush1.msra.mxu0 0.0
    %5629 = vmatprep.subr.mxu0 0.0
    %5630 = vmatpush1.msra.mxu0 0.0
    %5631 = vmatprep.subr.mxu0 0.0
    %5632 = vmatpush1.msra.mxu0 0.0
    %5633 = vmatprep.subr.mxu0 0.0
    %5634 = vmatpush1.msra.mxu0 0.0
    %5635 = vmatprep.subr.mxu0 0.0
    %5636 = vmatpush1.msra.mxu0 0.0
    %5637 = vmatprep.subr.mxu0 0.0
    %5638 = vmatpush1.msra.mxu0 0.0
    %5639 = vmatprep.subr.mxu0 0.0
    %5640 = vmatpush1.msra.mxu0 %v4600
    %5641 = vmatprep.subr.mxu0 0.0
    %5642 = vmatpush1.msra.mxu0 %v4599
    %5643 = vmatprep.subr.mxu0 0.0
    %5644 = vmatpush2.msra.mxu0 0.0
    %5645 = vmatprep.subr.mxu0 0.0
    %5646 = vmatpush2.msra.mxu0 0.0
    %5647 = vmatprep.subr.mxu0 0.0
    %5648 = vmatpush2.msra.mxu0 0.0
    %5649 = vmatprep.subr.mxu0 0.0
    %5650 = vmatpush2.msra.mxu0 0.0
    %5651 = vmatprep.subr.mxu0 0.0
    %5652 = vmatpush2.msra.mxu0 0.0
    %5653 = vmatprep.subr.mxu0 0.0
    %5654 = vmatpush2.msra.mxu0 0.0
    %5655 = vmatprep.subr.mxu0 0.0
    %5656 = vmatpush2.msra.mxu0 0.0
    %5657 = vmatprep.subr.mxu0 0.0
    %5658 = vmatpush2.msra.mxu0 0.0
    %5659 = vmatprep.subr.mxu0 0.0
    %5660 = vmatpush2.msra.mxu0 0.0
    %5661 = vmatprep.subr.mxu0 0.0
    %5662 = vmatpush2.msra.mxu0 0.0
    %5663 = vmatprep.subr.mxu0 0.0
    %5664 = vmatpush2.msra.mxu0 0.0
    %5665 = vmatprep.subr.mxu0 0.0
    %5666 = vmatpush2.msra.mxu0 0.0
    %5667 = vmatprep.subr.mxu0 0.0
    %5668 = vmatpush2.msra.mxu0 0.0
    %5669 = vmatprep.subr.mxu0 0.0
    %5670 = vmatpush2.msra.mxu0 0.0
    %5671 = vmatprep.subr.mxu0 0.0
    %5672 = vmatpush2.msra.mxu0 0.0
    %5673 = vmatprep.subr.mxu0 0.0
    %5674 = vmatpush2.msra.mxu0 0.0
    %5675 = vmatprep.mubr.f32.mxu0 0.0
    %5676 = vmatmul.mubr.f32.gmra.mxu0 %v5609
    %v5677 = vpop.f32.mrf.mxu0
    %v5678 = vadd.f32 0.0, %v5677
    %v5679 = vpop.f32.mrf.mxu0
    %5680 = vdwg.mxu0
    %v5682 = vrot.slane %v5678, 7
    %v5684 = vadd.f32 %v4595, %v5682
    %v5685 = vxor.u32 %v5684, 2147483648
    %v5686 = vmul.f32 %v5685, 1.442695
    %v5687 = vpow.pop %v5686
    %v5688 = vadd.f32 %v5687, 1.0
    %v5689 = vrcp.pop %v5688
    %v5690 = vmul.f32 1.0, %v5689
    %v5691 = vadd.f32 %v5678, %v4686
    %v5693 = vrot.slane %v5691, 7
    %5694 = vrot.lane.b32.xlu0 %v5693, 96
    %v5695 = vpop.permute.xlu0 %5694
    %v5697 = vmul.f32 %v5690, %v5695
    %5699 = vrot.lane.b32.xlu0 %v5697, 32
    %v5700 = vpop.permute.xlu0 %5699
    %v5702 = vadd.f32 %v4595, %v5700
    %v5703 = vtanh.pop %v5702
    %v5704 = vsub.f32 1.0, %v5690
    %5706 = vrot.lane.b32.xlu0 %v5703, 112
    %v5707 = vpop.permute.xlu0 %5706
    %v5709 = vmul.f32 %v5704, %v5707
    %v5710 = vrot.slane %v5603, 7
    %v5712 = vmul.f32 %v5690, %v5710
    %v5713 = vadd.f32 %v5709, %v5712
    %5715 = vrot.lane.b32.xlu0 %v5713, 112
    %v5716 = vpop.permute.xlu0 %5715
    %5718 = vst.msk [vmem:[#allocation2 + $0x8] sm:$0x2] %vm1030, %v5716
    %v5719 = vrot.slane %v5713, 1
    %5720 = vrot.lane.b32.xlu0 %v5719, 112
    %v5721 = vpop.permute.xlu0 %5720
    %v5722 = vsel %vm90, %v5721, 0
    %5724 = vmatprep.subr.mxu0 0.0
    %5725 = vmatpush1.msra.mxu0 0.0
    %5726 = vmatprep.subr.mxu0 0.0
    %5727 = vmatpush1.msra.mxu0 0.0
    %5728 = vmatprep.subr.mxu0 0.0
    %5729 = vmatpush1.msra.mxu0 0.0
    %5730 = vmatprep.subr.mxu0 0.0
    %5731 = vmatpush1.msra.mxu0 0.0
    %5732 = vmatprep.subr.mxu0 0.0
    %5733 = vmatpush1.msra.mxu0 0.0
    %5734 = vmatprep.subr.mxu0 0.0
    %5735 = vmatpush1.msra.mxu0 0.0
    %5736 = vmatprep.subr.mxu0 0.0
    %5737 = vmatpush1.msra.mxu0 0.0
    %5738 = vmatprep.subr.mxu0 0.0
    %5739 = vmatpush1.msra.mxu0 0.0
    %5740 = vmatprep.subr.mxu0 0.0
    %5741 = vmatpush1.msra.mxu0 0.0
    %5742 = vmatprep.subr.mxu0 0.0
    %5743 = vmatpush1.msra.mxu0 0.0
    %5744 = vmatprep.subr.mxu0 0.0
    %5745 = vmatpush1.msra.mxu0 0.0
    %5746 = vmatprep.subr.mxu0 0.0
    %5747 = vmatpush1.msra.mxu0 0.0
    %5748 = vmatprep.subr.mxu0 0.0
    %5749 = vmatpush1.msra.mxu0 0.0
    %5750 = vmatprep.subr.mxu0 0.0
    %5751 = vmatpush1.msra.mxu0 0.0
    %5752 = vmatprep.subr.mxu0 0.0
    %5753 = vmatpush1.msra.mxu0 %v4600
    %5754 = vmatprep.subr.mxu0 0.0
    %5755 = vmatpush1.msra.mxu0 %v4599
    %5756 = vmatprep.subr.mxu0 0.0
    %5757 = vmatpush2.msra.mxu0 0.0
    %5758 = vmatprep.subr.mxu0 0.0
    %5759 = vmatpush2.msra.mxu0 0.0
    %5760 = vmatprep.subr.mxu0 0.0
    %5761 = vmatpush2.msra.mxu0 0.0
    %5762 = vmatprep.subr.mxu0 0.0
    %5763 = vmatpush2.msra.mxu0 0.0
    %5764 = vmatprep.subr.mxu0 0.0
    %5765 = vmatpush2.msra.mxu0 0.0
    %5766 = vmatprep.subr.mxu0 0.0
    %5767 = vmatpush2.msra.mxu0 0.0
    %5768 = vmatprep.subr.mxu0 0.0
    %5769 = vmatpush2.msra.mxu0 0.0
    %5770 = vmatprep.subr.mxu0 0.0
    %5771 = vmatpush2.msra.mxu0 0.0
    %5772 = vmatprep.subr.mxu0 0.0
    %5773 = vmatpush2.msra.mxu0 0.0
    %5774 = vmatprep.subr.mxu0 0.0
    %5775 = vmatpush2.msra.mxu0 0.0
    %5776 = vmatprep.subr.mxu0 0.0
    %5777 = vmatpush2.msra.mxu0 0.0
    %5778 = vmatprep.subr.mxu0 0.0
    %5779 = vmatpush2.msra.mxu0 0.0
    %5780 = vmatprep.subr.mxu0 0.0
    %5781 = vmatpush2.msra.mxu0 0.0
    %5782 = vmatprep.subr.mxu0 0.0
    %5783 = vmatpush2.msra.mxu0 0.0
    %5784 = vmatprep.subr.mxu0 0.0
    %5785 = vmatpush2.msra.mxu0 0.0
    %5786 = vmatprep.subr.mxu0 0.0
    %5787 = vmatpush2.msra.mxu0 0.0
    %5788 = vmatprep.mubr.f32.mxu0 0.0
    %5789 = vmatmul.mubr.f32.gmra.mxu0 %v5722
    %v5790 = vpop.f32.mrf.mxu0
    %v5791 = vadd.f32 0.0, %v5790
    %v5792 = vpop.f32.mrf.mxu0
    %5793 = vdwg.mxu0
    %v5795 = vrot.slane %v5791, 6
    %v5797 = vadd.f32 %v4595, %v5795
    %v5798 = vxor.u32 %v5797, 2147483648
    %v5799 = vmul.f32 %v5798, 1.442695
    %v5800 = vpow.pop %v5799
    %v5801 = vadd.f32 %v5800, 1.0
    %v5802 = vrcp.pop %v5801
    %v5803 = vmul.f32 1.0, %v5802
    %v5804 = vadd.f32 %v5791, %v4686
    %v5806 = vrot.slane %v5804, 6
    %5807 = vrot.lane.b32.xlu0 %v5806, 96
    %v5808 = vpop.permute.xlu0 %5807
    %v5810 = vmul.f32 %v5803, %v5808
    %5812 = vrot.lane.b32.xlu0 %v5810, 32
    %v5813 = vpop.permute.xlu0 %5812
    %v5815 = vadd.f32 %v4595, %v5813
    %v5816 = vtanh.pop %v5815
    %v5817 = vsub.f32 1.0, %v5803
    %5819 = vrot.lane.b32.xlu0 %v5816, 112
    %v5820 = vpop.permute.xlu0 %5819
    %v5822 = vmul.f32 %v5817, %v5820
    %v5823 = vrot.slane %v5713, 7
    %v5825 = vmul.f32 %v5803, %v5823
    %v5826 = vadd.f32 %v5822, %v5825
    %5828 = vrot.lane.b32.xlu0 %v5826, 112
    %v5829 = vpop.permute.xlu0 %5828
    %5831 = vst.msk [vmem:[#allocation2 + $0x8] sm:$0x4] %vm1144, %v5829
    %v5832 = vrot.slane %v5826, 2
    %5833 = vrot.lane.b32.xlu0 %v5832, 112
    %v5834 = vpop.permute.xlu0 %5833
    %v5835 = vsel %vm90, %v5834, 0
    %5837 = vmatprep.subr.mxu0 0.0
    %5838 = vmatpush1.msra.mxu0 0.0
    %5839 = vmatprep.subr.mxu0 0.0
    %5840 = vmatpush1.msra.mxu0 0.0
    %5841 = vmatprep.subr.mxu0 0.0
    %5842 = vmatpush1.msra.mxu0 0.0
    %5843 = vmatprep.subr.mxu0 0.0
    %5844 = vmatpush1.msra.mxu0 0.0
    %5845 = vmatprep.subr.mxu0 0.0
    %5846 = vmatpush1.msra.mxu0 0.0
    %5847 = vmatprep.subr.mxu0 0.0
    %5848 = vmatpush1.msra.mxu0 0.0
    %5849 = vmatprep.subr.mxu0 0.0
    %5850 = vmatpush1.msra.mxu0 0.0
    %5851 = vmatprep.subr.mxu0 0.0
    %5852 = vmatpush1.msra.mxu0 0.0
    %5853 = vmatprep.subr.mxu0 0.0
    %5854 = vmatpush1.msra.mxu0 0.0
    %5855 = vmatprep.subr.mxu0 0.0
    %5856 = vmatpush1.msra.mxu0 0.0
    %5857 = vmatprep.subr.mxu0 0.0
    %5858 = vmatpush1.msra.mxu0 0.0
    %5859 = vmatprep.subr.mxu0 0.0
    %5860 = vmatpush1.msra.mxu0 0.0
    %5861 = vmatprep.subr.mxu0 0.0
    %5862 = vmatpush1.msra.mxu0 0.0
    %5863 = vmatprep.subr.mxu0 0.0
    %5864 = vmatpush1.msra.mxu0 0.0
    %5865 = vmatprep.subr.mxu0 0.0
    %5866 = vmatpush1.msra.mxu0 %v4600
    %5867 = vmatprep.subr.mxu0 0.0
    %5868 = vmatpush1.msra.mxu0 %v4599
    %5869 = vmatprep.subr.mxu0 0.0
    %5870 = vmatpush2.msra.mxu0 0.0
    %5871 = vmatprep.subr.mxu0 0.0
    %5872 = vmatpush2.msra.mxu0 0.0
    %5873 = vmatprep.subr.mxu0 0.0
    %5874 = vmatpush2.msra.mxu0 0.0
    %5875 = vmatprep.subr.mxu0 0.0
    %5876 = vmatpush2.msra.mxu0 0.0
    %5877 = vmatprep.subr.mxu0 0.0
    %5878 = vmatpush2.msra.mxu0 0.0
    %5879 = vmatprep.subr.mxu0 0.0
    %5880 = vmatpush2.msra.mxu0 0.0
    %5881 = vmatprep.subr.mxu0 0.0
    %5882 = vmatpush2.msra.mxu0 0.0
    %5883 = vmatprep.subr.mxu0 0.0
    %5884 = vmatpush2.msra.mxu0 0.0
    %5885 = vmatprep.subr.mxu0 0.0
    %5886 = vmatpush2.msra.mxu0 0.0
    %5887 = vmatprep.subr.mxu0 0.0
    %5888 = vmatpush2.msra.mxu0 0.0
    %5889 = vmatprep.subr.mxu0 0.0
    %5890 = vmatpush2.msra.mxu0 0.0
    %5891 = vmatprep.subr.mxu0 0.0
    %5892 = vmatpush2.msra.mxu0 0.0
    %5893 = vmatprep.subr.mxu0 0.0
    %5894 = vmatpush2.msra.mxu0 0.0
    %5895 = vmatprep.subr.mxu0 0.0
    %5896 = vmatpush2.msra.mxu0 0.0
    %5897 = vmatprep.subr.mxu0 0.0
    %5898 = vmatpush2.msra.mxu0 0.0
    %5899 = vmatprep.subr.mxu0 0.0
    %5900 = vmatpush2.msra.mxu0 0.0
    %5901 = vmatprep.mubr.f32.mxu0 0.0
    %5902 = vmatmul.mubr.f32.gmra.mxu0 %v5835
    %v5903 = vpop.f32.mrf.mxu0
    %v5904 = vadd.f32 0.0, %v5903
    %v5905 = vpop.f32.mrf.mxu0
    %5906 = vdwg.mxu0
    %v5908 = vrot.slane %v5904, 5
    %v5910 = vadd.f32 %v4595, %v5908
    %v5911 = vxor.u32 %v5910, 2147483648
    %v5912 = vmul.f32 %v5911, 1.442695
    %v5913 = vpow.pop %v5912
    %v5914 = vadd.f32 %v5913, 1.0
    %v5915 = vrcp.pop %v5914
    %v5916 = vmul.f32 1.0, %v5915
    %v5917 = vadd.f32 %v5904, %v4686
    %v5919 = vrot.slane %v5917, 5
    %5920 = vrot.lane.b32.xlu0 %v5919, 96
    %v5921 = vpop.permute.xlu0 %5920
    %v5923 = vmul.f32 %v5916, %v5921
    %5925 = vrot.lane.b32.xlu0 %v5923, 32
    %v5926 = vpop.permute.xlu0 %5925
    %v5928 = vadd.f32 %v4595, %v5926
    %v5929 = vtanh.pop %v5928
    %v5930 = vsub.f32 1.0, %v5916
    %5932 = vrot.lane.b32.xlu0 %v5929, 112
    %v5933 = vpop.permute.xlu0 %5932
    %v5935 = vmul.f32 %v5930, %v5933
    %v5936 = vrot.slane %v5826, 7
    %v5938 = vmul.f32 %v5916, %v5936
    %v5939 = vadd.f32 %v5935, %v5938
    %5941 = vrot.lane.b32.xlu0 %v5939, 112
    %v5942 = vpop.permute.xlu0 %5941
    %5944 = vst.msk [vmem:[#allocation2 + $0x8] sm:$0x8] %vm1258, %v5942
    %v5945 = vrot.slane %v5939, 3
    %5946 = vrot.lane.b32.xlu0 %v5945, 112
    %v5947 = vpop.permute.xlu0 %5946
    %v5948 = vsel %vm90, %v5947, 0
    %5950 = vmatprep.subr.mxu0 0.0
    %5951 = vmatpush1.msra.mxu0 0.0
    %5952 = vmatprep.subr.mxu0 0.0
    %5953 = vmatpush1.msra.mxu0 0.0
    %5954 = vmatprep.subr.mxu0 0.0
    %5955 = vmatpush1.msra.mxu0 0.0
    %5956 = vmatprep.subr.mxu0 0.0
    %5957 = vmatpush1.msra.mxu0 0.0
    %5958 = vmatprep.subr.mxu0 0.0
    %5959 = vmatpush1.msra.mxu0 0.0
    %5960 = vmatprep.subr.mxu0 0.0
    %5961 = vmatpush1.msra.mxu0 0.0
    %5962 = vmatprep.subr.mxu0 0.0
    %5963 = vmatpush1.msra.mxu0 0.0
    %5964 = vmatprep.subr.mxu0 0.0
    %5965 = vmatpush1.msra.mxu0 0.0
    %5966 = vmatprep.subr.mxu0 0.0
    %5967 = vmatpush1.msra.mxu0 0.0
    %5968 = vmatprep.subr.mxu0 0.0
    %5969 = vmatpush1.msra.mxu0 0.0
    %5970 = vmatprep.subr.mxu0 0.0
    %5971 = vmatpush1.msra.mxu0 0.0
    %5972 = vmatprep.subr.mxu0 0.0
    %5973 = vmatpush1.msra.mxu0 0.0
    %5974 = vmatprep.subr.mxu0 0.0
    %5975 = vmatpush1.msra.mxu0 0.0
    %5976 = vmatprep.subr.mxu0 0.0
    %5977 = vmatpush1.msra.mxu0 0.0
    %5978 = vmatprep.subr.mxu0 0.0
    %5979 = vmatpush1.msra.mxu0 %v4600
    %5980 = vmatprep.subr.mxu0 0.0
    %5981 = vmatpush1.msra.mxu0 %v4599
    %5982 = vmatprep.subr.mxu0 0.0
    %5983 = vmatpush2.msra.mxu0 0.0
    %5984 = vmatprep.subr.mxu0 0.0
    %5985 = vmatpush2.msra.mxu0 0.0
    %5986 = vmatprep.subr.mxu0 0.0
    %5987 = vmatpush2.msra.mxu0 0.0
    %5988 = vmatprep.subr.mxu0 0.0
    %5989 = vmatpush2.msra.mxu0 0.0
    %5990 = vmatprep.subr.mxu0 0.0
    %5991 = vmatpush2.msra.mxu0 0.0
    %5992 = vmatprep.subr.mxu0 0.0
    %5993 = vmatpush2.msra.mxu0 0.0
    %5994 = vmatprep.subr.mxu0 0.0
    %5995 = vmatpush2.msra.mxu0 0.0
    %5996 = vmatprep.subr.mxu0 0.0
    %5997 = vmatpush2.msra.mxu0 0.0
    %5998 = vmatprep.subr.mxu0 0.0
    %5999 = vmatpush2.msra.mxu0 0.0
    %6000 = vmatprep.subr.mxu0 0.0
    %6001 = vmatpush2.msra.mxu0 0.0
    %6002 = vmatprep.subr.mxu0 0.0
    %6003 = vmatpush2.msra.mxu0 0.0
    %6004 = vmatprep.subr.mxu0 0.0
    %6005 = vmatpush2.msra.mxu0 0.0
    %6006 = vmatprep.subr.mxu0 0.0
    %6007 = vmatpush2.msra.mxu0 0.0
    %6008 = vmatprep.subr.mxu0 0.0
    %6009 = vmatpush2.msra.mxu0 0.0
    %6010 = vmatprep.subr.mxu0 0.0
    %6011 = vmatpush2.msra.mxu0 0.0
    %6012 = vmatprep.subr.mxu0 0.0
    %6013 = vmatpush2.msra.mxu0 0.0
    %6014 = vmatprep.mubr.f32.mxu0 0.0
    %6015 = vmatmul.mubr.f32.gmra.mxu0 %v5948
    %v6016 = vpop.f32.mrf.mxu0
    %v6017 = vadd.f32 0.0, %v6016
    %v6018 = vpop.f32.mrf.mxu0
    %6019 = vdwg.mxu0
    %v6021 = vrot.slane %v6017, 4
    %v6023 = vadd.f32 %v4595, %v6021
    %v6024 = vxor.u32 %v6023, 2147483648
    %v6025 = vmul.f32 %v6024, 1.442695
    %v6026 = vpow.pop %v6025
    %v6027 = vadd.f32 %v6026, 1.0
    %v6028 = vrcp.pop %v6027
    %v6029 = vmul.f32 1.0, %v6028
    %v6030 = vadd.f32 %v6017, %v4686
    %v6032 = vrot.slane %v6030, 4
    %6033 = vrot.lane.b32.xlu0 %v6032, 96
    %v6034 = vpop.permute.xlu0 %6033
    %v6036 = vmul.f32 %v6029, %v6034
    %6038 = vrot.lane.b32.xlu0 %v6036, 32
    %v6039 = vpop.permute.xlu0 %6038
    %v6041 = vadd.f32 %v4595, %v6039
    %v6042 = vtanh.pop %v6041
    %v6043 = vsub.f32 1.0, %v6029
    %6045 = vrot.lane.b32.xlu0 %v6042, 112
    %v6046 = vpop.permute.xlu0 %6045
    %v6048 = vmul.f32 %v6043, %v6046
    %v6049 = vrot.slane %v5939, 7
    %v6051 = vmul.f32 %v6029, %v6049
    %v6052 = vadd.f32 %v6048, %v6051
    %6054 = vrot.lane.b32.xlu0 %v6052, 112
    %v6055 = vpop.permute.xlu0 %6054
    %6057 = vst.msk [vmem:[#allocation2 + $0x8] sm:$0x10] %vm1372, %v6055
    %v6058 = vrot.slane %v6052, 4
    %6059 = vrot.lane.b32.xlu0 %v6058, 112
    %v6060 = vpop.permute.xlu0 %6059
    %v6061 = vsel %vm90, %v6060, 0
    %6063 = vmatprep.subr.mxu0 0.0
    %6064 = vmatpush1.msra.mxu0 0.0
    %6065 = vmatprep.subr.mxu0 0.0
    %6066 = vmatpush1.msra.mxu0 0.0
    %6067 = vmatprep.subr.mxu0 0.0
    %6068 = vmatpush1.msra.mxu0 0.0
    %6069 = vmatprep.subr.mxu0 0.0
    %6070 = vmatpush1.msra.mxu0 0.0
    %6071 = vmatprep.subr.mxu0 0.0
    %6072 = vmatpush1.msra.mxu0 0.0
    %6073 = vmatprep.subr.mxu0 0.0
    %6074 = vmatpush1.msra.mxu0 0.0
    %6075 = vmatprep.subr.mxu0 0.0
    %6076 = vmatpush1.msra.mxu0 0.0
    %6077 = vmatprep.subr.mxu0 0.0
    %6078 = vmatpush1.msra.mxu0 0.0
    %6079 = vmatprep.subr.mxu0 0.0
    %6080 = vmatpush1.msra.mxu0 0.0
    %6081 = vmatprep.subr.mxu0 0.0
    %6082 = vmatpush1.msra.mxu0 0.0
    %6083 = vmatprep.subr.mxu0 0.0
    %6084 = vmatpush1.msra.mxu0 0.0
    %6085 = vmatprep.subr.mxu0 0.0
    %6086 = vmatpush1.msra.mxu0 0.0
    %6087 = vmatprep.subr.mxu0 0.0
    %6088 = vmatpush1.msra.mxu0 0.0
    %6089 = vmatprep.subr.mxu0 0.0
    %6090 = vmatpush1.msra.mxu0 0.0
    %6091 = vmatprep.subr.mxu0 0.0
    %6092 = vmatpush1.msra.mxu0 %v4600
    %6093 = vmatprep.subr.mxu0 0.0
    %6094 = vmatpush1.msra.mxu0 %v4599
    %6095 = vmatprep.subr.mxu0 0.0
    %6096 = vmatpush2.msra.mxu0 0.0
    %6097 = vmatprep.subr.mxu0 0.0
    %6098 = vmatpush2.msra.mxu0 0.0
    %6099 = vmatprep.subr.mxu0 0.0
    %6100 = vmatpush2.msra.mxu0 0.0
    %6101 = vmatprep.subr.mxu0 0.0
    %6102 = vmatpush2.msra.mxu0 0.0
    %6103 = vmatprep.subr.mxu0 0.0
    %6104 = vmatpush2.msra.mxu0 0.0
    %6105 = vmatprep.subr.mxu0 0.0
    %6106 = vmatpush2.msra.mxu0 0.0
    %6107 = vmatprep.subr.mxu0 0.0
    %6108 = vmatpush2.msra.mxu0 0.0
    %6109 = vmatprep.subr.mxu0 0.0
    %6110 = vmatpush2.msra.mxu0 0.0
    %6111 = vmatprep.subr.mxu0 0.0
    %6112 = vmatpush2.msra.mxu0 0.0
    %6113 = vmatprep.subr.mxu0 0.0
    %6114 = vmatpush2.msra.mxu0 0.0
    %6115 = vmatprep.subr.mxu0 0.0
    %6116 = vmatpush2.msra.mxu0 0.0
    %6117 = vmatprep.subr.mxu0 0.0
    %6118 = vmatpush2.msra.mxu0 0.0
    %6119 = vmatprep.subr.mxu0 0.0
    %6120 = vmatpush2.msra.mxu0 0.0
    %6121 = vmatprep.subr.mxu0 0.0
    %6122 = vmatpush2.msra.mxu0 0.0
    %6123 = vmatprep.subr.mxu0 0.0
    %6124 = vmatpush2.msra.mxu0 0.0
    %6125 = vmatprep.subr.mxu0 0.0
    %6126 = vmatpush2.msra.mxu0 0.0
    %6127 = vmatprep.mubr.f32.mxu0 0.0
    %6128 = vmatmul.mubr.f32.gmra.mxu0 %v6061
    %v6129 = vpop.f32.mrf.mxu0
    %v6130 = vadd.f32 0.0, %v6129
    %v6131 = vpop.f32.mrf.mxu0
    %6132 = vdwg.mxu0
    %v6134 = vrot.slane %v6130, 3
    %v6136 = vadd.f32 %v4595, %v6134
    %v6137 = vxor.u32 %v6136, 2147483648
    %v6138 = vmul.f32 %v6137, 1.442695
    %v6139 = vpow.pop %v6138
    %v6140 = vadd.f32 %v6139, 1.0
    %v6141 = vrcp.pop %v6140
    %v6142 = vmul.f32 1.0, %v6141
    %v6143 = vadd.f32 %v6130, %v4686
    %v6145 = vrot.slane %v6143, 3
    %6146 = vrot.lane.b32.xlu0 %v6145, 96
    %v6147 = vpop.permute.xlu0 %6146
    %v6149 = vmul.f32 %v6142, %v6147
    %6151 = vrot.lane.b32.xlu0 %v6149, 32
    %v6152 = vpop.permute.xlu0 %6151
    %v6154 = vadd.f32 %v4595, %v6152
    %v6155 = vtanh.pop %v6154
    %v6156 = vsub.f32 1.0, %v6142
    %6158 = vrot.lane.b32.xlu0 %v6155, 112
    %v6159 = vpop.permute.xlu0 %6158
    %v6161 = vmul.f32 %v6156, %v6159
    %v6162 = vrot.slane %v6052, 7
    %v6164 = vmul.f32 %v6142, %v6162
    %v6165 = vadd.f32 %v6161, %v6164
    %6167 = vrot.lane.b32.xlu0 %v6165, 112
    %v6168 = vpop.permute.xlu0 %6167
    %6170 = vst.msk [vmem:[#allocation2 + $0x8] sm:$0x20] %vm1486, %v6168
    %v6171 = vrot.slane %v6165, 5
    %6172 = vrot.lane.b32.xlu0 %v6171, 112
    %v6173 = vpop.permute.xlu0 %6172
    %v6174 = vsel %vm90, %v6173, 0
    %6176 = vmatprep.subr.mxu0 0.0
    %6177 = vmatpush1.msra.mxu0 0.0
    %6178 = vmatprep.subr.mxu0 0.0
    %6179 = vmatpush1.msra.mxu0 0.0
    %6180 = vmatprep.subr.mxu0 0.0
    %6181 = vmatpush1.msra.mxu0 0.0
    %6182 = vmatprep.subr.mxu0 0.0
    %6183 = vmatpush1.msra.mxu0 0.0
    %6184 = vmatprep.subr.mxu0 0.0
    %6185 = vmatpush1.msra.mxu0 0.0
    %6186 = vmatprep.subr.mxu0 0.0
    %6187 = vmatpush1.msra.mxu0 0.0
    %6188 = vmatprep.subr.mxu0 0.0
    %6189 = vmatpush1.msra.mxu0 0.0
    %6190 = vmatprep.subr.mxu0 0.0
    %6191 = vmatpush1.msra.mxu0 0.0
    %6192 = vmatprep.subr.mxu0 0.0
    %6193 = vmatpush1.msra.mxu0 0.0
    %6194 = vmatprep.subr.mxu0 0.0
    %6195 = vmatpush1.msra.mxu0 0.0
    %6196 = vmatprep.subr.mxu0 0.0
    %6197 = vmatpush1.msra.mxu0 0.0
    %6198 = vmatprep.subr.mxu0 0.0
    %6199 = vmatpush1.msra.mxu0 0.0
    %6200 = vmatprep.subr.mxu0 0.0
    %6201 = vmatpush1.msra.mxu0 0.0
    %6202 = vmatprep.subr.mxu0 0.0
    %6203 = vmatpush1.msra.mxu0 0.0
    %6204 = vmatprep.subr.mxu0 0.0
    %6205 = vmatpush1.msra.mxu0 %v4600
    %6206 = vmatprep.subr.mxu0 0.0
    %6207 = vmatpush1.msra.mxu0 %v4599
    %6208 = vmatprep.subr.mxu0 0.0
    %6209 = vmatpush2.msra.mxu0 0.0
    %6210 = vmatprep.subr.mxu0 0.0
    %6211 = vmatpush2.msra.mxu0 0.0
    %6212 = vmatprep.subr.mxu0 0.0
    %6213 = vmatpush2.msra.mxu0 0.0
    %6214 = vmatprep.subr.mxu0 0.0
    %6215 = vmatpush2.msra.mxu0 0.0
    %6216 = vmatprep.subr.mxu0 0.0
    %6217 = vmatpush2.msra.mxu0 0.0
    %6218 = vmatprep.subr.mxu0 0.0
    %6219 = vmatpush2.msra.mxu0 0.0
    %6220 = vmatprep.subr.mxu0 0.0
    %6221 = vmatpush2.msra.mxu0 0.0
    %6222 = vmatprep.subr.mxu0 0.0
    %6223 = vmatpush2.msra.mxu0 0.0
    %6224 = vmatprep.subr.mxu0 0.0
    %6225 = vmatpush2.msra.mxu0 0.0
    %6226 = vmatprep.subr.mxu0 0.0
    %6227 = vmatpush2.msra.mxu0 0.0
    %6228 = vmatprep.subr.mxu0 0.0
    %6229 = vmatpush2.msra.mxu0 0.0
    %6230 = vmatprep.subr.mxu0 0.0
    %6231 = vmatpush2.msra.mxu0 0.0
    %6232 = vmatprep.subr.mxu0 0.0
    %6233 = vmatpush2.msra.mxu0 0.0
    %6234 = vmatprep.subr.mxu0 0.0
    %6235 = vmatpush2.msra.mxu0 0.0
    %6236 = vmatprep.subr.mxu0 0.0
    %6237 = vmatpush2.msra.mxu0 0.0
    %6238 = vmatprep.subr.mxu0 0.0
    %6239 = vmatpush2.msra.mxu0 0.0
    %6240 = vmatprep.mubr.f32.mxu0 0.0
    %6241 = vmatmul.mubr.f32.gmra.mxu0 %v6174
    %v6242 = vpop.f32.mrf.mxu0
    %v6243 = vadd.f32 0.0, %v6242
    %v6244 = vpop.f32.mrf.mxu0
    %6245 = vdwg.mxu0
    %v6247 = vrot.slane %v6243, 2
    %v6249 = vadd.f32 %v4595, %v6247
    %v6250 = vxor.u32 %v6249, 2147483648
    %v6251 = vmul.f32 %v6250, 1.442695
    %v6252 = vpow.pop %v6251
    %v6253 = vadd.f32 %v6252, 1.0
    %v6254 = vrcp.pop %v6253
    %v6255 = vmul.f32 1.0, %v6254
    %v6256 = vadd.f32 %v6243, %v4686
    %v6258 = vrot.slane %v6256, 2
    %6259 = vrot.lane.b32.xlu0 %v6258, 96
    %v6260 = vpop.permute.xlu0 %6259
    %v6262 = vmul.f32 %v6255, %v6260
    %6264 = vrot.lane.b32.xlu0 %v6262, 32
    %v6265 = vpop.permute.xlu0 %6264
    %v6267 = vadd.f32 %v4595, %v6265
    %v6268 = vtanh.pop %v6267
    %v6269 = vsub.f32 1.0, %v6255
    %6271 = vrot.lane.b32.xlu0 %v6268, 112
    %v6272 = vpop.permute.xlu0 %6271
    %v6274 = vmul.f32 %v6269, %v6272
    %v6275 = vrot.slane %v6165, 7
    %v6277 = vmul.f32 %v6255, %v6275
    %v6278 = vadd.f32 %v6274, %v6277
    %6280 = vrot.lane.b32.xlu0 %v6278, 112
    %v6281 = vpop.permute.xlu0 %6280
    %6283 = vst.msk [vmem:[#allocation2 + $0x8] sm:$0x40] %vm1600, %v6281
    %v6284 = vrot.slane %v6278, 6
    %6285 = vrot.lane.b32.xlu0 %v6284, 112
    %v6286 = vpop.permute.xlu0 %6285
    %v6287 = vsel %vm90, %v6286, 0
    %6289 = vmatprep.subr.mxu0 0.0
    %6290 = vmatpush1.msra.mxu0 0.0
    %6291 = vmatprep.subr.mxu0 0.0
    %6292 = vmatpush1.msra.mxu0 0.0
    %6293 = vmatprep.subr.mxu0 0.0
    %6294 = vmatpush1.msra.mxu0 0.0
    %6295 = vmatprep.subr.mxu0 0.0
    %6296 = vmatpush1.msra.mxu0 0.0
    %6297 = vmatprep.subr.mxu0 0.0
    %6298 = vmatpush1.msra.mxu0 0.0
    %6299 = vmatprep.subr.mxu0 0.0
    %6300 = vmatpush1.msra.mxu0 0.0
    %6301 = vmatprep.subr.mxu0 0.0
    %6302 = vmatpush1.msra.mxu0 0.0
    %6303 = vmatprep.subr.mxu0 0.0
    %6304 = vmatpush1.msra.mxu0 0.0
    %6305 = vmatprep.subr.mxu0 0.0
    %6306 = vmatpush1.msra.mxu0 0.0
    %6307 = vmatprep.subr.mxu0 0.0
    %6308 = vmatpush1.msra.mxu0 0.0
    %6309 = vmatprep.subr.mxu0 0.0
    %6310 = vmatpush1.msra.mxu0 0.0
    %6311 = vmatprep.subr.mxu0 0.0
    %6312 = vmatpush1.msra.mxu0 0.0
    %6313 = vmatprep.subr.mxu0 0.0
    %6314 = vmatpush1.msra.mxu0 0.0
    %6315 = vmatprep.subr.mxu0 0.0
    %6316 = vmatpush1.msra.mxu0 0.0
    %6317 = vmatprep.subr.mxu0 0.0
    %6318 = vmatpush1.msra.mxu0 %v4600
    %6319 = vmatprep.subr.mxu0 0.0
    %6320 = vmatpush1.msra.mxu0 %v4599
    %6321 = vmatprep.subr.mxu0 0.0
    %6322 = vmatpush2.msra.mxu0 0.0
    %6323 = vmatprep.subr.mxu0 0.0
    %6324 = vmatpush2.msra.mxu0 0.0
    %6325 = vmatprep.subr.mxu0 0.0
    %6326 = vmatpush2.msra.mxu0 0.0
    %6327 = vmatprep.subr.mxu0 0.0
    %6328 = vmatpush2.msra.mxu0 0.0
    %6329 = vmatprep.subr.mxu0 0.0
    %6330 = vmatpush2.msra.mxu0 0.0
    %6331 = vmatprep.subr.mxu0 0.0
    %6332 = vmatpush2.msra.mxu0 0.0
    %6333 = vmatprep.subr.mxu0 0.0
    %6334 = vmatpush2.msra.mxu0 0.0
    %6335 = vmatprep.subr.mxu0 0.0
    %6336 = vmatpush2.msra.mxu0 0.0
    %6337 = vmatprep.subr.mxu0 0.0
    %6338 = vmatpush2.msra.mxu0 0.0
    %6339 = vmatprep.subr.mxu0 0.0
    %6340 = vmatpush2.msra.mxu0 0.0
    %6341 = vmatprep.subr.mxu0 0.0
    %6342 = vmatpush2.msra.mxu0 0.0
    %6343 = vmatprep.subr.mxu0 0.0
    %6344 = vmatpush2.msra.mxu0 0.0
    %6345 = vmatprep.subr.mxu0 0.0
    %6346 = vmatpush2.msra.mxu0 0.0
    %6347 = vmatprep.subr.mxu0 0.0
    %6348 = vmatpush2.msra.mxu0 0.0
    %6349 = vmatprep.subr.mxu0 0.0
    %6350 = vmatpush2.msra.mxu0 0.0
    %6351 = vmatprep.subr.mxu0 0.0
    %6352 = vmatpush2.msra.mxu0 0.0
    %6353 = vmatprep.mubr.f32.mxu0 0.0
    %6354 = vmatmul.mubr.f32.gmra.mxu0 %v6287
    %v6355 = vpop.f32.mrf.mxu0
    %v6356 = vadd.f32 0.0, %v6355
    %v6357 = vpop.f32.mrf.mxu0
    %6358 = vdwg.mxu0
    %v6360 = vrot.slane %v6356, 1
    %v6362 = vadd.f32 %v4595, %v6360
    %v6363 = vxor.u32 %v6362, 2147483648
    %v6364 = vmul.f32 %v6363, 1.442695
    %v6365 = vpow.pop %v6364
    %v6366 = vadd.f32 %v6365, 1.0
    %v6367 = vrcp.pop %v6366
    %v6368 = vmul.f32 1.0, %v6367
    %v6369 = vadd.f32 %v6356, %v4686
    %v6371 = vrot.slane %v6369, 1
    %6372 = vrot.lane.b32.xlu0 %v6371, 96
    %v6373 = vpop.permute.xlu0 %6372
    %v6375 = vmul.f32 %v6368, %v6373
    %6377 = vrot.lane.b32.xlu0 %v6375, 32
    %v6378 = vpop.permute.xlu0 %6377
    %v6380 = vadd.f32 %v4595, %v6378
    %v6381 = vtanh.pop %v6380
    %v6382 = vsub.f32 1.0, %v6368
    %6384 = vrot.lane.b32.xlu0 %v6381, 112
    %v6385 = vpop.permute.xlu0 %6384
    %v6387 = vmul.f32 %v6382, %v6385
    %v6388 = vrot.slane %v6278, 7
    %v6390 = vmul.f32 %v6368, %v6388
    %v6391 = vadd.f32 %v6387, %v6390
    %6393 = vrot.lane.b32.xlu0 %v6391, 112
    %v6394 = vpop.permute.xlu0 %6393
    %6396 = vst.msk [vmem:[#allocation2 + $0x8] sm:$0x80] %vm1714, %v6394
    %v6397 = vld [vmem:[#allocation2] sm:$0xff]
    %v6398 = vld [vmem:[#allocation2 + $0x8] sm:$0xff]
    %v6399 = vld [vmem:[%s14] sm:$0xff]
    %v6400 = vld [vmem:[%s14 + $0x8] sm:$0xff]
    %v6401 = vld [vmem:[%s15] sm:$0x1]
    %v6403 = vlaneseq
    %v6404 = vshrl.u32 %v6403, 7
    %v6405 = vsub.s32 0, %v6404
    %v6406 = vrot.slane %v6401, %v6405
    %v6409 = vsel %vm90, %v6397, 0
    %v6412 = vsel %vm90, %v6398, 0
    %6414 = vmatprep.subr.mxu0 0.0
    %6415 = vmatpush1.msra.mxu0 0.0
    %6416 = vmatprep.subr.mxu0 0.0
    %6417 = vmatpush1.msra.mxu0 0.0
    %6418 = vmatprep.subr.mxu0 0.0
    %6419 = vmatpush1.msra.mxu0 0.0
    %6420 = vmatprep.subr.mxu0 0.0
    %6421 = vmatpush1.msra.mxu0 0.0
    %6422 = vmatprep.subr.mxu0 0.0
    %6423 = vmatpush1.msra.mxu0 0.0
    %6424 = vmatprep.subr.mxu0 0.0
    %6425 = vmatpush1.msra.mxu0 0.0
    %6426 = vmatprep.subr.mxu0 0.0
    %6427 = vmatpush1.msra.mxu0 0.0
    %6428 = vmatprep.subr.mxu0 0.0
    %6429 = vmatpush1.msra.mxu0 0.0
    %6430 = vmatprep.subr.mxu0 0.0
    %6431 = vmatpush1.msra.mxu0 0.0
    %6432 = vmatprep.subr.mxu0 0.0
    %6433 = vmatpush1.msra.mxu0 0.0
    %6434 = vmatprep.subr.mxu0 0.0
    %6435 = vmatpush1.msra.mxu0 0.0
    %6436 = vmatprep.subr.mxu0 0.0
    %6437 = vmatpush1.msra.mxu0 0.0
    %6438 = vmatprep.subr.mxu0 0.0
    %6439 = vmatpush1.msra.mxu0 0.0
    %6440 = vmatprep.subr.mxu0 0.0
    %6441 = vmatpush1.msra.mxu0 0.0
    %6442 = vmatprep.subr.mxu0 0.0
    %6443 = vmatpush1.msra.mxu0 %v6400
    %6444 = vmatprep.subr.mxu0 0.0
    %6445 = vmatpush1.msra.mxu0 %v6399
    %6446 = vmatprep.subr.mxu0 0.0
    %6447 = vmatpush2.msra.mxu0 0.0
    %6448 = vmatprep.subr.mxu0 0.0
    %6449 = vmatpush2.msra.mxu0 0.0
    %6450 = vmatprep.subr.mxu0 0.0
    %6451 = vmatpush2.msra.mxu0 0.0
    %6452 = vmatprep.subr.mxu0 0.0
    %6453 = vmatpush2.msra.mxu0 0.0
    %6454 = vmatprep.subr.mxu0 0.0
    %6455 = vmatpush2.msra.mxu0 0.0
    %6456 = vmatprep.subr.mxu0 0.0
    %6457 = vmatpush2.msra.mxu0 0.0
    %6458 = vmatprep.subr.mxu0 0.0
    %6459 = vmatpush2.msra.mxu0 0.0
    %6460 = vmatprep.subr.mxu0 0.0
    %6461 = vmatpush2.msra.mxu0 0.0
    %6462 = vmatprep.subr.mxu0 0.0
    %6463 = vmatpush2.msra.mxu0 0.0
    %6464 = vmatprep.subr.mxu0 0.0
    %6465 = vmatpush2.msra.mxu0 0.0
    %6466 = vmatprep.subr.mxu0 0.0
    %6467 = vmatpush2.msra.mxu0 0.0
    %6468 = vmatprep.subr.mxu0 0.0
    %6469 = vmatpush2.msra.mxu0 0.0
    %6470 = vmatprep.subr.mxu0 0.0
    %6471 = vmatpush2.msra.mxu0 0.0
    %6472 = vmatprep.subr.mxu0 0.0
    %6473 = vmatpush2.msra.mxu0 0.0
    %6474 = vmatprep.subr.mxu0 0.0
    %6475 = vmatpush2.msra.mxu0 0.0
    %6476 = vmatprep.subr.mxu0 0.0
    %6477 = vmatpush2.msra.mxu0 0.0
    %6478 = vmatprep.mubr.f32.mxu0 0.0
    %6479 = vmatmul.mubr.f32.gmra.mxu0 %v6409
    %v6480 = vpop.f32.mrf.mxu0
    %v6481 = vadd.f32 %v6406, %v6480
    %v6482 = vpop.f32.mrf.mxu0
    %6483 = vmatprep.mubr.f32.mxu0 0.0
    %6484 = vmatmul.mubr.f32.gmra.mxu0 %v6412
    %v6485 = vpop.f32.mrf.mxu0
    %v6486 = vadd.f32 %v6406, %v6485
    %v6487 = vpop.f32.mrf.mxu0
    %6488 = vdwg.mxu0
    %v6489 = vld [vmem:[%s16] sm:$0xff]
    %v6490 = vld [vmem:[%s16 + $0x8] sm:$0xff]
    %v6491 = vld [vmem:[%s17] sm:$0x1]
    %v6493 = vlaneseq
    %v6494 = vshrl.u32 %v6493, 7
    %v6495 = vsub.s32 0, %v6494
    %v6496 = vrot.slane %v6491, %v6495
    %v6499 = vsel %vm90, %v6481, 0
    %v6502 = vsel %vm90, %v6486, 0
    %6504 = vmatprep.subr.mxu0 0.0
    %6505 = vmatpush1.msra.mxu0 0.0
    %6506 = vmatprep.subr.mxu0 0.0
    %6507 = vmatpush1.msra.mxu0 0.0
    %6508 = vmatprep.subr.mxu0 0.0
    %6509 = vmatpush1.msra.mxu0 0.0
    %6510 = vmatprep.subr.mxu0 0.0
    %6511 = vmatpush1.msra.mxu0 0.0
    %6512 = vmatprep.subr.mxu0 0.0
    %6513 = vmatpush1.msra.mxu0 0.0
    %6514 = vmatprep.subr.mxu0 0.0
    %6515 = vmatpush1.msra.mxu0 0.0
    %6516 = vmatprep.subr.mxu0 0.0
    %6517 = vmatpush1.msra.mxu0 0.0
    %6518 = vmatprep.subr.mxu0 0.0
    %6519 = vmatpush1.msra.mxu0 0.0
    %6520 = vmatprep.subr.mxu0 0.0
    %6521 = vmatpush1.msra.mxu0 0.0
    %6522 = vmatprep.subr.mxu0 0.0
    %6523 = vmatpush1.msra.mxu0 0.0
    %6524 = vmatprep.subr.mxu0 0.0
    %6525 = vmatpush1.msra.mxu0 0.0
    %6526 = vmatprep.subr.mxu0 0.0
    %6527 = vmatpush1.msra.mxu0 0.0
    %6528 = vmatprep.subr.mxu0 0.0
    %6529 = vmatpush1.msra.mxu0 0.0
    %6530 = vmatprep.subr.mxu0 0.0
    %6531 = vmatpush1.msra.mxu0 0.0
    %6532 = vmatprep.subr.mxu0 0.0
    %6533 = vmatpush1.msra.mxu0 %v6490
    %6534 = vmatprep.subr.mxu0 0.0
    %6535 = vmatpush1.msra.mxu0 %v6489
    %6536 = vmatprep.subr.mxu0 0.0
    %6537 = vmatpush2.msra.mxu0 0.0
    %6538 = vmatprep.subr.mxu0 0.0
    %6539 = vmatpush2.msra.mxu0 0.0
    %6540 = vmatprep.subr.mxu0 0.0
    %6541 = vmatpush2.msra.mxu0 0.0
    %6542 = vmatprep.subr.mxu0 0.0
    %6543 = vmatpush2.msra.mxu0 0.0
    %6544 = vmatprep.subr.mxu0 0.0
    %6545 = vmatpush2.msra.mxu0 0.0
    %6546 = vmatprep.subr.mxu0 0.0
    %6547 = vmatpush2.msra.mxu0 0.0
    %6548 = vmatprep.subr.mxu0 0.0
    %6549 = vmatpush2.msra.mxu0 0.0
    %6550 = vmatprep.subr.mxu0 0.0
    %6551 = vmatpush2.msra.mxu0 0.0
    %6552 = vmatprep.subr.mxu0 0.0
    %6553 = vmatpush2.msra.mxu0 0.0
    %6554 = vmatprep.subr.mxu0 0.0
    %6555 = vmatpush2.msra.mxu0 0.0
    %6556 = vmatprep.subr.mxu0 0.0
    %6557 = vmatpush2.msra.mxu0 0.0
    %6558 = vmatprep.subr.mxu0 0.0
    %6559 = vmatpush2.msra.mxu0 0.0
    %6560 = vmatprep.subr.mxu0 0.0
    %6561 = vmatpush2.msra.mxu0 0.0
    %6562 = vmatprep.subr.mxu0 0.0
    %6563 = vmatpush2.msra.mxu0 0.0
    %6564 = vmatprep.subr.mxu0 0.0
    %6565 = vmatpush2.msra.mxu0 0.0
    %6566 = vmatprep.subr.mxu0 0.0
    %6567 = vmatpush2.msra.mxu0 0.0
    %6568 = vmatprep.mubr.f32.mxu0 0.0
    %6569 = vmatmul.mubr.f32.gmra.mxu0 %v6499
    %v6570 = vpop.f32.mrf.mxu0
    %v6571 = vadd.f32 %v6496, %v6570
    %v6572 = vpop.f32.mrf.mxu0
    %6573 = vmatprep.mubr.f32.mxu0 0.0
    %6574 = vmatmul.mubr.f32.gmra.mxu0 %v6502
    %v6575 = vpop.f32.mrf.mxu0
    %v6576 = vadd.f32 %v6496, %v6575
    %v6577 = vpop.f32.mrf.mxu0
    %6578 = vdwg.mxu0
    %v6579 = vmax.f32 %v6571, 0.0
    %v6580 = vmax.f32 %v6576, 0.0
    %v6581 = vadd.f32 %v6579, %v6580
    %v6582 = vrot.slane %v6581, 4
    %v6583 = vadd.f32 %v6581, %v6582
    %v6584 = vrot.slane %v6583, 2
    %v6585 = vadd.f32 %v6583, %v6584
    %v6586 = vrot.slane %v6585, 1
    %v6587 = vadd.f32 %v6585, %v6586
    %v6588 = vrcp.pop 16.0
    %v6589 = vmul.f32 %v6587, %v6588
    %v6590 = vsub.f32 %v6579, %v6589
    %v6591 = vsub.f32 %v6580, %v6589
    %v6592 = vmul.f32 %v6590, %v6590
    %v6593 = vmul.f32 %v6591, %v6591
    %v6594 = vadd.f32 %v6592, %v6593
    %v6595 = vrot.slane %v6594, 4
    %v6596 = vadd.f32 %v6594, %v6595
    %v6597 = vrot.slane %v6596, 2
    %v6598 = vadd.f32 %v6596, %v6597
    %v6599 = vrot.slane %v6598, 1
    %v6600 = vadd.f32 %v6598, %v6599
    %v6601 = vmul.f32 %v6600, %v6588
    %v6602 = vadd.f32 %v6601, 1e-05
    %v6603 = vrsqrt.pop %v6602
    %v6604 = vmul.f32 %v6590, %v6603
    %v6605 = vmul.f32 %v6591, %v6603
    %v6606 = vld [vmem:[%s18] sm:$0x1]
    %v6608 = vlaneseq
    %v6609 = vshrl.u32 %v6608, 7
    %v6610 = vsub.s32 0, %v6609
    %v6611 = vrot.slane %v6606, %v6610
    %v6613 = vmul.f32 %v6604, %v6611
    %v6614 = vmul.f32 %v6605, %v6611
    %v6615 = vld [vmem:[%s19] sm:$0x1]
    %v6617 = vlaneseq
    %v6618 = vshrl.u32 %v6617, 7
    %v6619 = vsub.s32 0, %v6618
    %v6620 = vrot.slane %v6615, %v6619
    %v6622 = vadd.f32 %v6613, %v6620
    %v6623 = vadd.f32 %v6614, %v6620
    %v6624 = vld [vmem:[%s20] sm:$0xff]
    %v6625 = vld [vmem:[%s20 + $0x8] sm:$0xff]
    %v6626 = vld [vmem:[%s20 + $0x10] sm:$0xff]
    %v6627 = vld [vmem:[%s20 + $0x18] sm:$0xff]
    %v6628 = vld [vmem:[%s20 + $0x20] sm:$0xff]
    %v6629 = vld [vmem:[%s20 + $0x28] sm:$0xff]
    %v6630 = vld [vmem:[%s20 + $0x30] sm:$0xff]
    %v6631 = vld [vmem:[%s20 + $0x38] sm:$0xff]
    %v6632 = vld [vmem:[%s20 + $0x40] sm:$0xff]
    %v6633 = vld [vmem:[%s20 + $0x48] sm:$0xff]
    %v6634 = vld [vmem:[%s20 + $0x50] sm:$0xff]
    %v6635 = vld [vmem:[%s20 + $0x58] sm:$0xff]
    %v6636 = vld [vmem:[%s20 + $0x60] sm:$0xff]
    %v6637 = vld [vmem:[%s20 + $0x68] sm:$0xff]
    %v6638 = vld [vmem:[%s20 + $0x70] sm:$0xff]
    %v6639 = vld [vmem:[%s20 + $0x78] sm:$0xff]
    %v6640 = vld [vmem:[%s21] sm:$0x1]
    %v6642 = vlaneseq
    %v6643 = vshrl.u32 %v6642, 7
    %v6644 = vsub.s32 0, %v6643
    %v6645 = vrot.slane %v6640, %v6644
    %6647 = vmatprep.subr.mxu0 0.0
    %6648 = vmatpush1.msra.mxu0 %v6639
    %6649 = vmatprep.subr.mxu0 0.0
    %6650 = vmatpush1.msra.mxu0 %v6638
    %6651 = vmatprep.subr.mxu0 0.0
    %6652 = vmatpush1.msra.mxu0 %v6637
    %6653 = vmatprep.subr.mxu0 0.0
    %6654 = vmatpush1.msra.mxu0 %v6636
    %6655 = vmatprep.subr.mxu0 0.0
    %6656 = vmatpush1.msra.mxu0 %v6635
    %6657 = vmatprep.subr.mxu0 0.0
    %6658 = vmatpush1.msra.mxu0 %v6634
    %6659 = vmatprep.subr.mxu0 0.0
    %6660 = vmatpush1.msra.mxu0 %v6633
    %6661 = vmatprep.subr.mxu0 0.0
    %6662 = vmatpush1.msra.mxu0 %v6632
    %6663 = vmatprep.subr.mxu0 0.0
    %6664 = vmatpush1.msra.mxu0 %v6631
    %6665 = vmatprep.subr.mxu0 0.0
    %6666 = vmatpush1.msra.mxu0 %v6630
    %6667 = vmatprep.subr.mxu0 0.0
    %6668 = vmatpush1.msra.mxu0 %v6629
    %6669 = vmatprep.subr.mxu0 0.0
    %6670 = vmatpush1.msra.mxu0 %v6628
    %6671 = vmatprep.subr.mxu0 0.0
    %6672 = vmatpush1.msra.mxu0 %v6627
    %6673 = vmatprep.subr.mxu0 0.0
    %6674 = vmatpush1.msra.mxu0 %v6626
    %6675 = vmatprep.subr.mxu0 0.0
    %6676 = vmatpush1.msra.mxu0 %v6625
    %6677 = vmatprep.subr.mxu0 0.0
    %6678 = vmatpush1.msra.mxu0 %v6624
    %6679 = vmatprep.subr.mxu0 0.0
    %6680 = vmatpush2.msra.mxu0 0.0
    %6681 = vmatprep.subr.mxu0 0.0
    %6682 = vmatpush2.msra.mxu0 0.0
    %6683 = vmatprep.subr.mxu0 0.0
    %6684 = vmatpush2.msra.mxu0 0.0
    %6685 = vmatprep.subr.mxu0 0.0
    %6686 = vmatpush2.msra.mxu0 0.0
    %6687 = vmatprep.subr.mxu0 0.0
    %6688 = vmatpush2.msra.mxu0 0.0
    %6689 = vmatprep.subr.mxu0 0.0
    %6690 = vmatpush2.msra.mxu0 0.0
    %6691 = vmatprep.subr.mxu0 0.0
    %6692 = vmatpush2.msra.mxu0 0.0
    %6693 = vmatprep.subr.mxu0 0.0
    %6694 = vmatpush2.msra.mxu0 0.0
    %6695 = vmatprep.subr.mxu0 0.0
    %6696 = vmatpush2.msra.mxu0 0.0
    %6697 = vmatprep.subr.mxu0 0.0
    %6698 = vmatpush2.msra.mxu0 0.0
    %6699 = vmatprep.subr.mxu0 0.0
    %6700 = vmatpush2.msra.mxu0 0.0
    %6701 = vmatprep.subr.mxu0 0.0
    %6702 = vmatpush2.msra.mxu0 0.0
    %6703 = vmatprep.subr.mxu0 0.0
    %6704 = vmatpush2.msra.mxu0 0.0
    %6705 = vmatprep.subr.mxu0 0.0
    %6706 = vmatpush2.msra.mxu0 0.0
    %6707 = vmatprep.subr.mxu0 0.0
    %6708 = vmatpush2.msra.mxu0 0.0
    %6709 = vmatprep.subr.mxu0 0.0
    %6710 = vmatpush2.msra.mxu0 0.0
    %6711 = vmatprep.mubr.f32.mxu0 0.0
    %6712 = vmatmul.mubr.f32.gmra.mxu0 %v6622
    %v6713 = vpop.f32.mrf.mxu0
    %v6714 = vadd.f32 %v6645, %v6713
    %v6715 = vpop.f32.mrf.mxu0
    %6716 = vmatprep.mubr.f32.mxu0 0.0
    %6717 = vmatmul.mubr.f32.gmra.mxu0 %v6623
    %v6718 = vpop.f32.mrf.mxu0
    %v6719 = vadd.f32 %v6645, %v6718
    %v6720 = vpop.f32.mrf.mxu0
    %6721 = vdwg.mxu0
    %6722 = vmax.xlane.f32.xlu0 %v6714
    %v6723 = vpop.xlane.xlu0 %6722
    %6724 = vmax.xlane.f32.xlu0 %v6719
    %v6725 = vpop.xlane.xlu0 %6724
    %v6726 = vsub.f32 %v6714, %v6723
    %v6727 = vsub.f32 %v6719, %v6725
    %v6728 = vmul.f32 %v6726, 1.442695
    %v6729 = vpow.pop %v6728
    %v6730 = vmul.f32 %v6727, 1.442695
    %v6731 = vpow.pop %v6730
    %6732 = vadd.xlane.f32.xlu0 %v6729
    %v6733 = vpop.xlane.xlu0 %6732
    %6734 = vadd.xlane.f32.xlu0 %v6731
    %v6735 = vpop.xlane.xlu0 %6734
    %v6736 = vrcp.pop %v6733
    %v6737 = vrcp.pop %v6735
    %v6738 = vmul.f32 %v6729, %v6736
    %v6739 = vmul.f32 %v6731, %v6737
    %6740 = vst [vmem:[%s22] sm:$0xff] %v6738
    %6741 = vst [vmem:[%s22 + $0x8] sm:$0xff] %v6739
    // Predicated region
    $region94: #{we_stgcn_forward.1} parent=1 // pred_check
      _
    $region95: #{we_stgcn_forward.1} parent=1 // pred_check_branch
      %6743 = sbr.rel (0) target = $region97
    $region96: #{we_stgcn_forward.1} parent=1 // pred_region
      _
    $region97: #{we_stgcn_forward.1} parent=1 // pred_fallthru
      _
    // Predicated region
    $region98: #{we_stgcn_forward.1} parent=1 // pred_check
      _
    $region99: #{we_stgcn_forward.1} parent=1 // pred_check_branch
      %6745 = sbr.rel (0) target = $region101
    $region100: #{we_stgcn_forward.1} parent=1 // pred_region
      _
    $region101: #{we_stgcn_forward.1} parent=1 // pred_fallthru
      _
    %6746 = vsyncpa [#allocation4], 1

</llo_original>
